<compile_context>
chip_gen: v7x
topology: tpu7x:2x2x1
jax: 0.10.0
libtpu: 0.0.40
codegen_flags: <defaults>
</compile_context>

<pallas_src>
import jax
import jax.numpy as jnp
import numpy as np
from jax import lax
from jax.experimental import pallas as pl
from jax.experimental.pallas import tpu as pltpu

IN_FEAT = 39          # MFCC feature count (GRU input size)
HIDDEN = 69           # num_features in the torch module
NUM_LAYERS = 2
NUM_CLASSES = 12

HPAD = 128            # hidden padded to one lane tile
INP = 48              # input features padded only to a clean bf16 sublane multiple (was 128)
GP = 3 * HPAD         # 384 = padded gate width (r,z,n each own a 128-lane tile)


# ----------------------------------------------------------------------------------
# Pallas kernel
# ----------------------------------------------------------------------------------
def _network_kernel(
    x_ref,                      # (T*Bp, 48) bf16, features zero-padded
    w0_ih, b0_ih,               # (48, 768) bf16, (1, 768) f32   layer0 fwd|bwd concatenated
    w0f_hh, b0f_hh,             # (128, 384) bf16, (1, 384) f32
    w0b_hh, b0b_hh,             # (128, 384) bf16, (1, 384) f32
    w1f_ih, b1f_ih,             # (256, 384) bf16, (1, 384) f32
    w1f_hh, b1f_hh,             # (128, 384) bf16, (1, 384) f32
    w1b_ih, b1b_ih,             # (256, 384) bf16, (1, 384) f32
    w1b_hh, b1b_hh,             # (128, 384) bf16, (1, 384) f32
    wfc, bfc,                   # (256, 12) f32, (1, 12) f32
    out_ref,                    # (Bp, 12) f32
    gi0_ref,                    # (T*Bp, 768) f32 scratch: layer0 gi fwd|bwd, later reused
                                #   (cols 0:384) for the layer-1 forward gi
    seq0_ref,                   # (T*Bp, 256) f32 scratch: layer0 outputs, fwd | bwd
):
    Bp = out_ref.shape[0]
    T = x_ref.shape[0] // Bp
    H = HPAD
    unroll = True if T <= 32 else 8

    # Timestep-chunk for the hoisted projections: bounds the per-chunk matmul temporary
    # (v7x VMEM hygiene) while still feeding the MXU large LHS blocks.
    ct = 1
    for cand in range(min(T, max(1, 1024 // Bp)), 0, -1):
        if T % cand == 0:
            ct = cand
            break
    n_chunks = T // ct
    rows = ct * Bp

    def cell(gi, h, whh, bhh):
        # PyTorch GRUCell, gate order r, z, n (gates lane-tile aligned at 0/128/256).
        # bf16 operands into the MXU, f32 accumulation + f32 hidden state.
        gh = jnp.dot(h.astype(jnp.bfloat16), whh,
                     preferred_element_type=jnp.float32) + bhh
        r = jax.nn.sigmoid(gi[:, 0:H] + gh[:, 0:H])
        z = jax.nn.sigmoid(gi[:, H:2 * H] + gh[:, H:2 * H])
        n = jnp.tanh(gi[:, 2 * H:3 * H] + r * gh[:, 2 * H:3 * H])
        return (1.0 - z) * n + z * h

    zeros_h = jnp.zeros((Bp, H), jnp.float32)

    # ---- hoisted layer-0 input projection (both directions), chunked over timesteps ----
    w0i = w0_ih[...]
    b0i = b0_ih[...]

    @pl.loop(0, n_chunks)
    def _(c):
        r0 = pl.multiple_of(c * rows, rows)
        gi0_ref[pl.ds(r0, rows), :] = (
            jnp.dot(x_ref[pl.ds(r0, rows), :], w0i,
                    preferred_element_type=jnp.float32) + b0i)

    # ---- layer 0: forward and backward recurrences interleaved in one loop ----
    # hh weights/biases hoisted out of the loop (loaded once, closed over).
    w0f = w0f_hh[...]
    b0f = b0f_hh[...]
    w0b = w0b_hh[...]
    b0b = b0b_hh[...]

    def body0(i, carry):
        h_f, h_b = carry
        rf = pl.multiple_of(i * Bp, Bp)                 # row block for time i (fwd)
        rb = pl.multiple_of((T - 1 - i) * Bp, Bp)       # row block for time T-1-i (bwd)
        gi_f = gi0_ref[pl.ds(rf, Bp), pl.ds(0, GP)]
        gi_b = gi0_ref[pl.ds(rb, Bp), pl.ds(GP, GP)]
        h_f = cell(gi_f, h_f, w0f, b0f)
        h_b = cell(gi_b, h_b, w0b, b0b)
        seq0_ref[pl.ds(rf, Bp), pl.ds(0, H)] = h_f
        seq0_ref[pl.ds(rb, Bp), pl.ds(H, H)] = h_b
        return h_f, h_b

    lax.fori_loop(0, T, body0, (zeros_h, zeros_h), unroll=unroll)

    # ---- hoisted layer-1 (forward) input projection, written into gi0[:, :GP] ----
    # gi0's layer-0 contents are dead once body0 finished -> reuse it (no gi1 scratch).
    w1i = w1f_ih[...]
    b1i = b1f_ih[...]

    @pl.loop(0, n_chunks)
    def _(c):
        r0 = pl.multiple_of(c * rows, rows)
        s = seq0_ref[pl.ds(r0, rows), :].astype(jnp.bfloat16)
        gi0_ref[pl.ds(r0, rows), pl.ds(0, GP)] = (
            jnp.dot(s, w1i, preferred_element_type=jnp.float32) + b1i)

    # ---- layer 1 forward recurrence (only final h needed) ----
    w1f = w1f_hh[...]
    b1f = b1f_hh[...]

    def body1(i, h):
        r = pl.multiple_of(i * Bp, Bp)
        return cell(gi0_ref[pl.ds(r, Bp), pl.ds(0, GP)], h, w1f, b1f)

    h1f = lax.fori_loop(0, T, body1, zeros_h, unroll=unroll)

    # ---- layer 1 backward: only its FIRST step (time T-1) feeds the fc head ----
    last = pl.multiple_of((T - 1) * Bp, Bp)
    s_last = seq0_ref[pl.ds(last, Bp), :].astype(jnp.bfloat16)
    gi1b = jnp.dot(s_last, w1b_ih[...],
                   preferred_element_type=jnp.float32) + b1b_ih[...]
    h1b = cell(gi1b, zeros_h, w1b_hh[...], b1b_hh[...])

    # ---- fc head on concat(h1_fwd[T-1], h1_bwd[T-1]) -- kept f32 (tiny matmul) ----
    h_cat = jnp.concatenate([h1f, h1b], axis=-1)        # (Bp, 256), lane-tile aligned
    out_ref[...] = jnp.dot(h_cat, wfc[...],
                           preferred_element_type=jnp.float32) + bfc[...]


# ----------------------------------------------------------------------------------
# One-time parameter repack: transpose, gate-align to 128 lanes, zero-pad, bf16 cast
# ----------------------------------------------------------------------------------
def _pad_gate_cols(wt, out_rows):
    """wt: (in_dim, 3H) -> (out_rows, 3*HPAD); gate g occupies lanes [g*HPAD, g*HPAD+H)."""
    in_dim = wt.shape[0]
    out = jnp.zeros((out_rows, 3 * HPAD), jnp.float32)
    for g in range(3):
        out = out.at[:in_dim, g * HPAD:g * HPAD + HIDDEN].set(
            wt[:, g * HIDDEN:(g + 1) * HIDDEN])
    return out


def _pad_gate_bias(b):
    out = jnp.zeros((1, 3 * HPAD), jnp.float32)
    for g in range(3):
        out = out.at[0, g * HPAD:g * HPAD + HIDDEN].set(b[g * HIDDEN:(g + 1) * HIDDEN])
    return out


def prepare_params(p):
    """Repack PyTorch-layout GRU/Linear params into the padded, transposed, gate-aligned,
    bf16 layout the kernel consumes. Call once, outside the per-call path."""
    f32 = jnp.float32
    bf16 = jnp.bfloat16

    def T_(w):
        return jnp.transpose(w).astype(f32)

    def l1_ih(w):   # (3H, 2H) -> (256, 384): fwd half -> rows 0:H, bwd half -> rows 128:128+H
        wt = T_(w)                                         # (2H, 3H)
        full = jnp.zeros((2 * HPAD, 3 * HIDDEN), f32)
        full = full.at[:HIDDEN].set(wt[:HIDDEN])
        full = full.at[HPAD:HPAD + HIDDEN].set(wt[HIDDEN:])
        return _pad_gate_cols(full, 2 * HPAD).astype(bf16)

    out = {}
    # layer 0: concat fwd|bwd along output lanes -> single hoisted matmul
    w0f = _pad_gate_cols(T_(p["w_ih_l0"]), INP)
    w0b = _pad_gate_cols(T_(p["w_ih_l0_rev"]), INP)
    out["w0_ih"] = jnp.concatenate([w0f, w0b], axis=1).astype(bf16)   # (48, 768)
    out["b0_ih"] = jnp.concatenate([_pad_gate_bias(p["b_ih_l0"]),
                                    _pad_gate_bias(p["b_ih_l0_rev"])], axis=1)
    out["w0f_hh"] = _pad_gate_cols(T_(p["w_hh_l0"]), HPAD).astype(bf16)
    out["b0f_hh"] = _pad_gate_bias(p["b_hh_l0"])
    out["w0b_hh"] = _pad_gate_cols(T_(p["w_hh_l0_rev"]), HPAD).astype(bf16)
    out["b0b_hh"] = _pad_gate_bias(p["b_hh_l0_rev"])
    # layer 1
    out["w1f_ih"] = l1_ih(p["w_ih_l1"])                    # (256, 384) bf16
    out["b1f_ih"] = _pad_gate_bias(p["b_ih_l1"])
    out["w1f_hh"] = _pad_gate_cols(T_(p["w_hh_l1"]), HPAD).astype(bf16)
    out["b1f_hh"] = _pad_gate_bias(p["b_hh_l1"])
    out["w1b_ih"] = l1_ih(p["w_ih_l1_rev"])
    out["b1b_ih"] = _pad_gate_bias(p["b_ih_l1_rev"])
    out["w1b_hh"] = _pad_gate_cols(T_(p["w_hh_l1_rev"]), HPAD).astype(bf16)
    out["b1b_hh"] = _pad_gate_bias(p["b_hh_l1_rev"])
    # fc (kept f32): fwd half -> rows 0:H, bwd half -> rows 128:128+H
    wfc_t = T_(p["fc_w"])                                  # (2H, 12)
    wfc = jnp.zeros((2 * HPAD, NUM_CLASSES), f32)
    wfc = wfc.at[:HIDDEN].set(wfc_t[:HIDDEN])
    wfc = wfc.at[HPAD:HPAD + HIDDEN].set(wfc_t[HIDDEN:])
    out["wfc"] = wfc
    out["bfc"] = p["fc_b"].astype(f32)[None, :]
    return out


_PARAM_ORDER = ["w0_ih", "b0_ih", "w0f_hh", "b0f_hh", "w0b_hh", "b0b_hh",
                "w1f_ih", "b1f_ih", "w1f_hh", "b1f_hh",
                "w1b_ih", "b1b_ih", "w1b_hh", "b1b_hh", "wfc", "bfc"]


# ----------------------------------------------------------------------------------
# Wrapper
# ----------------------------------------------------------------------------------
def network_forward(x, prepared):
    """x: (B, 39, T) float32 (PyTorch N,C,L layout). Returns logits (B, 12)."""
    B, F, T = x.shape
    assert F == IN_FEAT
    Bp = max(8, ((B + 7) // 8) * 8)

    # (B, 39, T) -> (T, B, 39) -> pad batch to Bp, features to 48, bf16 -> (T*Bp, 48)
    x_tbf = jnp.transpose(x, (2, 0, 1)).astype(jnp.bfloat16)
    x_pad = jnp.zeros((T, Bp, INP), jnp.bfloat16).at[:, :B, :IN_FEAT].set(x_tbf)
    x_flat = x_pad.reshape(T * Bp, INP)

    args = [x_flat] + [prepared[k] for k in _PARAM_ORDER]

    vmem = pl.BlockSpec(memory_space=pltpu.MemorySpace.VMEM)
    scratch = [
        pltpu.VMEM((T * Bp, 2 * GP), jnp.float32),     # gi0 (fwd | bwd), reused for layer-1 gi
        pltpu.VMEM((T * Bp, 2 * HPAD), jnp.float32),   # seq0 (fwd | bwd)
    ]

    in_bytes = x_flat.size * x_flat.dtype.itemsize + sum(
        int(prepared[k].size) * prepared[k].dtype.itemsize for k in _PARAM_ORDER)
    scratch_bytes = T * Bp * (2 * GP + 2 * HPAD) * 4
    est_bytes = in_bytes + scratch_bytes + Bp * NUM_CLASSES * 4

    # Generation-aware VMEM budget: never ask for the full physical VMEM (headroom for
    # compiler temporaries); on v5e/v6e this allows well past 64 MiB, on v7x ~56 MiB.
    try:
        phys = int(pltpu.get_tpu_info().vmem_capacity_bytes)
    except Exception:
        phys = 64 << 20
    cap = (phys * 7) // 8
    vmem_limit = int(max(16 << 20, min(cap, 2 * est_bytes + (4 << 20))))

    out = pl.pallas_call(
        _network_kernel,
        out_shape=jax.ShapeDtypeStruct((Bp, NUM_CLASSES), jnp.float32),
        in_specs=[vmem] * len(args),
        out_specs=vmem,
        scratch_shapes=scratch,
        compiler_params=pltpu.CompilerParams(vmem_limit_bytes=vmem_limit),
    )(*args)
    return out[:B]


# ----------------------------------------------------------------------------------
# Deterministic parameter init (PyTorch-style uniform(-1/sqrt(H), 1/sqrt(H)))
# ----------------------------------------------------------------------------------
def init_params(key):
    p = {}
    kgru = 1.0 / float(np.sqrt(HIDDEN))
    kfc = 1.0 / float(np.sqrt(2 * HIDDEN))
    keys = iter(jax.random.split(key, NUM_LAYERS * 2 * 4 + 2))
    for l in range(NUM_LAYERS):
        in_dim = IN_FEAT if l == 0 else 2 * HIDDEN
        for d in ("", "_rev"):
            p[f"w_ih_l{l}{d}"] = jax.random.uniform(next(keys), (3 * HIDDEN, in_dim),
                                                    jnp.float32, -kgru, kgru)
            p[f"w_hh_l{l}{d}"] = jax.random.uniform(next(keys), (3 * HIDDEN, HIDDEN),
                                                    jnp.float32, -kgru, kgru)
            p[f"b_ih_l{l}{d}"] = jax.random.uniform(next(keys), (3 * HIDDEN,),
                                                    jnp.float32, -kgru, kgru)
            p[f"b_hh_l{l}{d}"] = jax.random.uniform(next(keys), (3 * HIDDEN,),
                                                    jnp.float32, -kgru, kgru)
    p["fc_w"] = jax.random.uniform(next(keys), (NUM_CLASSES, 2 * HIDDEN),
                                   jnp.float32, -kfc, kfc)
    p["fc_b"] = jax.random.uniform(next(keys), (NUM_CLASSES,), jnp.float32, -kfc, kfc)
    return p


# ----------------------------------------------------------------------------------
# Pure-JAX f32 reference of the PyTorch forward (for correctness check)
# ----------------------------------------------------------------------------------
def network_ref(x, p):
    B = x.shape[0]
    H = HIDDEN
    xs = jnp.transpose(x, (2, 0, 1)).astype(jnp.float32)        # (T, B, 39)

    def cell(x_t, h, wih, whh, bih, bhh):
        gi = x_t @ wih.T + bih
        gh = h @ whh.T + bhh
        r = jax.nn.sigmoid(gi[:, :H] + gh[:, :H])
        z = jax.nn.sigmoid(gi[:, H:2 * H] + gh[:, H:2 * H])
        n = jnp.tanh(gi[:, 2 * H:] + r * gh[:, 2 * H:])
        return (1.0 - z) * n + z * h

    def run_dir(seq, wih, whh, bih, bhh, reverse):
        s = seq[::-1] if reverse else seq

        def step(h, x_t):
            h2 = cell(x_t, h, wih, whh, bih, bhh)
            return h2, h2

        _, outs = lax.scan(step, jnp.zeros((B, H), jnp.float32), s)
        return outs[::-1] if reverse else outs

    layer_in = xs
    for l in range(NUM_LAYERS):
        of = run_dir(layer_in, p[f"w_ih_l{l}"], p[f"w_hh_l{l}"],
                     p[f"b_ih_l{l}"], p[f"b_hh_l{l}"], False)
        ob = run_dir(layer_in, p[f"w_ih_l{l}_rev"], p[f"w_hh_l{l}_rev"],
                     p[f"b_ih_l{l}_rev"], p[f"b_hh_l{l}_rev"], True)
        layer_in = jnp.concatenate([of, ob], axis=-1)
    last = layer_in[-1]                                          # x[:, -1, :]
    return last @ p["fc_w"].T + p["fc_b"]


if __name__ == "__main__":
    key = jax.random.PRNGKey(0)
    kp, kx = jax.random.split(key)
    params = init_params(kp)
    prepared = prepare_params(params)       # one-time repack (outside per-call path)

    B, T = 2, 8
    x = jax.random.normal(kx, (B, IN_FEAT, T), jnp.float32)      # (N, C=39, L=T)

    out = jax.block_until_ready(network_forward(x, prepared))
    ref = jax.block_until_ready(network_ref(x, params))

    assert out.shape == (B, NUM_CLASSES)
    # bf16 weights / bf16 MXU operands with f32 accumulation -> loosened tolerance
    np.testing.assert_allclose(np.asarray(out), np.asarray(ref), rtol=3e-2, atol=3e-2)
    print("KERNEL_OK")
</pallas_src>

<mosaic_0001>
module attributes {stable_mosaic.version = 11 : i64} {
  func.func @_network_kernel(%arg0: memref<64x48xbf16, #tpu.memory_space<vmem>>, %arg1: memref<48x768xbf16, #tpu.memory_space<vmem>>, %arg2: memref<1x768xf32, #tpu.memory_space<vmem>>, %arg3: memref<128x384xbf16, #tpu.memory_space<vmem>>, %arg4: memref<1x384xf32, #tpu.memory_space<vmem>>, %arg5: memref<128x384xbf16, #tpu.memory_space<vmem>>, %arg6: memref<1x384xf32, #tpu.memory_space<vmem>>, %arg7: memref<256x384xbf16, #tpu.memory_space<vmem>>, %arg8: memref<1x384xf32, #tpu.memory_space<vmem>>, %arg9: memref<128x384xbf16, #tpu.memory_space<vmem>>, %arg10: memref<1x384xf32, #tpu.memory_space<vmem>>, %arg11: memref<256x384xbf16, #tpu.memory_space<vmem>>, %arg12: memref<1x384xf32, #tpu.memory_space<vmem>>, %arg13: memref<128x384xbf16, #tpu.memory_space<vmem>>, %arg14: memref<1x384xf32, #tpu.memory_space<vmem>>, %arg15: memref<256x12xf32, #tpu.memory_space<vmem>>, %arg16: memref<1x12xf32, #tpu.memory_space<vmem>>, %arg17: memref<8x12xf32, #tpu.memory_space<vmem>>, %arg18: memref<64x768xf32, #tpu.memory_space<vmem>>, %arg19: memref<64x256xf32, #tpu.memory_space<vmem>>) attributes {dimension_semantics = [], scalar_prefetch = 0 : i64, scratch_operands = 2 : i64, tpu.core_type = #tpu.core_type<tc>} {
    %cst = arith.constant 0.000000e+00 : f32
    %0 = vector.broadcast %cst : f32 to vector<8x128xf32>
    %c0 = arith.constant 0 : index
    %c0_0 = arith.constant 0 : index
    %1 = vector.load %arg1[%c0, %c0_0] : memref<48x768xbf16, #tpu.memory_space<vmem>>, vector<48x768xbf16>
    %c0_1 = arith.constant 0 : index
    %c0_2 = arith.constant 0 : index
    %2 = vector.load %arg2[%c0_1, %c0_2] : memref<1x768xf32, #tpu.memory_space<vmem>>, vector<1x768xf32>
    %c0_i32 = arith.constant 0 : i32
    %c1_i32 = arith.constant 1 : i32
    %3 = arith.muli %c0_i32, %c1_i32 : i32
    %c0_i32_3 = arith.constant 0 : i32
    %4 = arith.addi %c0_i32_3, %3 : i32
    %c64_i32 = arith.constant 64 : i32
    %5 = arith.muli %4, %c64_i32 : i32
    %6 = tpu.assume_multiple %5, 64 : i32
    %7 = arith.index_cast %6 : i32 to index
    %c0_4 = arith.constant 0 : index
    %8 = vector.load %arg0[%7, %c0_4] : memref<64x48xbf16, #tpu.memory_space<vmem>>, vector<64x48xbf16>
    %cst_5 = arith.constant dense<0.000000e+00> : vector<64x768xf32>
    %9 = tpu.matmul %8, %1, %cst_5 {dimension_numbers = #tpu.dot_dimension_numbers<[1], [0], [0], [1], [0, 0, 1, 1], [], []>} : vector<64x48xbf16>, vector<48x768xbf16>, vector<64x768xf32> -> vector<64x768xf32>
    %10 = vector.broadcast %2 : vector<1x768xf32> to vector<64x768xf32>
    %11 = arith.addf %9, %10 : vector<64x768xf32>
    %12 = arith.index_cast %6 : i32 to index
    %c0_6 = arith.constant 0 : index
    %13 = vector.load %arg18[%12, %c0_6] : memref<64x768xf32, #tpu.memory_space<vmem>>, vector<64x768xf32>
    tpu.vector_store %arg18[%12, %c0_6], %11 {strides = array<i32>} : memref<64x768xf32, #tpu.memory_space<vmem>>, vector<64x768xf32>,
    %c1_i32_7 = arith.constant 1 : i32
    %c0_8 = arith.constant 0 : index
    %c0_9 = arith.constant 0 : index
    %14 = vector.load %arg3[%c0_8, %c0_9] : memref<128x384xbf16, #tpu.memory_space<vmem>>, vector<128x384xbf16>
    %c0_10 = arith.constant 0 : index
    %c0_11 = arith.constant 0 : index
    %15 = vector.load %arg4[%c0_10, %c0_11] : memref<1x384xf32, #tpu.memory_space<vmem>>, vector<1x384xf32>
    %c0_12 = arith.constant 0 : index
    %c0_13 = arith.constant 0 : index
    %16 = vector.load %arg5[%c0_12, %c0_13] : memref<128x384xbf16, #tpu.memory_space<vmem>>, vector<128x384xbf16>
    %c0_14 = arith.constant 0 : index
    %c0_15 = arith.constant 0 : index
    %17 = vector.load %arg6[%c0_14, %c0_15] : memref<1x384xf32, #tpu.memory_space<vmem>>, vector<1x384xf32>
    %c0_i32_16 = arith.constant 0 : i32
    %c8_i32 = arith.constant 8 : i32
    %18 = arith.muli %c0_i32_16, %c8_i32 : i32
    %19 = tpu.assume_multiple %18, 8 : i32
    %c7_i32 = arith.constant 7 : i32
    %20 = arith.subi %c7_i32, %c0_i32_16 : i32
    %c8_i32_17 = arith.constant 8 : i32
    %21 = arith.muli %20, %c8_i32_17 : i32
    %22 = tpu.assume_multiple %21, 8 : i32
    %23 = arith.index_cast %19 : i32 to index
    %c0_18 = arith.constant 0 : index
    %24 = vector.load %arg18[%23, %c0_18] : memref<64x768xf32, #tpu.memory_space<vmem>>, vector<8x384xf32>
    %25 = arith.index_cast %22 : i32 to index
    %c384 = arith.constant 384 : index
    %26 = vector.load %arg18[%25, %c384] : memref<64x768xf32, #tpu.memory_space<vmem>>, vector<8x384xf32>
    %27 = arith.truncf %0 : vector<8x128xf32> to vector<8x128xbf16>
    %cst_19 = arith.constant dense<0.000000e+00> : vector<8x384xf32>
    %28 = tpu.matmul %27, %14, %cst_19 {dimension_numbers = #tpu.dot_dimension_numbers<[1], [0], [0], [1], [0, 0, 1, 1], [], []>} : vector<8x128xbf16>, vector<128x384xbf16>, vector<8x384xf32> -> vector<8x384xf32>
    %29 = vector.broadcast %15 : vector<1x384xf32> to vector<8x384xf32>
    %30 = arith.addf %28, %29 : vector<8x384xf32>
    %31 = vector.extract_strided_slice %24 {offsets = [0, 0], sizes = [8, 128], strides = [1, 1]} : vector<8x384xf32> to vector<8x128xf32>
    %32 = vector.extract_strided_slice %30 {offsets = [0, 0], sizes = [8, 128], strides = [1, 1]} : vector<8x384xf32> to vector<8x128xf32>
    %33 = arith.addf %31, %32 : vector<8x128xf32>
    %34 = arith.negf %33 : vector<8x128xf32>
    %35 = math.exp %34 : vector<8x128xf32>
    %cst_20 = arith.constant 1.000000e+00 : f32
    %36 = vector.broadcast %cst_20 : f32 to vector<8x128xf32>
    %37 = arith.addf %36, %35 : vector<8x128xf32>
    %38 = arith.divf %36, %37 : vector<8x128xf32>
    %39 = vector.extract_strided_slice %24 {offsets = [0, 128], sizes = [8, 128], strides = [1, 1]} : vector<8x384xf32> to vector<8x128xf32>
    %40 = vector.extract_strided_slice %30 {offsets = [0, 128], sizes = [8, 128], strides = [1, 1]} : vector<8x384xf32> to vector<8x128xf32>
    %41 = arith.addf %39, %40 : vector<8x128xf32>
    %42 = arith.negf %41 : vector<8x128xf32>
    %43 = math.exp %42 : vector<8x128xf32>
    %cst_21 = arith.constant 1.000000e+00 : f32
    %44 = vector.broadcast %cst_21 : f32 to vector<8x128xf32>
    %45 = arith.addf %44, %43 : vector<8x128xf32>
    %46 = arith.divf %44, %45 : vector<8x128xf32>
    %47 = vector.extract_strided_slice %24 {offsets = [0, 256], sizes = [8, 128], strides = [1, 1]} : vector<8x384xf32> to vector<8x128xf32>
    %48 = vector.extract_strided_slice %30 {offsets = [0, 256], sizes = [8, 128], strides = [1, 1]} : vector<8x384xf32> to vector<8x128xf32>
    %49 = arith.mulf %38, %48 : vector<8x128xf32>
    %50 = arith.addf %47, %49 : vector<8x128xf32>
    %51 = math.tanh %50 : vector<8x128xf32>
    %cst_22 = arith.constant 1.000000e+00 : f32
    %52 = vector.broadcast %cst_22 : f32 to vector<8x128xf32>
    %53 = arith.subf %52, %46 : vector<8x128xf32>
    %54 = arith.mulf %53, %51 : vector<8x128xf32>
    %55 = arith.mulf %46, %0 : vector<8x128xf32>
    %56 = arith.addf %54, %55 : vector<8x128xf32>
    %57 = arith.truncf %0 : vector<8x128xf32> to vector<8x128xbf16>
    %cst_23 = arith.constant dense<0.000000e+00> : vector<8x384xf32>
    %58 = tpu.matmul %57, %16, %cst_23 {dimension_numbers = #tpu.dot_dimension_numbers<[1], [0], [0], [1], [0, 0, 1, 1], [], []>} : vector<8x128xbf16>, vector<128x384xbf16>, vector<8x384xf32> -> vector<8x384xf32>
    %59 = vector.broadcast %17 : vector<1x384xf32> to vector<8x384xf32>
    %60 = arith.addf %58, %59 : vector<8x384xf32>
    %61 = vector.extract_strided_slice %26 {offsets = [0, 0], sizes = [8, 128], strides = [1, 1]} : vector<8x384xf32> to vector<8x128xf32>
    %62 = vector.extract_strided_slice %60 {offsets = [0, 0], sizes = [8, 128], strides = [1, 1]} : vector<8x384xf32> to vector<8x128xf32>
    %63 = arith.addf %61, %62 : vector<8x128xf32>
    %64 = arith.negf %63 : vector<8x128xf32>
    %65 = math.exp %64 : vector<8x128xf32>
    %cst_24 = arith.constant 1.000000e+00 : f32
    %66 = vector.broadcast %cst_24 : f32 to vector<8x128xf32>
    %67 = arith.addf %66, %65 : vector<8x128xf32>
    %68 = arith.divf %66, %67 : vector<8x128xf32>
    %69 = vector.extract_strided_slice %26 {offsets = [0, 128], sizes = [8, 128], strides = [1, 1]} : vector<8x384xf32> to vector<8x128xf32>
    %70 = vector.extract_strided_slice %60 {offsets = [0, 128], sizes = [8, 128], strides = [1, 1]} : vector<8x384xf32> to vector<8x128xf32>
    %71 = arith.addf %69, %70 : vector<8x128xf32>
    %72 = arith.negf %71 : vector<8x128xf32>
    %73 = math.exp %72 : vector<8x128xf32>
    %cst_25 = arith.constant 1.000000e+00 : f32
    %74 = vector.broadcast %cst_25 : f32 to vector<8x128xf32>
    %75 = arith.addf %74, %73 : vector<8x128xf32>
    %76 = arith.divf %74, %75 : vector<8x128xf32>
    %77 = vector.extract_strided_slice %26 {offsets = [0, 256], sizes = [8, 128], strides = [1, 1]} : vector<8x384xf32> to vector<8x128xf32>
    %78 = vector.extract_strided_slice %60 {offsets = [0, 256], sizes = [8, 128], strides = [1, 1]} : vector<8x384xf32> to vector<8x128xf32>
    %79 = arith.mulf %68, %78 : vector<8x128xf32>
    %80 = arith.addf %77, %79 : vector<8x128xf32>
    %81 = math.tanh %80 : vector<8x128xf32>
    %cst_26 = arith.constant 1.000000e+00 : f32
    %82 = vector.broadcast %cst_26 : f32 to vector<8x128xf32>
    %83 = arith.subf %82, %76 : vector<8x128xf32>
    %84 = arith.mulf %83, %81 : vector<8x128xf32>
    %85 = arith.mulf %76, %0 : vector<8x128xf32>
    %86 = arith.addf %84, %85 : vector<8x128xf32>
    %87 = arith.index_cast %19 : i32 to index
    %c0_27 = arith.constant 0 : index
    %88 = vector.load %arg19[%87, %c0_27] : memref<64x256xf32, #tpu.memory_space<vmem>>, vector<8x128xf32>
    tpu.vector_store %arg19[%87, %c0_27], %56 {strides = array<i32>} : memref<64x256xf32, #tpu.memory_space<vmem>>, vector<8x128xf32>,
    %89 = arith.index_cast %22 : i32 to index
    %c128 = arith.constant 128 : index
    %90 = vector.load %arg19[%89, %c128] : memref<64x256xf32, #tpu.memory_space<vmem>>, vector<8x128xf32>
    tpu.vector_store %arg19[%89, %c128], %86 {strides = array<i32>} : memref<64x256xf32, #tpu.memory_space<vmem>>, vector<8x128xf32>,
    %c1_i32_28 = arith.constant 1 : i32
    %c8_i32_29 = arith.constant 8 : i32
    %91 = arith.muli %c1_i32_28, %c8_i32_29 : i32
    %92 = tpu.assume_multiple %91, 8 : i32
    %c7_i32_30 = arith.constant 7 : i32
    %93 = arith.subi %c7_i32_30, %c1_i32_28 : i32
    %c8_i32_31 = arith.constant 8 : i32
    %94 = arith.muli %93, %c8_i32_31 : i32
    %95 = tpu.assume_multiple %94, 8 : i32
    %96 = arith.index_cast %92 : i32 to index
    %c0_32 = arith.constant 0 : index
    %97 = vector.load %arg18[%96, %c0_32] : memref<64x768xf32, #tpu.memory_space<vmem>>, vector<8x384xf32>
    %98 = arith.index_cast %95 : i32 to index
    %c384_33 = arith.constant 384 : index
    %99 = vector.load %arg18[%98, %c384_33] : memref<64x768xf32, #tpu.memory_space<vmem>>, vector<8x384xf32>
    %100 = arith.truncf %56 : vector<8x128xf32> to vector<8x128xbf16>
    %cst_34 = arith.constant dense<0.000000e+00> : vector<8x384xf32>
    %101 = tpu.matmul %100, %14, %cst_34 {dimension_numbers = #tpu.dot_dimension_numbers<[1], [0], [0], [1], [0, 0, 1, 1], [], []>} : vector<8x128xbf16>, vector<128x384xbf16>, vector<8x384xf32> -> vector<8x384xf32>
    %102 = vector.broadcast %15 : vector<1x384xf32> to vector<8x384xf32>
    %103 = arith.addf %101, %102 : vector<8x384xf32>
    %104 = vector.extract_strided_slice %97 {offsets = [0, 0], sizes = [8, 128], strides = [1, 1]} : vector<8x384xf32> to vector<8x128xf32>
    %105 = vector.extract_strided_slice %103 {offsets = [0, 0], sizes = [8, 128], strides = [1, 1]} : vector<8x384xf32> to vector<8x128xf32>
    %106 = arith.addf %104, %105 : vector<8x128xf32>
    %107 = arith.negf %106 : vector<8x128xf32>
    %108 = math.exp %107 : vector<8x128xf32>
    %cst_35 = arith.constant 1.000000e+00 : f32
    %109 = vector.broadcast %cst_35 : f32 to vector<8x128xf32>
    %110 = arith.addf %109, %108 : vector<8x128xf32>
    %111 = arith.divf %109, %110 : vector<8x128xf32>
    %112 = vector.extract_strided_slice %97 {offsets = [0, 128], sizes = [8, 128], strides = [1, 1]} : vector<8x384xf32> to vector<8x128xf32>
    %113 = vector.extract_strided_slice %103 {offsets = [0, 128], sizes = [8, 128], strides = [1, 1]} : vector<8x384xf32> to vector<8x128xf32>
    %114 = arith.addf %112, %113 : vector<8x128xf32>
    %115 = arith.negf %114 : vector<8x128xf32>
    %116 = math.exp %115 : vector<8x128xf32>
    %cst_36 = arith.constant 1.000000e+00 : f32
    %117 = vector.broadcast %cst_36 : f32 to vector<8x128xf32>
    %118 = arith.addf %117, %116 : vector<8x128xf32>
    %119 = arith.divf %117, %118 : vector<8x128xf32>
    %120 = vector.extract_strided_slice %97 {offsets = [0, 256], sizes = [8, 128], strides = [1, 1]} : vector<8x384xf32> to vector<8x128xf32>
    %121 = vector.extract_strided_slice %103 {offsets = [0, 256], sizes = [8, 128], strides = [1, 1]} : vector<8x384xf32> to vector<8x128xf32>
    %122 = arith.mulf %111, %121 : vector<8x128xf32>
    %123 = arith.addf %120, %122 : vector<8x128xf32>
    %124 = math.tanh %123 : vector<8x128xf32>
    %cst_37 = arith.constant 1.000000e+00 : f32
    %125 = vector.broadcast %cst_37 : f32 to vector<8x128xf32>
    %126 = arith.subf %125, %119 : vector<8x128xf32>
    %127 = arith.mulf %126, %124 : vector<8x128xf32>
    %128 = arith.mulf %119, %56 : vector<8x128xf32>
    %129 = arith.addf %127, %128 : vector<8x128xf32>
    %130 = arith.truncf %86 : vector<8x128xf32> to vector<8x128xbf16>
    %cst_38 = arith.constant dense<0.000000e+00> : vector<8x384xf32>
    %131 = tpu.matmul %130, %16, %cst_38 {dimension_numbers = #tpu.dot_dimension_numbers<[1], [0], [0], [1], [0, 0, 1, 1], [], []>} : vector<8x128xbf16>, vector<128x384xbf16>, vector<8x384xf32> -> vector<8x384xf32>
    %132 = vector.broadcast %17 : vector<1x384xf32> to vector<8x384xf32>
    %133 = arith.addf %131, %132 : vector<8x384xf32>
    %134 = vector.extract_strided_slice %99 {offsets = [0, 0], sizes = [8, 128], strides = [1, 1]} : vector<8x384xf32> to vector<8x128xf32>
    %135 = vector.extract_strided_slice %133 {offsets = [0, 0], sizes = [8, 128], strides = [1, 1]} : vector<8x384xf32> to vector<8x128xf32>
    %136 = arith.addf %134, %135 : vector<8x128xf32>
    %137 = arith.negf %136 : vector<8x128xf32>
    %138 = math.exp %137 : vector<8x128xf32>
    %cst_39 = arith.constant 1.000000e+00 : f32
    %139 = vector.broadcast %cst_39 : f32 to vector<8x128xf32>
    %140 = arith.addf %139, %138 : vector<8x128xf32>
    %141 = arith.divf %139, %140 : vector<8x128xf32>
    %142 = vector.extract_strided_slice %99 {offsets = [0, 128], sizes = [8, 128], strides = [1, 1]} : vector<8x384xf32> to vector<8x128xf32>
    %143 = vector.extract_strided_slice %133 {offsets = [0, 128], sizes = [8, 128], strides = [1, 1]} : vector<8x384xf32> to vector<8x128xf32>
    %144 = arith.addf %142, %143 : vector<8x128xf32>
    %145 = arith.negf %144 : vector<8x128xf32>
    %146 = math.exp %145 : vector<8x128xf32>
    %cst_40 = arith.constant 1.000000e+00 : f32
    %147 = vector.broadcast %cst_40 : f32 to vector<8x128xf32>
    %148 = arith.addf %147, %146 : vector<8x128xf32>
    %149 = arith.divf %147, %148 : vector<8x128xf32>
    %150 = vector.extract_strided_slice %99 {offsets = [0, 256], sizes = [8, 128], strides = [1, 1]} : vector<8x384xf32> to vector<8x128xf32>
    %151 = vector.extract_strided_slice %133 {offsets = [0, 256], sizes = [8, 128], strides = [1, 1]} : vector<8x384xf32> to vector<8x128xf32>
    %152 = arith.mulf %141, %151 : vector<8x128xf32>
    %153 = arith.addf %150, %152 : vector<8x128xf32>
    %154 = math.tanh %153 : vector<8x128xf32>
    %cst_41 = arith.constant 1.000000e+00 : f32
    %155 = vector.broadcast %cst_41 : f32 to vector<8x128xf32>
    %156 = arith.subf %155, %149 : vector<8x128xf32>
    %157 = arith.mulf %156, %154 : vector<8x128xf32>
    %158 = arith.mulf %149, %86 : vector<8x128xf32>
    %159 = arith.addf %157, %158 : vector<8x128xf32>
    %160 = arith.index_cast %92 : i32 to index
    %c0_42 = arith.constant 0 : index
    %161 = vector.load %arg19[%160, %c0_42] : memref<64x256xf32, #tpu.memory_space<vmem>>, vector<8x128xf32>
    tpu.vector_store %arg19[%160, %c0_42], %129 {strides = array<i32>} : memref<64x256xf32, #tpu.memory_space<vmem>>, vector<8x128xf32>,
    %162 = arith.index_cast %95 : i32 to index
    %c128_43 = arith.constant 128 : index
    %163 = vector.load %arg19[%162, %c128_43] : memref<64x256xf32, #tpu.memory_space<vmem>>, vector<8x128xf32>
    tpu.vector_store %arg19[%162, %c128_43], %159 {strides = array<i32>} : memref<64x256xf32, #tpu.memory_space<vmem>>, vector<8x128xf32>,
    %c2_i32 = arith.constant 2 : i32
    %c8_i32_44 = arith.constant 8 : i32
    %164 = arith.muli %c2_i32, %c8_i32_44 : i32
    %165 = tpu.assume_multiple %164, 8 : i32
    %c7_i32_45 = arith.constant 7 : i32
    %166 = arith.subi %c7_i32_45, %c2_i32 : i32
    %c8_i32_46 = arith.constant 8 : i32
    %167 = arith.muli %166, %c8_i32_46 : i32
    %168 = tpu.assume_multiple %167, 8 : i32
    %169 = arith.index_cast %165 : i32 to index
    %c0_47 = arith.constant 0 : index
    %170 = vector.load %arg18[%169, %c0_47] : memref<64x768xf32, #tpu.memory_space<vmem>>, vector<8x384xf32>
    %171 = arith.index_cast %168 : i32 to index
    %c384_48 = arith.constant 384 : index
    %172 = vector.load %arg18[%171, %c384_48] : memref<64x768xf32, #tpu.memory_space<vmem>>, vector<8x384xf32>
    %173 = arith.truncf %129 : vector<8x128xf32> to vector<8x128xbf16>
    %cst_49 = arith.constant dense<0.000000e+00> : vector<8x384xf32>
    %174 = tpu.matmul %173, %14, %cst_49 {dimension_numbers = #tpu.dot_dimension_numbers<[1], [0], [0], [1], [0, 0, 1, 1], [], []>} : vector<8x128xbf16>, vector<128x384xbf16>, vector<8x384xf32> -> vector<8x384xf32>
    %175 = vector.broadcast %15 : vector<1x384xf32> to vector<8x384xf32>
    %176 = arith.addf %174, %175 : vector<8x384xf32>
    %177 = vector.extract_strided_slice %170 {offsets = [0, 0], sizes = [8, 128], strides = [1, 1]} : vector<8x384xf32> to vector<8x128xf32>
    %178 = vector.extract_strided_slice %176 {offsets = [0, 0], sizes = [8, 128], strides = [1, 1]} : vector<8x384xf32> to vector<8x128xf32>
    %179 = arith.addf %177, %178 : vector<8x128xf32>
    %180 = arith.negf %179 : vector<8x128xf32>
    %181 = math.exp %180 : vector<8x128xf32>
    %cst_50 = arith.constant 1.000000e+00 : f32
    %182 = vector.broadcast %cst_50 : f32 to vector<8x128xf32>
    %183 = arith.addf %182, %181 : vector<8x128xf32>
    %184 = arith.divf %182, %183 : vector<8x128xf32>
    %185 = vector.extract_strided_slice %170 {offsets = [0, 128], sizes = [8, 128], strides = [1, 1]} : vector<8x384xf32> to vector<8x128xf32>
    %186 = vector.extract_strided_slice %176 {offsets = [0, 128], sizes = [8, 128], strides = [1, 1]} : vector<8x384xf32> to vector<8x128xf32>
    %187 = arith.addf %185, %186 : vector<8x128xf32>
    %188 = arith.negf %187 : vector<8x128xf32>
    %189 = math.exp %188 : vector<8x128xf32>
    %cst_51 = arith.constant 1.000000e+00 : f32
    %190 = vector.broadcast %cst_51 : f32 to vector<8x128xf32>
    %191 = arith.addf %190, %189 : vector<8x128xf32>
    %192 = arith.divf %190, %191 : vector<8x128xf32>
    %193 = vector.extract_strided_slice %170 {offsets = [0, 256], sizes = [8, 128], strides = [1, 1]} : vector<8x384xf32> to vector<8x128xf32>
    %194 = vector.extract_strided_slice %176 {offsets = [0, 256], sizes = [8, 128], strides = [1, 1]} : vector<8x384xf32> to vector<8x128xf32>
    %195 = arith.mulf %184, %194 : vector<8x128xf32>
    %196 = arith.addf %193, %195 : vector<8x128xf32>
    %197 = math.tanh %196 : vector<8x128xf32>
    %cst_52 = arith.constant 1.000000e+00 : f32
    %198 = vector.broadcast %cst_52 : f32 to vector<8x128xf32>
    %199 = arith.subf %198, %192 : vector<8x128xf32>
    %200 = arith.mulf %199, %197 : vector<8x128xf32>
    %201 = arith.mulf %192, %129 : vector<8x128xf32>
    %202 = arith.addf %200, %201 : vector<8x128xf32>
    %203 = arith.truncf %159 : vector<8x128xf32> to vector<8x128xbf16>
    %cst_53 = arith.constant dense<0.000000e+00> : vector<8x384xf32>
    %204 = tpu.matmul %203, %16, %cst_53 {dimension_numbers = #tpu.dot_dimension_numbers<[1], [0], [0], [1], [0, 0, 1, 1], [], []>} : vector<8x128xbf16>, vector<128x384xbf16>, vector<8x384xf32> -> vector<8x384xf32>
    %205 = vector.broadcast %17 : vector<1x384xf32> to vector<8x384xf32>
    %206 = arith.addf %204, %205 : vector<8x384xf32>
    %207 = vector.extract_strided_slice %172 {offsets = [0, 0], sizes = [8, 128], strides = [1, 1]} : vector<8x384xf32> to vector<8x128xf32>
    %208 = vector.extract_strided_slice %206 {offsets = [0, 0], sizes = [8, 128], strides = [1, 1]} : vector<8x384xf32> to vector<8x128xf32>
    %209 = arith.addf %207, %208 : vector<8x128xf32>
    %210 = arith.negf %209 : vector<8x128xf32>
    %211 = math.exp %210 : vector<8x128xf32>
    %cst_54 = arith.constant 1.000000e+00 : f32
    %212 = vector.broadcast %cst_54 : f32 to vector<8x128xf32>
    %213 = arith.addf %212, %211 : vector<8x128xf32>
    %214 = arith.divf %212, %213 : vector<8x128xf32>
    %215 = vector.extract_strided_slice %172 {offsets = [0, 128], sizes = [8, 128], strides = [1, 1]} : vector<8x384xf32> to vector<8x128xf32>
    %216 = vector.extract_strided_slice %206 {offsets = [0, 128], sizes = [8, 128], strides = [1, 1]} : vector<8x384xf32> to vector<8x128xf32>
    %217 = arith.addf %215, %216 : vector<8x128xf32>
    %218 = arith.negf %217 : vector<8x128xf32>
    %219 = math.exp %218 : vector<8x128xf32>
    %cst_55 = arith.constant 1.000000e+00 : f32
    %220 = vector.broadcast %cst_55 : f32 to vector<8x128xf32>
    %221 = arith.addf %220, %219 : vector<8x128xf32>
    %222 = arith.divf %220, %221 : vector<8x128xf32>
    %223 = vector.extract_strided_slice %172 {offsets = [0, 256], sizes = [8, 128], strides = [1, 1]} : vector<8x384xf32> to vector<8x128xf32>
    %224 = vector.extract_strided_slice %206 {offsets = [0, 256], sizes = [8, 128], strides = [1, 1]} : vector<8x384xf32> to vector<8x128xf32>
    %225 = arith.mulf %214, %224 : vector<8x128xf32>
    %226 = arith.addf %223, %225 : vector<8x128xf32>
    %227 = math.tanh %226 : vector<8x128xf32>
    %cst_56 = arith.constant 1.000000e+00 : f32
    %228 = vector.broadcast %cst_56 : f32 to vector<8x128xf32>
    %229 = arith.subf %228, %222 : vector<8x128xf32>
    %230 = arith.mulf %229, %227 : vector<8x128xf32>
    %231 = arith.mulf %222, %159 : vector<8x128xf32>
    %232 = arith.addf %230, %231 : vector<8x128xf32>
    %233 = arith.index_cast %165 : i32 to index
    %c0_57 = arith.constant 0 : index
    %234 = vector.load %arg19[%233, %c0_57] : memref<64x256xf32, #tpu.memory_space<vmem>>, vector<8x128xf32>
    tpu.vector_store %arg19[%233, %c0_57], %202 {strides = array<i32>} : memref<64x256xf32, #tpu.memory_space<vmem>>, vector<8x128xf32>,
    %235 = arith.index_cast %168 : i32 to index
    %c128_58 = arith.constant 128 : index
    %236 = vector.load %arg19[%235, %c128_58] : memref<64x256xf32, #tpu.memory_space<vmem>>, vector<8x128xf32>
    tpu.vector_store %arg19[%235, %c128_58], %232 {strides = array<i32>} : memref<64x256xf32, #tpu.memory_space<vmem>>, vector<8x128xf32>,
    %c3_i32 = arith.constant 3 : i32
    %c8_i32_59 = arith.constant 8 : i32
    %237 = arith.muli %c3_i32, %c8_i32_59 : i32
    %238 = tpu.assume_multiple %237, 8 : i32
    %c7_i32_60 = arith.constant 7 : i32
    %239 = arith.subi %c7_i32_60, %c3_i32 : i32
    %c8_i32_61 = arith.constant 8 : i32
    %240 = arith.muli %239, %c8_i32_61 : i32
    %241 = tpu.assume_multiple %240, 8 : i32
    %242 = arith.index_cast %238 : i32 to index
    %c0_62 = arith.constant 0 : index
    %243 = vector.load %arg18[%242, %c0_62] : memref<64x768xf32, #tpu.memory_space<vmem>>, vector<8x384xf32>
    %244 = arith.index_cast %241 : i32 to index
    %c384_63 = arith.constant 384 : index
    %245 = vector.load %arg18[%244, %c384_63] : memref<64x768xf32, #tpu.memory_space<vmem>>, vector<8x384xf32>
    %246 = arith.truncf %202 : vector<8x128xf32> to vector<8x128xbf16>
    %cst_64 = arith.constant dense<0.000000e+00> : vector<8x384xf32>
    %247 = tpu.matmul %246, %14, %cst_64 {dimension_numbers = #tpu.dot_dimension_numbers<[1], [0], [0], [1], [0, 0, 1, 1], [], []>} : vector<8x128xbf16>, vector<128x384xbf16>, vector<8x384xf32> -> vector<8x384xf32>
    %248 = vector.broadcast %15 : vector<1x384xf32> to vector<8x384xf32>
    %249 = arith.addf %247, %248 : vector<8x384xf32>
    %250 = vector.extract_strided_slice %243 {offsets = [0, 0], sizes = [8, 128], strides = [1, 1]} : vector<8x384xf32> to vector<8x128xf32>
    %251 = vector.extract_strided_slice %249 {offsets = [0, 0], sizes = [8, 128], strides = [1, 1]} : vector<8x384xf32> to vector<8x128xf32>
    %252 = arith.addf %250, %251 : vector<8x128xf32>
    %253 = arith.negf %252 : vector<8x128xf32>
    %254 = math.exp %253 : vector<8x128xf32>
    %cst_65 = arith.constant 1.000000e+00 : f32
    %255 = vector.broadcast %cst_65 : f32 to vector<8x128xf32>
    %256 = arith.addf %255, %254 : vector<8x128xf32>
    %257 = arith.divf %255, %256 : vector<8x128xf32>
    %258 = vector.extract_strided_slice %243 {offsets = [0, 128], sizes = [8, 128], strides = [1, 1]} : vector<8x384xf32> to vector<8x128xf32>
    %259 = vector.extract_strided_slice %249 {offsets = [0, 128], sizes = [8, 128], strides = [1, 1]} : vector<8x384xf32> to vector<8x128xf32>
    %260 = arith.addf %258, %259 : vector<8x128xf32>
    %261 = arith.negf %260 : vector<8x128xf32>
    %262 = math.exp %261 : vector<8x128xf32>
    %cst_66 = arith.constant 1.000000e+00 : f32
    %263 = vector.broadcast %cst_66 : f32 to vector<8x128xf32>
    %264 = arith.addf %263, %262 : vector<8x128xf32>
    %265 = arith.divf %263, %264 : vector<8x128xf32>
    %266 = vector.extract_strided_slice %243 {offsets = [0, 256], sizes = [8, 128], strides = [1, 1]} : vector<8x384xf32> to vector<8x128xf32>
    %267 = vector.extract_strided_slice %249 {offsets = [0, 256], sizes = [8, 128], strides = [1, 1]} : vector<8x384xf32> to vector<8x128xf32>
    %268 = arith.mulf %257, %267 : vector<8x128xf32>
    %269 = arith.addf %266, %268 : vector<8x128xf32>
    %270 = math.tanh %269 : vector<8x128xf32>
    %cst_67 = arith.constant 1.000000e+00 : f32
    %271 = vector.broadcast %cst_67 : f32 to vector<8x128xf32>
    %272 = arith.subf %271, %265 : vector<8x128xf32>
    %273 = arith.mulf %272, %270 : vector<8x128xf32>
    %274 = arith.mulf %265, %202 : vector<8x128xf32>
    %275 = arith.addf %273, %274 : vector<8x128xf32>
    %276 = arith.truncf %232 : vector<8x128xf32> to vector<8x128xbf16>
    %cst_68 = arith.constant dense<0.000000e+00> : vector<8x384xf32>
    %277 = tpu.matmul %276, %16, %cst_68 {dimension_numbers = #tpu.dot_dimension_numbers<[1], [0], [0], [1], [0, 0, 1, 1], [], []>} : vector<8x128xbf16>, vector<128x384xbf16>, vector<8x384xf32> -> vector<8x384xf32>
    %278 = vector.broadcast %17 : vector<1x384xf32> to vector<8x384xf32>
    %279 = arith.addf %277, %278 : vector<8x384xf32>
    %280 = vector.extract_strided_slice %245 {offsets = [0, 0], sizes = [8, 128], strides = [1, 1]} : vector<8x384xf32> to vector<8x128xf32>
    %281 = vector.extract_strided_slice %279 {offsets = [0, 0], sizes = [8, 128], strides = [1, 1]} : vector<8x384xf32> to vector<8x128xf32>
    %282 = arith.addf %280, %281 : vector<8x128xf32>
    %283 = arith.negf %282 : vector<8x128xf32>
    %284 = math.exp %283 : vector<8x128xf32>
    %cst_69 = arith.constant 1.000000e+00 : f32
    %285 = vector.broadcast %cst_69 : f32 to vector<8x128xf32>
    %286 = arith.addf %285, %284 : vector<8x128xf32>
    %287 = arith.divf %285, %286 : vector<8x128xf32>
    %288 = vector.extract_strided_slice %245 {offsets = [0, 128], sizes = [8, 128], strides = [1, 1]} : vector<8x384xf32> to vector<8x128xf32>
    %289 = vector.extract_strided_slice %279 {offsets = [0, 128], sizes = [8, 128], strides = [1, 1]} : vector<8x384xf32> to vector<8x128xf32>
    %290 = arith.addf %288, %289 : vector<8x128xf32>
    %291 = arith.negf %290 : vector<8x128xf32>
    %292 = math.exp %291 : vector<8x128xf32>
    %cst_70 = arith.constant 1.000000e+00 : f32
    %293 = vector.broadcast %cst_70 : f32 to vector<8x128xf32>
    %294 = arith.addf %293, %292 : vector<8x128xf32>
    %295 = arith.divf %293, %294 : vector<8x128xf32>
    %296 = vector.extract_strided_slice %245 {offsets = [0, 256], sizes = [8, 128], strides = [1, 1]} : vector<8x384xf32> to vector<8x128xf32>
    %297 = vector.extract_strided_slice %279 {offsets = [0, 256], sizes = [8, 128], strides = [1, 1]} : vector<8x384xf32> to vector<8x128xf32>
    %298 = arith.mulf %287, %297 : vector<8x128xf32>
    %299 = arith.addf %296, %298 : vector<8x128xf32>
    %300 = math.tanh %299 : vector<8x128xf32>
    %cst_71 = arith.constant 1.000000e+00 : f32
    %301 = vector.broadcast %cst_71 : f32 to vector<8x128xf32>
    %302 = arith.subf %301, %295 : vector<8x128xf32>
    %303 = arith.mulf %302, %300 : vector<8x128xf32>
    %304 = arith.mulf %295, %232 : vector<8x128xf32>
    %305 = arith.addf %303, %304 : vector<8x128xf32>
    %306 = arith.index_cast %238 : i32 to index
    %c0_72 = arith.constant 0 : index
    %307 = vector.load %arg19[%306, %c0_72] : memref<64x256xf32, #tpu.memory_space<vmem>>, vector<8x128xf32>
    tpu.vector_store %arg19[%306, %c0_72], %275 {strides = array<i32>} : memref<64x256xf32, #tpu.memory_space<vmem>>, vector<8x128xf32>,
    %308 = arith.index_cast %241 : i32 to index
    %c128_73 = arith.constant 128 : index
    %309 = vector.load %arg19[%308, %c128_73] : memref<64x256xf32, #tpu.memory_space<vmem>>, vector<8x128xf32>
    tpu.vector_store %arg19[%308, %c128_73], %305 {strides = array<i32>} : memref<64x256xf32, #tpu.memory_space<vmem>>, vector<8x128xf32>,
    %c4_i32 = arith.constant 4 : i32
    %c8_i32_74 = arith.constant 8 : i32
    %310 = arith.muli %c4_i32, %c8_i32_74 : i32
    %311 = tpu.assume_multiple %310, 8 : i32
    %c7_i32_75 = arith.constant 7 : i32
    %312 = arith.subi %c7_i32_75, %c4_i32 : i32
    %c8_i32_76 = arith.constant 8 : i32
    %313 = arith.muli %312, %c8_i32_76 : i32
    %314 = tpu.assume_multiple %313, 8 : i32
    %315 = arith.index_cast %311 : i32 to index
    %c0_77 = arith.constant 0 : index
    %316 = vector.load %arg18[%315, %c0_77] : memref<64x768xf32, #tpu.memory_space<vmem>>, vector<8x384xf32>
    %317 = arith.index_cast %314 : i32 to index
    %c384_78 = arith.constant 384 : index
    %318 = vector.load %arg18[%317, %c384_78] : memref<64x768xf32, #tpu.memory_space<vmem>>, vector<8x384xf32>
    %319 = arith.truncf %275 : vector<8x128xf32> to vector<8x128xbf16>
    %cst_79 = arith.constant dense<0.000000e+00> : vector<8x384xf32>
    %320 = tpu.matmul %319, %14, %cst_79 {dimension_numbers = #tpu.dot_dimension_numbers<[1], [0], [0], [1], [0, 0, 1, 1], [], []>} : vector<8x128xbf16>, vector<128x384xbf16>, vector<8x384xf32> -> vector<8x384xf32>
    %321 = vector.broadcast %15 : vector<1x384xf32> to vector<8x384xf32>
    %322 = arith.addf %320, %321 : vector<8x384xf32>
    %323 = vector.extract_strided_slice %316 {offsets = [0, 0], sizes = [8, 128], strides = [1, 1]} : vector<8x384xf32> to vector<8x128xf32>
    %324 = vector.extract_strided_slice %322 {offsets = [0, 0], sizes = [8, 128], strides = [1, 1]} : vector<8x384xf32> to vector<8x128xf32>
    %325 = arith.addf %323, %324 : vector<8x128xf32>
    %326 = arith.negf %325 : vector<8x128xf32>
    %327 = math.exp %326 : vector<8x128xf32>
    %cst_80 = arith.constant 1.000000e+00 : f32
    %328 = vector.broadcast %cst_80 : f32 to vector<8x128xf32>
    %329 = arith.addf %328, %327 : vector<8x128xf32>
    %330 = arith.divf %328, %329 : vector<8x128xf32>
    %331 = vector.extract_strided_slice %316 {offsets = [0, 128], sizes = [8, 128], strides = [1, 1]} : vector<8x384xf32> to vector<8x128xf32>
    %332 = vector.extract_strided_slice %322 {offsets = [0, 128], sizes = [8, 128], strides = [1, 1]} : vector<8x384xf32> to vector<8x128xf32>
    %333 = arith.addf %331, %332 : vector<8x128xf32>
    %334 = arith.negf %333 : vector<8x128xf32>
    %335 = math.exp %334 : vector<8x128xf32>
    %cst_81 = arith.constant 1.000000e+00 : f32
    %336 = vector.broadcast %cst_81 : f32 to vector<8x128xf32>
    %337 = arith.addf %336, %335 : vector<8x128xf32>
    %338 = arith.divf %336, %337 : vector<8x128xf32>
    %339 = vector.extract_strided_slice %316 {offsets = [0, 256], sizes = [8, 128], strides = [1, 1]} : vector<8x384xf32> to vector<8x128xf32>
    %340 = vector.extract_strided_slice %322 {offsets = [0, 256], sizes = [8, 128], strides = [1, 1]} : vector<8x384xf32> to vector<8x128xf32>
    %341 = arith.mulf %330, %340 : vector<8x128xf32>
    %342 = arith.addf %339, %341 : vector<8x128xf32>
    %343 = math.tanh %342 : vector<8x128xf32>
    %cst_82 = arith.constant 1.000000e+00 : f32
    %344 = vector.broadcast %cst_82 : f32 to vector<8x128xf32>
    %345 = arith.subf %344, %338 : vector<8x128xf32>
    %346 = arith.mulf %345, %343 : vector<8x128xf32>
    %347 = arith.mulf %338, %275 : vector<8x128xf32>
    %348 = arith.addf %346, %347 : vector<8x128xf32>
    %349 = arith.truncf %305 : vector<8x128xf32> to vector<8x128xbf16>
    %cst_83 = arith.constant dense<0.000000e+00> : vector<8x384xf32>
    %350 = tpu.matmul %349, %16, %cst_83 {dimension_numbers = #tpu.dot_dimension_numbers<[1], [0], [0], [1], [0, 0, 1, 1], [], []>} : vector<8x128xbf16>, vector<128x384xbf16>, vector<8x384xf32> -> vector<8x384xf32>
    %351 = vector.broadcast %17 : vector<1x384xf32> to vector<8x384xf32>
    %352 = arith.addf %350, %351 : vector<8x384xf32>
    %353 = vector.extract_strided_slice %318 {offsets = [0, 0], sizes = [8, 128], strides = [1, 1]} : vector<8x384xf32> to vector<8x128xf32>
    %354 = vector.extract_strided_slice %352 {offsets = [0, 0], sizes = [8, 128], strides = [1, 1]} : vector<8x384xf32> to vector<8x128xf32>
    %355 = arith.addf %353, %354 : vector<8x128xf32>
    %356 = arith.negf %355 : vector<8x128xf32>
    %357 = math.exp %356 : vector<8x128xf32>
    %cst_84 = arith.constant 1.000000e+00 : f32
    %358 = vector.broadcast %cst_84 : f32 to vector<8x128xf32>
    %359 = arith.addf %358, %357 : vector<8x128xf32>
    %360 = arith.divf %358, %359 : vector<8x128xf32>
    %361 = vector.extract_strided_slice %318 {offsets = [0, 128], sizes = [8, 128], strides = [1, 1]} : vector<8x384xf32> to vector<8x128xf32>
    %362 = vector.extract_strided_slice %352 {offsets = [0, 128], sizes = [8, 128], strides = [1, 1]} : vector<8x384xf32> to vector<8x128xf32>
    %363 = arith.addf %361, %362 : vector<8x128xf32>
    %364 = arith.negf %363 : vector<8x128xf32>
    %365 = math.exp %364 : vector<8x128xf32>
    %cst_85 = arith.constant 1.000000e+00 : f32
    %366 = vector.broadcast %cst_85 : f32 to vector<8x128xf32>
    %367 = arith.addf %366, %365 : vector<8x128xf32>
    %368 = arith.divf %366, %367 : vector<8x128xf32>
    %369 = vector.extract_strided_slice %318 {offsets = [0, 256], sizes = [8, 128], strides = [1, 1]} : vector<8x384xf32> to vector<8x128xf32>
    %370 = vector.extract_strided_slice %352 {offsets = [0, 256], sizes = [8, 128], strides = [1, 1]} : vector<8x384xf32> to vector<8x128xf32>
    %371 = arith.mulf %360, %370 : vector<8x128xf32>
    %372 = arith.addf %369, %371 : vector<8x128xf32>
    %373 = math.tanh %372 : vector<8x128xf32>
    %cst_86 = arith.constant 1.000000e+00 : f32
    %374 = vector.broadcast %cst_86 : f32 to vector<8x128xf32>
    %375 = arith.subf %374, %368 : vector<8x128xf32>
    %376 = arith.mulf %375, %373 : vector<8x128xf32>
    %377 = arith.mulf %368, %305 : vector<8x128xf32>
    %378 = arith.addf %376, %377 : vector<8x128xf32>
    %379 = arith.index_cast %311 : i32 to index
    %c0_87 = arith.constant 0 : index
    %380 = vector.load %arg19[%379, %c0_87] : memref<64x256xf32, #tpu.memory_space<vmem>>, vector<8x128xf32>
    tpu.vector_store %arg19[%379, %c0_87], %348 {strides = array<i32>} : memref<64x256xf32, #tpu.memory_space<vmem>>, vector<8x128xf32>,
    %381 = arith.index_cast %314 : i32 to index
    %c128_88 = arith.constant 128 : index
    %382 = vector.load %arg19[%381, %c128_88] : memref<64x256xf32, #tpu.memory_space<vmem>>, vector<8x128xf32>
    tpu.vector_store %arg19[%381, %c128_88], %378 {strides = array<i32>} : memref<64x256xf32, #tpu.memory_space<vmem>>, vector<8x128xf32>,
    %c5_i32 = arith.constant 5 : i32
    %c8_i32_89 = arith.constant 8 : i32
    %383 = arith.muli %c5_i32, %c8_i32_89 : i32
    %384 = tpu.assume_multiple %383, 8 : i32
    %c7_i32_90 = arith.constant 7 : i32
    %385 = arith.subi %c7_i32_90, %c5_i32 : i32
    %c8_i32_91 = arith.constant 8 : i32
    %386 = arith.muli %385, %c8_i32_91 : i32
    %387 = tpu.assume_multiple %386, 8 : i32
    %388 = arith.index_cast %384 : i32 to index
    %c0_92 = arith.constant 0 : index
    %389 = vector.load %arg18[%388, %c0_92] : memref<64x768xf32, #tpu.memory_space<vmem>>, vector<8x384xf32>
    %390 = arith.index_cast %387 : i32 to index
    %c384_93 = arith.constant 384 : index
    %391 = vector.load %arg18[%390, %c384_93] : memref<64x768xf32, #tpu.memory_space<vmem>>, vector<8x384xf32>
    %392 = arith.truncf %348 : vector<8x128xf32> to vector<8x128xbf16>
    %cst_94 = arith.constant dense<0.000000e+00> : vector<8x384xf32>
    %393 = tpu.matmul %392, %14, %cst_94 {dimension_numbers = #tpu.dot_dimension_numbers<[1], [0], [0], [1], [0, 0, 1, 1], [], []>} : vector<8x128xbf16>, vector<128x384xbf16>, vector<8x384xf32> -> vector<8x384xf32>
    %394 = vector.broadcast %15 : vector<1x384xf32> to vector<8x384xf32>
    %395 = arith.addf %393, %394 : vector<8x384xf32>
    %396 = vector.extract_strided_slice %389 {offsets = [0, 0], sizes = [8, 128], strides = [1, 1]} : vector<8x384xf32> to vector<8x128xf32>
    %397 = vector.extract_strided_slice %395 {offsets = [0, 0], sizes = [8, 128], strides = [1, 1]} : vector<8x384xf32> to vector<8x128xf32>
    %398 = arith.addf %396, %397 : vector<8x128xf32>
    %399 = arith.negf %398 : vector<8x128xf32>
    %400 = math.exp %399 : vector<8x128xf32>
    %cst_95 = arith.constant 1.000000e+00 : f32
    %401 = vector.broadcast %cst_95 : f32 to vector<8x128xf32>
    %402 = arith.addf %401, %400 : vector<8x128xf32>
    %403 = arith.divf %401, %402 : vector<8x128xf32>
    %404 = vector.extract_strided_slice %389 {offsets = [0, 128], sizes = [8, 128], strides = [1, 1]} : vector<8x384xf32> to vector<8x128xf32>
    %405 = vector.extract_strided_slice %395 {offsets = [0, 128], sizes = [8, 128], strides = [1, 1]} : vector<8x384xf32> to vector<8x128xf32>
    %406 = arith.addf %404, %405 : vector<8x128xf32>
    %407 = arith.negf %406 : vector<8x128xf32>
    %408 = math.exp %407 : vector<8x128xf32>
    %cst_96 = arith.constant 1.000000e+00 : f32
    %409 = vector.broadcast %cst_96 : f32 to vector<8x128xf32>
    %410 = arith.addf %409, %408 : vector<8x128xf32>
    %411 = arith.divf %409, %410 : vector<8x128xf32>
    %412 = vector.extract_strided_slice %389 {offsets = [0, 256], sizes = [8, 128], strides = [1, 1]} : vector<8x384xf32> to vector<8x128xf32>
    %413 = vector.extract_strided_slice %395 {offsets = [0, 256], sizes = [8, 128], strides = [1, 1]} : vector<8x384xf32> to vector<8x128xf32>
    %414 = arith.mulf %403, %413 : vector<8x128xf32>
    %415 = arith.addf %412, %414 : vector<8x128xf32>
    %416 = math.tanh %415 : vector<8x128xf32>
    %cst_97 = arith.constant 1.000000e+00 : f32
    %417 = vector.broadcast %cst_97 : f32 to vector<8x128xf32>
    %418 = arith.subf %417, %411 : vector<8x128xf32>
    %419 = arith.mulf %418, %416 : vector<8x128xf32>
    %420 = arith.mulf %411, %348 : vector<8x128xf32>
    %421 = arith.addf %419, %420 : vector<8x128xf32>
    %422 = arith.truncf %378 : vector<8x128xf32> to vector<8x128xbf16>
    %cst_98 = arith.constant dense<0.000000e+00> : vector<8x384xf32>
    %423 = tpu.matmul %422, %16, %cst_98 {dimension_numbers = #tpu.dot_dimension_numbers<[1], [0], [0], [1], [0, 0, 1, 1], [], []>} : vector<8x128xbf16>, vector<128x384xbf16>, vector<8x384xf32> -> vector<8x384xf32>
    %424 = vector.broadcast %17 : vector<1x384xf32> to vector<8x384xf32>
    %425 = arith.addf %423, %424 : vector<8x384xf32>
    %426 = vector.extract_strided_slice %391 {offsets = [0, 0], sizes = [8, 128], strides = [1, 1]} : vector<8x384xf32> to vector<8x128xf32>
    %427 = vector.extract_strided_slice %425 {offsets = [0, 0], sizes = [8, 128], strides = [1, 1]} : vector<8x384xf32> to vector<8x128xf32>
    %428 = arith.addf %426, %427 : vector<8x128xf32>
    %429 = arith.negf %428 : vector<8x128xf32>
    %430 = math.exp %429 : vector<8x128xf32>
    %cst_99 = arith.constant 1.000000e+00 : f32
    %431 = vector.broadcast %cst_99 : f32 to vector<8x128xf32>
    %432 = arith.addf %431, %430 : vector<8x128xf32>
    %433 = arith.divf %431, %432 : vector<8x128xf32>
    %434 = vector.extract_strided_slice %391 {offsets = [0, 128], sizes = [8, 128], strides = [1, 1]} : vector<8x384xf32> to vector<8x128xf32>
    %435 = vector.extract_strided_slice %425 {offsets = [0, 128], sizes = [8, 128], strides = [1, 1]} : vector<8x384xf32> to vector<8x128xf32>
    %436 = arith.addf %434, %435 : vector<8x128xf32>
    %437 = arith.negf %436 : vector<8x128xf32>
    %438 = math.exp %437 : vector<8x128xf32>
    %cst_100 = arith.constant 1.000000e+00 : f32
    %439 = vector.broadcast %cst_100 : f32 to vector<8x128xf32>
    %440 = arith.addf %439, %438 : vector<8x128xf32>
    %441 = arith.divf %439, %440 : vector<8x128xf32>
    %442 = vector.extract_strided_slice %391 {offsets = [0, 256], sizes = [8, 128], strides = [1, 1]} : vector<8x384xf32> to vector<8x128xf32>
    %443 = vector.extract_strided_slice %425 {offsets = [0, 256], sizes = [8, 128], strides = [1, 1]} : vector<8x384xf32> to vector<8x128xf32>
    %444 = arith.mulf %433, %443 : vector<8x128xf32>
    %445 = arith.addf %442, %444 : vector<8x128xf32>
    %446 = math.tanh %445 : vector<8x128xf32>
    %cst_101 = arith.constant 1.000000e+00 : f32
    %447 = vector.broadcast %cst_101 : f32 to vector<8x128xf32>
    %448 = arith.subf %447, %441 : vector<8x128xf32>
    %449 = arith.mulf %448, %446 : vector<8x128xf32>
    %450 = arith.mulf %441, %378 : vector<8x128xf32>
    %451 = arith.addf %449, %450 : vector<8x128xf32>
    %452 = arith.index_cast %384 : i32 to index
    %c0_102 = arith.constant 0 : index
    %453 = vector.load %arg19[%452, %c0_102] : memref<64x256xf32, #tpu.memory_space<vmem>>, vector<8x128xf32>
    tpu.vector_store %arg19[%452, %c0_102], %421 {strides = array<i32>} : memref<64x256xf32, #tpu.memory_space<vmem>>, vector<8x128xf32>,
    %454 = arith.index_cast %387 : i32 to index
    %c128_103 = arith.constant 128 : index
    %455 = vector.load %arg19[%454, %c128_103] : memref<64x256xf32, #tpu.memory_space<vmem>>, vector<8x128xf32>
    tpu.vector_store %arg19[%454, %c128_103], %451 {strides = array<i32>} : memref<64x256xf32, #tpu.memory_space<vmem>>, vector<8x128xf32>,
    %c6_i32 = arith.constant 6 : i32
    %c8_i32_104 = arith.constant 8 : i32
    %456 = arith.muli %c6_i32, %c8_i32_104 : i32
    %457 = tpu.assume_multiple %456, 8 : i32
    %c7_i32_105 = arith.constant 7 : i32
    %458 = arith.subi %c7_i32_105, %c6_i32 : i32
    %c8_i32_106 = arith.constant 8 : i32
    %459 = arith.muli %458, %c8_i32_106 : i32
    %460 = tpu.assume_multiple %459, 8 : i32
    %461 = arith.index_cast %457 : i32 to index
    %c0_107 = arith.constant 0 : index
    %462 = vector.load %arg18[%461, %c0_107] : memref<64x768xf32, #tpu.memory_space<vmem>>, vector<8x384xf32>
    %463 = arith.index_cast %460 : i32 to index
    %c384_108 = arith.constant 384 : index
    %464 = vector.load %arg18[%463, %c384_108] : memref<64x768xf32, #tpu.memory_space<vmem>>, vector<8x384xf32>
    %465 = arith.truncf %421 : vector<8x128xf32> to vector<8x128xbf16>
    %cst_109 = arith.constant dense<0.000000e+00> : vector<8x384xf32>
    %466 = tpu.matmul %465, %14, %cst_109 {dimension_numbers = #tpu.dot_dimension_numbers<[1], [0], [0], [1], [0, 0, 1, 1], [], []>} : vector<8x128xbf16>, vector<128x384xbf16>, vector<8x384xf32> -> vector<8x384xf32>
    %467 = vector.broadcast %15 : vector<1x384xf32> to vector<8x384xf32>
    %468 = arith.addf %466, %467 : vector<8x384xf32>
    %469 = vector.extract_strided_slice %462 {offsets = [0, 0], sizes = [8, 128], strides = [1, 1]} : vector<8x384xf32> to vector<8x128xf32>
    %470 = vector.extract_strided_slice %468 {offsets = [0, 0], sizes = [8, 128], strides = [1, 1]} : vector<8x384xf32> to vector<8x128xf32>
    %471 = arith.addf %469, %470 : vector<8x128xf32>
    %472 = arith.negf %471 : vector<8x128xf32>
    %473 = math.exp %472 : vector<8x128xf32>
    %cst_110 = arith.constant 1.000000e+00 : f32
    %474 = vector.broadcast %cst_110 : f32 to vector<8x128xf32>
    %475 = arith.addf %474, %473 : vector<8x128xf32>
    %476 = arith.divf %474, %475 : vector<8x128xf32>
    %477 = vector.extract_strided_slice %462 {offsets = [0, 128], sizes = [8, 128], strides = [1, 1]} : vector<8x384xf32> to vector<8x128xf32>
    %478 = vector.extract_strided_slice %468 {offsets = [0, 128], sizes = [8, 128], strides = [1, 1]} : vector<8x384xf32> to vector<8x128xf32>
    %479 = arith.addf %477, %478 : vector<8x128xf32>
    %480 = arith.negf %479 : vector<8x128xf32>
    %481 = math.exp %480 : vector<8x128xf32>
    %cst_111 = arith.constant 1.000000e+00 : f32
    %482 = vector.broadcast %cst_111 : f32 to vector<8x128xf32>
    %483 = arith.addf %482, %481 : vector<8x128xf32>
    %484 = arith.divf %482, %483 : vector<8x128xf32>
    %485 = vector.extract_strided_slice %462 {offsets = [0, 256], sizes = [8, 128], strides = [1, 1]} : vector<8x384xf32> to vector<8x128xf32>
    %486 = vector.extract_strided_slice %468 {offsets = [0, 256], sizes = [8, 128], strides = [1, 1]} : vector<8x384xf32> to vector<8x128xf32>
    %487 = arith.mulf %476, %486 : vector<8x128xf32>
    %488 = arith.addf %485, %487 : vector<8x128xf32>
    %489 = math.tanh %488 : vector<8x128xf32>
    %cst_112 = arith.constant 1.000000e+00 : f32
    %490 = vector.broadcast %cst_112 : f32 to vector<8x128xf32>
    %491 = arith.subf %490, %484 : vector<8x128xf32>
    %492 = arith.mulf %491, %489 : vector<8x128xf32>
    %493 = arith.mulf %484, %421 : vector<8x128xf32>
    %494 = arith.addf %492, %493 : vector<8x128xf32>
    %495 = arith.truncf %451 : vector<8x128xf32> to vector<8x128xbf16>
    %cst_113 = arith.constant dense<0.000000e+00> : vector<8x384xf32>
    %496 = tpu.matmul %495, %16, %cst_113 {dimension_numbers = #tpu.dot_dimension_numbers<[1], [0], [0], [1], [0, 0, 1, 1], [], []>} : vector<8x128xbf16>, vector<128x384xbf16>, vector<8x384xf32> -> vector<8x384xf32>
    %497 = vector.broadcast %17 : vector<1x384xf32> to vector<8x384xf32>
    %498 = arith.addf %496, %497 : vector<8x384xf32>
    %499 = vector.extract_strided_slice %464 {offsets = [0, 0], sizes = [8, 128], strides = [1, 1]} : vector<8x384xf32> to vector<8x128xf32>
    %500 = vector.extract_strided_slice %498 {offsets = [0, 0], sizes = [8, 128], strides = [1, 1]} : vector<8x384xf32> to vector<8x128xf32>
    %501 = arith.addf %499, %500 : vector<8x128xf32>
    %502 = arith.negf %501 : vector<8x128xf32>
    %503 = math.exp %502 : vector<8x128xf32>
    %cst_114 = arith.constant 1.000000e+00 : f32
    %504 = vector.broadcast %cst_114 : f32 to vector<8x128xf32>
    %505 = arith.addf %504, %503 : vector<8x128xf32>
    %506 = arith.divf %504, %505 : vector<8x128xf32>
    %507 = vector.extract_strided_slice %464 {offsets = [0, 128], sizes = [8, 128], strides = [1, 1]} : vector<8x384xf32> to vector<8x128xf32>
    %508 = vector.extract_strided_slice %498 {offsets = [0, 128], sizes = [8, 128], strides = [1, 1]} : vector<8x384xf32> to vector<8x128xf32>
    %509 = arith.addf %507, %508 : vector<8x128xf32>
    %510 = arith.negf %509 : vector<8x128xf32>
    %511 = math.exp %510 : vector<8x128xf32>
    %cst_115 = arith.constant 1.000000e+00 : f32
    %512 = vector.broadcast %cst_115 : f32 to vector<8x128xf32>
    %513 = arith.addf %512, %511 : vector<8x128xf32>
    %514 = arith.divf %512, %513 : vector<8x128xf32>
    %515 = vector.extract_strided_slice %464 {offsets = [0, 256], sizes = [8, 128], strides = [1, 1]} : vector<8x384xf32> to vector<8x128xf32>
    %516 = vector.extract_strided_slice %498 {offsets = [0, 256], sizes = [8, 128], strides = [1, 1]} : vector<8x384xf32> to vector<8x128xf32>
    %517 = arith.mulf %506, %516 : vector<8x128xf32>
    %518 = arith.addf %515, %517 : vector<8x128xf32>
    %519 = math.tanh %518 : vector<8x128xf32>
    %cst_116 = arith.constant 1.000000e+00 : f32
    %520 = vector.broadcast %cst_116 : f32 to vector<8x128xf32>
    %521 = arith.subf %520, %514 : vector<8x128xf32>
    %522 = arith.mulf %521, %519 : vector<8x128xf32>
    %523 = arith.mulf %514, %451 : vector<8x128xf32>
    %524 = arith.addf %522, %523 : vector<8x128xf32>
    %525 = arith.index_cast %457 : i32 to index
    %c0_117 = arith.constant 0 : index
    %526 = vector.load %arg19[%525, %c0_117] : memref<64x256xf32, #tpu.memory_space<vmem>>, vector<8x128xf32>
    tpu.vector_store %arg19[%525, %c0_117], %494 {strides = array<i32>} : memref<64x256xf32, #tpu.memory_space<vmem>>, vector<8x128xf32>,
    %527 = arith.index_cast %460 : i32 to index
    %c128_118 = arith.constant 128 : index
    %528 = vector.load %arg19[%527, %c128_118] : memref<64x256xf32, #tpu.memory_space<vmem>>, vector<8x128xf32>
    tpu.vector_store %arg19[%527, %c128_118], %524 {strides = array<i32>} : memref<64x256xf32, #tpu.memory_space<vmem>>, vector<8x128xf32>,
    %c7_i32_119 = arith.constant 7 : i32
    %c8_i32_120 = arith.constant 8 : i32
    %529 = arith.muli %c7_i32_119, %c8_i32_120 : i32
    %530 = tpu.assume_multiple %529, 8 : i32
    %c7_i32_121 = arith.constant 7 : i32
    %531 = arith.subi %c7_i32_121, %c7_i32_119 : i32
    %c8_i32_122 = arith.constant 8 : i32
    %532 = arith.muli %531, %c8_i32_122 : i32
    %533 = tpu.assume_multiple %532, 8 : i32
    %534 = arith.index_cast %530 : i32 to index
    %c0_123 = arith.constant 0 : index
    %535 = vector.load %arg18[%534, %c0_123] : memref<64x768xf32, #tpu.memory_space<vmem>>, vector<8x384xf32>
    %536 = arith.index_cast %533 : i32 to index
    %c384_124 = arith.constant 384 : index
    %537 = vector.load %arg18[%536, %c384_124] : memref<64x768xf32, #tpu.memory_space<vmem>>, vector<8x384xf32>
    %538 = arith.truncf %494 : vector<8x128xf32> to vector<8x128xbf16>
    %cst_125 = arith.constant dense<0.000000e+00> : vector<8x384xf32>
    %539 = tpu.matmul %538, %14, %cst_125 {dimension_numbers = #tpu.dot_dimension_numbers<[1], [0], [0], [1], [0, 0, 1, 1], [], []>} : vector<8x128xbf16>, vector<128x384xbf16>, vector<8x384xf32> -> vector<8x384xf32>
    %540 = vector.broadcast %15 : vector<1x384xf32> to vector<8x384xf32>
    %541 = arith.addf %539, %540 : vector<8x384xf32>
    %542 = vector.extract_strided_slice %535 {offsets = [0, 0], sizes = [8, 128], strides = [1, 1]} : vector<8x384xf32> to vector<8x128xf32>
    %543 = vector.extract_strided_slice %541 {offsets = [0, 0], sizes = [8, 128], strides = [1, 1]} : vector<8x384xf32> to vector<8x128xf32>
    %544 = arith.addf %542, %543 : vector<8x128xf32>
    %545 = arith.negf %544 : vector<8x128xf32>
    %546 = math.exp %545 : vector<8x128xf32>
    %cst_126 = arith.constant 1.000000e+00 : f32
    %547 = vector.broadcast %cst_126 : f32 to vector<8x128xf32>
    %548 = arith.addf %547, %546 : vector<8x128xf32>
    %549 = arith.divf %547, %548 : vector<8x128xf32>
    %550 = vector.extract_strided_slice %535 {offsets = [0, 128], sizes = [8, 128], strides = [1, 1]} : vector<8x384xf32> to vector<8x128xf32>
    %551 = vector.extract_strided_slice %541 {offsets = [0, 128], sizes = [8, 128], strides = [1, 1]} : vector<8x384xf32> to vector<8x128xf32>
    %552 = arith.addf %550, %551 : vector<8x128xf32>
    %553 = arith.negf %552 : vector<8x128xf32>
    %554 = math.exp %553 : vector<8x128xf32>
    %cst_127 = arith.constant 1.000000e+00 : f32
    %555 = vector.broadcast %cst_127 : f32 to vector<8x128xf32>
    %556 = arith.addf %555, %554 : vector<8x128xf32>
    %557 = arith.divf %555, %556 : vector<8x128xf32>
    %558 = vector.extract_strided_slice %535 {offsets = [0, 256], sizes = [8, 128], strides = [1, 1]} : vector<8x384xf32> to vector<8x128xf32>
    %559 = vector.extract_strided_slice %541 {offsets = [0, 256], sizes = [8, 128], strides = [1, 1]} : vector<8x384xf32> to vector<8x128xf32>
    %560 = arith.mulf %549, %559 : vector<8x128xf32>
    %561 = arith.addf %558, %560 : vector<8x128xf32>
    %562 = math.tanh %561 : vector<8x128xf32>
    %cst_128 = arith.constant 1.000000e+00 : f32
    %563 = vector.broadcast %cst_128 : f32 to vector<8x128xf32>
    %564 = arith.subf %563, %557 : vector<8x128xf32>
    %565 = arith.mulf %564, %562 : vector<8x128xf32>
    %566 = arith.mulf %557, %494 : vector<8x128xf32>
    %567 = arith.addf %565, %566 : vector<8x128xf32>
    %568 = arith.truncf %524 : vector<8x128xf32> to vector<8x128xbf16>
    %cst_129 = arith.constant dense<0.000000e+00> : vector<8x384xf32>
    %569 = tpu.matmul %568, %16, %cst_129 {dimension_numbers = #tpu.dot_dimension_numbers<[1], [0], [0], [1], [0, 0, 1, 1], [], []>} : vector<8x128xbf16>, vector<128x384xbf16>, vector<8x384xf32> -> vector<8x384xf32>
    %570 = vector.broadcast %17 : vector<1x384xf32> to vector<8x384xf32>
    %571 = arith.addf %569, %570 : vector<8x384xf32>
    %572 = vector.extract_strided_slice %537 {offsets = [0, 0], sizes = [8, 128], strides = [1, 1]} : vector<8x384xf32> to vector<8x128xf32>
    %573 = vector.extract_strided_slice %571 {offsets = [0, 0], sizes = [8, 128], strides = [1, 1]} : vector<8x384xf32> to vector<8x128xf32>
    %574 = arith.addf %572, %573 : vector<8x128xf32>
    %575 = arith.negf %574 : vector<8x128xf32>
    %576 = math.exp %575 : vector<8x128xf32>
    %cst_130 = arith.constant 1.000000e+00 : f32
    %577 = vector.broadcast %cst_130 : f32 to vector<8x128xf32>
    %578 = arith.addf %577, %576 : vector<8x128xf32>
    %579 = arith.divf %577, %578 : vector<8x128xf32>
    %580 = vector.extract_strided_slice %537 {offsets = [0, 128], sizes = [8, 128], strides = [1, 1]} : vector<8x384xf32> to vector<8x128xf32>
    %581 = vector.extract_strided_slice %571 {offsets = [0, 128], sizes = [8, 128], strides = [1, 1]} : vector<8x384xf32> to vector<8x128xf32>
    %582 = arith.addf %580, %581 : vector<8x128xf32>
    %583 = arith.negf %582 : vector<8x128xf32>
    %584 = math.exp %583 : vector<8x128xf32>
    %cst_131 = arith.constant 1.000000e+00 : f32
    %585 = vector.broadcast %cst_131 : f32 to vector<8x128xf32>
    %586 = arith.addf %585, %584 : vector<8x128xf32>
    %587 = arith.divf %585, %586 : vector<8x128xf32>
    %588 = vector.extract_strided_slice %537 {offsets = [0, 256], sizes = [8, 128], strides = [1, 1]} : vector<8x384xf32> to vector<8x128xf32>
    %589 = vector.extract_strided_slice %571 {offsets = [0, 256], sizes = [8, 128], strides = [1, 1]} : vector<8x384xf32> to vector<8x128xf32>
    %590 = arith.mulf %579, %589 : vector<8x128xf32>
    %591 = arith.addf %588, %590 : vector<8x128xf32>
    %592 = math.tanh %591 : vector<8x128xf32>
    %cst_132 = arith.constant 1.000000e+00 : f32
    %593 = vector.broadcast %cst_132 : f32 to vector<8x128xf32>
    %594 = arith.subf %593, %587 : vector<8x128xf32>
    %595 = arith.mulf %594, %592 : vector<8x128xf32>
    %596 = arith.mulf %587, %524 : vector<8x128xf32>
    %597 = arith.addf %595, %596 : vector<8x128xf32>
    %598 = arith.index_cast %530 : i32 to index
    %c0_133 = arith.constant 0 : index
    %599 = vector.load %arg19[%598, %c0_133] : memref<64x256xf32, #tpu.memory_space<vmem>>, vector<8x128xf32>
    tpu.vector_store %arg19[%598, %c0_133], %567 {strides = array<i32>} : memref<64x256xf32, #tpu.memory_space<vmem>>, vector<8x128xf32>,
    %600 = arith.index_cast %533 : i32 to index
    %c128_134 = arith.constant 128 : index
    %601 = vector.load %arg19[%600, %c128_134] : memref<64x256xf32, #tpu.memory_space<vmem>>, vector<8x128xf32>
    tpu.vector_store %arg19[%600, %c128_134], %597 {strides = array<i32>} : memref<64x256xf32, #tpu.memory_space<vmem>>, vector<8x128xf32>,
    %c8_i32_135 = arith.constant 8 : i32
    %c0_136 = arith.constant 0 : index
    %c0_137 = arith.constant 0 : index
    %602 = vector.load %arg7[%c0_136, %c0_137] : memref<256x384xbf16, #tpu.memory_space<vmem>>, vector<256x384xbf16>
    %c0_138 = arith.constant 0 : index
    %c0_139 = arith.constant 0 : index
    %603 = vector.load %arg8[%c0_138, %c0_139] : memref<1x384xf32, #tpu.memory_space<vmem>>, vector<1x384xf32>
    %c0_i32_140 = arith.constant 0 : i32
    %c1_i32_141 = arith.constant 1 : i32
    %604 = arith.muli %c0_i32_140, %c1_i32_141 : i32
    %c0_i32_142 = arith.constant 0 : i32
    %605 = arith.addi %c0_i32_142, %604 : i32
    %c64_i32_143 = arith.constant 64 : i32
    %606 = arith.muli %605, %c64_i32_143 : i32
    %607 = tpu.assume_multiple %606, 64 : i32
    %608 = arith.index_cast %607 : i32 to index
    %c0_144 = arith.constant 0 : index
    %609 = vector.load %arg19[%608, %c0_144] : memref<64x256xf32, #tpu.memory_space<vmem>>, vector<64x256xf32>
    %610 = arith.truncf %609 : vector<64x256xf32> to vector<64x256xbf16>
    %cst_145 = arith.constant dense<0.000000e+00> : vector<64x384xf32>
    %611 = tpu.matmul %610, %602, %cst_145 {dimension_numbers = #tpu.dot_dimension_numbers<[1], [0], [0], [1], [0, 0, 1, 1], [], []>} : vector<64x256xbf16>, vector<256x384xbf16>, vector<64x384xf32> -> vector<64x384xf32>
    %612 = vector.broadcast %603 : vector<1x384xf32> to vector<64x384xf32>
    %613 = arith.addf %611, %612 : vector<64x384xf32>
    %614 = arith.index_cast %607 : i32 to index
    %c0_146 = arith.constant 0 : index
    %615 = vector.load %arg18[%614, %c0_146] : memref<64x768xf32, #tpu.memory_space<vmem>>, vector<64x384xf32>
    tpu.vector_store %arg18[%614, %c0_146], %613 {strides = array<i32>} : memref<64x768xf32, #tpu.memory_space<vmem>>, vector<64x384xf32>,
    %c1_i32_147 = arith.constant 1 : i32
    %c0_148 = arith.constant 0 : index
    %c0_149 = arith.constant 0 : index
    %616 = vector.load %arg9[%c0_148, %c0_149] : memref<128x384xbf16, #tpu.memory_space<vmem>>, vector<128x384xbf16>
    %c0_150 = arith.constant 0 : index
    %c0_151 = arith.constant 0 : index
    %617 = vector.load %arg10[%c0_150, %c0_151] : memref<1x384xf32, #tpu.memory_space<vmem>>, vector<1x384xf32>
    %c0_i32_152 = arith.constant 0 : i32
    %c8_i32_153 = arith.constant 8 : i32
    %618 = arith.muli %c0_i32_152, %c8_i32_153 : i32
    %619 = tpu.assume_multiple %618, 8 : i32
    %620 = arith.index_cast %619 : i32 to index
    %c0_154 = arith.constant 0 : index
    %621 = vector.load %arg18[%620, %c0_154] : memref<64x768xf32, #tpu.memory_space<vmem>>, vector<8x384xf32>
    %622 = arith.truncf %0 : vector<8x128xf32> to vector<8x128xbf16>
    %cst_155 = arith.constant dense<0.000000e+00> : vector<8x384xf32>
    %623 = tpu.matmul %622, %616, %cst_155 {dimension_numbers = #tpu.dot_dimension_numbers<[1], [0], [0], [1], [0, 0, 1, 1], [], []>} : vector<8x128xbf16>, vector<128x384xbf16>, vector<8x384xf32> -> vector<8x384xf32>
    %624 = vector.broadcast %617 : vector<1x384xf32> to vector<8x384xf32>
    %625 = arith.addf %623, %624 : vector<8x384xf32>
    %626 = vector.extract_strided_slice %621 {offsets = [0, 0], sizes = [8, 128], strides = [1, 1]} : vector<8x384xf32> to vector<8x128xf32>
    %627 = vector.extract_strided_slice %625 {offsets = [0, 0], sizes = [8, 128], strides = [1, 1]} : vector<8x384xf32> to vector<8x128xf32>
    %628 = arith.addf %626, %627 : vector<8x128xf32>
    %629 = arith.negf %628 : vector<8x128xf32>
    %630 = math.exp %629 : vector<8x128xf32>
    %cst_156 = arith.constant 1.000000e+00 : f32
    %631 = vector.broadcast %cst_156 : f32 to vector<8x128xf32>
    %632 = arith.addf %631, %630 : vector<8x128xf32>
    %633 = arith.divf %631, %632 : vector<8x128xf32>
    %634 = vector.extract_strided_slice %621 {offsets = [0, 128], sizes = [8, 128], strides = [1, 1]} : vector<8x384xf32> to vector<8x128xf32>
    %635 = vector.extract_strided_slice %625 {offsets = [0, 128], sizes = [8, 128], strides = [1, 1]} : vector<8x384xf32> to vector<8x128xf32>
    %636 = arith.addf %634, %635 : vector<8x128xf32>
    %637 = arith.negf %636 : vector<8x128xf32>
    %638 = math.exp %637 : vector<8x128xf32>
    %cst_157 = arith.constant 1.000000e+00 : f32
    %639 = vector.broadcast %cst_157 : f32 to vector<8x128xf32>
    %640 = arith.addf %639, %638 : vector<8x128xf32>
    %641 = arith.divf %639, %640 : vector<8x128xf32>
    %642 = vector.extract_strided_slice %621 {offsets = [0, 256], sizes = [8, 128], strides = [1, 1]} : vector<8x384xf32> to vector<8x128xf32>
    %643 = vector.extract_strided_slice %625 {offsets = [0, 256], sizes = [8, 128], strides = [1, 1]} : vector<8x384xf32> to vector<8x128xf32>
    %644 = arith.mulf %633, %643 : vector<8x128xf32>
    %645 = arith.addf %642, %644 : vector<8x128xf32>
    %646 = math.tanh %645 : vector<8x128xf32>
    %cst_158 = arith.constant 1.000000e+00 : f32
    %647 = vector.broadcast %cst_158 : f32 to vector<8x128xf32>
    %648 = arith.subf %647, %641 : vector<8x128xf32>
    %649 = arith.mulf %648, %646 : vector<8x128xf32>
    %650 = arith.mulf %641, %0 : vector<8x128xf32>
    %651 = arith.addf %649, %650 : vector<8x128xf32>
    %c1_i32_159 = arith.constant 1 : i32
    %c8_i32_160 = arith.constant 8 : i32
    %652 = arith.muli %c1_i32_159, %c8_i32_160 : i32
    %653 = tpu.assume_multiple %652, 8 : i32
    %654 = arith.index_cast %653 : i32 to index
    %c0_161 = arith.constant 0 : index
    %655 = vector.load %arg18[%654, %c0_161] : memref<64x768xf32, #tpu.memory_space<vmem>>, vector<8x384xf32>
    %656 = arith.truncf %651 : vector<8x128xf32> to vector<8x128xbf16>
    %cst_162 = arith.constant dense<0.000000e+00> : vector<8x384xf32>
    %657 = tpu.matmul %656, %616, %cst_162 {dimension_numbers = #tpu.dot_dimension_numbers<[1], [0], [0], [1], [0, 0, 1, 1], [], []>} : vector<8x128xbf16>, vector<128x384xbf16>, vector<8x384xf32> -> vector<8x384xf32>
    %658 = vector.broadcast %617 : vector<1x384xf32> to vector<8x384xf32>
    %659 = arith.addf %657, %658 : vector<8x384xf32>
    %660 = vector.extract_strided_slice %655 {offsets = [0, 0], sizes = [8, 128], strides = [1, 1]} : vector<8x384xf32> to vector<8x128xf32>
    %661 = vector.extract_strided_slice %659 {offsets = [0, 0], sizes = [8, 128], strides = [1, 1]} : vector<8x384xf32> to vector<8x128xf32>
    %662 = arith.addf %660, %661 : vector<8x128xf32>
    %663 = arith.negf %662 : vector<8x128xf32>
    %664 = math.exp %663 : vector<8x128xf32>
    %cst_163 = arith.constant 1.000000e+00 : f32
    %665 = vector.broadcast %cst_163 : f32 to vector<8x128xf32>
    %666 = arith.addf %665, %664 : vector<8x128xf32>
    %667 = arith.divf %665, %666 : vector<8x128xf32>
    %668 = vector.extract_strided_slice %655 {offsets = [0, 128], sizes = [8, 128], strides = [1, 1]} : vector<8x384xf32> to vector<8x128xf32>
    %669 = vector.extract_strided_slice %659 {offsets = [0, 128], sizes = [8, 128], strides = [1, 1]} : vector<8x384xf32> to vector<8x128xf32>
    %670 = arith.addf %668, %669 : vector<8x128xf32>
    %671 = arith.negf %670 : vector<8x128xf32>
    %672 = math.exp %671 : vector<8x128xf32>
    %cst_164 = arith.constant 1.000000e+00 : f32
    %673 = vector.broadcast %cst_164 : f32 to vector<8x128xf32>
    %674 = arith.addf %673, %672 : vector<8x128xf32>
    %675 = arith.divf %673, %674 : vector<8x128xf32>
    %676 = vector.extract_strided_slice %655 {offsets = [0, 256], sizes = [8, 128], strides = [1, 1]} : vector<8x384xf32> to vector<8x128xf32>
    %677 = vector.extract_strided_slice %659 {offsets = [0, 256], sizes = [8, 128], strides = [1, 1]} : vector<8x384xf32> to vector<8x128xf32>
    %678 = arith.mulf %667, %677 : vector<8x128xf32>
    %679 = arith.addf %676, %678 : vector<8x128xf32>
    %680 = math.tanh %679 : vector<8x128xf32>
    %cst_165 = arith.constant 1.000000e+00 : f32
    %681 = vector.broadcast %cst_165 : f32 to vector<8x128xf32>
    %682 = arith.subf %681, %675 : vector<8x128xf32>
    %683 = arith.mulf %682, %680 : vector<8x128xf32>
    %684 = arith.mulf %675, %651 : vector<8x128xf32>
    %685 = arith.addf %683, %684 : vector<8x128xf32>
    %c2_i32_166 = arith.constant 2 : i32
    %c8_i32_167 = arith.constant 8 : i32
    %686 = arith.muli %c2_i32_166, %c8_i32_167 : i32
    %687 = tpu.assume_multiple %686, 8 : i32
    %688 = arith.index_cast %687 : i32 to index
    %c0_168 = arith.constant 0 : index
    %689 = vector.load %arg18[%688, %c0_168] : memref<64x768xf32, #tpu.memory_space<vmem>>, vector<8x384xf32>
    %690 = arith.truncf %685 : vector<8x128xf32> to vector<8x128xbf16>
    %cst_169 = arith.constant dense<0.000000e+00> : vector<8x384xf32>
    %691 = tpu.matmul %690, %616, %cst_169 {dimension_numbers = #tpu.dot_dimension_numbers<[1], [0], [0], [1], [0, 0, 1, 1], [], []>} : vector<8x128xbf16>, vector<128x384xbf16>, vector<8x384xf32> -> vector<8x384xf32>
    %692 = vector.broadcast %617 : vector<1x384xf32> to vector<8x384xf32>
    %693 = arith.addf %691, %692 : vector<8x384xf32>
    %694 = vector.extract_strided_slice %689 {offsets = [0, 0], sizes = [8, 128], strides = [1, 1]} : vector<8x384xf32> to vector<8x128xf32>
    %695 = vector.extract_strided_slice %693 {offsets = [0, 0], sizes = [8, 128], strides = [1, 1]} : vector<8x384xf32> to vector<8x128xf32>
    %696 = arith.addf %694, %695 : vector<8x128xf32>
    %697 = arith.negf %696 : vector<8x128xf32>
    %698 = math.exp %697 : vector<8x128xf32>
    %cst_170 = arith.constant 1.000000e+00 : f32
    %699 = vector.broadcast %cst_170 : f32 to vector<8x128xf32>
    %700 = arith.addf %699, %698 : vector<8x128xf32>
    %701 = arith.divf %699, %700 : vector<8x128xf32>
    %702 = vector.extract_strided_slice %689 {offsets = [0, 128], sizes = [8, 128], strides = [1, 1]} : vector<8x384xf32> to vector<8x128xf32>
    %703 = vector.extract_strided_slice %693 {offsets = [0, 128], sizes = [8, 128], strides = [1, 1]} : vector<8x384xf32> to vector<8x128xf32>
    %704 = arith.addf %702, %703 : vector<8x128xf32>
    %705 = arith.negf %704 : vector<8x128xf32>
    %706 = math.exp %705 : vector<8x128xf32>
    %cst_171 = arith.constant 1.000000e+00 : f32
    %707 = vector.broadcast %cst_171 : f32 to vector<8x128xf32>
    %708 = arith.addf %707, %706 : vector<8x128xf32>
    %709 = arith.divf %707, %708 : vector<8x128xf32>
    %710 = vector.extract_strided_slice %689 {offsets = [0, 256], sizes = [8, 128], strides = [1, 1]} : vector<8x384xf32> to vector<8x128xf32>
    %711 = vector.extract_strided_slice %693 {offsets = [0, 256], sizes = [8, 128], strides = [1, 1]} : vector<8x384xf32> to vector<8x128xf32>
    %712 = arith.mulf %701, %711 : vector<8x128xf32>
    %713 = arith.addf %710, %712 : vector<8x128xf32>
    %714 = math.tanh %713 : vector<8x128xf32>
    %cst_172 = arith.constant 1.000000e+00 : f32
    %715 = vector.broadcast %cst_172 : f32 to vector<8x128xf32>
    %716 = arith.subf %715, %709 : vector<8x128xf32>
    %717 = arith.mulf %716, %714 : vector<8x128xf32>
    %718 = arith.mulf %709, %685 : vector<8x128xf32>
    %719 = arith.addf %717, %718 : vector<8x128xf32>
    %c3_i32_173 = arith.constant 3 : i32
    %c8_i32_174 = arith.constant 8 : i32
    %720 = arith.muli %c3_i32_173, %c8_i32_174 : i32
    %721 = tpu.assume_multiple %720, 8 : i32
    %722 = arith.index_cast %721 : i32 to index
    %c0_175 = arith.constant 0 : index
    %723 = vector.load %arg18[%722, %c0_175] : memref<64x768xf32, #tpu.memory_space<vmem>>, vector<8x384xf32>
    %724 = arith.truncf %719 : vector<8x128xf32> to vector<8x128xbf16>
    %cst_176 = arith.constant dense<0.000000e+00> : vector<8x384xf32>
    %725 = tpu.matmul %724, %616, %cst_176 {dimension_numbers = #tpu.dot_dimension_numbers<[1], [0], [0], [1], [0, 0, 1, 1], [], []>} : vector<8x128xbf16>, vector<128x384xbf16>, vector<8x384xf32> -> vector<8x384xf32>
    %726 = vector.broadcast %617 : vector<1x384xf32> to vector<8x384xf32>
    %727 = arith.addf %725, %726 : vector<8x384xf32>
    %728 = vector.extract_strided_slice %723 {offsets = [0, 0], sizes = [8, 128], strides = [1, 1]} : vector<8x384xf32> to vector<8x128xf32>
    %729 = vector.extract_strided_slice %727 {offsets = [0, 0], sizes = [8, 128], strides = [1, 1]} : vector<8x384xf32> to vector<8x128xf32>
    %730 = arith.addf %728, %729 : vector<8x128xf32>
    %731 = arith.negf %730 : vector<8x128xf32>
    %732 = math.exp %731 : vector<8x128xf32>
    %cst_177 = arith.constant 1.000000e+00 : f32
    %733 = vector.broadcast %cst_177 : f32 to vector<8x128xf32>
    %734 = arith.addf %733, %732 : vector<8x128xf32>
    %735 = arith.divf %733, %734 : vector<8x128xf32>
    %736 = vector.extract_strided_slice %723 {offsets = [0, 128], sizes = [8, 128], strides = [1, 1]} : vector<8x384xf32> to vector<8x128xf32>
    %737 = vector.extract_strided_slice %727 {offsets = [0, 128], sizes = [8, 128], strides = [1, 1]} : vector<8x384xf32> to vector<8x128xf32>
    %738 = arith.addf %736, %737 : vector<8x128xf32>
    %739 = arith.negf %738 : vector<8x128xf32>
    %740 = math.exp %739 : vector<8x128xf32>
    %cst_178 = arith.constant 1.000000e+00 : f32
    %741 = vector.broadcast %cst_178 : f32 to vector<8x128xf32>
    %742 = arith.addf %741, %740 : vector<8x128xf32>
    %743 = arith.divf %741, %742 : vector<8x128xf32>
    %744 = vector.extract_strided_slice %723 {offsets = [0, 256], sizes = [8, 128], strides = [1, 1]} : vector<8x384xf32> to vector<8x128xf32>
    %745 = vector.extract_strided_slice %727 {offsets = [0, 256], sizes = [8, 128], strides = [1, 1]} : vector<8x384xf32> to vector<8x128xf32>
    %746 = arith.mulf %735, %745 : vector<8x128xf32>
    %747 = arith.addf %744, %746 : vector<8x128xf32>
    %748 = math.tanh %747 : vector<8x128xf32>
    %cst_179 = arith.constant 1.000000e+00 : f32
    %749 = vector.broadcast %cst_179 : f32 to vector<8x128xf32>
    %750 = arith.subf %749, %743 : vector<8x128xf32>
    %751 = arith.mulf %750, %748 : vector<8x128xf32>
    %752 = arith.mulf %743, %719 : vector<8x128xf32>
    %753 = arith.addf %751, %752 : vector<8x128xf32>
    %c4_i32_180 = arith.constant 4 : i32
    %c8_i32_181 = arith.constant 8 : i32
    %754 = arith.muli %c4_i32_180, %c8_i32_181 : i32
    %755 = tpu.assume_multiple %754, 8 : i32
    %756 = arith.index_cast %755 : i32 to index
    %c0_182 = arith.constant 0 : index
    %757 = vector.load %arg18[%756, %c0_182] : memref<64x768xf32, #tpu.memory_space<vmem>>, vector<8x384xf32>
    %758 = arith.truncf %753 : vector<8x128xf32> to vector<8x128xbf16>
    %cst_183 = arith.constant dense<0.000000e+00> : vector<8x384xf32>
    %759 = tpu.matmul %758, %616, %cst_183 {dimension_numbers = #tpu.dot_dimension_numbers<[1], [0], [0], [1], [0, 0, 1, 1], [], []>} : vector<8x128xbf16>, vector<128x384xbf16>, vector<8x384xf32> -> vector<8x384xf32>
    %760 = vector.broadcast %617 : vector<1x384xf32> to vector<8x384xf32>
    %761 = arith.addf %759, %760 : vector<8x384xf32>
    %762 = vector.extract_strided_slice %757 {offsets = [0, 0], sizes = [8, 128], strides = [1, 1]} : vector<8x384xf32> to vector<8x128xf32>
    %763 = vector.extract_strided_slice %761 {offsets = [0, 0], sizes = [8, 128], strides = [1, 1]} : vector<8x384xf32> to vector<8x128xf32>
    %764 = arith.addf %762, %763 : vector<8x128xf32>
    %765 = arith.negf %764 : vector<8x128xf32>
    %766 = math.exp %765 : vector<8x128xf32>
    %cst_184 = arith.constant 1.000000e+00 : f32
    %767 = vector.broadcast %cst_184 : f32 to vector<8x128xf32>
    %768 = arith.addf %767, %766 : vector<8x128xf32>
    %769 = arith.divf %767, %768 : vector<8x128xf32>
    %770 = vector.extract_strided_slice %757 {offsets = [0, 128], sizes = [8, 128], strides = [1, 1]} : vector<8x384xf32> to vector<8x128xf32>
    %771 = vector.extract_strided_slice %761 {offsets = [0, 128], sizes = [8, 128], strides = [1, 1]} : vector<8x384xf32> to vector<8x128xf32>
    %772 = arith.addf %770, %771 : vector<8x128xf32>
    %773 = arith.negf %772 : vector<8x128xf32>
    %774 = math.exp %773 : vector<8x128xf32>
    %cst_185 = arith.constant 1.000000e+00 : f32
    %775 = vector.broadcast %cst_185 : f32 to vector<8x128xf32>
    %776 = arith.addf %775, %774 : vector<8x128xf32>
    %777 = arith.divf %775, %776 : vector<8x128xf32>
    %778 = vector.extract_strided_slice %757 {offsets = [0, 256], sizes = [8, 128], strides = [1, 1]} : vector<8x384xf32> to vector<8x128xf32>
    %779 = vector.extract_strided_slice %761 {offsets = [0, 256], sizes = [8, 128], strides = [1, 1]} : vector<8x384xf32> to vector<8x128xf32>
    %780 = arith.mulf %769, %779 : vector<8x128xf32>
    %781 = arith.addf %778, %780 : vector<8x128xf32>
    %782 = math.tanh %781 : vector<8x128xf32>
    %cst_186 = arith.constant 1.000000e+00 : f32
    %783 = vector.broadcast %cst_186 : f32 to vector<8x128xf32>
    %784 = arith.subf %783, %777 : vector<8x128xf32>
    %785 = arith.mulf %784, %782 : vector<8x128xf32>
    %786 = arith.mulf %777, %753 : vector<8x128xf32>
    %787 = arith.addf %785, %786 : vector<8x128xf32>
    %c5_i32_187 = arith.constant 5 : i32
    %c8_i32_188 = arith.constant 8 : i32
    %788 = arith.muli %c5_i32_187, %c8_i32_188 : i32
    %789 = tpu.assume_multiple %788, 8 : i32
    %790 = arith.index_cast %789 : i32 to index
    %c0_189 = arith.constant 0 : index
    %791 = vector.load %arg18[%790, %c0_189] : memref<64x768xf32, #tpu.memory_space<vmem>>, vector<8x384xf32>
    %792 = arith.truncf %787 : vector<8x128xf32> to vector<8x128xbf16>
    %cst_190 = arith.constant dense<0.000000e+00> : vector<8x384xf32>
    %793 = tpu.matmul %792, %616, %cst_190 {dimension_numbers = #tpu.dot_dimension_numbers<[1], [0], [0], [1], [0, 0, 1, 1], [], []>} : vector<8x128xbf16>, vector<128x384xbf16>, vector<8x384xf32> -> vector<8x384xf32>
    %794 = vector.broadcast %617 : vector<1x384xf32> to vector<8x384xf32>
    %795 = arith.addf %793, %794 : vector<8x384xf32>
    %796 = vector.extract_strided_slice %791 {offsets = [0, 0], sizes = [8, 128], strides = [1, 1]} : vector<8x384xf32> to vector<8x128xf32>
    %797 = vector.extract_strided_slice %795 {offsets = [0, 0], sizes = [8, 128], strides = [1, 1]} : vector<8x384xf32> to vector<8x128xf32>
    %798 = arith.addf %796, %797 : vector<8x128xf32>
    %799 = arith.negf %798 : vector<8x128xf32>
    %800 = math.exp %799 : vector<8x128xf32>
    %cst_191 = arith.constant 1.000000e+00 : f32
    %801 = vector.broadcast %cst_191 : f32 to vector<8x128xf32>
    %802 = arith.addf %801, %800 : vector<8x128xf32>
    %803 = arith.divf %801, %802 : vector<8x128xf32>
    %804 = vector.extract_strided_slice %791 {offsets = [0, 128], sizes = [8, 128], strides = [1, 1]} : vector<8x384xf32> to vector<8x128xf32>
    %805 = vector.extract_strided_slice %795 {offsets = [0, 128], sizes = [8, 128], strides = [1, 1]} : vector<8x384xf32> to vector<8x128xf32>
    %806 = arith.addf %804, %805 : vector<8x128xf32>
    %807 = arith.negf %806 : vector<8x128xf32>
    %808 = math.exp %807 : vector<8x128xf32>
    %cst_192 = arith.constant 1.000000e+00 : f32
    %809 = vector.broadcast %cst_192 : f32 to vector<8x128xf32>
    %810 = arith.addf %809, %808 : vector<8x128xf32>
    %811 = arith.divf %809, %810 : vector<8x128xf32>
    %812 = vector.extract_strided_slice %791 {offsets = [0, 256], sizes = [8, 128], strides = [1, 1]} : vector<8x384xf32> to vector<8x128xf32>
    %813 = vector.extract_strided_slice %795 {offsets = [0, 256], sizes = [8, 128], strides = [1, 1]} : vector<8x384xf32> to vector<8x128xf32>
    %814 = arith.mulf %803, %813 : vector<8x128xf32>
    %815 = arith.addf %812, %814 : vector<8x128xf32>
    %816 = math.tanh %815 : vector<8x128xf32>
    %cst_193 = arith.constant 1.000000e+00 : f32
    %817 = vector.broadcast %cst_193 : f32 to vector<8x128xf32>
    %818 = arith.subf %817, %811 : vector<8x128xf32>
    %819 = arith.mulf %818, %816 : vector<8x128xf32>
    %820 = arith.mulf %811, %787 : vector<8x128xf32>
    %821 = arith.addf %819, %820 : vector<8x128xf32>
    %c6_i32_194 = arith.constant 6 : i32
    %c8_i32_195 = arith.constant 8 : i32
    %822 = arith.muli %c6_i32_194, %c8_i32_195 : i32
    %823 = tpu.assume_multiple %822, 8 : i32
    %824 = arith.index_cast %823 : i32 to index
    %c0_196 = arith.constant 0 : index
    %825 = vector.load %arg18[%824, %c0_196] : memref<64x768xf32, #tpu.memory_space<vmem>>, vector<8x384xf32>
    %826 = arith.truncf %821 : vector<8x128xf32> to vector<8x128xbf16>
    %cst_197 = arith.constant dense<0.000000e+00> : vector<8x384xf32>
    %827 = tpu.matmul %826, %616, %cst_197 {dimension_numbers = #tpu.dot_dimension_numbers<[1], [0], [0], [1], [0, 0, 1, 1], [], []>} : vector<8x128xbf16>, vector<128x384xbf16>, vector<8x384xf32> -> vector<8x384xf32>
    %828 = vector.broadcast %617 : vector<1x384xf32> to vector<8x384xf32>
    %829 = arith.addf %827, %828 : vector<8x384xf32>
    %830 = vector.extract_strided_slice %825 {offsets = [0, 0], sizes = [8, 128], strides = [1, 1]} : vector<8x384xf32> to vector<8x128xf32>
    %831 = vector.extract_strided_slice %829 {offsets = [0, 0], sizes = [8, 128], strides = [1, 1]} : vector<8x384xf32> to vector<8x128xf32>
    %832 = arith.addf %830, %831 : vector<8x128xf32>
    %833 = arith.negf %832 : vector<8x128xf32>
    %834 = math.exp %833 : vector<8x128xf32>
    %cst_198 = arith.constant 1.000000e+00 : f32
    %835 = vector.broadcast %cst_198 : f32 to vector<8x128xf32>
    %836 = arith.addf %835, %834 : vector<8x128xf32>
    %837 = arith.divf %835, %836 : vector<8x128xf32>
    %838 = vector.extract_strided_slice %825 {offsets = [0, 128], sizes = [8, 128], strides = [1, 1]} : vector<8x384xf32> to vector<8x128xf32>
    %839 = vector.extract_strided_slice %829 {offsets = [0, 128], sizes = [8, 128], strides = [1, 1]} : vector<8x384xf32> to vector<8x128xf32>
    %840 = arith.addf %838, %839 : vector<8x128xf32>
    %841 = arith.negf %840 : vector<8x128xf32>
    %842 = math.exp %841 : vector<8x128xf32>
    %cst_199 = arith.constant 1.000000e+00 : f32
    %843 = vector.broadcast %cst_199 : f32 to vector<8x128xf32>
    %844 = arith.addf %843, %842 : vector<8x128xf32>
    %845 = arith.divf %843, %844 : vector<8x128xf32>
    %846 = vector.extract_strided_slice %825 {offsets = [0, 256], sizes = [8, 128], strides = [1, 1]} : vector<8x384xf32> to vector<8x128xf32>
    %847 = vector.extract_strided_slice %829 {offsets = [0, 256], sizes = [8, 128], strides = [1, 1]} : vector<8x384xf32> to vector<8x128xf32>
    %848 = arith.mulf %837, %847 : vector<8x128xf32>
    %849 = arith.addf %846, %848 : vector<8x128xf32>
    %850 = math.tanh %849 : vector<8x128xf32>
    %cst_200 = arith.constant 1.000000e+00 : f32
    %851 = vector.broadcast %cst_200 : f32 to vector<8x128xf32>
    %852 = arith.subf %851, %845 : vector<8x128xf32>
    %853 = arith.mulf %852, %850 : vector<8x128xf32>
    %854 = arith.mulf %845, %821 : vector<8x128xf32>
    %855 = arith.addf %853, %854 : vector<8x128xf32>
    %c7_i32_201 = arith.constant 7 : i32
    %c8_i32_202 = arith.constant 8 : i32
    %856 = arith.muli %c7_i32_201, %c8_i32_202 : i32
    %857 = tpu.assume_multiple %856, 8 : i32
    %858 = arith.index_cast %857 : i32 to index
    %c0_203 = arith.constant 0 : index
    %859 = vector.load %arg18[%858, %c0_203] : memref<64x768xf32, #tpu.memory_space<vmem>>, vector<8x384xf32>
    %860 = arith.truncf %855 : vector<8x128xf32> to vector<8x128xbf16>
    %cst_204 = arith.constant dense<0.000000e+00> : vector<8x384xf32>
    %861 = tpu.matmul %860, %616, %cst_204 {dimension_numbers = #tpu.dot_dimension_numbers<[1], [0], [0], [1], [0, 0, 1, 1], [], []>} : vector<8x128xbf16>, vector<128x384xbf16>, vector<8x384xf32> -> vector<8x384xf32>
    %862 = vector.broadcast %617 : vector<1x384xf32> to vector<8x384xf32>
    %863 = arith.addf %861, %862 : vector<8x384xf32>
    %864 = vector.extract_strided_slice %859 {offsets = [0, 0], sizes = [8, 128], strides = [1, 1]} : vector<8x384xf32> to vector<8x128xf32>
    %865 = vector.extract_strided_slice %863 {offsets = [0, 0], sizes = [8, 128], strides = [1, 1]} : vector<8x384xf32> to vector<8x128xf32>
    %866 = arith.addf %864, %865 : vector<8x128xf32>
    %867 = arith.negf %866 : vector<8x128xf32>
    %868 = math.exp %867 : vector<8x128xf32>
    %cst_205 = arith.constant 1.000000e+00 : f32
    %869 = vector.broadcast %cst_205 : f32 to vector<8x128xf32>
    %870 = arith.addf %869, %868 : vector<8x128xf32>
    %871 = arith.divf %869, %870 : vector<8x128xf32>
    %872 = vector.extract_strided_slice %859 {offsets = [0, 128], sizes = [8, 128], strides = [1, 1]} : vector<8x384xf32> to vector<8x128xf32>
    %873 = vector.extract_strided_slice %863 {offsets = [0, 128], sizes = [8, 128], strides = [1, 1]} : vector<8x384xf32> to vector<8x128xf32>
    %874 = arith.addf %872, %873 : vector<8x128xf32>
    %875 = arith.negf %874 : vector<8x128xf32>
    %876 = math.exp %875 : vector<8x128xf32>
    %cst_206 = arith.constant 1.000000e+00 : f32
    %877 = vector.broadcast %cst_206 : f32 to vector<8x128xf32>
    %878 = arith.addf %877, %876 : vector<8x128xf32>
    %879 = arith.divf %877, %878 : vector<8x128xf32>
    %880 = vector.extract_strided_slice %859 {offsets = [0, 256], sizes = [8, 128], strides = [1, 1]} : vector<8x384xf32> to vector<8x128xf32>
    %881 = vector.extract_strided_slice %863 {offsets = [0, 256], sizes = [8, 128], strides = [1, 1]} : vector<8x384xf32> to vector<8x128xf32>
    %882 = arith.mulf %871, %881 : vector<8x128xf32>
    %883 = arith.addf %880, %882 : vector<8x128xf32>
    %884 = math.tanh %883 : vector<8x128xf32>
    %cst_207 = arith.constant 1.000000e+00 : f32
    %885 = vector.broadcast %cst_207 : f32 to vector<8x128xf32>
    %886 = arith.subf %885, %879 : vector<8x128xf32>
    %887 = arith.mulf %886, %884 : vector<8x128xf32>
    %888 = arith.mulf %879, %855 : vector<8x128xf32>
    %889 = arith.addf %887, %888 : vector<8x128xf32>
    %c8_i32_208 = arith.constant 8 : i32
    %c56_i32 = arith.constant 56 : i32
    %890 = tpu.assume_multiple %c56_i32, 8 : i32
    %891 = arith.index_cast %890 : i32 to index
    %c0_209 = arith.constant 0 : index
    %892 = vector.load %arg19[%891, %c0_209] : memref<64x256xf32, #tpu.memory_space<vmem>>, vector<8x256xf32>
    %893 = arith.truncf %892 : vector<8x256xf32> to vector<8x256xbf16>
    %c0_210 = arith.constant 0 : index
    %c0_211 = arith.constant 0 : index
    %894 = vector.load %arg11[%c0_210, %c0_211] : memref<256x384xbf16, #tpu.memory_space<vmem>>, vector<256x384xbf16>
    %cst_212 = arith.constant dense<0.000000e+00> : vector<8x384xf32>
    %895 = tpu.matmul %893, %894, %cst_212 {dimension_numbers = #tpu.dot_dimension_numbers<[1], [0], [0], [1], [0, 0, 1, 1], [], []>} : vector<8x256xbf16>, vector<256x384xbf16>, vector<8x384xf32> -> vector<8x384xf32>
    %c0_213 = arith.constant 0 : index
    %c0_214 = arith.constant 0 : index
    %896 = vector.load %arg12[%c0_213, %c0_214] : memref<1x384xf32, #tpu.memory_space<vmem>>, vector<1x384xf32>
    %897 = vector.broadcast %896 : vector<1x384xf32> to vector<8x384xf32>
    %898 = arith.addf %895, %897 : vector<8x384xf32>
    %c0_215 = arith.constant 0 : index
    %c0_216 = arith.constant 0 : index
    %899 = vector.load %arg13[%c0_215, %c0_216] : memref<128x384xbf16, #tpu.memory_space<vmem>>, vector<128x384xbf16>
    %c0_217 = arith.constant 0 : index
    %c0_218 = arith.constant 0 : index
    %900 = vector.load %arg14[%c0_217, %c0_218] : memref<1x384xf32, #tpu.memory_space<vmem>>, vector<1x384xf32>
    %901 = arith.truncf %0 : vector<8x128xf32> to vector<8x128xbf16>
    %cst_219 = arith.constant dense<0.000000e+00> : vector<8x384xf32>
    %902 = tpu.matmul %901, %899, %cst_219 {dimension_numbers = #tpu.dot_dimension_numbers<[1], [0], [0], [1], [0, 0, 1, 1], [], []>} : vector<8x128xbf16>, vector<128x384xbf16>, vector<8x384xf32> -> vector<8x384xf32>
    %903 = vector.broadcast %900 : vector<1x384xf32> to vector<8x384xf32>
    %904 = arith.addf %902, %903 : vector<8x384xf32>
    %905 = vector.extract_strided_slice %898 {offsets = [0, 0], sizes = [8, 128], strides = [1, 1]} : vector<8x384xf32> to vector<8x128xf32>
    %906 = vector.extract_strided_slice %904 {offsets = [0, 0], sizes = [8, 128], strides = [1, 1]} : vector<8x384xf32> to vector<8x128xf32>
    %907 = arith.addf %905, %906 : vector<8x128xf32>
    %908 = arith.negf %907 : vector<8x128xf32>
    %909 = math.exp %908 : vector<8x128xf32>
    %cst_220 = arith.constant 1.000000e+00 : f32
    %910 = vector.broadcast %cst_220 : f32 to vector<8x128xf32>
    %911 = arith.addf %910, %909 : vector<8x128xf32>
    %912 = arith.divf %910, %911 : vector<8x128xf32>
    %913 = vector.extract_strided_slice %898 {offsets = [0, 128], sizes = [8, 128], strides = [1, 1]} : vector<8x384xf32> to vector<8x128xf32>
    %914 = vector.extract_strided_slice %904 {offsets = [0, 128], sizes = [8, 128], strides = [1, 1]} : vector<8x384xf32> to vector<8x128xf32>
    %915 = arith.addf %913, %914 : vector<8x128xf32>
    %916 = arith.negf %915 : vector<8x128xf32>
    %917 = math.exp %916 : vector<8x128xf32>
    %cst_221 = arith.constant 1.000000e+00 : f32
    %918 = vector.broadcast %cst_221 : f32 to vector<8x128xf32>
    %919 = arith.addf %918, %917 : vector<8x128xf32>
    %920 = arith.divf %918, %919 : vector<8x128xf32>
    %921 = vector.extract_strided_slice %898 {offsets = [0, 256], sizes = [8, 128], strides = [1, 1]} : vector<8x384xf32> to vector<8x128xf32>
    %922 = vector.extract_strided_slice %904 {offsets = [0, 256], sizes = [8, 128], strides = [1, 1]} : vector<8x384xf32> to vector<8x128xf32>
    %923 = arith.mulf %912, %922 : vector<8x128xf32>
    %924 = arith.addf %921, %923 : vector<8x128xf32>
    %925 = math.tanh %924 : vector<8x128xf32>
    %cst_222 = arith.constant 1.000000e+00 : f32
    %926 = vector.broadcast %cst_222 : f32 to vector<8x128xf32>
    %927 = arith.subf %926, %920 : vector<8x128xf32>
    %928 = arith.mulf %927, %925 : vector<8x128xf32>
    %929 = arith.mulf %920, %0 : vector<8x128xf32>
    %930 = arith.addf %928, %929 : vector<8x128xf32>
    %931 = tpu.concatenate %889, %930 in 1 : vector<8x128xf32>, vector<8x128xf32> -> vector<8x256xf32>
    %c0_223 = arith.constant 0 : index
    %c0_224 = arith.constant 0 : index
    %932 = vector.load %arg15[%c0_223, %c0_224] : memref<256x12xf32, #tpu.memory_space<vmem>>, vector<256x12xf32>
    %cst_225 = arith.constant dense<0.000000e+00> : vector<8x12xf32>
    %933 = tpu.matmul %931, %932, %cst_225 {dimension_numbers = #tpu.dot_dimension_numbers<[1], [0], [0], [1], [0, 0, 1, 1], [], []>} : vector<8x256xf32>, vector<256x12xf32>, vector<8x12xf32> -> vector<8x12xf32>
    %c0_226 = arith.constant 0 : index
    %c0_227 = arith.constant 0 : index
    %934 = vector.load %arg16[%c0_226, %c0_227] : memref<1x12xf32, #tpu.memory_space<vmem>>, vector<1x12xf32>
    %935 = vector.broadcast %934 : vector<1x12xf32> to vector<8x12xf32>
    %936 = arith.addf %933, %935 : vector<8x12xf32>
    %c0_228 = arith.constant 0 : index
    %c0_229 = arith.constant 0 : index
    %937 = vector.load %arg17[%c0_228, %c0_229] : memref<8x12xf32, #tpu.memory_space<vmem>>, vector<8x12xf32>
    tpu.vector_store %arg17[%c0_228, %c0_229], %936 {strides = array<i32>} : memref<8x12xf32, #tpu.memory_space<vmem>>, vector<8x12xf32>,
    return
  }
}

</mosaic_0001>

<llo_original>
// kernel: tpu_custom_call.1
$region0: #{tpu_custom_call.1}
  #allocation0 [shape = 'u32[]', space=smem, size = 0x4, offset = 0x4, fixed_abs, tag = 'smem constant byte address 0x4 - core index']
  #allocation1 [shape = 'u32[144,128]{1,0:T(1,128)}', space=vmem, size = 0x12000, scoped, tag = 'internal scratch']
  #allocation2 [shape = 'f32[64,768]{1,0:T(8,128)}', space=vmem, size = 0x30000, scoped, tag = 'scratch operand']
  #allocation3 [shape = 'f32[64,256]{1,0:T(8,128)}', space=vmem, size = 0x10000, scoped, tag = 'scratch operand']
  %s0 = inlined_call_operand.vmem [shape: bf16[64,48], index: 0, kind: input, shape index: {}]
  %s1 = inlined_call_operand.hbm [shape: bf16[48,768], index: 1, kind: input, shape index: {}]
  %s2 = inlined_call_operand.hbm [shape: f32[1,768], index: 2, kind: input, shape index: {}]
  %s3 = inlined_call_operand.hbm [shape: bf16[128,384], index: 3, kind: input, shape index: {}]
  %s4 = inlined_call_operand.hbm [shape: f32[1,384], index: 4, kind: input, shape index: {}]
  %s5 = inlined_call_operand.hbm [shape: bf16[128,384], index: 5, kind: input, shape index: {}]
  %s6 = inlined_call_operand.hbm [shape: f32[1,384], index: 6, kind: input, shape index: {}]
  %s7 = inlined_call_operand.hbm [shape: bf16[256,384], index: 7, kind: input, shape index: {}]
  %s8 = inlined_call_operand.hbm [shape: f32[1,384], index: 8, kind: input, shape index: {}]
  %s9 = inlined_call_operand.hbm [shape: bf16[128,384], index: 9, kind: input, shape index: {}]
  %s10 = inlined_call_operand.hbm [shape: f32[1,384], index: 10, kind: input, shape index: {}]
  %s11 = inlined_call_operand.vmem [shape: bf16[256,384], index: 11, kind: input, shape index: {}]
  %s12 = inlined_call_operand.vmem [shape: f32[1,384], index: 12, kind: input, shape index: {}]
  %s13 = inlined_call_operand.hbm [shape: bf16[128,384], index: 13, kind: input, shape index: {}]
  %s14 = inlined_call_operand.vmem [shape: f32[1,384], index: 14, kind: input, shape index: {}]
  %s15 = inlined_call_operand.vmem [shape: f32[256,12], index: 15, kind: input, shape index: {}]
  %s16 = inlined_call_operand.vmem [shape: f32[1,12], index: 16, kind: input, shape index: {}]
  %s17 = inlined_call_operand.hbm [shape: f32[8,12], index: 17, kind: output, shape index: {}]
  %s18 = sld [smem:[#allocation0]]
  $region122: #{tpu_custom_call.1} parent=0
    _
  %s20 = ssub.s32 1, %s18
  %s21 = scalar_select 0, %s20, %s18
  $region1: #{tpu_custom_call.1} parent=0
    #allocation4 [shape = 'u8[73728]{0}', space=vmem, size = 0x12000, scoped, tag = 'input window, operand 1, single buffered']
    #allocation5 [shape = 's32[1]{0}', space=sflag, size = 0x4, scoped, tag = 'scoped memory for tpu_custom_call.1']
    #allocation6 [shape = 's32[1]{0}', space=sflag, size = 0x4, scoped, tag = 'scoped memory for tpu_custom_call.1']
    #allocation7 [shape = 'u8[3072]{0}', space=vmem, size = 0xc00, scoped, tag = 'input window, operand 2, single buffered']
    #allocation8 [shape = 's32[1]{0}', space=sflag, size = 0x4, scoped, tag = 'scoped memory for tpu_custom_call.1']
    #allocation9 [shape = 'u8[98304]{0}', space=vmem, size = 0x18000, scoped, tag = 'input window, operand 3, single buffered']
    #allocation10 [shape = 'u8[1536]{0}', space=vmem, size = 0x800, scoped, tag = 'input window, operand 4, single buffered']
    #allocation11 [shape = 's32[1]{0}', space=sflag, size = 0x4, scoped, tag = 'scoped memory for tpu_custom_call.1']
    #allocation12 [shape = 'u8[98304]{0}', space=vmem, size = 0x18000, scoped, tag = 'input window, operand 5, single buffered']
    #allocation13 [shape = 'u8[1536]{0}', space=vmem, size = 0x800, scoped, tag = 'input window, operand 6, single buffered']
    #allocation14 [shape = 's32[1]{0}', space=sflag, size = 0x4, scoped, tag = 'scoped memory for tpu_custom_call.1']
    #allocation15 [shape = 'u8[196608]{0}', space=vmem, size = 0x30000, scoped, tag = 'input window, operand 7, single buffered']
    #allocation16 [shape = 'u8[1536]{0}', space=vmem, size = 0x800, scoped, tag = 'input window, operand 8, single buffered']
    #allocation17 [shape = 's32[1]{0}', space=sflag, size = 0x4, scoped, tag = 'scoped memory for tpu_custom_call.1']
    #allocation18 [shape = 'u8[98304]{0}', space=vmem, size = 0x18000, scoped, tag = 'input window, operand 9, single buffered']
    #allocation19 [shape = 'u8[1536]{0}', space=vmem, size = 0x800, scoped, tag = 'input window, operand 10, single buffered']
    #allocation20 [shape = 's32[1]{0}', space=sflag, size = 0x4, scoped, tag = 'scoped memory for tpu_custom_call.1']
    #allocation21 [shape = 'u8[98304]{0}', space=vmem, size = 0x18000, scoped, tag = 'input window, operand 13, single buffered']
    #allocation22 [shape = 'u8[4096]{0}', space=vmem, size = 0x1000, scoped, tag = 'output window, operand 0, single buffered']
    %22 = vsyncpa [#allocation5], 0
    %23 = vsyncpa [#allocation8], 0
    %24 = vsyncpa [#allocation11], 0
    %25 = vsyncpa [#allocation14], 0
    %26 = vsyncpa [#allocation17], 0
    %27 = vsyncpa [#allocation20], 0
    %28 = vsyncpa [#allocation6], 0
    // Predicated region
    $region2: #{tpu_custom_call.1} parent=1 // pred_check
      _
    $region3: #{tpu_custom_call.1} parent=1 // pred_check_branch
      %30 = sbr.rel (0) target = $region5
    $region4: #{tpu_custom_call.1} parent=1 // pred_region
      _
    $region5: #{tpu_custom_call.1} parent=1 // pred_fallthru
      _
    // Predicated region
    $region6: #{tpu_custom_call.1} parent=1 // pred_check
      _
    $region7: #{tpu_custom_call.1} parent=1 // pred_check_branch
      %32 = sbr.rel (0) target = $region9
    $region8: #{tpu_custom_call.1} parent=1 // pred_region
      %s34 = ssub.s32 2304, 2304
      %35 = vsyncadd [#allocation5], %s34
      %s36 = sshll.u32 [#allocation4], 4
      %s37 = int_to_ptr.vmem [resolvable:$true] %s36
      %42 = dma.hbm_to_vmem [thread:$0]  %s1, 2304, %s37, [#allocation5], 384, 384, 24
    $region9: #{tpu_custom_call.1} parent=1 // pred_fallthru
      _
    // Predicated region
    $region10: #{tpu_custom_call.1} parent=1 // pred_check
      _
    $region11: #{tpu_custom_call.1} parent=1 // pred_check_branch
      %44 = sbr.rel (0) target = $region13
    $region12: #{tpu_custom_call.1} parent=1 // pred_region
      %s46 = ssub.s32 96, 96
      %47 = vsyncadd [#allocation8], %s46
      %s49 = sshll.u32 [#allocation7], 4
      %s50 = int_to_ptr.vmem [resolvable:$true] %s49
      %52 = dma.hbm_to_vmem [thread:$0]  %s2, 96, %s50, [#allocation8]
    $region13: #{tpu_custom_call.1} parent=1 // pred_fallthru
      _
    // Predicated region
    $region14: #{tpu_custom_call.1} parent=1 // pred_check
      _
    $region15: #{tpu_custom_call.1} parent=1 // pred_check_branch
      %54 = sbr.rel (0) target = $region17
    $region16: #{tpu_custom_call.1} parent=1 // pred_region
      %s56 = ssub.s32 3072, 3072
      %57 = vsyncadd [#allocation8], %s56
      %s58 = sshll.u32 [#allocation9], 4
      %s59 = int_to_ptr.vmem [resolvable:$true] %s58
      %64 = dma.hbm_to_vmem [thread:$0]  %s3, 3072, %s59, [#allocation8], 192, 192, 12
    $region17: #{tpu_custom_call.1} parent=1 // pred_fallthru
      _
    // Predicated region
    $region18: #{tpu_custom_call.1} parent=1 // pred_check
      _
    $region19: #{tpu_custom_call.1} parent=1 // pred_check_branch
      %66 = sbr.rel (0) target = $region21
    $region20: #{tpu_custom_call.1} parent=1 // pred_region
      %s68 = ssub.s32 48, 48
      %69 = vsyncadd [#allocation11], %s68
      %s71 = sshll.u32 [#allocation10], 4
      %s72 = int_to_ptr.vmem [resolvable:$true] %s71
      %74 = dma.hbm_to_vmem [thread:$0]  %s4, 48, %s72, [#allocation11]
    $region21: #{tpu_custom_call.1} parent=1 // pred_fallthru
      _
    // Predicated region
    $region22: #{tpu_custom_call.1} parent=1 // pred_check
      _
    $region23: #{tpu_custom_call.1} parent=1 // pred_check_branch
      %76 = sbr.rel (0) target = $region25
    $region24: #{tpu_custom_call.1} parent=1 // pred_region
      %s78 = ssub.s32 3072, 3072
      %79 = vsyncadd [#allocation11], %s78
      %s80 = sshll.u32 [#allocation12], 4
      %s81 = int_to_ptr.vmem [resolvable:$true] %s80
      %86 = dma.hbm_to_vmem [thread:$0]  %s5, 3072, %s81, [#allocation11], 192, 192, 12
    $region25: #{tpu_custom_call.1} parent=1 // pred_fallthru
      _
    // Predicated region
    $region26: #{tpu_custom_call.1} parent=1 // pred_check
      _
    $region27: #{tpu_custom_call.1} parent=1 // pred_check_branch
      %88 = sbr.rel (0) target = $region29
    $region28: #{tpu_custom_call.1} parent=1 // pred_region
      %s90 = ssub.s32 48, 48
      %91 = vsyncadd [#allocation14], %s90
      %s93 = sshll.u32 [#allocation13], 4
      %s94 = int_to_ptr.vmem [resolvable:$true] %s93
      %96 = dma.hbm_to_vmem [thread:$0]  %s6, 48, %s94, [#allocation14]
    $region29: #{tpu_custom_call.1} parent=1 // pred_fallthru
      _
    // Predicated region
    $region30: #{tpu_custom_call.1} parent=1 // pred_check
      _
    $region31: #{tpu_custom_call.1} parent=1 // pred_check_branch
      %98 = sbr.rel (0) target = $region33
    $region32: #{tpu_custom_call.1} parent=1 // pred_region
      %s100 = ssub.s32 6144, 6144
      %101 = vsyncadd [#allocation14], %s100
      %s102 = sshll.u32 [#allocation15], 4
      %s103 = int_to_ptr.vmem [resolvable:$true] %s102
      %108 = dma.hbm_to_vmem [thread:$0]  %s7, 6144, %s103, [#allocation14], 192, 192, 12
    $region33: #{tpu_custom_call.1} parent=1 // pred_fallthru
      _
    // Predicated region
    $region34: #{tpu_custom_call.1} parent=1 // pred_check
      _
    $region35: #{tpu_custom_call.1} parent=1 // pred_check_branch
      %110 = sbr.rel (0) target = $region37
    $region36: #{tpu_custom_call.1} parent=1 // pred_region
      %s112 = ssub.s32 48, 48
      %113 = vsyncadd [#allocation17], %s112
      %s115 = sshll.u32 [#allocation16], 4
      %s116 = int_to_ptr.vmem [resolvable:$true] %s115
      %118 = dma.hbm_to_vmem [thread:$0]  %s8, 48, %s116, [#allocation17]
    $region37: #{tpu_custom_call.1} parent=1 // pred_fallthru
      _
    // Predicated region
    $region38: #{tpu_custom_call.1} parent=1 // pred_check
      _
    $region39: #{tpu_custom_call.1} parent=1 // pred_check_branch
      %120 = sbr.rel (0) target = $region41
    $region40: #{tpu_custom_call.1} parent=1 // pred_region
      %s122 = ssub.s32 3072, 3072
      %123 = vsyncadd [#allocation17], %s122
      %s124 = sshll.u32 [#allocation18], 4
      %s125 = int_to_ptr.vmem [resolvable:$true] %s124
      %130 = dma.hbm_to_vmem [thread:$0]  %s9, 3072, %s125, [#allocation17], 192, 192, 12
    $region41: #{tpu_custom_call.1} parent=1 // pred_fallthru
      _
    // Predicated region
    $region42: #{tpu_custom_call.1} parent=1 // pred_check
      _
    $region43: #{tpu_custom_call.1} parent=1 // pred_check_branch
      %132 = sbr.rel (0) target = $region45
    $region44: #{tpu_custom_call.1} parent=1 // pred_region
      %s134 = ssub.s32 48, 48
      %135 = vsyncadd [#allocation20], %s134
      %s137 = sshll.u32 [#allocation19], 4
      %s138 = int_to_ptr.vmem [resolvable:$true] %s137
      %140 = dma.hbm_to_vmem [thread:$0]  %s10, 48, %s138, [#allocation20]
    $region45: #{tpu_custom_call.1} parent=1 // pred_fallthru
      _
    // Predicated region
    $region46: #{tpu_custom_call.1} parent=1 // pred_check
      _
    $region47: #{tpu_custom_call.1} parent=1 // pred_check_branch
      %142 = sbr.rel (0) target = $region49
    $region48: #{tpu_custom_call.1} parent=1 // pred_region
      _
    $region49: #{tpu_custom_call.1} parent=1 // pred_fallthru
      _
    // Predicated region
    $region50: #{tpu_custom_call.1} parent=1 // pred_check
      _
    $region51: #{tpu_custom_call.1} parent=1 // pred_check_branch
      %144 = sbr.rel (0) target = $region53
    $region52: #{tpu_custom_call.1} parent=1 // pred_region
      _
    $region53: #{tpu_custom_call.1} parent=1 // pred_fallthru
      _
    // Predicated region
    $region54: #{tpu_custom_call.1} parent=1 // pred_check
      _
    $region55: #{tpu_custom_call.1} parent=1 // pred_check_branch
      %146 = sbr.rel (0) target = $region57
    $region56: #{tpu_custom_call.1} parent=1 // pred_region
      %s148 = ssub.s32 3072, 3072
      %149 = vsyncadd [#allocation20], %s148
      %s150 = sshll.u32 [#allocation21], 4
      %s151 = int_to_ptr.vmem [resolvable:$true] %s150
      %156 = dma.hbm_to_vmem [thread:$0]  %s13, 3072, %s151, [#allocation20], 192, 192, 12
    $region57: #{tpu_custom_call.1} parent=1 // pred_fallthru
      _
    // Predicated region
    $region58: #{tpu_custom_call.1} parent=1 // pred_check
      _
    $region59: #{tpu_custom_call.1} parent=1 // pred_check_branch
      %158 = sbr.rel (0) target = $region61
    $region60: #{tpu_custom_call.1} parent=1 // pred_region
      _
    $region61: #{tpu_custom_call.1} parent=1 // pred_fallthru
      _
    // Predicated region
    $region62: #{tpu_custom_call.1} parent=1 // pred_check
      _
    $region63: #{tpu_custom_call.1} parent=1 // pred_check_branch
      %160 = sbr.rel (0) target = $region65
    $region64: #{tpu_custom_call.1} parent=1 // pred_region
      _
    $region65: #{tpu_custom_call.1} parent=1 // pred_fallthru
      _
    // Predicated region
    $region66: #{tpu_custom_call.1} parent=1 // pred_check
      _
    $region67: #{tpu_custom_call.1} parent=1 // pred_check_branch
      %162 = sbr.rel (0) target = $region69
    $region68: #{tpu_custom_call.1} parent=1 // pred_region
      _
    $region69: #{tpu_custom_call.1} parent=1 // pred_fallthru
      _
    // Predicated region
    $region70: #{tpu_custom_call.1} parent=1 // pred_check
      _
    $region71: #{tpu_custom_call.1} parent=1 // pred_check_branch
      %164 = sbr.rel (0) target = $region73
    $region72: #{tpu_custom_call.1} parent=1 // pred_region
      %165 = dma.done [#allocation5], 2304
    $region73: #{tpu_custom_call.1} parent=1 // pred_fallthru
      _
    // Predicated region
    $region74: #{tpu_custom_call.1} parent=1 // pred_check
      _
    $region75: #{tpu_custom_call.1} parent=1 // pred_check_branch
      %167 = sbr.rel (0) target = $region77
    $region76: #{tpu_custom_call.1} parent=1 // pred_region
      %168 = dma.done [#allocation8], 96
    $region77: #{tpu_custom_call.1} parent=1 // pred_fallthru
      _
    // Predicated region
    $region78: #{tpu_custom_call.1} parent=1 // pred_check
      _
    $region79: #{tpu_custom_call.1} parent=1 // pred_check_branch
      %170 = sbr.rel (0) target = $region81
    $region80: #{tpu_custom_call.1} parent=1 // pred_region
      %171 = dma.done [#allocation8], 3072
    $region81: #{tpu_custom_call.1} parent=1 // pred_fallthru
      _
    // Predicated region
    $region82: #{tpu_custom_call.1} parent=1 // pred_check
      _
    $region83: #{tpu_custom_call.1} parent=1 // pred_check_branch
      %173 = sbr.rel (0) target = $region85
    $region84: #{tpu_custom_call.1} parent=1 // pred_region
      %174 = dma.done [#allocation11], 48
    $region85: #{tpu_custom_call.1} parent=1 // pred_fallthru
      _
    // Predicated region
    $region86: #{tpu_custom_call.1} parent=1 // pred_check
      _
    $region87: #{tpu_custom_call.1} parent=1 // pred_check_branch
      %176 = sbr.rel (0) target = $region89
    $region88: #{tpu_custom_call.1} parent=1 // pred_region
      %177 = dma.done [#allocation11], 3072
    $region89: #{tpu_custom_call.1} parent=1 // pred_fallthru
      _
    // Predicated region
    $region90: #{tpu_custom_call.1} parent=1 // pred_check
      _
    $region91: #{tpu_custom_call.1} parent=1 // pred_check_branch
      %179 = sbr.rel (0) target = $region93
    $region92: #{tpu_custom_call.1} parent=1 // pred_region
      %180 = dma.done [#allocation14], 48
    $region93: #{tpu_custom_call.1} parent=1 // pred_fallthru
      _
    // Predicated region
    $region94: #{tpu_custom_call.1} parent=1 // pred_check
      _
    $region95: #{tpu_custom_call.1} parent=1 // pred_check_branch
      %182 = sbr.rel (0) target = $region97
    $region96: #{tpu_custom_call.1} parent=1 // pred_region
      %183 = dma.done [#allocation14], 6144
    $region97: #{tpu_custom_call.1} parent=1 // pred_fallthru
      _
    // Predicated region
    $region98: #{tpu_custom_call.1} parent=1 // pred_check
      _
    $region99: #{tpu_custom_call.1} parent=1 // pred_check_branch
      %185 = sbr.rel (0) target = $region101
    $region100: #{tpu_custom_call.1} parent=1 // pred_region
      %186 = dma.done [#allocation17], 48
    $region101: #{tpu_custom_call.1} parent=1 // pred_fallthru
      _
    // Predicated region
    $region102: #{tpu_custom_call.1} parent=1 // pred_check
      _
    $region103: #{tpu_custom_call.1} parent=1 // pred_check_branch
      %188 = sbr.rel (0) target = $region105
    $region104: #{tpu_custom_call.1} parent=1 // pred_region
      %189 = dma.done [#allocation17], 3072
    $region105: #{tpu_custom_call.1} parent=1 // pred_fallthru
      _
    // Predicated region
    $region106: #{tpu_custom_call.1} parent=1 // pred_check
      _
    $region107: #{tpu_custom_call.1} parent=1 // pred_check_branch
      %191 = sbr.rel (0) target = $region109
    $region108: #{tpu_custom_call.1} parent=1 // pred_region
      %192 = dma.done [#allocation20], 48
    $region109: #{tpu_custom_call.1} parent=1 // pred_fallthru
      _
    // Predicated region
    $region110: #{tpu_custom_call.1} parent=1 // pred_check
      _
    $region111: #{tpu_custom_call.1} parent=1 // pred_check_branch
      %194 = sbr.rel (0) target = $region113
    $region112: #{tpu_custom_call.1} parent=1 // pred_region
      %195 = dma.done [#allocation20], 3072
    $region113: #{tpu_custom_call.1} parent=1 // pred_fallthru
      _
    %v197 = vld [vmem:[#allocation4] sm:$0xff]
    %v198 = vld [vmem:[#allocation4 + $0x8] sm:$0xff]
    %v199 = vld [vmem:[#allocation4 + $0x10] sm:$0xff]
    %v200 = vld [vmem:[#allocation4 + $0x18] sm:$0xff]
    %v201 = vld [vmem:[#allocation4 + $0x20] sm:$0xff]
    %v202 = vld [vmem:[#allocation4 + $0x28] sm:$0xff]
    %v203 = vld [vmem:[#allocation4 + $0x30] sm:$0xff]
    %v204 = vld [vmem:[#allocation4 + $0x38] sm:$0xff]
    %v205 = vld [vmem:[#allocation4 + $0x40] sm:$0xff]
    %v206 = vld [vmem:[#allocation4 + $0x48] sm:$0xff]
    %v207 = vld [vmem:[#allocation4 + $0x50] sm:$0xff]
    %v208 = vld [vmem:[#allocation4 + $0x58] sm:$0xff]
    %v209 = vld [vmem:[#allocation4 + $0x60] sm:$0xff]
    %v210 = vld [vmem:[#allocation4 + $0x68] sm:$0xff]
    %v211 = vld [vmem:[#allocation4 + $0x70] sm:$0xff]
    %v212 = vld [vmem:[#allocation4 + $0x78] sm:$0xff]
    %v213 = vld [vmem:[#allocation4 + $0x80] sm:$0xff]
    %v214 = vld [vmem:[#allocation4 + $0x88] sm:$0xff]
    %v215 = vld [vmem:[#allocation7] sm:$0x3f]
    %v216 = vld [vmem:[%s0] sm:$0xf]
    %v217 = vld [vmem:[%s0 + $0x4] sm:$0xf]
    %v218 = vld [vmem:[%s0 + $0x8] sm:$0xf]
    %v219 = vld [vmem:[%s0 + $0xc] sm:$0xf]
    %v220 = vld [vmem:[%s0 + $0x10] sm:$0xf]
    %v221 = vld [vmem:[%s0 + $0x14] sm:$0xf]
    %v222 = vld [vmem:[%s0 + $0x18] sm:$0xf]
    %v223 = vld [vmem:[%s0 + $0x1c] sm:$0xf]
    %v225 = vlaneseq
    %v226 = vshrl.u32 %v225, 7
    %v227 = vsub.s32 0, %v226
    %v228 = vrot.slane %v215, %v227
    %v229 = vlaneseq
    %v230 = vshrl.u32 %v229, 7
    %v231 = vsub.s32 1, %v230
    %v232 = vrot.slane %v215, %v231
    %v233 = vlaneseq
    %v234 = vshrl.u32 %v233, 7
    %v235 = vsub.s32 2, %v234
    %v236 = vrot.slane %v215, %v235
    %v237 = vlaneseq
    %v238 = vshrl.u32 %v237, 7
    %v239 = vsub.s32 3, %v238
    %v240 = vrot.slane %v215, %v239
    %v241 = vlaneseq
    %v242 = vshrl.u32 %v241, 7
    %v243 = vsub.s32 4, %v242
    %v244 = vrot.slane %v215, %v243
    %v245 = vlaneseq
    %v246 = vshrl.u32 %v245, 7
    %v247 = vsub.s32 5, %v246
    %v248 = vrot.slane %v215, %v247
    %v263 = vunpack.c.l.b16 %v216
    %v264 = vunpack.c.l.b16 %v217
    %v265 = vunpack.c.l.b16 %v218
    %v266 = vunpack.c.l.b16 %v219
    %v267 = vunpack.c.l.b16 %v220
    %v268 = vunpack.c.l.b16 %v221
    %v269 = vunpack.c.l.b16 %v222
    %v270 = vunpack.c.l.b16 %v223
    %v271 = vpack.c.b16 %v264, %v263
    %v272 = vpack.c.b16 %v266, %v265
    %v273 = vpack.c.b16 %v268, %v267
    %v274 = vpack.c.b16 %v270, %v269
    %v293 = vunpack.c.l.b16 %v197
    %v294 = vunpack.c.h.b16 %v197
    %v295 = vunpack.c.l.b16 %v198
    %v296 = vunpack.c.h.b16 %v198
    %v297 = vunpack.c.l.b16 %v199
    %v298 = vunpack.c.h.b16 %v199
    %v299 = vunpack.c.l.b16 %v200
    %v300 = vunpack.c.h.b16 %v200
    %v301 = vunpack.c.l.b16 %v201
    %v302 = vunpack.c.h.b16 %v201
    %v303 = vunpack.c.l.b16 %v202
    %v304 = vunpack.c.h.b16 %v202
    %v305 = vunpack.c.l.b16 %v203
    %v306 = vunpack.c.h.b16 %v203
    %v307 = vunpack.c.l.b16 %v204
    %v308 = vunpack.c.h.b16 %v204
    %v309 = vunpack.c.l.b16 %v205
    %v310 = vunpack.c.h.b16 %v205
    %v311 = vunpack.c.l.b16 %v206
    %v312 = vunpack.c.h.b16 %v206
    %v313 = vunpack.c.l.b16 %v207
    %v314 = vunpack.c.h.b16 %v207
    %v315 = vunpack.c.l.b16 %v208
    %v316 = vunpack.c.h.b16 %v208
    %v317 = vunpack.c.l.b16 %v209
    %v318 = vunpack.c.h.b16 %v209
    %v319 = vunpack.c.l.b16 %v210
    %v320 = vunpack.c.h.b16 %v210
    %v321 = vunpack.c.l.b16 %v211
    %v322 = vunpack.c.h.b16 %v211
    %v323 = vunpack.c.l.b16 %v212
    %v324 = vunpack.c.h.b16 %v212
    %v325 = vunpack.c.l.b16 %v213
    %v326 = vunpack.c.h.b16 %v213
    %v327 = vunpack.c.l.b16 %v214
    %v328 = vunpack.c.h.b16 %v214
    %v329 = vpack.c.b16 %v299, %v293
    %v330 = vpack.c.b16 %v300, %v294
    %v331 = vpack.c.b16 %v301, %v295
    %v332 = vpack.c.b16 %v302, %v296
    %v333 = vpack.c.b16 %v303, %v297
    %v334 = vpack.c.b16 %v304, %v298
    %v335 = vpack.c.b16 %v311, %v305
    %v336 = vpack.c.b16 %v312, %v306
    %v337 = vpack.c.b16 %v313, %v307
    %v338 = vpack.c.b16 %v314, %v308
    %v339 = vpack.c.b16 %v315, %v309
    %v340 = vpack.c.b16 %v316, %v310
    %v341 = vpack.c.b16 %v323, %v317
    %v342 = vpack.c.b16 %v324, %v318
    %v343 = vpack.c.b16 %v325, %v319
    %v344 = vpack.c.b16 %v326, %v320
    %v345 = vpack.c.b16 %v327, %v321
    %v346 = vpack.c.b16 %v328, %v322
    %vm365 = vcmask 392192
    %v367 = vsel %vm365, %v271, 0
    %v370 = vsel %vm365, %v272, 0
    %v373 = vsel %vm365, %v273, 0
    %v376 = vsel %vm365, %v274, 0
    %378 = vmatprep.subr.bf16.mxu0 %v330
    %379 = vmatpush1.bf16.msra.mxu0 %v329
    %380 = vmatprep.subr.bf16.mxu0 %v336
    %381 = vmatpush1.bf16.msra.mxu0 %v335
    %382 = vmatprep.subr.bf16.mxu0 %v342
    %383 = vmatpush1.bf16.msra.mxu0 %v341
    %384 = vmatprep.subr.bf16.mxu0 0
    %385 = vmatpush1.bf16.msra.mxu0 0
    %386 = vmatprep.subr.bf16.mxu0 0
    %387 = vmatpush1.bf16.msra.mxu0 0
    %388 = vmatprep.subr.bf16.mxu0 0
    %389 = vmatpush1.bf16.msra.mxu0 0
    %390 = vmatprep.subr.bf16.mxu0 0
    %391 = vmatpush1.bf16.msra.mxu0 0
    %392 = vmatprep.subr.bf16.mxu0 0
    %393 = vmatpush1.bf16.msra.mxu0 0
    %394 = vmatprep.subr.bf16.mxu0 0
    %395 = vmatpush1.bf16.msra.mxu0 0
    %396 = vmatprep.subr.bf16.mxu0 0
    %397 = vmatpush1.bf16.msra.mxu0 0
    %398 = vmatprep.subr.bf16.mxu0 0
    %399 = vmatpush1.bf16.msra.mxu0 0
    %400 = vmatprep.subr.bf16.mxu0 0
    %401 = vmatpush1.bf16.msra.mxu0 0
    %402 = vmatprep.subr.bf16.mxu0 0
    %403 = vmatpush1.bf16.msra.mxu0 0
    %404 = vmatprep.subr.bf16.mxu0 0
    %405 = vmatpush1.bf16.msra.mxu0 0
    %406 = vmatprep.subr.bf16.mxu0 0
    %407 = vmatpush1.bf16.msra.mxu0 0
    %408 = vmatprep.subr.bf16.mxu0 0
    %409 = vmatpush1.bf16.msra.mxu0 0
    %410 = vmatprep.mubr.bf16.mxu0 0
    %411 = vmatmul.mubr.bf16.gmra.mrb[0].mxu0 %v367
    %v412 = vpop.f32.mrb[0].mxu0
    %v413 = vadd.f32 %v228, %v412
    %v414 = vpop.f32.mrb[0].mxu0
    %v415 = vadd.f32 %v232, %v414
    %v416 = vpop.f32.mrb[0].mxu0
    %v417 = vadd.f32 %v228, %v416
    %v418 = vpop.f32.mrb[0].mxu0
    %v419 = vadd.f32 %v232, %v418
    %420 = vmatprep.mubr.bf16.mxu0 0
    %421 = vmatmul.mubr.bf16.gmra.mrb[0].mxu0 %v370
    %v422 = vpop.f32.mrb[0].mxu0
    %v423 = vadd.f32 %v228, %v422
    %v424 = vpop.f32.mrb[0].mxu0
    %v425 = vadd.f32 %v232, %v424
    %v426 = vpop.f32.mrb[0].mxu0
    %v427 = vadd.f32 %v228, %v426
    %v428 = vpop.f32.mrb[0].mxu0
    %v429 = vadd.f32 %v232, %v428
    %430 = vmatprep.mubr.bf16.mxu0 0
    %431 = vmatmul.mubr.bf16.gmra.mrb[0].mxu0 %v373
    %v432 = vpop.f32.mrb[0].mxu0
    %v433 = vadd.f32 %v228, %v432
    %v434 = vpop.f32.mrb[0].mxu0
    %v435 = vadd.f32 %v232, %v434
    %v436 = vpop.f32.mrb[0].mxu0
    %v437 = vadd.f32 %v228, %v436
    %v438 = vpop.f32.mrb[0].mxu0
    %v439 = vadd.f32 %v232, %v438
    %440 = vmatprep.mubr.bf16.mxu0 0
    %441 = vmatmul.mubr.bf16.gmra.mrb[0].mxu0 %v376
    %v442 = vpop.f32.mrb[0].mxu0
    %v443 = vadd.f32 %v228, %v442
    %v444 = vpop.f32.mrb[0].mxu0
    %v445 = vadd.f32 %v232, %v444
    %v446 = vpop.f32.mrb[0].mxu0
    %v447 = vadd.f32 %v228, %v446
    %v448 = vpop.f32.mrb[0].mxu0
    %v449 = vadd.f32 %v232, %v448
    %450 = vdwg.mxu0
    %451 = vmatprep.subr.bf16.mxu0 %v332
    %452 = vmatpush1.bf16.msra.mxu0 %v331
    %453 = vmatprep.subr.bf16.mxu0 %v338
    %454 = vmatpush1.bf16.msra.mxu0 %v337
    %455 = vmatprep.subr.bf16.mxu0 %v344
    %456 = vmatpush1.bf16.msra.mxu0 %v343
    %457 = vmatprep.subr.bf16.mxu0 0
    %458 = vmatpush1.bf16.msra.mxu0 0
    %459 = vmatprep.subr.bf16.mxu0 0
    %460 = vmatpush1.bf16.msra.mxu0 0
    %461 = vmatprep.subr.bf16.mxu0 0
    %462 = vmatpush1.bf16.msra.mxu0 0
    %463 = vmatprep.subr.bf16.mxu0 0
    %464 = vmatpush1.bf16.msra.mxu0 0
    %465 = vmatprep.subr.bf16.mxu0 0
    %466 = vmatpush1.bf16.msra.mxu0 0
    %467 = vmatprep.subr.bf16.mxu0 0
    %468 = vmatpush1.bf16.msra.mxu0 0
    %469 = vmatprep.subr.bf16.mxu0 0
    %470 = vmatpush1.bf16.msra.mxu0 0
    %471 = vmatprep.subr.bf16.mxu0 0
    %472 = vmatpush1.bf16.msra.mxu0 0
    %473 = vmatprep.subr.bf16.mxu0 0
    %474 = vmatpush1.bf16.msra.mxu0 0
    %475 = vmatprep.subr.bf16.mxu0 0
    %476 = vmatpush1.bf16.msra.mxu0 0
    %477 = vmatprep.subr.bf16.mxu0 0
    %478 = vmatpush1.bf16.msra.mxu0 0
    %479 = vmatprep.subr.bf16.mxu0 0
    %480 = vmatpush1.bf16.msra.mxu0 0
    %481 = vmatprep.subr.bf16.mxu0 0
    %482 = vmatpush1.bf16.msra.mxu0 0
    %483 = vmatprep.mubr.bf16.mxu0 0
    %484 = vmatmul.mubr.bf16.gmra.mrb[0].mxu0 %v367
    %v485 = vpop.f32.mrb[0].mxu0
    %v486 = vadd.f32 %v236, %v485
    %v487 = vpop.f32.mrb[0].mxu0
    %v488 = vadd.f32 %v240, %v487
    %v489 = vpop.f32.mrb[0].mxu0
    %v490 = vadd.f32 %v236, %v489
    %v491 = vpop.f32.mrb[0].mxu0
    %v492 = vadd.f32 %v240, %v491
    %493 = vmatprep.mubr.bf16.mxu0 0
    %494 = vmatmul.mubr.bf16.gmra.mrb[0].mxu0 %v370
    %v495 = vpop.f32.mrb[0].mxu0
    %v496 = vadd.f32 %v236, %v495
    %v497 = vpop.f32.mrb[0].mxu0
    %v498 = vadd.f32 %v240, %v497
    %v499 = vpop.f32.mrb[0].mxu0
    %v500 = vadd.f32 %v236, %v499
    %v501 = vpop.f32.mrb[0].mxu0
    %v502 = vadd.f32 %v240, %v501
    %503 = vmatprep.mubr.bf16.mxu0 0
    %504 = vmatmul.mubr.bf16.gmra.mrb[0].mxu0 %v373
    %v505 = vpop.f32.mrb[0].mxu0
    %v506 = vadd.f32 %v236, %v505
    %v507 = vpop.f32.mrb[0].mxu0
    %v508 = vadd.f32 %v240, %v507
    %v509 = vpop.f32.mrb[0].mxu0
    %v510 = vadd.f32 %v236, %v509
    %v511 = vpop.f32.mrb[0].mxu0
    %v512 = vadd.f32 %v240, %v511
    %513 = vmatprep.mubr.bf16.mxu0 0
    %514 = vmatmul.mubr.bf16.gmra.mrb[0].mxu0 %v376
    %v515 = vpop.f32.mrb[0].mxu0
    %v516 = vadd.f32 %v236, %v515
    %v517 = vpop.f32.mrb[0].mxu0
    %v518 = vadd.f32 %v240, %v517
    %v519 = vpop.f32.mrb[0].mxu0
    %v520 = vadd.f32 %v236, %v519
    %v521 = vpop.f32.mrb[0].mxu0
    %v522 = vadd.f32 %v240, %v521
    %523 = vdwg.mxu0
    %524 = vmatprep.subr.bf16.mxu0 %v334
    %525 = vmatpush1.bf16.msra.mxu0 %v333
    %526 = vmatprep.subr.bf16.mxu0 %v340
    %527 = vmatpush1.bf16.msra.mxu0 %v339
    %528 = vmatprep.subr.bf16.mxu0 %v346
    %529 = vmatpush1.bf16.msra.mxu0 %v345
    %530 = vmatprep.subr.bf16.mxu0 0
    %531 = vmatpush1.bf16.msra.mxu0 0
    %532 = vmatprep.subr.bf16.mxu0 0
    %533 = vmatpush1.bf16.msra.mxu0 0
    %534 = vmatprep.subr.bf16.mxu0 0
    %535 = vmatpush1.bf16.msra.mxu0 0
    %536 = vmatprep.subr.bf16.mxu0 0
    %537 = vmatpush1.bf16.msra.mxu0 0
    %538 = vmatprep.subr.bf16.mxu0 0
    %539 = vmatpush1.bf16.msra.mxu0 0
    %540 = vmatprep.subr.bf16.mxu0 0
    %541 = vmatpush1.bf16.msra.mxu0 0
    %542 = vmatprep.subr.bf16.mxu0 0
    %543 = vmatpush1.bf16.msra.mxu0 0
    %544 = vmatprep.subr.bf16.mxu0 0
    %545 = vmatpush1.bf16.msra.mxu0 0
    %546 = vmatprep.subr.bf16.mxu0 0
    %547 = vmatpush1.bf16.msra.mxu0 0
    %548 = vmatprep.subr.bf16.mxu0 0
    %549 = vmatpush1.bf16.msra.mxu0 0
    %550 = vmatprep.subr.bf16.mxu0 0
    %551 = vmatpush1.bf16.msra.mxu0 0
    %552 = vmatprep.subr.bf16.mxu0 0
    %553 = vmatpush1.bf16.msra.mxu0 0
    %554 = vmatprep.subr.bf16.mxu0 0
    %555 = vmatpush1.bf16.msra.mxu0 0
    %556 = vmatprep.mubr.bf16.mxu0 0
    %557 = vmatmul.mubr.bf16.gmra.mrb[0].mxu0 %v367
    %v558 = vpop.f32.mrb[0].mxu0
    %v559 = vadd.f32 %v244, %v558
    %v560 = vpop.f32.mrb[0].mxu0
    %v561 = vadd.f32 %v248, %v560
    %v562 = vpop.f32.mrb[0].mxu0
    %v563 = vadd.f32 %v244, %v562
    %v564 = vpop.f32.mrb[0].mxu0
    %v565 = vadd.f32 %v248, %v564
    %566 = vmatprep.mubr.bf16.mxu0 0
    %567 = vmatmul.mubr.bf16.gmra.mrb[0].mxu0 %v370
    %v568 = vpop.f32.mrb[0].mxu0
    %v569 = vadd.f32 %v244, %v568
    %v570 = vpop.f32.mrb[0].mxu0
    %v571 = vadd.f32 %v248, %v570
    %v572 = vpop.f32.mrb[0].mxu0
    %v573 = vadd.f32 %v244, %v572
    %v574 = vpop.f32.mrb[0].mxu0
    %v575 = vadd.f32 %v248, %v574
    %576 = vmatprep.mubr.bf16.mxu0 0
    %577 = vmatmul.mubr.bf16.gmra.mrb[0].mxu0 %v373
    %v578 = vpop.f32.mrb[0].mxu0
    %v579 = vadd.f32 %v244, %v578
    %v580 = vpop.f32.mrb[0].mxu0
    %v581 = vadd.f32 %v248, %v580
    %v582 = vpop.f32.mrb[0].mxu0
    %v583 = vadd.f32 %v244, %v582
    %v584 = vpop.f32.mrb[0].mxu0
    %v585 = vadd.f32 %v248, %v584
    %586 = vmatprep.mubr.bf16.mxu0 0
    %587 = vmatmul.mubr.bf16.gmra.mrb[0].mxu0 %v376
    %v588 = vpop.f32.mrb[0].mxu0
    %v589 = vadd.f32 %v244, %v588
    %v590 = vpop.f32.mrb[0].mxu0
    %v591 = vadd.f32 %v248, %v590
    %v592 = vpop.f32.mrb[0].mxu0
    %v593 = vadd.f32 %v244, %v592
    %v594 = vpop.f32.mrb[0].mxu0
    %v595 = vadd.f32 %v248, %v594
    %596 = vdwg.mxu0
    %s597 = smul.u32 0, 6
    %s598 = smul.addr %s597, 8
    %s599 = scalar_lea.vmem [#allocation2], %s598
    %600 = vst [vmem:[%s599] sm:$0xff] %v413
    %601 = vst [vmem:[%s599 + $0x8] sm:$0xff] %v415
    %602 = vst [vmem:[%s599 + $0x10] sm:$0xff] %v486
    %603 = vst [vmem:[%s599 + $0x18] sm:$0xff] %v488
    %604 = vst [vmem:[%s599 + $0x20] sm:$0xff] %v559
    %605 = vst [vmem:[%s599 + $0x28] sm:$0xff] %v561
    %606 = vst [vmem:[%s599 + $0x30] sm:$0xff] %v417
    %607 = vst [vmem:[%s599 + $0x38] sm:$0xff] %v419
    %608 = vst [vmem:[%s599 + $0x40] sm:$0xff] %v490
    %609 = vst [vmem:[%s599 + $0x48] sm:$0xff] %v492
    %610 = vst [vmem:[%s599 + $0x50] sm:$0xff] %v563
    %611 = vst [vmem:[%s599 + $0x58] sm:$0xff] %v565
    %612 = vst [vmem:[%s599 + $0x60] sm:$0xff] %v423
    %613 = vst [vmem:[%s599 + $0x68] sm:$0xff] %v425
    %614 = vst [vmem:[%s599 + $0x70] sm:$0xff] %v496
    %615 = vst [vmem:[%s599 + $0x78] sm:$0xff] %v498
    %616 = vst [vmem:[%s599 + $0x80] sm:$0xff] %v569
    %617 = vst [vmem:[%s599 + $0x88] sm:$0xff] %v571
    %618 = vst [vmem:[%s599 + $0x90] sm:$0xff] %v427
    %619 = vst [vmem:[%s599 + $0x98] sm:$0xff] %v429
    %620 = vst [vmem:[%s599 + $0xa0] sm:$0xff] %v500
    %621 = vst [vmem:[%s599 + $0xa8] sm:$0xff] %v502
    %622 = vst [vmem:[%s599 + $0xb0] sm:$0xff] %v573
    %623 = vst [vmem:[%s599 + $0xb8] sm:$0xff] %v575
    %624 = vst [vmem:[%s599 + $0xc0] sm:$0xff] %v433
    %625 = vst [vmem:[%s599 + $0xc8] sm:$0xff] %v435
    %626 = vst [vmem:[%s599 + $0xd0] sm:$0xff] %v506
    %627 = vst [vmem:[%s599 + $0xd8] sm:$0xff] %v508
    %628 = vst [vmem:[%s599 + $0xe0] sm:$0xff] %v579
    %629 = vst [vmem:[%s599 + $0xe8] sm:$0xff] %v581
    %630 = vst [vmem:[%s599 + $0xf0] sm:$0xff] %v437
    %631 = vst [vmem:[%s599 + $0xf8] sm:$0xff] %v439
    %632 = vst [vmem:[%s599 + $0x100] sm:$0xff] %v510
    %633 = vst [vmem:[%s599 + $0x108] sm:$0xff] %v512
    %634 = vst [vmem:[%s599 + $0x110] sm:$0xff] %v583
    %635 = vst [vmem:[%s599 + $0x118] sm:$0xff] %v585
    %636 = vst [vmem:[%s599 + $0x120] sm:$0xff] %v443
    %637 = vst [vmem:[%s599 + $0x128] sm:$0xff] %v445
    %638 = vst [vmem:[%s599 + $0x130] sm:$0xff] %v516
    %639 = vst [vmem:[%s599 + $0x138] sm:$0xff] %v518
    %640 = vst [vmem:[%s599 + $0x140] sm:$0xff] %v589
    %641 = vst [vmem:[%s599 + $0x148] sm:$0xff] %v591
    %642 = vst [vmem:[%s599 + $0x150] sm:$0xff] %v447
    %643 = vst [vmem:[%s599 + $0x158] sm:$0xff] %v449
    %644 = vst [vmem:[%s599 + $0x160] sm:$0xff] %v520
    %645 = vst [vmem:[%s599 + $0x168] sm:$0xff] %v522
    %646 = vst [vmem:[%s599 + $0x170] sm:$0xff] %v593
    %647 = vst [vmem:[%s599 + $0x178] sm:$0xff] %v595
    %v648 = vld [vmem:[#allocation9] sm:$0xff]
    %v649 = vld [vmem:[#allocation9 + $0x8] sm:$0xf]
    %v650 = vld [vmem:[#allocation9 + $0xc] sm:$0xff]
    %v651 = vld [vmem:[#allocation9 + $0x14] sm:$0xf]
    %v652 = vld [vmem:[#allocation9 + $0x18] sm:$0xff]
    %v653 = vld [vmem:[#allocation9 + $0x20] sm:$0xf]
    %v654 = vld [vmem:[#allocation9 + $0x24] sm:$0xff]
    %v655 = vld [vmem:[#allocation9 + $0x2c] sm:$0xf]
    %v656 = vld [vmem:[#allocation9 + $0x30] sm:$0xff]
    %v657 = vld [vmem:[#allocation9 + $0x38] sm:$0xf]
    %v658 = vld [vmem:[#allocation9 + $0x3c] sm:$0xff]
    %v659 = vld [vmem:[#allocation9 + $0x44] sm:$0xf]
    %v660 = vld [vmem:[#allocation9 + $0x48] sm:$0xff]
    %v661 = vld [vmem:[#allocation9 + $0x50] sm:$0xf]
    %v662 = vld [vmem:[#allocation9 + $0x54] sm:$0xff]
    %v663 = vld [vmem:[#allocation9 + $0x5c] sm:$0xf]
    %v664 = vld [vmem:[#allocation9 + $0x60] sm:$0xff]
    %v665 = vld [vmem:[#allocation9 + $0x68] sm:$0xf]
    %v666 = vld [vmem:[#allocation9 + $0x6c] sm:$0xff]
    %v667 = vld [vmem:[#allocation9 + $0x74] sm:$0xf]
    %v668 = vld [vmem:[#allocation9 + $0x78] sm:$0xff]
    %v669 = vld [vmem:[#allocation9 + $0x80] sm:$0xf]
    %v670 = vld [vmem:[#allocation9 + $0x84] sm:$0xff]
    %v671 = vld [vmem:[#allocation9 + $0x8c] sm:$0xf]
    %v672 = vld [vmem:[#allocation9 + $0x90] sm:$0xff]
    %v673 = vld [vmem:[#allocation9 + $0x98] sm:$0xf]
    %v674 = vld [vmem:[#allocation9 + $0x9c] sm:$0xff]
    %v675 = vld [vmem:[#allocation9 + $0xa4] sm:$0xf]
    %v676 = vld [vmem:[#allocation9 + $0xa8] sm:$0xff]
    %v677 = vld [vmem:[#allocation9 + $0xb0] sm:$0xf]
    %v678 = vld [vmem:[#allocation9 + $0xb4] sm:$0xff]
    %v679 = vld [vmem:[#allocation9 + $0xbc] sm:$0xf]
    %v680 = vld [vmem:[#allocation10] sm:$0x7]
    %v681 = vld [vmem:[#allocation12] sm:$0xff]
    %v682 = vld [vmem:[#allocation12 + $0x8] sm:$0xf]
    %v683 = vld [vmem:[#allocation12 + $0xc] sm:$0xff]
    %v684 = vld [vmem:[#allocation12 + $0x14] sm:$0xf]
    %v685 = vld [vmem:[#allocation12 + $0x18] sm:$0xff]
    %v686 = vld [vmem:[#allocation12 + $0x20] sm:$0xf]
    %v687 = vld [vmem:[#allocation12 + $0x24] sm:$0xff]
    %v688 = vld [vmem:[#allocation12 + $0x2c] sm:$0xf]
    %v689 = vld [vmem:[#allocation12 + $0x30] sm:$0xff]
    %v690 = vld [vmem:[#allocation12 + $0x38] sm:$0xf]
    %v691 = vld [vmem:[#allocation12 + $0x3c] sm:$0xff]
    %v692 = vld [vmem:[#allocation12 + $0x44] sm:$0xf]
    %v693 = vld [vmem:[#allocation12 + $0x48] sm:$0xff]
    %v694 = vld [vmem:[#allocation12 + $0x50] sm:$0xf]
    %v695 = vld [vmem:[#allocation12 + $0x54] sm:$0xff]
    %v696 = vld [vmem:[#allocation12 + $0x5c] sm:$0xf]
    %v697 = vld [vmem:[#allocation12 + $0x60] sm:$0xff]
    %v698 = vld [vmem:[#allocation12 + $0x68] sm:$0xf]
    %v699 = vld [vmem:[#allocation12 + $0x6c] sm:$0xff]
    %v700 = vld [vmem:[#allocation12 + $0x74] sm:$0xf]
    %v701 = vld [vmem:[#allocation12 + $0x78] sm:$0xff]
    %v702 = vld [vmem:[#allocation12 + $0x80] sm:$0xf]
    %v703 = vld [vmem:[#allocation12 + $0x84] sm:$0xff]
    %v704 = vld [vmem:[#allocation12 + $0x8c] sm:$0xf]
    %v705 = vld [vmem:[#allocation12 + $0x90] sm:$0xff]
    %v706 = vld [vmem:[#allocation12 + $0x98] sm:$0xf]
    %v707 = vld [vmem:[#allocation12 + $0x9c] sm:$0xff]
    %v708 = vld [vmem:[#allocation12 + $0xa4] sm:$0xf]
    %v709 = vld [vmem:[#allocation12 + $0xa8] sm:$0xff]
    %v710 = vld [vmem:[#allocation12 + $0xb0] sm:$0xf]
    %v711 = vld [vmem:[#allocation12 + $0xb4] sm:$0xff]
    %v712 = vld [vmem:[#allocation12 + $0xbc] sm:$0xf]
    %v713 = vld [vmem:[#allocation13] sm:$0x7]
    %s714 = smul.u32 0, 6
    %s715 = smul.addr %s714, 8
    %s716 = scalar_lea.vmem [#allocation2], %s715
    %v717 = vld [vmem:[%s716] sm:$0xff]
    %v718 = vld [vmem:[%s716 + $0x8] sm:$0xff]
    %v719 = vld [vmem:[%s716 + $0x10] sm:$0xff]
    %s720 = smul.u32 7, 6
    %s721 = smul.addr %s720, 8
    %s722 = scalar_lea.vmem [#allocation2], %s721
    %v723 = vld [vmem:[%s722 + $0x18] sm:$0xff]
    %v724 = vld [vmem:[%s722 + $0x20] sm:$0xff]
    %v725 = vld [vmem:[%s722 + $0x28] sm:$0xff]
    %v727 = vlaneseq
    %v728 = vshrl.u32 %v727, 7
    %v729 = vsub.s32 0, %v728
    %v730 = vrot.slane %v680, %v729
    %v731 = vlaneseq
    %v732 = vshrl.u32 %v731, 7
    %v733 = vsub.s32 1, %v732
    %v734 = vrot.slane %v680, %v733
    %v735 = vlaneseq
    %v736 = vshrl.u32 %v735, 7
    %v737 = vsub.s32 2, %v736
    %v738 = vrot.slane %v680, %v737
    %v774 = vunpack.c.l.b16 %v648
    %v775 = vunpack.c.h.b16 %v648
    %v776 = vunpack.c.l.b16 %v649
    %v777 = vunpack.c.l.b16 %v650
    %v778 = vunpack.c.h.b16 %v650
    %v779 = vunpack.c.l.b16 %v651
    %v780 = vunpack.c.l.b16 %v652
    %v781 = vunpack.c.h.b16 %v652
    %v782 = vunpack.c.l.b16 %v653
    %v783 = vunpack.c.l.b16 %v654
    %v784 = vunpack.c.h.b16 %v654
    %v785 = vunpack.c.l.b16 %v655
    %v786 = vunpack.c.l.b16 %v656
    %v787 = vunpack.c.h.b16 %v656
    %v788 = vunpack.c.l.b16 %v657
    %v789 = vunpack.c.l.b16 %v658
    %v790 = vunpack.c.h.b16 %v658
    %v791 = vunpack.c.l.b16 %v659
    %v792 = vunpack.c.l.b16 %v660
    %v793 = vunpack.c.h.b16 %v660
    %v794 = vunpack.c.l.b16 %v661
    %v795 = vunpack.c.l.b16 %v662
    %v796 = vunpack.c.h.b16 %v662
    %v797 = vunpack.c.l.b16 %v663
    %v798 = vunpack.c.l.b16 %v664
    %v799 = vunpack.c.h.b16 %v664
    %v800 = vunpack.c.l.b16 %v665
    %v801 = vunpack.c.l.b16 %v666
    %v802 = vunpack.c.h.b16 %v666
    %v803 = vunpack.c.l.b16 %v667
    %v804 = vunpack.c.l.b16 %v668
    %v805 = vunpack.c.h.b16 %v668
    %v806 = vunpack.c.l.b16 %v669
    %v807 = vunpack.c.l.b16 %v670
    %v808 = vunpack.c.h.b16 %v670
    %v809 = vunpack.c.l.b16 %v671
    %v810 = vunpack.c.l.b16 %v672
    %v811 = vunpack.c.h.b16 %v672
    %v812 = vunpack.c.l.b16 %v673
    %v813 = vunpack.c.l.b16 %v674
    %v814 = vunpack.c.h.b16 %v674
    %v815 = vunpack.c.l.b16 %v675
    %v816 = vunpack.c.l.b16 %v676
    %v817 = vunpack.c.h.b16 %v676
    %v818 = vunpack.c.l.b16 %v677
    %v819 = vunpack.c.l.b16 %v678
    %v820 = vunpack.c.h.b16 %v678
    %v821 = vunpack.c.l.b16 %v679
    %v822 = vpack.c.b16 %v777, %v774
    %v823 = vpack.c.b16 %v778, %v775
    %v824 = vpack.c.b16 %v779, %v776
    %v825 = vpack.c.b16 %v783, %v780
    %v826 = vpack.c.b16 %v784, %v781
    %v827 = vpack.c.b16 %v785, %v782
    %v828 = vpack.c.b16 %v789, %v786
    %v829 = vpack.c.b16 %v790, %v787
    %v830 = vpack.c.b16 %v791, %v788
    %v831 = vpack.c.b16 %v795, %v792
    %v832 = vpack.c.b16 %v796, %v793
    %v833 = vpack.c.b16 %v797, %v794
    %v834 = vpack.c.b16 %v801, %v798
    %v835 = vpack.c.b16 %v802, %v799
    %v836 = vpack.c.b16 %v803, %v800
    %v837 = vpack.c.b16 %v807, %v804
    %v838 = vpack.c.b16 %v808, %v805
    %v839 = vpack.c.b16 %v809, %v806
    %v840 = vpack.c.b16 %v813, %v810
    %v841 = vpack.c.b16 %v814, %v811
    %v842 = vpack.c.b16 %v815, %v812
    %v843 = vpack.c.b16 %v819, %v816
    %v844 = vpack.c.b16 %v820, %v817
    %v845 = vpack.c.b16 %v821, %v818
    %870 = vmatprep.subr.bf16.mxu0 %v823
    %871 = vmatpush1.bf16.msra.mxu0 %v822
    %872 = vmatprep.subr.bf16.mxu0 %v826
    %873 = vmatpush1.bf16.msra.mxu0 %v825
    %874 = vmatprep.subr.bf16.mxu0 %v829
    %875 = vmatpush1.bf16.msra.mxu0 %v828
    %876 = vmatprep.subr.bf16.mxu0 %v832
    %877 = vmatpush1.bf16.msra.mxu0 %v831
    %878 = vmatprep.subr.bf16.mxu0 %v835
    %879 = vmatpush1.bf16.msra.mxu0 %v834
    %880 = vmatprep.subr.bf16.mxu0 %v838
    %881 = vmatpush1.bf16.msra.mxu0 %v837
    %882 = vmatprep.subr.bf16.mxu0 %v841
    %883 = vmatpush1.bf16.msra.mxu0 %v840
    %884 = vmatprep.subr.bf16.mxu0 %v844
    %885 = vmatpush1.bf16.msra.mxu0 %v843
    %886 = vmatprep.subr.bf16.mxu0 0
    %887 = vmatpush1.bf16.msra.mxu0 0
    %888 = vmatprep.subr.bf16.mxu0 0
    %889 = vmatpush1.bf16.msra.mxu0 0
    %890 = vmatprep.subr.bf16.mxu0 0
    %891 = vmatpush1.bf16.msra.mxu0 0
    %892 = vmatprep.subr.bf16.mxu0 0
    %893 = vmatpush1.bf16.msra.mxu0 0
    %894 = vmatprep.subr.bf16.mxu0 0
    %895 = vmatpush1.bf16.msra.mxu0 0
    %896 = vmatprep.subr.bf16.mxu0 0
    %897 = vmatpush1.bf16.msra.mxu0 0
    %898 = vmatprep.subr.bf16.mxu0 0
    %899 = vmatpush1.bf16.msra.mxu0 0
    %900 = vmatprep.subr.bf16.mxu0 0
    %901 = vmatpush1.bf16.msra.mxu0 0
    %902 = vmatprep.mubr.bf16.mxu0 0
    %903 = vmatmul.mubr.bf16.gmra.mrb[0].mxu0 0
    %v904 = vpop.f32.mrb[0].mxu0
    %v905 = vadd.f32 %v730, %v904
    %v906 = vpop.f32.mrb[0].mxu0
    %v907 = vadd.f32 %v734, %v906
    %v908 = vpop.f32.mrb[0].mxu0
    %v909 = vpop.f32.mrb[0].mxu0
    %910 = vdwg.mxu0
    %911 = vmatprep.subr.bf16.mxu0 0
    %912 = vmatpush1.bf16.msra.mxu0 %v824
    %913 = vmatprep.subr.bf16.mxu0 0
    %914 = vmatpush1.bf16.msra.mxu0 %v827
    %915 = vmatprep.subr.bf16.mxu0 0
    %916 = vmatpush1.bf16.msra.mxu0 %v830
    %917 = vmatprep.subr.bf16.mxu0 0
    %918 = vmatpush1.bf16.msra.mxu0 %v833
    %919 = vmatprep.subr.bf16.mxu0 0
    %920 = vmatpush1.bf16.msra.mxu0 %v836
    %921 = vmatprep.subr.bf16.mxu0 0
    %922 = vmatpush1.bf16.msra.mxu0 %v839
    %923 = vmatprep.subr.bf16.mxu0 0
    %924 = vmatpush1.bf16.msra.mxu0 %v842
    %925 = vmatprep.subr.bf16.mxu0 0
    %926 = vmatpush1.bf16.msra.mxu0 %v845
    %927 = vmatprep.subr.bf16.mxu0 0
    %928 = vmatpush1.bf16.msra.mxu0 0
    %929 = vmatprep.subr.bf16.mxu0 0
    %930 = vmatpush1.bf16.msra.mxu0 0
    %931 = vmatprep.subr.bf16.mxu0 0
    %932 = vmatpush1.bf16.msra.mxu0 0
    %933 = vmatprep.subr.bf16.mxu0 0
    %934 = vmatpush1.bf16.msra.mxu0 0
    %935 = vmatprep.subr.bf16.mxu0 0
    %936 = vmatpush1.bf16.msra.mxu0 0
    %937 = vmatprep.subr.bf16.mxu0 0
    %938 = vmatpush1.bf16.msra.mxu0 0
    %939 = vmatprep.subr.bf16.mxu0 0
    %940 = vmatpush1.bf16.msra.mxu0 0
    %941 = vmatprep.subr.bf16.mxu0 0
    %942 = vmatpush1.bf16.msra.mxu0 0
    %943 = vmatprep.mubr.bf16.mxu0 0
    %944 = vmatmul.mubr.bf16.gmra.mrb[0].mxu0 0
    %v945 = vpop.f32.mrb[0].mxu0
    %v946 = vadd.f32 %v738, %v945
    %v947 = vpop.f32.mrb[0].mxu0
    %v948 = vpop.f32.mrb[0].mxu0
    %v949 = vpop.f32.mrb[0].mxu0
    %950 = vdwg.mxu0
    %v951 = vadd.f32 %v717, %v905
    %v952 = vxor.u32 %v951, 2147483648
    %v953 = vmul.f32 %v952, 1.442695
    %v954 = vpow.pop %v953
    %v955 = vadd.f32 %v954, 1.0
    %v956 = vrcp.pop %v955
    %v957 = vmul.f32 1.0, %v956
    %v958 = vadd.f32 %v718, %v907
    %v959 = vxor.u32 %v958, 2147483648
    %v960 = vmul.f32 %v959, 1.442695
    %v961 = vpow.pop %v960
    %v962 = vadd.f32 %v961, 1.0
    %v963 = vrcp.pop %v962
    %v964 = vmul.f32 1.0, %v963
    %v965 = vmul.f32 %v957, %v946
    %v966 = vadd.f32 %v719, %v965
    %v967 = vtanh.pop %v966
    %v968 = vsub.f32 1.0, %v964
    %v969 = vmul.f32 %v968, %v967
    %v970 = vmul.f32 %v964, 0.0
    %v971 = vadd.f32 %v969, %v970
    %v973 = vlaneseq
    %v974 = vshrl.u32 %v973, 7
    %v975 = vsub.s32 0, %v974
    %v976 = vrot.slane %v713, %v975
    %v977 = vlaneseq
    %v978 = vshrl.u32 %v977, 7
    %v979 = vsub.s32 1, %v978
    %v980 = vrot.slane %v713, %v979
    %v981 = vlaneseq
    %v982 = vshrl.u32 %v981, 7
    %v983 = vsub.s32 2, %v982
    %v984 = vrot.slane %v713, %v983
    %v1020 = vunpack.c.l.b16 %v681
    %v1021 = vunpack.c.h.b16 %v681
    %v1022 = vunpack.c.l.b16 %v682
    %v1023 = vunpack.c.l.b16 %v683
    %v1024 = vunpack.c.h.b16 %v683
    %v1025 = vunpack.c.l.b16 %v684
    %v1026 = vunpack.c.l.b16 %v685
    %v1027 = vunpack.c.h.b16 %v685
    %v1028 = vunpack.c.l.b16 %v686
    %v1029 = vunpack.c.l.b16 %v687
    %v1030 = vunpack.c.h.b16 %v687
    %v1031 = vunpack.c.l.b16 %v688
    %v1032 = vunpack.c.l.b16 %v689
    %v1033 = vunpack.c.h.b16 %v689
    %v1034 = vunpack.c.l.b16 %v690
    %v1035 = vunpack.c.l.b16 %v691
    %v1036 = vunpack.c.h.b16 %v691
    %v1037 = vunpack.c.l.b16 %v692
    %v1038 = vunpack.c.l.b16 %v693
    %v1039 = vunpack.c.h.b16 %v693
    %v1040 = vunpack.c.l.b16 %v694
    %v1041 = vunpack.c.l.b16 %v695
    %v1042 = vunpack.c.h.b16 %v695
    %v1043 = vunpack.c.l.b16 %v696
    %v1044 = vunpack.c.l.b16 %v697
    %v1045 = vunpack.c.h.b16 %v697
    %v1046 = vunpack.c.l.b16 %v698
    %v1047 = vunpack.c.l.b16 %v699
    %v1048 = vunpack.c.h.b16 %v699
    %v1049 = vunpack.c.l.b16 %v700
    %v1050 = vunpack.c.l.b16 %v701
    %v1051 = vunpack.c.h.b16 %v701
    %v1052 = vunpack.c.l.b16 %v702
    %v1053 = vunpack.c.l.b16 %v703
    %v1054 = vunpack.c.h.b16 %v703
    %v1055 = vunpack.c.l.b16 %v704
    %v1056 = vunpack.c.l.b16 %v705
    %v1057 = vunpack.c.h.b16 %v705
    %v1058 = vunpack.c.l.b16 %v706
    %v1059 = vunpack.c.l.b16 %v707
    %v1060 = vunpack.c.h.b16 %v707
    %v1061 = vunpack.c.l.b16 %v708
    %v1062 = vunpack.c.l.b16 %v709
    %v1063 = vunpack.c.h.b16 %v709
    %v1064 = vunpack.c.l.b16 %v710
    %v1065 = vunpack.c.l.b16 %v711
    %v1066 = vunpack.c.h.b16 %v711
    %v1067 = vunpack.c.l.b16 %v712
    %v1068 = vpack.c.b16 %v1023, %v1020
    %v1069 = vpack.c.b16 %v1024, %v1021
    %v1070 = vpack.c.b16 %v1025, %v1022
    %v1071 = vpack.c.b16 %v1029, %v1026
    %v1072 = vpack.c.b16 %v1030, %v1027
    %v1073 = vpack.c.b16 %v1031, %v1028
    %v1074 = vpack.c.b16 %v1035, %v1032
    %v1075 = vpack.c.b16 %v1036, %v1033
    %v1076 = vpack.c.b16 %v1037, %v1034
    %v1077 = vpack.c.b16 %v1041, %v1038
    %v1078 = vpack.c.b16 %v1042, %v1039
    %v1079 = vpack.c.b16 %v1043, %v1040
    %v1080 = vpack.c.b16 %v1047, %v1044
    %v1081 = vpack.c.b16 %v1048, %v1045
    %v1082 = vpack.c.b16 %v1049, %v1046
    %v1083 = vpack.c.b16 %v1053, %v1050
    %v1084 = vpack.c.b16 %v1054, %v1051
    %v1085 = vpack.c.b16 %v1055, %v1052
    %v1086 = vpack.c.b16 %v1059, %v1056
    %v1087 = vpack.c.b16 %v1060, %v1057
    %v1088 = vpack.c.b16 %v1061, %v1058
    %v1089 = vpack.c.b16 %v1065, %v1062
    %v1090 = vpack.c.b16 %v1066, %v1063
    %v1091 = vpack.c.b16 %v1067, %v1064
    %1116 = vmatprep.subr.bf16.mxu0 %v1069
    %1117 = vmatpush1.bf16.msra.mxu0 %v1068
    %1118 = vmatprep.subr.bf16.mxu0 %v1072
    %1119 = vmatpush1.bf16.msra.mxu0 %v1071
    %1120 = vmatprep.subr.bf16.mxu0 %v1075
    %1121 = vmatpush1.bf16.msra.mxu0 %v1074
    %1122 = vmatprep.subr.bf16.mxu0 %v1078
    %1123 = vmatpush1.bf16.msra.mxu0 %v1077
    %1124 = vmatprep.subr.bf16.mxu0 %v1081
    %1125 = vmatpush1.bf16.msra.mxu0 %v1080
    %1126 = vmatprep.subr.bf16.mxu0 %v1084
    %1127 = vmatpush1.bf16.msra.mxu0 %v1083
    %1128 = vmatprep.subr.bf16.mxu0 %v1087
    %1129 = vmatpush1.bf16.msra.mxu0 %v1086
    %1130 = vmatprep.subr.bf16.mxu0 %v1090
    %1131 = vmatpush1.bf16.msra.mxu0 %v1089
    %1132 = vmatprep.subr.bf16.mxu0 0
    %1133 = vmatpush1.bf16.msra.mxu0 0
    %1134 = vmatprep.subr.bf16.mxu0 0
    %1135 = vmatpush1.bf16.msra.mxu0 0
    %1136 = vmatprep.subr.bf16.mxu0 0
    %1137 = vmatpush1.bf16.msra.mxu0 0
    %1138 = vmatprep.subr.bf16.mxu0 0
    %1139 = vmatpush1.bf16.msra.mxu0 0
    %1140 = vmatprep.subr.bf16.mxu0 0
    %1141 = vmatpush1.bf16.msra.mxu0 0
    %1142 = vmatprep.subr.bf16.mxu0 0
    %1143 = vmatpush1.bf16.msra.mxu0 0
    %1144 = vmatprep.subr.bf16.mxu0 0
    %1145 = vmatpush1.bf16.msra.mxu0 0
    %1146 = vmatprep.subr.bf16.mxu0 0
    %1147 = vmatpush1.bf16.msra.mxu0 0
    %1148 = vmatprep.mubr.bf16.mxu0 0
    %1149 = vmatmul.mubr.bf16.gmra.mrb[0].mxu0 0
    %v1150 = vpop.f32.mrb[0].mxu0
    %v1151 = vadd.f32 %v976, %v1150
    %v1152 = vpop.f32.mrb[0].mxu0
    %v1153 = vadd.f32 %v980, %v1152
    %v1154 = vpop.f32.mrb[0].mxu0
    %v1155 = vpop.f32.mrb[0].mxu0
    %1156 = vdwg.mxu0
    %1157 = vmatprep.subr.bf16.mxu0 0
    %1158 = vmatpush1.bf16.msra.mxu0 %v1070
    %1159 = vmatprep.subr.bf16.mxu0 0
    %1160 = vmatpush1.bf16.msra.mxu0 %v1073
    %1161 = vmatprep.subr.bf16.mxu0 0
    %1162 = vmatpush1.bf16.msra.mxu0 %v1076
    %1163 = vmatprep.subr.bf16.mxu0 0
    %1164 = vmatpush1.bf16.msra.mxu0 %v1079
    %1165 = vmatprep.subr.bf16.mxu0 0
    %1166 = vmatpush1.bf16.msra.mxu0 %v1082
    %1167 = vmatprep.subr.bf16.mxu0 0
    %1168 = vmatpush1.bf16.msra.mxu0 %v1085
    %1169 = vmatprep.subr.bf16.mxu0 0
    %1170 = vmatpush1.bf16.msra.mxu0 %v1088
    %1171 = vmatprep.subr.bf16.mxu0 0
    %1172 = vmatpush1.bf16.msra.mxu0 %v1091
    %1173 = vmatprep.subr.bf16.mxu0 0
    %1174 = vmatpush1.bf16.msra.mxu0 0
    %1175 = vmatprep.subr.bf16.mxu0 0
    %1176 = vmatpush1.bf16.msra.mxu0 0
    %1177 = vmatprep.subr.bf16.mxu0 0
    %1178 = vmatpush1.bf16.msra.mxu0 0
    %1179 = vmatprep.subr.bf16.mxu0 0
    %1180 = vmatpush1.bf16.msra.mxu0 0
    %1181 = vmatprep.subr.bf16.mxu0 0
    %1182 = vmatpush1.bf16.msra.mxu0 0
    %1183 = vmatprep.subr.bf16.mxu0 0
    %1184 = vmatpush1.bf16.msra.mxu0 0
    %1185 = vmatprep.subr.bf16.mxu0 0
    %1186 = vmatpush1.bf16.msra.mxu0 0
    %1187 = vmatprep.subr.bf16.mxu0 0
    %1188 = vmatpush1.bf16.msra.mxu0 0
    %1189 = vmatprep.mubr.bf16.mxu0 0
    %1190 = vmatmul.mubr.bf16.gmra.mrb[0].mxu0 0
    %v1191 = vpop.f32.mrb[0].mxu0
    %v1192 = vadd.f32 %v984, %v1191
    %v1193 = vpop.f32.mrb[0].mxu0
    %v1194 = vpop.f32.mrb[0].mxu0
    %v1195 = vpop.f32.mrb[0].mxu0
    %1196 = vdwg.mxu0
    %v1197 = vadd.f32 %v723, %v1151
    %v1198 = vxor.u32 %v1197, 2147483648
    %v1199 = vmul.f32 %v1198, 1.442695
    %v1200 = vpow.pop %v1199
    %v1201 = vadd.f32 %v1200, 1.0
    %v1202 = vrcp.pop %v1201
    %v1203 = vmul.f32 1.0, %v1202
    %v1204 = vadd.f32 %v724, %v1153
    %v1205 = vxor.u32 %v1204, 2147483648
    %v1206 = vmul.f32 %v1205, 1.442695
    %v1207 = vpow.pop %v1206
    %v1208 = vadd.f32 %v1207, 1.0
    %v1209 = vrcp.pop %v1208
    %v1210 = vmul.f32 1.0, %v1209
    %v1211 = vmul.f32 %v1203, %v1192
    %v1212 = vadd.f32 %v725, %v1211
    %v1213 = vtanh.pop %v1212
    %v1214 = vsub.f32 1.0, %v1210
    %v1215 = vmul.f32 %v1214, %v1213
    %v1216 = vmul.f32 %v1210, 0.0
    %v1217 = vadd.f32 %v1215, %v1216
    %s1218 = smul.u32 0, 2
    %s1219 = smul.addr %s1218, 8
    %s1220 = scalar_lea.vmem [#allocation3], %s1219
    %1221 = vst [vmem:[%s1220] sm:$0xff] %v971
    %s1222 = smul.u32 7, 2
    %s1223 = smul.addr %s1222, 8
    %s1224 = scalar_lea.vmem [#allocation3], %s1223
    %1225 = vst [vmem:[%s1224 + $0x8] sm:$0xff] %v1217
    %s1226 = smul.u32 1, 6
    %s1227 = smul.addr %s1226, 8
    %s1228 = scalar_lea.vmem [#allocation2], %s1227
    %v1229 = vld [vmem:[%s1228] sm:$0xff]
    %v1230 = vld [vmem:[%s1228 + $0x8] sm:$0xff]
    %v1231 = vld [vmem:[%s1228 + $0x10] sm:$0xff]
    %s1232 = smul.u32 6, 6
    %s1233 = smul.addr %s1232, 8
    %s1234 = scalar_lea.vmem [#allocation2], %s1233
    %v1235 = vld [vmem:[%s1234 + $0x18] sm:$0xff]
    %v1236 = vld [vmem:[%s1234 + $0x20] sm:$0xff]
    %v1237 = vld [vmem:[%s1234 + $0x28] sm:$0xff]
    %v1238 = vpack.c.bf16 %v971, %v971
    %1239 = vmatprep.subr.bf16.mxu0 %v823
    %1240 = vmatpush1.bf16.msra.mxu0 %v822
    %1241 = vmatprep.subr.bf16.mxu0 %v826
    %1242 = vmatpush1.bf16.msra.mxu0 %v825
    %1243 = vmatprep.subr.bf16.mxu0 %v829
    %1244 = vmatpush1.bf16.msra.mxu0 %v828
    %1245 = vmatprep.subr.bf16.mxu0 %v832
    %1246 = vmatpush1.bf16.msra.mxu0 %v831
    %1247 = vmatprep.subr.bf16.mxu0 %v835
    %1248 = vmatpush1.bf16.msra.mxu0 %v834
    %1249 = vmatprep.subr.bf16.mxu0 %v838
    %1250 = vmatpush1.bf16.msra.mxu0 %v837
    %1251 = vmatprep.subr.bf16.mxu0 %v841
    %1252 = vmatpush1.bf16.msra.mxu0 %v840
    %1253 = vmatprep.subr.bf16.mxu0 %v844
    %1254 = vmatpush1.bf16.msra.mxu0 %v843
    %1255 = vmatprep.subr.bf16.mxu0 0
    %1256 = vmatpush1.bf16.msra.mxu0 0
    %1257 = vmatprep.subr.bf16.mxu0 0
    %1258 = vmatpush1.bf16.msra.mxu0 0
    %1259 = vmatprep.subr.bf16.mxu0 0
    %1260 = vmatpush1.bf16.msra.mxu0 0
    %1261 = vmatprep.subr.bf16.mxu0 0
    %1262 = vmatpush1.bf16.msra.mxu0 0
    %1263 = vmatprep.subr.bf16.mxu0 0
    %1264 = vmatpush1.bf16.msra.mxu0 0
    %1265 = vmatprep.subr.bf16.mxu0 0
    %1266 = vmatpush1.bf16.msra.mxu0 0
    %1267 = vmatprep.subr.bf16.mxu0 0
    %1268 = vmatpush1.bf16.msra.mxu0 0
    %1269 = vmatprep.subr.bf16.mxu0 0
    %1270 = vmatpush1.bf16.msra.mxu0 0
    %1271 = vmatprep.mubr.bf16.mxu0 0
    %1272 = vmatmul.mubr.bf16.gmra.mrb[0].mxu0 %v1238
    %v1273 = vpop.f32.mrb[0].mxu0
    %v1274 = vadd.f32 %v730, %v1273
    %v1275 = vpop.f32.mrb[0].mxu0
    %v1276 = vadd.f32 %v734, %v1275
    %v1277 = vpop.f32.mrb[0].mxu0
    %v1278 = vpop.f32.mrb[0].mxu0
    %1279 = vdwg.mxu0
    %1280 = vmatprep.subr.bf16.mxu0 0
    %1281 = vmatpush1.bf16.msra.mxu0 %v824
    %1282 = vmatprep.subr.bf16.mxu0 0
    %1283 = vmatpush1.bf16.msra.mxu0 %v827
    %1284 = vmatprep.subr.bf16.mxu0 0
    %1285 = vmatpush1.bf16.msra.mxu0 %v830
    %1286 = vmatprep.subr.bf16.mxu0 0
    %1287 = vmatpush1.bf16.msra.mxu0 %v833
    %1288 = vmatprep.subr.bf16.mxu0 0
    %1289 = vmatpush1.bf16.msra.mxu0 %v836
    %1290 = vmatprep.subr.bf16.mxu0 0
    %1291 = vmatpush1.bf16.msra.mxu0 %v839
    %1292 = vmatprep.subr.bf16.mxu0 0
    %1293 = vmatpush1.bf16.msra.mxu0 %v842
    %1294 = vmatprep.subr.bf16.mxu0 0
    %1295 = vmatpush1.bf16.msra.mxu0 %v845
    %1296 = vmatprep.subr.bf16.mxu0 0
    %1297 = vmatpush1.bf16.msra.mxu0 0
    %1298 = vmatprep.subr.bf16.mxu0 0
    %1299 = vmatpush1.bf16.msra.mxu0 0
    %1300 = vmatprep.subr.bf16.mxu0 0
    %1301 = vmatpush1.bf16.msra.mxu0 0
    %1302 = vmatprep.subr.bf16.mxu0 0
    %1303 = vmatpush1.bf16.msra.mxu0 0
    %1304 = vmatprep.subr.bf16.mxu0 0
    %1305 = vmatpush1.bf16.msra.mxu0 0
    %1306 = vmatprep.subr.bf16.mxu0 0
    %1307 = vmatpush1.bf16.msra.mxu0 0
    %1308 = vmatprep.subr.bf16.mxu0 0
    %1309 = vmatpush1.bf16.msra.mxu0 0
    %1310 = vmatprep.subr.bf16.mxu0 0
    %1311 = vmatpush1.bf16.msra.mxu0 0
    %1312 = vmatprep.mubr.bf16.mxu0 0
    %1313 = vmatmul.mubr.bf16.gmra.mrb[0].mxu0 %v1238
    %v1314 = vpop.f32.mrb[0].mxu0
    %v1315 = vadd.f32 %v738, %v1314
    %v1316 = vpop.f32.mrb[0].mxu0
    %v1317 = vpop.f32.mrb[0].mxu0
    %v1318 = vpop.f32.mrb[0].mxu0
    %1319 = vdwg.mxu0
    %v1320 = vadd.f32 %v1229, %v1274
    %v1321 = vxor.u32 %v1320, 2147483648
    %v1322 = vmul.f32 %v1321, 1.442695
    %v1323 = vpow.pop %v1322
    %v1324 = vadd.f32 %v1323, 1.0
    %v1325 = vrcp.pop %v1324
    %v1326 = vmul.f32 1.0, %v1325
    %v1327 = vadd.f32 %v1230, %v1276
    %v1328 = vxor.u32 %v1327, 2147483648
    %v1329 = vmul.f32 %v1328, 1.442695
    %v1330 = vpow.pop %v1329
    %v1331 = vadd.f32 %v1330, 1.0
    %v1332 = vrcp.pop %v1331
    %v1333 = vmul.f32 1.0, %v1332
    %v1334 = vmul.f32 %v1326, %v1315
    %v1335 = vadd.f32 %v1231, %v1334
    %v1336 = vtanh.pop %v1335
    %v1337 = vsub.f32 1.0, %v1333
    %v1338 = vmul.f32 %v1337, %v1336
    %v1339 = vmul.f32 %v1333, %v971
    %v1340 = vadd.f32 %v1338, %v1339
    %v1341 = vpack.c.bf16 %v1217, %v1217
    %1342 = vmatprep.subr.bf16.mxu0 %v1069
    %1343 = vmatpush1.bf16.msra.mxu0 %v1068
    %1344 = vmatprep.subr.bf16.mxu0 %v1072
    %1345 = vmatpush1.bf16.msra.mxu0 %v1071
    %1346 = vmatprep.subr.bf16.mxu0 %v1075
    %1347 = vmatpush1.bf16.msra.mxu0 %v1074
    %1348 = vmatprep.subr.bf16.mxu0 %v1078
    %1349 = vmatpush1.bf16.msra.mxu0 %v1077
    %1350 = vmatprep.subr.bf16.mxu0 %v1081
    %1351 = vmatpush1.bf16.msra.mxu0 %v1080
    %1352 = vmatprep.subr.bf16.mxu0 %v1084
    %1353 = vmatpush1.bf16.msra.mxu0 %v1083
    %1354 = vmatprep.subr.bf16.mxu0 %v1087
    %1355 = vmatpush1.bf16.msra.mxu0 %v1086
    %1356 = vmatprep.subr.bf16.mxu0 %v1090
    %1357 = vmatpush1.bf16.msra.mxu0 %v1089
    %1358 = vmatprep.subr.bf16.mxu0 0
    %1359 = vmatpush1.bf16.msra.mxu0 0
    %1360 = vmatprep.subr.bf16.mxu0 0
    %1361 = vmatpush1.bf16.msra.mxu0 0
    %1362 = vmatprep.subr.bf16.mxu0 0
    %1363 = vmatpush1.bf16.msra.mxu0 0
    %1364 = vmatprep.subr.bf16.mxu0 0
    %1365 = vmatpush1.bf16.msra.mxu0 0
    %1366 = vmatprep.subr.bf16.mxu0 0
    %1367 = vmatpush1.bf16.msra.mxu0 0
    %1368 = vmatprep.subr.bf16.mxu0 0
    %1369 = vmatpush1.bf16.msra.mxu0 0
    %1370 = vmatprep.subr.bf16.mxu0 0
    %1371 = vmatpush1.bf16.msra.mxu0 0
    %1372 = vmatprep.subr.bf16.mxu0 0
    %1373 = vmatpush1.bf16.msra.mxu0 0
    %1374 = vmatprep.mubr.bf16.mxu0 0
    %1375 = vmatmul.mubr.bf16.gmra.mrb[0].mxu0 %v1341
    %v1376 = vpop.f32.mrb[0].mxu0
    %v1377 = vadd.f32 %v976, %v1376
    %v1378 = vpop.f32.mrb[0].mxu0
    %v1379 = vadd.f32 %v980, %v1378
    %v1380 = vpop.f32.mrb[0].mxu0
    %v1381 = vpop.f32.mrb[0].mxu0
    %1382 = vdwg.mxu0
    %1383 = vmatprep.subr.bf16.mxu0 0
    %1384 = vmatpush1.bf16.msra.mxu0 %v1070
    %1385 = vmatprep.subr.bf16.mxu0 0
    %1386 = vmatpush1.bf16.msra.mxu0 %v1073
    %1387 = vmatprep.subr.bf16.mxu0 0
    %1388 = vmatpush1.bf16.msra.mxu0 %v1076
    %1389 = vmatprep.subr.bf16.mxu0 0
    %1390 = vmatpush1.bf16.msra.mxu0 %v1079
    %1391 = vmatprep.subr.bf16.mxu0 0
    %1392 = vmatpush1.bf16.msra.mxu0 %v1082
    %1393 = vmatprep.subr.bf16.mxu0 0
    %1394 = vmatpush1.bf16.msra.mxu0 %v1085
    %1395 = vmatprep.subr.bf16.mxu0 0
    %1396 = vmatpush1.bf16.msra.mxu0 %v1088
    %1397 = vmatprep.subr.bf16.mxu0 0
    %1398 = vmatpush1.bf16.msra.mxu0 %v1091
    %1399 = vmatprep.subr.bf16.mxu0 0
    %1400 = vmatpush1.bf16.msra.mxu0 0
    %1401 = vmatprep.subr.bf16.mxu0 0
    %1402 = vmatpush1.bf16.msra.mxu0 0
    %1403 = vmatprep.subr.bf16.mxu0 0
    %1404 = vmatpush1.bf16.msra.mxu0 0
    %1405 = vmatprep.subr.bf16.mxu0 0
    %1406 = vmatpush1.bf16.msra.mxu0 0
    %1407 = vmatprep.subr.bf16.mxu0 0
    %1408 = vmatpush1.bf16.msra.mxu0 0
    %1409 = vmatprep.subr.bf16.mxu0 0
    %1410 = vmatpush1.bf16.msra.mxu0 0
    %1411 = vmatprep.subr.bf16.mxu0 0
    %1412 = vmatpush1.bf16.msra.mxu0 0
    %1413 = vmatprep.subr.bf16.mxu0 0
    %1414 = vmatpush1.bf16.msra.mxu0 0
    %1415 = vmatprep.mubr.bf16.mxu0 0
    %1416 = vmatmul.mubr.bf16.gmra.mrb[0].mxu0 %v1341
    %v1417 = vpop.f32.mrb[0].mxu0
    %v1418 = vadd.f32 %v984, %v1417
    %v1419 = vpop.f32.mrb[0].mxu0
    %v1420 = vpop.f32.mrb[0].mxu0
    %v1421 = vpop.f32.mrb[0].mxu0
    %1422 = vdwg.mxu0
    %v1423 = vadd.f32 %v1235, %v1377
    %v1424 = vxor.u32 %v1423, 2147483648
    %v1425 = vmul.f32 %v1424, 1.442695
    %v1426 = vpow.pop %v1425
    %v1427 = vadd.f32 %v1426, 1.0
    %v1428 = vrcp.pop %v1427
    %v1429 = vmul.f32 1.0, %v1428
    %v1430 = vadd.f32 %v1236, %v1379
    %v1431 = vxor.u32 %v1430, 2147483648
    %v1432 = vmul.f32 %v1431, 1.442695
    %v1433 = vpow.pop %v1432
    %v1434 = vadd.f32 %v1433, 1.0
    %v1435 = vrcp.pop %v1434
    %v1436 = vmul.f32 1.0, %v1435
    %v1437 = vmul.f32 %v1429, %v1418
    %v1438 = vadd.f32 %v1237, %v1437
    %v1439 = vtanh.pop %v1438
    %v1440 = vsub.f32 1.0, %v1436
    %v1441 = vmul.f32 %v1440, %v1439
    %v1442 = vmul.f32 %v1436, %v1217
    %v1443 = vadd.f32 %v1441, %v1442
    %s1444 = smul.u32 1, 2
    %s1445 = smul.addr %s1444, 8
    %s1446 = scalar_lea.vmem [#allocation3], %s1445
    %1447 = vst [vmem:[%s1446] sm:$0xff] %v1340
    %s1448 = smul.u32 6, 2
    %s1449 = smul.addr %s1448, 8
    %s1450 = scalar_lea.vmem [#allocation3], %s1449
    %1451 = vst [vmem:[%s1450 + $0x8] sm:$0xff] %v1443
    %s1452 = smul.u32 2, 6
    %s1453 = smul.addr %s1452, 8
    %s1454 = scalar_lea.vmem [#allocation2], %s1453
    %v1455 = vld [vmem:[%s1454] sm:$0xff]
    %v1456 = vld [vmem:[%s1454 + $0x8] sm:$0xff]
    %v1457 = vld [vmem:[%s1454 + $0x10] sm:$0xff]
    %s1458 = smul.u32 5, 6
    %s1459 = smul.addr %s1458, 8
    %s1460 = scalar_lea.vmem [#allocation2], %s1459
    %v1461 = vld [vmem:[%s1460 + $0x18] sm:$0xff]
    %v1462 = vld [vmem:[%s1460 + $0x20] sm:$0xff]
    %v1463 = vld [vmem:[%s1460 + $0x28] sm:$0xff]
    %v1464 = vpack.c.bf16 %v1340, %v1340
    %1465 = vmatprep.subr.bf16.mxu0 %v823
    %1466 = vmatpush1.bf16.msra.mxu0 %v822
    %1467 = vmatprep.subr.bf16.mxu0 %v826
    %1468 = vmatpush1.bf16.msra.mxu0 %v825
    %1469 = vmatprep.subr.bf16.mxu0 %v829
    %1470 = vmatpush1.bf16.msra.mxu0 %v828
    %1471 = vmatprep.subr.bf16.mxu0 %v832
    %1472 = vmatpush1.bf16.msra.mxu0 %v831
    %1473 = vmatprep.subr.bf16.mxu0 %v835
    %1474 = vmatpush1.bf16.msra.mxu0 %v834
    %1475 = vmatprep.subr.bf16.mxu0 %v838
    %1476 = vmatpush1.bf16.msra.mxu0 %v837
    %1477 = vmatprep.subr.bf16.mxu0 %v841
    %1478 = vmatpush1.bf16.msra.mxu0 %v840
    %1479 = vmatprep.subr.bf16.mxu0 %v844
    %1480 = vmatpush1.bf16.msra.mxu0 %v843
    %1481 = vmatprep.subr.bf16.mxu0 0
    %1482 = vmatpush1.bf16.msra.mxu0 0
    %1483 = vmatprep.subr.bf16.mxu0 0
    %1484 = vmatpush1.bf16.msra.mxu0 0
    %1485 = vmatprep.subr.bf16.mxu0 0
    %1486 = vmatpush1.bf16.msra.mxu0 0
    %1487 = vmatprep.subr.bf16.mxu0 0
    %1488 = vmatpush1.bf16.msra.mxu0 0
    %1489 = vmatprep.subr.bf16.mxu0 0
    %1490 = vmatpush1.bf16.msra.mxu0 0
    %1491 = vmatprep.subr.bf16.mxu0 0
    %1492 = vmatpush1.bf16.msra.mxu0 0
    %1493 = vmatprep.subr.bf16.mxu0 0
    %1494 = vmatpush1.bf16.msra.mxu0 0
    %1495 = vmatprep.subr.bf16.mxu0 0
    %1496 = vmatpush1.bf16.msra.mxu0 0
    %1497 = vmatprep.mubr.bf16.mxu0 0
    %1498 = vmatmul.mubr.bf16.gmra.mrb[0].mxu0 %v1464
    %v1499 = vpop.f32.mrb[0].mxu0
    %v1500 = vadd.f32 %v730, %v1499
    %v1501 = vpop.f32.mrb[0].mxu0
    %v1502 = vadd.f32 %v734, %v1501
    %v1503 = vpop.f32.mrb[0].mxu0
    %v1504 = vpop.f32.mrb[0].mxu0
    %1505 = vdwg.mxu0
    %1506 = vmatprep.subr.bf16.mxu0 0
    %1507 = vmatpush1.bf16.msra.mxu0 %v824
    %1508 = vmatprep.subr.bf16.mxu0 0
    %1509 = vmatpush1.bf16.msra.mxu0 %v827
    %1510 = vmatprep.subr.bf16.mxu0 0
    %1511 = vmatpush1.bf16.msra.mxu0 %v830
    %1512 = vmatprep.subr.bf16.mxu0 0
    %1513 = vmatpush1.bf16.msra.mxu0 %v833
    %1514 = vmatprep.subr.bf16.mxu0 0
    %1515 = vmatpush1.bf16.msra.mxu0 %v836
    %1516 = vmatprep.subr.bf16.mxu0 0
    %1517 = vmatpush1.bf16.msra.mxu0 %v839
    %1518 = vmatprep.subr.bf16.mxu0 0
    %1519 = vmatpush1.bf16.msra.mxu0 %v842
    %1520 = vmatprep.subr.bf16.mxu0 0
    %1521 = vmatpush1.bf16.msra.mxu0 %v845
    %1522 = vmatprep.subr.bf16.mxu0 0
    %1523 = vmatpush1.bf16.msra.mxu0 0
    %1524 = vmatprep.subr.bf16.mxu0 0
    %1525 = vmatpush1.bf16.msra.mxu0 0
    %1526 = vmatprep.subr.bf16.mxu0 0
    %1527 = vmatpush1.bf16.msra.mxu0 0
    %1528 = vmatprep.subr.bf16.mxu0 0
    %1529 = vmatpush1.bf16.msra.mxu0 0
    %1530 = vmatprep.subr.bf16.mxu0 0
    %1531 = vmatpush1.bf16.msra.mxu0 0
    %1532 = vmatprep.subr.bf16.mxu0 0
    %1533 = vmatpush1.bf16.msra.mxu0 0
    %1534 = vmatprep.subr.bf16.mxu0 0
    %1535 = vmatpush1.bf16.msra.mxu0 0
    %1536 = vmatprep.subr.bf16.mxu0 0
    %1537 = vmatpush1.bf16.msra.mxu0 0
    %1538 = vmatprep.mubr.bf16.mxu0 0
    %1539 = vmatmul.mubr.bf16.gmra.mrb[0].mxu0 %v1464
    %v1540 = vpop.f32.mrb[0].mxu0
    %v1541 = vadd.f32 %v738, %v1540
    %v1542 = vpop.f32.mrb[0].mxu0
    %v1543 = vpop.f32.mrb[0].mxu0
    %v1544 = vpop.f32.mrb[0].mxu0
    %1545 = vdwg.mxu0
    %v1546 = vadd.f32 %v1455, %v1500
    %v1547 = vxor.u32 %v1546, 2147483648
    %v1548 = vmul.f32 %v1547, 1.442695
    %v1549 = vpow.pop %v1548
    %v1550 = vadd.f32 %v1549, 1.0
    %v1551 = vrcp.pop %v1550
    %v1552 = vmul.f32 1.0, %v1551
    %v1553 = vadd.f32 %v1456, %v1502
    %v1554 = vxor.u32 %v1553, 2147483648
    %v1555 = vmul.f32 %v1554, 1.442695
    %v1556 = vpow.pop %v1555
    %v1557 = vadd.f32 %v1556, 1.0
    %v1558 = vrcp.pop %v1557
    %v1559 = vmul.f32 1.0, %v1558
    %v1560 = vmul.f32 %v1552, %v1541
    %v1561 = vadd.f32 %v1457, %v1560
    %v1562 = vtanh.pop %v1561
    %v1563 = vsub.f32 1.0, %v1559
    %v1564 = vmul.f32 %v1563, %v1562
    %v1565 = vmul.f32 %v1559, %v1340
    %v1566 = vadd.f32 %v1564, %v1565
    %v1567 = vpack.c.bf16 %v1443, %v1443
    %1568 = vmatprep.subr.bf16.mxu0 %v1069
    %1569 = vmatpush1.bf16.msra.mxu0 %v1068
    %1570 = vmatprep.subr.bf16.mxu0 %v1072
    %1571 = vmatpush1.bf16.msra.mxu0 %v1071
    %1572 = vmatprep.subr.bf16.mxu0 %v1075
    %1573 = vmatpush1.bf16.msra.mxu0 %v1074
    %1574 = vmatprep.subr.bf16.mxu0 %v1078
    %1575 = vmatpush1.bf16.msra.mxu0 %v1077
    %1576 = vmatprep.subr.bf16.mxu0 %v1081
    %1577 = vmatpush1.bf16.msra.mxu0 %v1080
    %1578 = vmatprep.subr.bf16.mxu0 %v1084
    %1579 = vmatpush1.bf16.msra.mxu0 %v1083
    %1580 = vmatprep.subr.bf16.mxu0 %v1087
    %1581 = vmatpush1.bf16.msra.mxu0 %v1086
    %1582 = vmatprep.subr.bf16.mxu0 %v1090
    %1583 = vmatpush1.bf16.msra.mxu0 %v1089
    %1584 = vmatprep.subr.bf16.mxu0 0
    %1585 = vmatpush1.bf16.msra.mxu0 0
    %1586 = vmatprep.subr.bf16.mxu0 0
    %1587 = vmatpush1.bf16.msra.mxu0 0
    %1588 = vmatprep.subr.bf16.mxu0 0
    %1589 = vmatpush1.bf16.msra.mxu0 0
    %1590 = vmatprep.subr.bf16.mxu0 0
    %1591 = vmatpush1.bf16.msra.mxu0 0
    %1592 = vmatprep.subr.bf16.mxu0 0
    %1593 = vmatpush1.bf16.msra.mxu0 0
    %1594 = vmatprep.subr.bf16.mxu0 0
    %1595 = vmatpush1.bf16.msra.mxu0 0
    %1596 = vmatprep.subr.bf16.mxu0 0
    %1597 = vmatpush1.bf16.msra.mxu0 0
    %1598 = vmatprep.subr.bf16.mxu0 0
    %1599 = vmatpush1.bf16.msra.mxu0 0
    %1600 = vmatprep.mubr.bf16.mxu0 0
    %1601 = vmatmul.mubr.bf16.gmra.mrb[0].mxu0 %v1567
    %v1602 = vpop.f32.mrb[0].mxu0
    %v1603 = vadd.f32 %v976, %v1602
    %v1604 = vpop.f32.mrb[0].mxu0
    %v1605 = vadd.f32 %v980, %v1604
    %v1606 = vpop.f32.mrb[0].mxu0
    %v1607 = vpop.f32.mrb[0].mxu0
    %1608 = vdwg.mxu0
    %1609 = vmatprep.subr.bf16.mxu0 0
    %1610 = vmatpush1.bf16.msra.mxu0 %v1070
    %1611 = vmatprep.subr.bf16.mxu0 0
    %1612 = vmatpush1.bf16.msra.mxu0 %v1073
    %1613 = vmatprep.subr.bf16.mxu0 0
    %1614 = vmatpush1.bf16.msra.mxu0 %v1076
    %1615 = vmatprep.subr.bf16.mxu0 0
    %1616 = vmatpush1.bf16.msra.mxu0 %v1079
    %1617 = vmatprep.subr.bf16.mxu0 0
    %1618 = vmatpush1.bf16.msra.mxu0 %v1082
    %1619 = vmatprep.subr.bf16.mxu0 0
    %1620 = vmatpush1.bf16.msra.mxu0 %v1085
    %1621 = vmatprep.subr.bf16.mxu0 0
    %1622 = vmatpush1.bf16.msra.mxu0 %v1088
    %1623 = vmatprep.subr.bf16.mxu0 0
    %1624 = vmatpush1.bf16.msra.mxu0 %v1091
    %1625 = vmatprep.subr.bf16.mxu0 0
    %1626 = vmatpush1.bf16.msra.mxu0 0
    %1627 = vmatprep.subr.bf16.mxu0 0
    %1628 = vmatpush1.bf16.msra.mxu0 0
    %1629 = vmatprep.subr.bf16.mxu0 0
    %1630 = vmatpush1.bf16.msra.mxu0 0
    %1631 = vmatprep.subr.bf16.mxu0 0
    %1632 = vmatpush1.bf16.msra.mxu0 0
    %1633 = vmatprep.subr.bf16.mxu0 0
    %1634 = vmatpush1.bf16.msra.mxu0 0
    %1635 = vmatprep.subr.bf16.mxu0 0
    %1636 = vmatpush1.bf16.msra.mxu0 0
    %1637 = vmatprep.subr.bf16.mxu0 0
    %1638 = vmatpush1.bf16.msra.mxu0 0
    %1639 = vmatprep.subr.bf16.mxu0 0
    %1640 = vmatpush1.bf16.msra.mxu0 0
    %1641 = vmatprep.mubr.bf16.mxu0 0
    %1642 = vmatmul.mubr.bf16.gmra.mrb[0].mxu0 %v1567
    %v1643 = vpop.f32.mrb[0].mxu0
    %v1644 = vadd.f32 %v984, %v1643
    %v1645 = vpop.f32.mrb[0].mxu0
    %v1646 = vpop.f32.mrb[0].mxu0
    %v1647 = vpop.f32.mrb[0].mxu0
    %1648 = vdwg.mxu0
    %v1649 = vadd.f32 %v1461, %v1603
    %v1650 = vxor.u32 %v1649, 2147483648
    %v1651 = vmul.f32 %v1650, 1.442695
    %v1652 = vpow.pop %v1651
    %v1653 = vadd.f32 %v1652, 1.0
    %v1654 = vrcp.pop %v1653
    %v1655 = vmul.f32 1.0, %v1654
    %v1656 = vadd.f32 %v1462, %v1605
    %v1657 = vxor.u32 %v1656, 2147483648
    %v1658 = vmul.f32 %v1657, 1.442695
    %v1659 = vpow.pop %v1658
    %v1660 = vadd.f32 %v1659, 1.0
    %v1661 = vrcp.pop %v1660
    %v1662 = vmul.f32 1.0, %v1661
    %v1663 = vmul.f32 %v1655, %v1644
    %v1664 = vadd.f32 %v1463, %v1663
    %v1665 = vtanh.pop %v1664
    %v1666 = vsub.f32 1.0, %v1662
    %v1667 = vmul.f32 %v1666, %v1665
    %v1668 = vmul.f32 %v1662, %v1443
    %v1669 = vadd.f32 %v1667, %v1668
    %s1670 = smul.u32 2, 2
    %s1671 = smul.addr %s1670, 8
    %s1672 = scalar_lea.vmem [#allocation3], %s1671
    %1673 = vst [vmem:[%s1672] sm:$0xff] %v1566
    %s1674 = smul.u32 5, 2
    %s1675 = smul.addr %s1674, 8
    %s1676 = scalar_lea.vmem [#allocation3], %s1675
    %1677 = vst [vmem:[%s1676 + $0x8] sm:$0xff] %v1669
    %s1678 = smul.u32 3, 6
    %s1679 = smul.addr %s1678, 8
    %s1680 = scalar_lea.vmem [#allocation2], %s1679
    %v1681 = vld [vmem:[%s1680] sm:$0xff]
    %v1682 = vld [vmem:[%s1680 + $0x8] sm:$0xff]
    %v1683 = vld [vmem:[%s1680 + $0x10] sm:$0xff]
    %s1684 = smul.u32 4, 6
    %s1685 = smul.addr %s1684, 8
    %s1686 = scalar_lea.vmem [#allocation2], %s1685
    %v1687 = vld [vmem:[%s1686 + $0x18] sm:$0xff]
    %v1688 = vld [vmem:[%s1686 + $0x20] sm:$0xff]
    %v1689 = vld [vmem:[%s1686 + $0x28] sm:$0xff]
    %v1690 = vpack.c.bf16 %v1566, %v1566
    %1691 = vmatprep.subr.bf16.mxu0 %v823
    %1692 = vmatpush1.bf16.msra.mxu0 %v822
    %1693 = vmatprep.subr.bf16.mxu0 %v826
    %1694 = vmatpush1.bf16.msra.mxu0 %v825
    %1695 = vmatprep.subr.bf16.mxu0 %v829
    %1696 = vmatpush1.bf16.msra.mxu0 %v828
    %1697 = vmatprep.subr.bf16.mxu0 %v832
    %1698 = vmatpush1.bf16.msra.mxu0 %v831
    %1699 = vmatprep.subr.bf16.mxu0 %v835
    %1700 = vmatpush1.bf16.msra.mxu0 %v834
    %1701 = vmatprep.subr.bf16.mxu0 %v838
    %1702 = vmatpush1.bf16.msra.mxu0 %v837
    %1703 = vmatprep.subr.bf16.mxu0 %v841
    %1704 = vmatpush1.bf16.msra.mxu0 %v840
    %1705 = vmatprep.subr.bf16.mxu0 %v844
    %1706 = vmatpush1.bf16.msra.mxu0 %v843
    %1707 = vmatprep.subr.bf16.mxu0 0
    %1708 = vmatpush1.bf16.msra.mxu0 0
    %1709 = vmatprep.subr.bf16.mxu0 0
    %1710 = vmatpush1.bf16.msra.mxu0 0
    %1711 = vmatprep.subr.bf16.mxu0 0
    %1712 = vmatpush1.bf16.msra.mxu0 0
    %1713 = vmatprep.subr.bf16.mxu0 0
    %1714 = vmatpush1.bf16.msra.mxu0 0
    %1715 = vmatprep.subr.bf16.mxu0 0
    %1716 = vmatpush1.bf16.msra.mxu0 0
    %1717 = vmatprep.subr.bf16.mxu0 0
    %1718 = vmatpush1.bf16.msra.mxu0 0
    %1719 = vmatprep.subr.bf16.mxu0 0
    %1720 = vmatpush1.bf16.msra.mxu0 0
    %1721 = vmatprep.subr.bf16.mxu0 0
    %1722 = vmatpush1.bf16.msra.mxu0 0
    %1723 = vmatprep.mubr.bf16.mxu0 0
    %1724 = vmatmul.mubr.bf16.gmra.mrb[0].mxu0 %v1690
    %v1725 = vpop.f32.mrb[0].mxu0
    %v1726 = vadd.f32 %v730, %v1725
    %v1727 = vpop.f32.mrb[0].mxu0
    %v1728 = vadd.f32 %v734, %v1727
    %v1729 = vpop.f32.mrb[0].mxu0
    %v1730 = vpop.f32.mrb[0].mxu0
    %1731 = vdwg.mxu0
    %1732 = vmatprep.subr.bf16.mxu0 0
    %1733 = vmatpush1.bf16.msra.mxu0 %v824
    %1734 = vmatprep.subr.bf16.mxu0 0
    %1735 = vmatpush1.bf16.msra.mxu0 %v827
    %1736 = vmatprep.subr.bf16.mxu0 0
    %1737 = vmatpush1.bf16.msra.mxu0 %v830
    %1738 = vmatprep.subr.bf16.mxu0 0
    %1739 = vmatpush1.bf16.msra.mxu0 %v833
    %1740 = vmatprep.subr.bf16.mxu0 0
    %1741 = vmatpush1.bf16.msra.mxu0 %v836
    %1742 = vmatprep.subr.bf16.mxu0 0
    %1743 = vmatpush1.bf16.msra.mxu0 %v839
    %1744 = vmatprep.subr.bf16.mxu0 0
    %1745 = vmatpush1.bf16.msra.mxu0 %v842
    %1746 = vmatprep.subr.bf16.mxu0 0
    %1747 = vmatpush1.bf16.msra.mxu0 %v845
    %1748 = vmatprep.subr.bf16.mxu0 0
    %1749 = vmatpush1.bf16.msra.mxu0 0
    %1750 = vmatprep.subr.bf16.mxu0 0
    %1751 = vmatpush1.bf16.msra.mxu0 0
    %1752 = vmatprep.subr.bf16.mxu0 0
    %1753 = vmatpush1.bf16.msra.mxu0 0
    %1754 = vmatprep.subr.bf16.mxu0 0
    %1755 = vmatpush1.bf16.msra.mxu0 0
    %1756 = vmatprep.subr.bf16.mxu0 0
    %1757 = vmatpush1.bf16.msra.mxu0 0
    %1758 = vmatprep.subr.bf16.mxu0 0
    %1759 = vmatpush1.bf16.msra.mxu0 0
    %1760 = vmatprep.subr.bf16.mxu0 0
    %1761 = vmatpush1.bf16.msra.mxu0 0
    %1762 = vmatprep.subr.bf16.mxu0 0
    %1763 = vmatpush1.bf16.msra.mxu0 0
    %1764 = vmatprep.mubr.bf16.mxu0 0
    %1765 = vmatmul.mubr.bf16.gmra.mrb[0].mxu0 %v1690
    %v1766 = vpop.f32.mrb[0].mxu0
    %v1767 = vadd.f32 %v738, %v1766
    %v1768 = vpop.f32.mrb[0].mxu0
    %v1769 = vpop.f32.mrb[0].mxu0
    %v1770 = vpop.f32.mrb[0].mxu0
    %1771 = vdwg.mxu0
    %v1772 = vadd.f32 %v1681, %v1726
    %v1773 = vxor.u32 %v1772, 2147483648
    %v1774 = vmul.f32 %v1773, 1.442695
    %v1775 = vpow.pop %v1774
    %v1776 = vadd.f32 %v1775, 1.0
    %v1777 = vrcp.pop %v1776
    %v1778 = vmul.f32 1.0, %v1777
    %v1779 = vadd.f32 %v1682, %v1728
    %v1780 = vxor.u32 %v1779, 2147483648
    %v1781 = vmul.f32 %v1780, 1.442695
    %v1782 = vpow.pop %v1781
    %v1783 = vadd.f32 %v1782, 1.0
    %v1784 = vrcp.pop %v1783
    %v1785 = vmul.f32 1.0, %v1784
    %v1786 = vmul.f32 %v1778, %v1767
    %v1787 = vadd.f32 %v1683, %v1786
    %v1788 = vtanh.pop %v1787
    %v1789 = vsub.f32 1.0, %v1785
    %v1790 = vmul.f32 %v1789, %v1788
    %v1791 = vmul.f32 %v1785, %v1566
    %v1792 = vadd.f32 %v1790, %v1791
    %v1793 = vpack.c.bf16 %v1669, %v1669
    %1794 = vmatprep.subr.bf16.mxu0 %v1069
    %1795 = vmatpush1.bf16.msra.mxu0 %v1068
    %1796 = vmatprep.subr.bf16.mxu0 %v1072
    %1797 = vmatpush1.bf16.msra.mxu0 %v1071
    %1798 = vmatprep.subr.bf16.mxu0 %v1075
    %1799 = vmatpush1.bf16.msra.mxu0 %v1074
    %1800 = vmatprep.subr.bf16.mxu0 %v1078
    %1801 = vmatpush1.bf16.msra.mxu0 %v1077
    %1802 = vmatprep.subr.bf16.mxu0 %v1081
    %1803 = vmatpush1.bf16.msra.mxu0 %v1080
    %1804 = vmatprep.subr.bf16.mxu0 %v1084
    %1805 = vmatpush1.bf16.msra.mxu0 %v1083
    %1806 = vmatprep.subr.bf16.mxu0 %v1087
    %1807 = vmatpush1.bf16.msra.mxu0 %v1086
    %1808 = vmatprep.subr.bf16.mxu0 %v1090
    %1809 = vmatpush1.bf16.msra.mxu0 %v1089
    %1810 = vmatprep.subr.bf16.mxu0 0
    %1811 = vmatpush1.bf16.msra.mxu0 0
    %1812 = vmatprep.subr.bf16.mxu0 0
    %1813 = vmatpush1.bf16.msra.mxu0 0
    %1814 = vmatprep.subr.bf16.mxu0 0
    %1815 = vmatpush1.bf16.msra.mxu0 0
    %1816 = vmatprep.subr.bf16.mxu0 0
    %1817 = vmatpush1.bf16.msra.mxu0 0
    %1818 = vmatprep.subr.bf16.mxu0 0
    %1819 = vmatpush1.bf16.msra.mxu0 0
    %1820 = vmatprep.subr.bf16.mxu0 0
    %1821 = vmatpush1.bf16.msra.mxu0 0
    %1822 = vmatprep.subr.bf16.mxu0 0
    %1823 = vmatpush1.bf16.msra.mxu0 0
    %1824 = vmatprep.subr.bf16.mxu0 0
    %1825 = vmatpush1.bf16.msra.mxu0 0
    %1826 = vmatprep.mubr.bf16.mxu0 0
    %1827 = vmatmul.mubr.bf16.gmra.mrb[0].mxu0 %v1793
    %v1828 = vpop.f32.mrb[0].mxu0
    %v1829 = vadd.f32 %v976, %v1828
    %v1830 = vpop.f32.mrb[0].mxu0
    %v1831 = vadd.f32 %v980, %v1830
    %v1832 = vpop.f32.mrb[0].mxu0
    %v1833 = vpop.f32.mrb[0].mxu0
    %1834 = vdwg.mxu0
    %1835 = vmatprep.subr.bf16.mxu0 0
    %1836 = vmatpush1.bf16.msra.mxu0 %v1070
    %1837 = vmatprep.subr.bf16.mxu0 0
    %1838 = vmatpush1.bf16.msra.mxu0 %v1073
    %1839 = vmatprep.subr.bf16.mxu0 0
    %1840 = vmatpush1.bf16.msra.mxu0 %v1076
    %1841 = vmatprep.subr.bf16.mxu0 0
    %1842 = vmatpush1.bf16.msra.mxu0 %v1079
    %1843 = vmatprep.subr.bf16.mxu0 0
    %1844 = vmatpush1.bf16.msra.mxu0 %v1082
    %1845 = vmatprep.subr.bf16.mxu0 0
    %1846 = vmatpush1.bf16.msra.mxu0 %v1085
    %1847 = vmatprep.subr.bf16.mxu0 0
    %1848 = vmatpush1.bf16.msra.mxu0 %v1088
    %1849 = vmatprep.subr.bf16.mxu0 0
    %1850 = vmatpush1.bf16.msra.mxu0 %v1091
    %1851 = vmatprep.subr.bf16.mxu0 0
    %1852 = vmatpush1.bf16.msra.mxu0 0
    %1853 = vmatprep.subr.bf16.mxu0 0
    %1854 = vmatpush1.bf16.msra.mxu0 0
    %1855 = vmatprep.subr.bf16.mxu0 0
    %1856 = vmatpush1.bf16.msra.mxu0 0
    %1857 = vmatprep.subr.bf16.mxu0 0
    %1858 = vmatpush1.bf16.msra.mxu0 0
    %1859 = vmatprep.subr.bf16.mxu0 0
    %1860 = vmatpush1.bf16.msra.mxu0 0
    %1861 = vmatprep.subr.bf16.mxu0 0
    %1862 = vmatpush1.bf16.msra.mxu0 0
    %1863 = vmatprep.subr.bf16.mxu0 0
    %1864 = vmatpush1.bf16.msra.mxu0 0
    %1865 = vmatprep.subr.bf16.mxu0 0
    %1866 = vmatpush1.bf16.msra.mxu0 0
    %1867 = vmatprep.mubr.bf16.mxu0 0
    %1868 = vmatmul.mubr.bf16.gmra.mrb[0].mxu0 %v1793
    %v1869 = vpop.f32.mrb[0].mxu0
    %v1870 = vadd.f32 %v984, %v1869
    %v1871 = vpop.f32.mrb[0].mxu0
    %v1872 = vpop.f32.mrb[0].mxu0
    %v1873 = vpop.f32.mrb[0].mxu0
    %1874 = vdwg.mxu0
    %v1875 = vadd.f32 %v1687, %v1829
    %v1876 = vxor.u32 %v1875, 2147483648
    %v1877 = vmul.f32 %v1876, 1.442695
    %v1878 = vpow.pop %v1877
    %v1879 = vadd.f32 %v1878, 1.0
    %v1880 = vrcp.pop %v1879
    %v1881 = vmul.f32 1.0, %v1880
    %v1882 = vadd.f32 %v1688, %v1831
    %v1883 = vxor.u32 %v1882, 2147483648
    %v1884 = vmul.f32 %v1883, 1.442695
    %v1885 = vpow.pop %v1884
    %v1886 = vadd.f32 %v1885, 1.0
    %v1887 = vrcp.pop %v1886
    %v1888 = vmul.f32 1.0, %v1887
    %v1889 = vmul.f32 %v1881, %v1870
    %v1890 = vadd.f32 %v1689, %v1889
    %v1891 = vtanh.pop %v1890
    %v1892 = vsub.f32 1.0, %v1888
    %v1893 = vmul.f32 %v1892, %v1891
    %v1894 = vmul.f32 %v1888, %v1669
    %v1895 = vadd.f32 %v1893, %v1894
    %s1896 = smul.u32 3, 2
    %s1897 = smul.addr %s1896, 8
    %s1898 = scalar_lea.vmem [#allocation3], %s1897
    %1899 = vst [vmem:[%s1898] sm:$0xff] %v1792
    %s1900 = smul.u32 4, 2
    %s1901 = smul.addr %s1900, 8
    %s1902 = scalar_lea.vmem [#allocation3], %s1901
    %1903 = vst [vmem:[%s1902 + $0x8] sm:$0xff] %v1895
    %v1904 = vld [vmem:[%s1686] sm:$0xff]
    %v1905 = vld [vmem:[%s1686 + $0x8] sm:$0xff]
    %v1906 = vld [vmem:[%s1686 + $0x10] sm:$0xff]
    %v1907 = vld [vmem:[%s1680 + $0x18] sm:$0xff]
    %v1908 = vld [vmem:[%s1680 + $0x20] sm:$0xff]
    %v1909 = vld [vmem:[%s1680 + $0x28] sm:$0xff]
    %v1910 = vpack.c.bf16 %v1792, %v1792
    %1911 = vmatprep.subr.bf16.mxu0 %v823
    %1912 = vmatpush1.bf16.msra.mxu0 %v822
    %1913 = vmatprep.subr.bf16.mxu0 %v826
    %1914 = vmatpush1.bf16.msra.mxu0 %v825
    %1915 = vmatprep.subr.bf16.mxu0 %v829
    %1916 = vmatpush1.bf16.msra.mxu0 %v828
    %1917 = vmatprep.subr.bf16.mxu0 %v832
    %1918 = vmatpush1.bf16.msra.mxu0 %v831
    %1919 = vmatprep.subr.bf16.mxu0 %v835
    %1920 = vmatpush1.bf16.msra.mxu0 %v834
    %1921 = vmatprep.subr.bf16.mxu0 %v838
    %1922 = vmatpush1.bf16.msra.mxu0 %v837
    %1923 = vmatprep.subr.bf16.mxu0 %v841
    %1924 = vmatpush1.bf16.msra.mxu0 %v840
    %1925 = vmatprep.subr.bf16.mxu0 %v844
    %1926 = vmatpush1.bf16.msra.mxu0 %v843
    %1927 = vmatprep.subr.bf16.mxu0 0
    %1928 = vmatpush1.bf16.msra.mxu0 0
    %1929 = vmatprep.subr.bf16.mxu0 0
    %1930 = vmatpush1.bf16.msra.mxu0 0
    %1931 = vmatprep.subr.bf16.mxu0 0
    %1932 = vmatpush1.bf16.msra.mxu0 0
    %1933 = vmatprep.subr.bf16.mxu0 0
    %1934 = vmatpush1.bf16.msra.mxu0 0
    %1935 = vmatprep.subr.bf16.mxu0 0
    %1936 = vmatpush1.bf16.msra.mxu0 0
    %1937 = vmatprep.subr.bf16.mxu0 0
    %1938 = vmatpush1.bf16.msra.mxu0 0
    %1939 = vmatprep.subr.bf16.mxu0 0
    %1940 = vmatpush1.bf16.msra.mxu0 0
    %1941 = vmatprep.subr.bf16.mxu0 0
    %1942 = vmatpush1.bf16.msra.mxu0 0
    %1943 = vmatprep.mubr.bf16.mxu0 0
    %1944 = vmatmul.mubr.bf16.gmra.mrb[0].mxu0 %v1910
    %v1945 = vpop.f32.mrb[0].mxu0
    %v1946 = vadd.f32 %v730, %v1945
    %v1947 = vpop.f32.mrb[0].mxu0
    %v1948 = vadd.f32 %v734, %v1947
    %v1949 = vpop.f32.mrb[0].mxu0
    %v1950 = vpop.f32.mrb[0].mxu0
    %1951 = vdwg.mxu0
    %1952 = vmatprep.subr.bf16.mxu0 0
    %1953 = vmatpush1.bf16.msra.mxu0 %v824
    %1954 = vmatprep.subr.bf16.mxu0 0
    %1955 = vmatpush1.bf16.msra.mxu0 %v827
    %1956 = vmatprep.subr.bf16.mxu0 0
    %1957 = vmatpush1.bf16.msra.mxu0 %v830
    %1958 = vmatprep.subr.bf16.mxu0 0
    %1959 = vmatpush1.bf16.msra.mxu0 %v833
    %1960 = vmatprep.subr.bf16.mxu0 0
    %1961 = vmatpush1.bf16.msra.mxu0 %v836
    %1962 = vmatprep.subr.bf16.mxu0 0
    %1963 = vmatpush1.bf16.msra.mxu0 %v839
    %1964 = vmatprep.subr.bf16.mxu0 0
    %1965 = vmatpush1.bf16.msra.mxu0 %v842
    %1966 = vmatprep.subr.bf16.mxu0 0
    %1967 = vmatpush1.bf16.msra.mxu0 %v845
    %1968 = vmatprep.subr.bf16.mxu0 0
    %1969 = vmatpush1.bf16.msra.mxu0 0
    %1970 = vmatprep.subr.bf16.mxu0 0
    %1971 = vmatpush1.bf16.msra.mxu0 0
    %1972 = vmatprep.subr.bf16.mxu0 0
    %1973 = vmatpush1.bf16.msra.mxu0 0
    %1974 = vmatprep.subr.bf16.mxu0 0
    %1975 = vmatpush1.bf16.msra.mxu0 0
    %1976 = vmatprep.subr.bf16.mxu0 0
    %1977 = vmatpush1.bf16.msra.mxu0 0
    %1978 = vmatprep.subr.bf16.mxu0 0
    %1979 = vmatpush1.bf16.msra.mxu0 0
    %1980 = vmatprep.subr.bf16.mxu0 0
    %1981 = vmatpush1.bf16.msra.mxu0 0
    %1982 = vmatprep.subr.bf16.mxu0 0
    %1983 = vmatpush1.bf16.msra.mxu0 0
    %1984 = vmatprep.mubr.bf16.mxu0 0
    %1985 = vmatmul.mubr.bf16.gmra.mrb[0].mxu0 %v1910
    %v1986 = vpop.f32.mrb[0].mxu0
    %v1987 = vadd.f32 %v738, %v1986
    %v1988 = vpop.f32.mrb[0].mxu0
    %v1989 = vpop.f32.mrb[0].mxu0
    %v1990 = vpop.f32.mrb[0].mxu0
    %1991 = vdwg.mxu0
    %v1992 = vadd.f32 %v1904, %v1946
    %v1993 = vxor.u32 %v1992, 2147483648
    %v1994 = vmul.f32 %v1993, 1.442695
    %v1995 = vpow.pop %v1994
    %v1996 = vadd.f32 %v1995, 1.0
    %v1997 = vrcp.pop %v1996
    %v1998 = vmul.f32 1.0, %v1997
    %v1999 = vadd.f32 %v1905, %v1948
    %v2000 = vxor.u32 %v1999, 2147483648
    %v2001 = vmul.f32 %v2000, 1.442695
    %v2002 = vpow.pop %v2001
    %v2003 = vadd.f32 %v2002, 1.0
    %v2004 = vrcp.pop %v2003
    %v2005 = vmul.f32 1.0, %v2004
    %v2006 = vmul.f32 %v1998, %v1987
    %v2007 = vadd.f32 %v1906, %v2006
    %v2008 = vtanh.pop %v2007
    %v2009 = vsub.f32 1.0, %v2005
    %v2010 = vmul.f32 %v2009, %v2008
    %v2011 = vmul.f32 %v2005, %v1792
    %v2012 = vadd.f32 %v2010, %v2011
    %v2013 = vpack.c.bf16 %v1895, %v1895
    %2014 = vmatprep.subr.bf16.mxu0 %v1069
    %2015 = vmatpush1.bf16.msra.mxu0 %v1068
    %2016 = vmatprep.subr.bf16.mxu0 %v1072
    %2017 = vmatpush1.bf16.msra.mxu0 %v1071
    %2018 = vmatprep.subr.bf16.mxu0 %v1075
    %2019 = vmatpush1.bf16.msra.mxu0 %v1074
    %2020 = vmatprep.subr.bf16.mxu0 %v1078
    %2021 = vmatpush1.bf16.msra.mxu0 %v1077
    %2022 = vmatprep.subr.bf16.mxu0 %v1081
    %2023 = vmatpush1.bf16.msra.mxu0 %v1080
    %2024 = vmatprep.subr.bf16.mxu0 %v1084
    %2025 = vmatpush1.bf16.msra.mxu0 %v1083
    %2026 = vmatprep.subr.bf16.mxu0 %v1087
    %2027 = vmatpush1.bf16.msra.mxu0 %v1086
    %2028 = vmatprep.subr.bf16.mxu0 %v1090
    %2029 = vmatpush1.bf16.msra.mxu0 %v1089
    %2030 = vmatprep.subr.bf16.mxu0 0
    %2031 = vmatpush1.bf16.msra.mxu0 0
    %2032 = vmatprep.subr.bf16.mxu0 0
    %2033 = vmatpush1.bf16.msra.mxu0 0
    %2034 = vmatprep.subr.bf16.mxu0 0
    %2035 = vmatpush1.bf16.msra.mxu0 0
    %2036 = vmatprep.subr.bf16.mxu0 0
    %2037 = vmatpush1.bf16.msra.mxu0 0
    %2038 = vmatprep.subr.bf16.mxu0 0
    %2039 = vmatpush1.bf16.msra.mxu0 0
    %2040 = vmatprep.subr.bf16.mxu0 0
    %2041 = vmatpush1.bf16.msra.mxu0 0
    %2042 = vmatprep.subr.bf16.mxu0 0
    %2043 = vmatpush1.bf16.msra.mxu0 0
    %2044 = vmatprep.subr.bf16.mxu0 0
    %2045 = vmatpush1.bf16.msra.mxu0 0
    %2046 = vmatprep.mubr.bf16.mxu0 0
    %2047 = vmatmul.mubr.bf16.gmra.mrb[0].mxu0 %v2013
    %v2048 = vpop.f32.mrb[0].mxu0
    %v2049 = vadd.f32 %v976, %v2048
    %v2050 = vpop.f32.mrb[0].mxu0
    %v2051 = vadd.f32 %v980, %v2050
    %v2052 = vpop.f32.mrb[0].mxu0
    %v2053 = vpop.f32.mrb[0].mxu0
    %2054 = vdwg.mxu0
    %2055 = vmatprep.subr.bf16.mxu0 0
    %2056 = vmatpush1.bf16.msra.mxu0 %v1070
    %2057 = vmatprep.subr.bf16.mxu0 0
    %2058 = vmatpush1.bf16.msra.mxu0 %v1073
    %2059 = vmatprep.subr.bf16.mxu0 0
    %2060 = vmatpush1.bf16.msra.mxu0 %v1076
    %2061 = vmatprep.subr.bf16.mxu0 0
    %2062 = vmatpush1.bf16.msra.mxu0 %v1079
    %2063 = vmatprep.subr.bf16.mxu0 0
    %2064 = vmatpush1.bf16.msra.mxu0 %v1082
    %2065 = vmatprep.subr.bf16.mxu0 0
    %2066 = vmatpush1.bf16.msra.mxu0 %v1085
    %2067 = vmatprep.subr.bf16.mxu0 0
    %2068 = vmatpush1.bf16.msra.mxu0 %v1088
    %2069 = vmatprep.subr.bf16.mxu0 0
    %2070 = vmatpush1.bf16.msra.mxu0 %v1091
    %2071 = vmatprep.subr.bf16.mxu0 0
    %2072 = vmatpush1.bf16.msra.mxu0 0
    %2073 = vmatprep.subr.bf16.mxu0 0
    %2074 = vmatpush1.bf16.msra.mxu0 0
    %2075 = vmatprep.subr.bf16.mxu0 0
    %2076 = vmatpush1.bf16.msra.mxu0 0
    %2077 = vmatprep.subr.bf16.mxu0 0
    %2078 = vmatpush1.bf16.msra.mxu0 0
    %2079 = vmatprep.subr.bf16.mxu0 0
    %2080 = vmatpush1.bf16.msra.mxu0 0
    %2081 = vmatprep.subr.bf16.mxu0 0
    %2082 = vmatpush1.bf16.msra.mxu0 0
    %2083 = vmatprep.subr.bf16.mxu0 0
    %2084 = vmatpush1.bf16.msra.mxu0 0
    %2085 = vmatprep.subr.bf16.mxu0 0
    %2086 = vmatpush1.bf16.msra.mxu0 0
    %2087 = vmatprep.mubr.bf16.mxu0 0
    %2088 = vmatmul.mubr.bf16.gmra.mrb[0].mxu0 %v2013
    %v2089 = vpop.f32.mrb[0].mxu0
    %v2090 = vadd.f32 %v984, %v2089
    %v2091 = vpop.f32.mrb[0].mxu0
    %v2092 = vpop.f32.mrb[0].mxu0
    %v2093 = vpop.f32.mrb[0].mxu0
    %2094 = vdwg.mxu0
    %v2095 = vadd.f32 %v1907, %v2049
    %v2096 = vxor.u32 %v2095, 2147483648
    %v2097 = vmul.f32 %v2096, 1.442695
    %v2098 = vpow.pop %v2097
    %v2099 = vadd.f32 %v2098, 1.0
    %v2100 = vrcp.pop %v2099
    %v2101 = vmul.f32 1.0, %v2100
    %v2102 = vadd.f32 %v1908, %v2051
    %v2103 = vxor.u32 %v2102, 2147483648
    %v2104 = vmul.f32 %v2103, 1.442695
    %v2105 = vpow.pop %v2104
    %v2106 = vadd.f32 %v2105, 1.0
    %v2107 = vrcp.pop %v2106
    %v2108 = vmul.f32 1.0, %v2107
    %v2109 = vmul.f32 %v2101, %v2090
    %v2110 = vadd.f32 %v1909, %v2109
    %v2111 = vtanh.pop %v2110
    %v2112 = vsub.f32 1.0, %v2108
    %v2113 = vmul.f32 %v2112, %v2111
    %v2114 = vmul.f32 %v2108, %v1895
    %v2115 = vadd.f32 %v2113, %v2114
    %2116 = vst [vmem:[%s1902] sm:$0xff] %v2012
    %2117 = vst [vmem:[%s1898 + $0x8] sm:$0xff] %v2115
    %v2118 = vld [vmem:[%s1460] sm:$0xff]
    %v2119 = vld [vmem:[%s1460 + $0x8] sm:$0xff]
    %v2120 = vld [vmem:[%s1460 + $0x10] sm:$0xff]
    %v2121 = vld [vmem:[%s1454 + $0x18] sm:$0xff]
    %v2122 = vld [vmem:[%s1454 + $0x20] sm:$0xff]
    %v2123 = vld [vmem:[%s1454 + $0x28] sm:$0xff]
    %v2124 = vpack.c.bf16 %v2012, %v2012
    %2125 = vmatprep.subr.bf16.mxu0 %v823
    %2126 = vmatpush1.bf16.msra.mxu0 %v822
    %2127 = vmatprep.subr.bf16.mxu0 %v826
    %2128 = vmatpush1.bf16.msra.mxu0 %v825
    %2129 = vmatprep.subr.bf16.mxu0 %v829
    %2130 = vmatpush1.bf16.msra.mxu0 %v828
    %2131 = vmatprep.subr.bf16.mxu0 %v832
    %2132 = vmatpush1.bf16.msra.mxu0 %v831
    %2133 = vmatprep.subr.bf16.mxu0 %v835
    %2134 = vmatpush1.bf16.msra.mxu0 %v834
    %2135 = vmatprep.subr.bf16.mxu0 %v838
    %2136 = vmatpush1.bf16.msra.mxu0 %v837
    %2137 = vmatprep.subr.bf16.mxu0 %v841
    %2138 = vmatpush1.bf16.msra.mxu0 %v840
    %2139 = vmatprep.subr.bf16.mxu0 %v844
    %2140 = vmatpush1.bf16.msra.mxu0 %v843
    %2141 = vmatprep.subr.bf16.mxu0 0
    %2142 = vmatpush1.bf16.msra.mxu0 0
    %2143 = vmatprep.subr.bf16.mxu0 0
    %2144 = vmatpush1.bf16.msra.mxu0 0
    %2145 = vmatprep.subr.bf16.mxu0 0
    %2146 = vmatpush1.bf16.msra.mxu0 0
    %2147 = vmatprep.subr.bf16.mxu0 0
    %2148 = vmatpush1.bf16.msra.mxu0 0
    %2149 = vmatprep.subr.bf16.mxu0 0
    %2150 = vmatpush1.bf16.msra.mxu0 0
    %2151 = vmatprep.subr.bf16.mxu0 0
    %2152 = vmatpush1.bf16.msra.mxu0 0
    %2153 = vmatprep.subr.bf16.mxu0 0
    %2154 = vmatpush1.bf16.msra.mxu0 0
    %2155 = vmatprep.subr.bf16.mxu0 0
    %2156 = vmatpush1.bf16.msra.mxu0 0
    %2157 = vmatprep.mubr.bf16.mxu0 0
    %2158 = vmatmul.mubr.bf16.gmra.mrb[0].mxu0 %v2124
    %v2159 = vpop.f32.mrb[0].mxu0
    %v2160 = vadd.f32 %v730, %v2159
    %v2161 = vpop.f32.mrb[0].mxu0
    %v2162 = vadd.f32 %v734, %v2161
    %v2163 = vpop.f32.mrb[0].mxu0
    %v2164 = vpop.f32.mrb[0].mxu0
    %2165 = vdwg.mxu0
    %2166 = vmatprep.subr.bf16.mxu0 0
    %2167 = vmatpush1.bf16.msra.mxu0 %v824
    %2168 = vmatprep.subr.bf16.mxu0 0
    %2169 = vmatpush1.bf16.msra.mxu0 %v827
    %2170 = vmatprep.subr.bf16.mxu0 0
    %2171 = vmatpush1.bf16.msra.mxu0 %v830
    %2172 = vmatprep.subr.bf16.mxu0 0
    %2173 = vmatpush1.bf16.msra.mxu0 %v833
    %2174 = vmatprep.subr.bf16.mxu0 0
    %2175 = vmatpush1.bf16.msra.mxu0 %v836
    %2176 = vmatprep.subr.bf16.mxu0 0
    %2177 = vmatpush1.bf16.msra.mxu0 %v839
    %2178 = vmatprep.subr.bf16.mxu0 0
    %2179 = vmatpush1.bf16.msra.mxu0 %v842
    %2180 = vmatprep.subr.bf16.mxu0 0
    %2181 = vmatpush1.bf16.msra.mxu0 %v845
    %2182 = vmatprep.subr.bf16.mxu0 0
    %2183 = vmatpush1.bf16.msra.mxu0 0
    %2184 = vmatprep.subr.bf16.mxu0 0
    %2185 = vmatpush1.bf16.msra.mxu0 0
    %2186 = vmatprep.subr.bf16.mxu0 0
    %2187 = vmatpush1.bf16.msra.mxu0 0
    %2188 = vmatprep.subr.bf16.mxu0 0
    %2189 = vmatpush1.bf16.msra.mxu0 0
    %2190 = vmatprep.subr.bf16.mxu0 0
    %2191 = vmatpush1.bf16.msra.mxu0 0
    %2192 = vmatprep.subr.bf16.mxu0 0
    %2193 = vmatpush1.bf16.msra.mxu0 0
    %2194 = vmatprep.subr.bf16.mxu0 0
    %2195 = vmatpush1.bf16.msra.mxu0 0
    %2196 = vmatprep.subr.bf16.mxu0 0
    %2197 = vmatpush1.bf16.msra.mxu0 0
    %2198 = vmatprep.mubr.bf16.mxu0 0
    %2199 = vmatmul.mubr.bf16.gmra.mrb[0].mxu0 %v2124
    %v2200 = vpop.f32.mrb[0].mxu0
    %v2201 = vadd.f32 %v738, %v2200
    %v2202 = vpop.f32.mrb[0].mxu0
    %v2203 = vpop.f32.mrb[0].mxu0
    %v2204 = vpop.f32.mrb[0].mxu0
    %2205 = vdwg.mxu0
    %v2206 = vadd.f32 %v2118, %v2160
    %v2207 = vxor.u32 %v2206, 2147483648
    %v2208 = vmul.f32 %v2207, 1.442695
    %v2209 = vpow.pop %v2208
    %v2210 = vadd.f32 %v2209, 1.0
    %v2211 = vrcp.pop %v2210
    %v2212 = vmul.f32 1.0, %v2211
    %v2213 = vadd.f32 %v2119, %v2162
    %v2214 = vxor.u32 %v2213, 2147483648
    %v2215 = vmul.f32 %v2214, 1.442695
    %v2216 = vpow.pop %v2215
    %v2217 = vadd.f32 %v2216, 1.0
    %v2218 = vrcp.pop %v2217
    %v2219 = vmul.f32 1.0, %v2218
    %v2220 = vmul.f32 %v2212, %v2201
    %v2221 = vadd.f32 %v2120, %v2220
    %v2222 = vtanh.pop %v2221
    %v2223 = vsub.f32 1.0, %v2219
    %v2224 = vmul.f32 %v2223, %v2222
    %v2225 = vmul.f32 %v2219, %v2012
    %v2226 = vadd.f32 %v2224, %v2225
    %v2227 = vpack.c.bf16 %v2115, %v2115
    %2228 = vmatprep.subr.bf16.mxu0 %v1069
    %2229 = vmatpush1.bf16.msra.mxu0 %v1068
    %2230 = vmatprep.subr.bf16.mxu0 %v1072
    %2231 = vmatpush1.bf16.msra.mxu0 %v1071
    %2232 = vmatprep.subr.bf16.mxu0 %v1075
    %2233 = vmatpush1.bf16.msra.mxu0 %v1074
    %2234 = vmatprep.subr.bf16.mxu0 %v1078
    %2235 = vmatpush1.bf16.msra.mxu0 %v1077
    %2236 = vmatprep.subr.bf16.mxu0 %v1081
    %2237 = vmatpush1.bf16.msra.mxu0 %v1080
    %2238 = vmatprep.subr.bf16.mxu0 %v1084
    %2239 = vmatpush1.bf16.msra.mxu0 %v1083
    %2240 = vmatprep.subr.bf16.mxu0 %v1087
    %2241 = vmatpush1.bf16.msra.mxu0 %v1086
    %2242 = vmatprep.subr.bf16.mxu0 %v1090
    %2243 = vmatpush1.bf16.msra.mxu0 %v1089
    %2244 = vmatprep.subr.bf16.mxu0 0
    %2245 = vmatpush1.bf16.msra.mxu0 0
    %2246 = vmatprep.subr.bf16.mxu0 0
    %2247 = vmatpush1.bf16.msra.mxu0 0
    %2248 = vmatprep.subr.bf16.mxu0 0
    %2249 = vmatpush1.bf16.msra.mxu0 0
    %2250 = vmatprep.subr.bf16.mxu0 0
    %2251 = vmatpush1.bf16.msra.mxu0 0
    %2252 = vmatprep.subr.bf16.mxu0 0
    %2253 = vmatpush1.bf16.msra.mxu0 0
    %2254 = vmatprep.subr.bf16.mxu0 0
    %2255 = vmatpush1.bf16.msra.mxu0 0
    %2256 = vmatprep.subr.bf16.mxu0 0
    %2257 = vmatpush1.bf16.msra.mxu0 0
    %2258 = vmatprep.subr.bf16.mxu0 0
    %2259 = vmatpush1.bf16.msra.mxu0 0
    %2260 = vmatprep.mubr.bf16.mxu0 0
    %2261 = vmatmul.mubr.bf16.gmra.mrb[0].mxu0 %v2227
    %v2262 = vpop.f32.mrb[0].mxu0
    %v2263 = vadd.f32 %v976, %v2262
    %v2264 = vpop.f32.mrb[0].mxu0
    %v2265 = vadd.f32 %v980, %v2264
    %v2266 = vpop.f32.mrb[0].mxu0
    %v2267 = vpop.f32.mrb[0].mxu0
    %2268 = vdwg.mxu0
    %2269 = vmatprep.subr.bf16.mxu0 0
    %2270 = vmatpush1.bf16.msra.mxu0 %v1070
    %2271 = vmatprep.subr.bf16.mxu0 0
    %2272 = vmatpush1.bf16.msra.mxu0 %v1073
    %2273 = vmatprep.subr.bf16.mxu0 0
    %2274 = vmatpush1.bf16.msra.mxu0 %v1076
    %2275 = vmatprep.subr.bf16.mxu0 0
    %2276 = vmatpush1.bf16.msra.mxu0 %v1079
    %2277 = vmatprep.subr.bf16.mxu0 0
    %2278 = vmatpush1.bf16.msra.mxu0 %v1082
    %2279 = vmatprep.subr.bf16.mxu0 0
    %2280 = vmatpush1.bf16.msra.mxu0 %v1085
    %2281 = vmatprep.subr.bf16.mxu0 0
    %2282 = vmatpush1.bf16.msra.mxu0 %v1088
    %2283 = vmatprep.subr.bf16.mxu0 0
    %2284 = vmatpush1.bf16.msra.mxu0 %v1091
    %2285 = vmatprep.subr.bf16.mxu0 0
    %2286 = vmatpush1.bf16.msra.mxu0 0
    %2287 = vmatprep.subr.bf16.mxu0 0
    %2288 = vmatpush1.bf16.msra.mxu0 0
    %2289 = vmatprep.subr.bf16.mxu0 0
    %2290 = vmatpush1.bf16.msra.mxu0 0
    %2291 = vmatprep.subr.bf16.mxu0 0
    %2292 = vmatpush1.bf16.msra.mxu0 0
    %2293 = vmatprep.subr.bf16.mxu0 0
    %2294 = vmatpush1.bf16.msra.mxu0 0
    %2295 = vmatprep.subr.bf16.mxu0 0
    %2296 = vmatpush1.bf16.msra.mxu0 0
    %2297 = vmatprep.subr.bf16.mxu0 0
    %2298 = vmatpush1.bf16.msra.mxu0 0
    %2299 = vmatprep.subr.bf16.mxu0 0
    %2300 = vmatpush1.bf16.msra.mxu0 0
    %2301 = vmatprep.mubr.bf16.mxu0 0
    %2302 = vmatmul.mubr.bf16.gmra.mrb[0].mxu0 %v2227
    %v2303 = vpop.f32.mrb[0].mxu0
    %v2304 = vadd.f32 %v984, %v2303
    %v2305 = vpop.f32.mrb[0].mxu0
    %v2306 = vpop.f32.mrb[0].mxu0
    %v2307 = vpop.f32.mrb[0].mxu0
    %2308 = vdwg.mxu0
    %v2309 = vadd.f32 %v2121, %v2263
    %v2310 = vxor.u32 %v2309, 2147483648
    %v2311 = vmul.f32 %v2310, 1.442695
    %v2312 = vpow.pop %v2311
    %v2313 = vadd.f32 %v2312, 1.0
    %v2314 = vrcp.pop %v2313
    %v2315 = vmul.f32 1.0, %v2314
    %v2316 = vadd.f32 %v2122, %v2265
    %v2317 = vxor.u32 %v2316, 2147483648
    %v2318 = vmul.f32 %v2317, 1.442695
    %v2319 = vpow.pop %v2318
    %v2320 = vadd.f32 %v2319, 1.0
    %v2321 = vrcp.pop %v2320
    %v2322 = vmul.f32 1.0, %v2321
    %v2323 = vmul.f32 %v2315, %v2304
    %v2324 = vadd.f32 %v2123, %v2323
    %v2325 = vtanh.pop %v2324
    %v2326 = vsub.f32 1.0, %v2322
    %v2327 = vmul.f32 %v2326, %v2325
    %v2328 = vmul.f32 %v2322, %v2115
    %v2329 = vadd.f32 %v2327, %v2328
    %2330 = vst [vmem:[%s1676] sm:$0xff] %v2226
    %2331 = vst [vmem:[%s1672 + $0x8] sm:$0xff] %v2329
    %v2332 = vld [vmem:[%s1234] sm:$0xff]
    %v2333 = vld [vmem:[%s1234 + $0x8] sm:$0xff]
    %v2334 = vld [vmem:[%s1234 + $0x10] sm:$0xff]
    %v2335 = vld [vmem:[%s1228 + $0x18] sm:$0xff]
    %v2336 = vld [vmem:[%s1228 + $0x20] sm:$0xff]
    %v2337 = vld [vmem:[%s1228 + $0x28] sm:$0xff]
    %v2338 = vpack.c.bf16 %v2226, %v2226
    %2339 = vmatprep.subr.bf16.mxu0 %v823
    %2340 = vmatpush1.bf16.msra.mxu0 %v822
    %2341 = vmatprep.subr.bf16.mxu0 %v826
    %2342 = vmatpush1.bf16.msra.mxu0 %v825
    %2343 = vmatprep.subr.bf16.mxu0 %v829
    %2344 = vmatpush1.bf16.msra.mxu0 %v828
    %2345 = vmatprep.subr.bf16.mxu0 %v832
    %2346 = vmatpush1.bf16.msra.mxu0 %v831
    %2347 = vmatprep.subr.bf16.mxu0 %v835
    %2348 = vmatpush1.bf16.msra.mxu0 %v834
    %2349 = vmatprep.subr.bf16.mxu0 %v838
    %2350 = vmatpush1.bf16.msra.mxu0 %v837
    %2351 = vmatprep.subr.bf16.mxu0 %v841
    %2352 = vmatpush1.bf16.msra.mxu0 %v840
    %2353 = vmatprep.subr.bf16.mxu0 %v844
    %2354 = vmatpush1.bf16.msra.mxu0 %v843
    %2355 = vmatprep.subr.bf16.mxu0 0
    %2356 = vmatpush1.bf16.msra.mxu0 0
    %2357 = vmatprep.subr.bf16.mxu0 0
    %2358 = vmatpush1.bf16.msra.mxu0 0
    %2359 = vmatprep.subr.bf16.mxu0 0
    %2360 = vmatpush1.bf16.msra.mxu0 0
    %2361 = vmatprep.subr.bf16.mxu0 0
    %2362 = vmatpush1.bf16.msra.mxu0 0
    %2363 = vmatprep.subr.bf16.mxu0 0
    %2364 = vmatpush1.bf16.msra.mxu0 0
    %2365 = vmatprep.subr.bf16.mxu0 0
    %2366 = vmatpush1.bf16.msra.mxu0 0
    %2367 = vmatprep.subr.bf16.mxu0 0
    %2368 = vmatpush1.bf16.msra.mxu0 0
    %2369 = vmatprep.subr.bf16.mxu0 0
    %2370 = vmatpush1.bf16.msra.mxu0 0
    %2371 = vmatprep.mubr.bf16.mxu0 0
    %2372 = vmatmul.mubr.bf16.gmra.mrb[0].mxu0 %v2338
    %v2373 = vpop.f32.mrb[0].mxu0
    %v2374 = vadd.f32 %v730, %v2373
    %v2375 = vpop.f32.mrb[0].mxu0
    %v2376 = vadd.f32 %v734, %v2375
    %v2377 = vpop.f32.mrb[0].mxu0
    %v2378 = vpop.f32.mrb[0].mxu0
    %2379 = vdwg.mxu0
    %2380 = vmatprep.subr.bf16.mxu0 0
    %2381 = vmatpush1.bf16.msra.mxu0 %v824
    %2382 = vmatprep.subr.bf16.mxu0 0
    %2383 = vmatpush1.bf16.msra.mxu0 %v827
    %2384 = vmatprep.subr.bf16.mxu0 0
    %2385 = vmatpush1.bf16.msra.mxu0 %v830
    %2386 = vmatprep.subr.bf16.mxu0 0
    %2387 = vmatpush1.bf16.msra.mxu0 %v833
    %2388 = vmatprep.subr.bf16.mxu0 0
    %2389 = vmatpush1.bf16.msra.mxu0 %v836
    %2390 = vmatprep.subr.bf16.mxu0 0
    %2391 = vmatpush1.bf16.msra.mxu0 %v839
    %2392 = vmatprep.subr.bf16.mxu0 0
    %2393 = vmatpush1.bf16.msra.mxu0 %v842
    %2394 = vmatprep.subr.bf16.mxu0 0
    %2395 = vmatpush1.bf16.msra.mxu0 %v845
    %2396 = vmatprep.subr.bf16.mxu0 0
    %2397 = vmatpush1.bf16.msra.mxu0 0
    %2398 = vmatprep.subr.bf16.mxu0 0
    %2399 = vmatpush1.bf16.msra.mxu0 0
    %2400 = vmatprep.subr.bf16.mxu0 0
    %2401 = vmatpush1.bf16.msra.mxu0 0
    %2402 = vmatprep.subr.bf16.mxu0 0
    %2403 = vmatpush1.bf16.msra.mxu0 0
    %2404 = vmatprep.subr.bf16.mxu0 0
    %2405 = vmatpush1.bf16.msra.mxu0 0
    %2406 = vmatprep.subr.bf16.mxu0 0
    %2407 = vmatpush1.bf16.msra.mxu0 0
    %2408 = vmatprep.subr.bf16.mxu0 0
    %2409 = vmatpush1.bf16.msra.mxu0 0
    %2410 = vmatprep.subr.bf16.mxu0 0
    %2411 = vmatpush1.bf16.msra.mxu0 0
    %2412 = vmatprep.mubr.bf16.mxu0 0
    %2413 = vmatmul.mubr.bf16.gmra.mrb[0].mxu0 %v2338
    %v2414 = vpop.f32.mrb[0].mxu0
    %v2415 = vadd.f32 %v738, %v2414
    %v2416 = vpop.f32.mrb[0].mxu0
    %v2417 = vpop.f32.mrb[0].mxu0
    %v2418 = vpop.f32.mrb[0].mxu0
    %2419 = vdwg.mxu0
    %v2420 = vadd.f32 %v2332, %v2374
    %v2421 = vxor.u32 %v2420, 2147483648
    %v2422 = vmul.f32 %v2421, 1.442695
    %v2423 = vpow.pop %v2422
    %v2424 = vadd.f32 %v2423, 1.0
    %v2425 = vrcp.pop %v2424
    %v2426 = vmul.f32 1.0, %v2425
    %v2427 = vadd.f32 %v2333, %v2376
    %v2428 = vxor.u32 %v2427, 2147483648
    %v2429 = vmul.f32 %v2428, 1.442695
    %v2430 = vpow.pop %v2429
    %v2431 = vadd.f32 %v2430, 1.0
    %v2432 = vrcp.pop %v2431
    %v2433 = vmul.f32 1.0, %v2432
    %v2434 = vmul.f32 %v2426, %v2415
    %v2435 = vadd.f32 %v2334, %v2434
    %v2436 = vtanh.pop %v2435
    %v2437 = vsub.f32 1.0, %v2433
    %v2438 = vmul.f32 %v2437, %v2436
    %v2439 = vmul.f32 %v2433, %v2226
    %v2440 = vadd.f32 %v2438, %v2439
    %v2441 = vpack.c.bf16 %v2329, %v2329
    %2442 = vmatprep.subr.bf16.mxu0 %v1069
    %2443 = vmatpush1.bf16.msra.mxu0 %v1068
    %2444 = vmatprep.subr.bf16.mxu0 %v1072
    %2445 = vmatpush1.bf16.msra.mxu0 %v1071
    %2446 = vmatprep.subr.bf16.mxu0 %v1075
    %2447 = vmatpush1.bf16.msra.mxu0 %v1074
    %2448 = vmatprep.subr.bf16.mxu0 %v1078
    %2449 = vmatpush1.bf16.msra.mxu0 %v1077
    %2450 = vmatprep.subr.bf16.mxu0 %v1081
    %2451 = vmatpush1.bf16.msra.mxu0 %v1080
    %2452 = vmatprep.subr.bf16.mxu0 %v1084
    %2453 = vmatpush1.bf16.msra.mxu0 %v1083
    %2454 = vmatprep.subr.bf16.mxu0 %v1087
    %2455 = vmatpush1.bf16.msra.mxu0 %v1086
    %2456 = vmatprep.subr.bf16.mxu0 %v1090
    %2457 = vmatpush1.bf16.msra.mxu0 %v1089
    %2458 = vmatprep.subr.bf16.mxu0 0
    %2459 = vmatpush1.bf16.msra.mxu0 0
    %2460 = vmatprep.subr.bf16.mxu0 0
    %2461 = vmatpush1.bf16.msra.mxu0 0
    %2462 = vmatprep.subr.bf16.mxu0 0
    %2463 = vmatpush1.bf16.msra.mxu0 0
    %2464 = vmatprep.subr.bf16.mxu0 0
    %2465 = vmatpush1.bf16.msra.mxu0 0
    %2466 = vmatprep.subr.bf16.mxu0 0
    %2467 = vmatpush1.bf16.msra.mxu0 0
    %2468 = vmatprep.subr.bf16.mxu0 0
    %2469 = vmatpush1.bf16.msra.mxu0 0
    %2470 = vmatprep.subr.bf16.mxu0 0
    %2471 = vmatpush1.bf16.msra.mxu0 0
    %2472 = vmatprep.subr.bf16.mxu0 0
    %2473 = vmatpush1.bf16.msra.mxu0 0
    %2474 = vmatprep.mubr.bf16.mxu0 0
    %2475 = vmatmul.mubr.bf16.gmra.mrb[0].mxu0 %v2441
    %v2476 = vpop.f32.mrb[0].mxu0
    %v2477 = vadd.f32 %v976, %v2476
    %v2478 = vpop.f32.mrb[0].mxu0
    %v2479 = vadd.f32 %v980, %v2478
    %v2480 = vpop.f32.mrb[0].mxu0
    %v2481 = vpop.f32.mrb[0].mxu0
    %2482 = vdwg.mxu0
    %2483 = vmatprep.subr.bf16.mxu0 0
    %2484 = vmatpush1.bf16.msra.mxu0 %v1070
    %2485 = vmatprep.subr.bf16.mxu0 0
    %2486 = vmatpush1.bf16.msra.mxu0 %v1073
    %2487 = vmatprep.subr.bf16.mxu0 0
    %2488 = vmatpush1.bf16.msra.mxu0 %v1076
    %2489 = vmatprep.subr.bf16.mxu0 0
    %2490 = vmatpush1.bf16.msra.mxu0 %v1079
    %2491 = vmatprep.subr.bf16.mxu0 0
    %2492 = vmatpush1.bf16.msra.mxu0 %v1082
    %2493 = vmatprep.subr.bf16.mxu0 0
    %2494 = vmatpush1.bf16.msra.mxu0 %v1085
    %2495 = vmatprep.subr.bf16.mxu0 0
    %2496 = vmatpush1.bf16.msra.mxu0 %v1088
    %2497 = vmatprep.subr.bf16.mxu0 0
    %2498 = vmatpush1.bf16.msra.mxu0 %v1091
    %2499 = vmatprep.subr.bf16.mxu0 0
    %2500 = vmatpush1.bf16.msra.mxu0 0
    %2501 = vmatprep.subr.bf16.mxu0 0
    %2502 = vmatpush1.bf16.msra.mxu0 0
    %2503 = vmatprep.subr.bf16.mxu0 0
    %2504 = vmatpush1.bf16.msra.mxu0 0
    %2505 = vmatprep.subr.bf16.mxu0 0
    %2506 = vmatpush1.bf16.msra.mxu0 0
    %2507 = vmatprep.subr.bf16.mxu0 0
    %2508 = vmatpush1.bf16.msra.mxu0 0
    %2509 = vmatprep.subr.bf16.mxu0 0
    %2510 = vmatpush1.bf16.msra.mxu0 0
    %2511 = vmatprep.subr.bf16.mxu0 0
    %2512 = vmatpush1.bf16.msra.mxu0 0
    %2513 = vmatprep.subr.bf16.mxu0 0
    %2514 = vmatpush1.bf16.msra.mxu0 0
    %2515 = vmatprep.mubr.bf16.mxu0 0
    %2516 = vmatmul.mubr.bf16.gmra.mrb[0].mxu0 %v2441
    %v2517 = vpop.f32.mrb[0].mxu0
    %v2518 = vadd.f32 %v984, %v2517
    %v2519 = vpop.f32.mrb[0].mxu0
    %v2520 = vpop.f32.mrb[0].mxu0
    %v2521 = vpop.f32.mrb[0].mxu0
    %2522 = vdwg.mxu0
    %v2523 = vadd.f32 %v2335, %v2477
    %v2524 = vxor.u32 %v2523, 2147483648
    %v2525 = vmul.f32 %v2524, 1.442695
    %v2526 = vpow.pop %v2525
    %v2527 = vadd.f32 %v2526, 1.0
    %v2528 = vrcp.pop %v2527
    %v2529 = vmul.f32 1.0, %v2528
    %v2530 = vadd.f32 %v2336, %v2479
    %v2531 = vxor.u32 %v2530, 2147483648
    %v2532 = vmul.f32 %v2531, 1.442695
    %v2533 = vpow.pop %v2532
    %v2534 = vadd.f32 %v2533, 1.0
    %v2535 = vrcp.pop %v2534
    %v2536 = vmul.f32 1.0, %v2535
    %v2537 = vmul.f32 %v2529, %v2518
    %v2538 = vadd.f32 %v2337, %v2537
    %v2539 = vtanh.pop %v2538
    %v2540 = vsub.f32 1.0, %v2536
    %v2541 = vmul.f32 %v2540, %v2539
    %v2542 = vmul.f32 %v2536, %v2329
    %v2543 = vadd.f32 %v2541, %v2542
    %2544 = vst [vmem:[%s1450] sm:$0xff] %v2440
    %2545 = vst [vmem:[%s1446 + $0x8] sm:$0xff] %v2543
    %v2546 = vld [vmem:[%s722] sm:$0xff]
    %v2547 = vld [vmem:[%s722 + $0x8] sm:$0xff]
    %v2548 = vld [vmem:[%s722 + $0x10] sm:$0xff]
    %v2549 = vld [vmem:[%s716 + $0x18] sm:$0xff]
    %v2550 = vld [vmem:[%s716 + $0x20] sm:$0xff]
    %v2551 = vld [vmem:[%s716 + $0x28] sm:$0xff]
    %v2552 = vpack.c.bf16 %v2440, %v2440
    %2553 = vmatprep.subr.bf16.mxu0 %v823
    %2554 = vmatpush1.bf16.msra.mxu0 %v822
    %2555 = vmatprep.subr.bf16.mxu0 %v826
    %2556 = vmatpush1.bf16.msra.mxu0 %v825
    %2557 = vmatprep.subr.bf16.mxu0 %v829
    %2558 = vmatpush1.bf16.msra.mxu0 %v828
    %2559 = vmatprep.subr.bf16.mxu0 %v832
    %2560 = vmatpush1.bf16.msra.mxu0 %v831
    %2561 = vmatprep.subr.bf16.mxu0 %v835
    %2562 = vmatpush1.bf16.msra.mxu0 %v834
    %2563 = vmatprep.subr.bf16.mxu0 %v838
    %2564 = vmatpush1.bf16.msra.mxu0 %v837
    %2565 = vmatprep.subr.bf16.mxu0 %v841
    %2566 = vmatpush1.bf16.msra.mxu0 %v840
    %2567 = vmatprep.subr.bf16.mxu0 %v844
    %2568 = vmatpush1.bf16.msra.mxu0 %v843
    %2569 = vmatprep.subr.bf16.mxu0 0
    %2570 = vmatpush1.bf16.msra.mxu0 0
    %2571 = vmatprep.subr.bf16.mxu0 0
    %2572 = vmatpush1.bf16.msra.mxu0 0
    %2573 = vmatprep.subr.bf16.mxu0 0
    %2574 = vmatpush1.bf16.msra.mxu0 0
    %2575 = vmatprep.subr.bf16.mxu0 0
    %2576 = vmatpush1.bf16.msra.mxu0 0
    %2577 = vmatprep.subr.bf16.mxu0 0
    %2578 = vmatpush1.bf16.msra.mxu0 0
    %2579 = vmatprep.subr.bf16.mxu0 0
    %2580 = vmatpush1.bf16.msra.mxu0 0
    %2581 = vmatprep.subr.bf16.mxu0 0
    %2582 = vmatpush1.bf16.msra.mxu0 0
    %2583 = vmatprep.subr.bf16.mxu0 0
    %2584 = vmatpush1.bf16.msra.mxu0 0
    %2585 = vmatprep.mubr.bf16.mxu0 0
    %2586 = vmatmul.mubr.bf16.gmra.mrb[0].mxu0 %v2552
    %v2587 = vpop.f32.mrb[0].mxu0
    %v2588 = vadd.f32 %v730, %v2587
    %v2589 = vpop.f32.mrb[0].mxu0
    %v2590 = vadd.f32 %v734, %v2589
    %v2591 = vpop.f32.mrb[0].mxu0
    %v2592 = vpop.f32.mrb[0].mxu0
    %2593 = vdwg.mxu0
    %2594 = vmatprep.subr.bf16.mxu0 0
    %2595 = vmatpush1.bf16.msra.mxu0 %v824
    %2596 = vmatprep.subr.bf16.mxu0 0
    %2597 = vmatpush1.bf16.msra.mxu0 %v827
    %2598 = vmatprep.subr.bf16.mxu0 0
    %2599 = vmatpush1.bf16.msra.mxu0 %v830
    %2600 = vmatprep.subr.bf16.mxu0 0
    %2601 = vmatpush1.bf16.msra.mxu0 %v833
    %2602 = vmatprep.subr.bf16.mxu0 0
    %2603 = vmatpush1.bf16.msra.mxu0 %v836
    %2604 = vmatprep.subr.bf16.mxu0 0
    %2605 = vmatpush1.bf16.msra.mxu0 %v839
    %2606 = vmatprep.subr.bf16.mxu0 0
    %2607 = vmatpush1.bf16.msra.mxu0 %v842
    %2608 = vmatprep.subr.bf16.mxu0 0
    %2609 = vmatpush1.bf16.msra.mxu0 %v845
    %2610 = vmatprep.subr.bf16.mxu0 0
    %2611 = vmatpush1.bf16.msra.mxu0 0
    %2612 = vmatprep.subr.bf16.mxu0 0
    %2613 = vmatpush1.bf16.msra.mxu0 0
    %2614 = vmatprep.subr.bf16.mxu0 0
    %2615 = vmatpush1.bf16.msra.mxu0 0
    %2616 = vmatprep.subr.bf16.mxu0 0
    %2617 = vmatpush1.bf16.msra.mxu0 0
    %2618 = vmatprep.subr.bf16.mxu0 0
    %2619 = vmatpush1.bf16.msra.mxu0 0
    %2620 = vmatprep.subr.bf16.mxu0 0
    %2621 = vmatpush1.bf16.msra.mxu0 0
    %2622 = vmatprep.subr.bf16.mxu0 0
    %2623 = vmatpush1.bf16.msra.mxu0 0
    %2624 = vmatprep.subr.bf16.mxu0 0
    %2625 = vmatpush1.bf16.msra.mxu0 0
    %2626 = vmatprep.mubr.bf16.mxu0 0
    %2627 = vmatmul.mubr.bf16.gmra.mrb[0].mxu0 %v2552
    %v2628 = vpop.f32.mrb[0].mxu0
    %v2629 = vadd.f32 %v738, %v2628
    %v2630 = vpop.f32.mrb[0].mxu0
    %v2631 = vpop.f32.mrb[0].mxu0
    %v2632 = vpop.f32.mrb[0].mxu0
    %2633 = vdwg.mxu0
    %v2634 = vadd.f32 %v2546, %v2588
    %v2635 = vxor.u32 %v2634, 2147483648
    %v2636 = vmul.f32 %v2635, 1.442695
    %v2637 = vpow.pop %v2636
    %v2638 = vadd.f32 %v2637, 1.0
    %v2639 = vrcp.pop %v2638
    %v2640 = vmul.f32 1.0, %v2639
    %v2641 = vadd.f32 %v2547, %v2590
    %v2642 = vxor.u32 %v2641, 2147483648
    %v2643 = vmul.f32 %v2642, 1.442695
    %v2644 = vpow.pop %v2643
    %v2645 = vadd.f32 %v2644, 1.0
    %v2646 = vrcp.pop %v2645
    %v2647 = vmul.f32 1.0, %v2646
    %v2648 = vmul.f32 %v2640, %v2629
    %v2649 = vadd.f32 %v2548, %v2648
    %v2650 = vtanh.pop %v2649
    %v2651 = vsub.f32 1.0, %v2647
    %v2652 = vmul.f32 %v2651, %v2650
    %v2653 = vmul.f32 %v2647, %v2440
    %v2654 = vadd.f32 %v2652, %v2653
    %v2655 = vpack.c.bf16 %v2543, %v2543
    %2656 = vmatprep.subr.bf16.mxu0 %v1069
    %2657 = vmatpush1.bf16.msra.mxu0 %v1068
    %2658 = vmatprep.subr.bf16.mxu0 %v1072
    %2659 = vmatpush1.bf16.msra.mxu0 %v1071
    %2660 = vmatprep.subr.bf16.mxu0 %v1075
    %2661 = vmatpush1.bf16.msra.mxu0 %v1074
    %2662 = vmatprep.subr.bf16.mxu0 %v1078
    %2663 = vmatpush1.bf16.msra.mxu0 %v1077
    %2664 = vmatprep.subr.bf16.mxu0 %v1081
    %2665 = vmatpush1.bf16.msra.mxu0 %v1080
    %2666 = vmatprep.subr.bf16.mxu0 %v1084
    %2667 = vmatpush1.bf16.msra.mxu0 %v1083
    %2668 = vmatprep.subr.bf16.mxu0 %v1087
    %2669 = vmatpush1.bf16.msra.mxu0 %v1086
    %2670 = vmatprep.subr.bf16.mxu0 %v1090
    %2671 = vmatpush1.bf16.msra.mxu0 %v1089
    %2672 = vmatprep.subr.bf16.mxu0 0
    %2673 = vmatpush1.bf16.msra.mxu0 0
    %2674 = vmatprep.subr.bf16.mxu0 0
    %2675 = vmatpush1.bf16.msra.mxu0 0
    %2676 = vmatprep.subr.bf16.mxu0 0
    %2677 = vmatpush1.bf16.msra.mxu0 0
    %2678 = vmatprep.subr.bf16.mxu0 0
    %2679 = vmatpush1.bf16.msra.mxu0 0
    %2680 = vmatprep.subr.bf16.mxu0 0
    %2681 = vmatpush1.bf16.msra.mxu0 0
    %2682 = vmatprep.subr.bf16.mxu0 0
    %2683 = vmatpush1.bf16.msra.mxu0 0
    %2684 = vmatprep.subr.bf16.mxu0 0
    %2685 = vmatpush1.bf16.msra.mxu0 0
    %2686 = vmatprep.subr.bf16.mxu0 0
    %2687 = vmatpush1.bf16.msra.mxu0 0
    %2688 = vmatprep.mubr.bf16.mxu0 0
    %2689 = vmatmul.mubr.bf16.gmra.mrb[0].mxu0 %v2655
    %v2690 = vpop.f32.mrb[0].mxu0
    %v2691 = vadd.f32 %v976, %v2690
    %v2692 = vpop.f32.mrb[0].mxu0
    %v2693 = vadd.f32 %v980, %v2692
    %v2694 = vpop.f32.mrb[0].mxu0
    %v2695 = vpop.f32.mrb[0].mxu0
    %2696 = vdwg.mxu0
    %2697 = vmatprep.subr.bf16.mxu0 0
    %2698 = vmatpush1.bf16.msra.mxu0 %v1070
    %2699 = vmatprep.subr.bf16.mxu0 0
    %2700 = vmatpush1.bf16.msra.mxu0 %v1073
    %2701 = vmatprep.subr.bf16.mxu0 0
    %2702 = vmatpush1.bf16.msra.mxu0 %v1076
    %2703 = vmatprep.subr.bf16.mxu0 0
    %2704 = vmatpush1.bf16.msra.mxu0 %v1079
    %2705 = vmatprep.subr.bf16.mxu0 0
    %2706 = vmatpush1.bf16.msra.mxu0 %v1082
    %2707 = vmatprep.subr.bf16.mxu0 0
    %2708 = vmatpush1.bf16.msra.mxu0 %v1085
    %2709 = vmatprep.subr.bf16.mxu0 0
    %2710 = vmatpush1.bf16.msra.mxu0 %v1088
    %2711 = vmatprep.subr.bf16.mxu0 0
    %2712 = vmatpush1.bf16.msra.mxu0 %v1091
    %2713 = vmatprep.subr.bf16.mxu0 0
    %2714 = vmatpush1.bf16.msra.mxu0 0
    %2715 = vmatprep.subr.bf16.mxu0 0
    %2716 = vmatpush1.bf16.msra.mxu0 0
    %2717 = vmatprep.subr.bf16.mxu0 0
    %2718 = vmatpush1.bf16.msra.mxu0 0
    %2719 = vmatprep.subr.bf16.mxu0 0
    %2720 = vmatpush1.bf16.msra.mxu0 0
    %2721 = vmatprep.subr.bf16.mxu0 0
    %2722 = vmatpush1.bf16.msra.mxu0 0
    %2723 = vmatprep.subr.bf16.mxu0 0
    %2724 = vmatpush1.bf16.msra.mxu0 0
    %2725 = vmatprep.subr.bf16.mxu0 0
    %2726 = vmatpush1.bf16.msra.mxu0 0
    %2727 = vmatprep.subr.bf16.mxu0 0
    %2728 = vmatpush1.bf16.msra.mxu0 0
    %2729 = vmatprep.mubr.bf16.mxu0 0
    %2730 = vmatmul.mubr.bf16.gmra.mrb[0].mxu0 %v2655
    %v2731 = vpop.f32.mrb[0].mxu0
    %v2732 = vadd.f32 %v984, %v2731
    %v2733 = vpop.f32.mrb[0].mxu0
    %v2734 = vpop.f32.mrb[0].mxu0
    %v2735 = vpop.f32.mrb[0].mxu0
    %2736 = vdwg.mxu0
    %v2737 = vadd.f32 %v2549, %v2691
    %v2738 = vxor.u32 %v2737, 2147483648
    %v2739 = vmul.f32 %v2738, 1.442695
    %v2740 = vpow.pop %v2739
    %v2741 = vadd.f32 %v2740, 1.0
    %v2742 = vrcp.pop %v2741
    %v2743 = vmul.f32 1.0, %v2742
    %v2744 = vadd.f32 %v2550, %v2693
    %v2745 = vxor.u32 %v2744, 2147483648
    %v2746 = vmul.f32 %v2745, 1.442695
    %v2747 = vpow.pop %v2746
    %v2748 = vadd.f32 %v2747, 1.0
    %v2749 = vrcp.pop %v2748
    %v2750 = vmul.f32 1.0, %v2749
    %v2751 = vmul.f32 %v2743, %v2732
    %v2752 = vadd.f32 %v2551, %v2751
    %v2753 = vtanh.pop %v2752
    %v2754 = vsub.f32 1.0, %v2750
    %v2755 = vmul.f32 %v2754, %v2753
    %v2756 = vmul.f32 %v2750, %v2543
    %v2757 = vadd.f32 %v2755, %v2756
    %2758 = vst [vmem:[%s1224] sm:$0xff] %v2654
    %2759 = vst [vmem:[%s1220 + $0x8] sm:$0xff] %v2757
    %v2760 = vld [vmem:[#allocation15] sm:$0xff]
    %v2761 = vld [vmem:[#allocation15 + $0x8] sm:$0xf]
    %v2762 = vld [vmem:[#allocation15 + $0xc] sm:$0xff]
    %v2763 = vld [vmem:[#allocation15 + $0x14] sm:$0xf]
    %v2764 = vld [vmem:[#allocation15 + $0x18] sm:$0xff]
    %v2765 = vld [vmem:[#allocation15 + $0x20] sm:$0xf]
    %v2766 = vld [vmem:[#allocation15 + $0x24] sm:$0xff]
    %v2767 = vld [vmem:[#allocation15 + $0x2c] sm:$0xf]
    %v2768 = vld [vmem:[#allocation15 + $0x30] sm:$0xff]
    %v2769 = vld [vmem:[#allocation15 + $0x38] sm:$0xf]
    %v2770 = vld [vmem:[#allocation15 + $0x3c] sm:$0xff]
    %v2771 = vld [vmem:[#allocation15 + $0x44] sm:$0xf]
    %v2772 = vld [vmem:[#allocation15 + $0x48] sm:$0xff]
    %v2773 = vld [vmem:[#allocation15 + $0x50] sm:$0xf]
    %v2774 = vld [vmem:[#allocation15 + $0x54] sm:$0xff]
    %v2775 = vld [vmem:[#allocation15 + $0x5c] sm:$0xf]
    %v2776 = vld [vmem:[#allocation15 + $0x60] sm:$0xff]
    %v2777 = vld [vmem:[#allocation15 + $0x68] sm:$0xf]
    %v2778 = vld [vmem:[#allocation15 + $0x6c] sm:$0xff]
    %v2779 = vld [vmem:[#allocation15 + $0x74] sm:$0xf]
    %v2780 = vld [vmem:[#allocation15 + $0x78] sm:$0xff]
    %v2781 = vld [vmem:[#allocation15 + $0x80] sm:$0xf]
    %v2782 = vld [vmem:[#allocation15 + $0x84] sm:$0xff]
    %v2783 = vld [vmem:[#allocation15 + $0x8c] sm:$0xf]
    %v2784 = vld [vmem:[#allocation15 + $0x90] sm:$0xff]
    %v2785 = vld [vmem:[#allocation15 + $0x98] sm:$0xf]
    %v2786 = vld [vmem:[#allocation15 + $0x9c] sm:$0xff]
    %v2787 = vld [vmem:[#allocation15 + $0xa4] sm:$0xf]
    %v2788 = vld [vmem:[#allocation15 + $0xa8] sm:$0xff]
    %v2789 = vld [vmem:[#allocation15 + $0xb0] sm:$0xf]
    %v2790 = vld [vmem:[#allocation15 + $0xb4] sm:$0xff]
    %v2791 = vld [vmem:[#allocation15 + $0xbc] sm:$0xf]
    %v2792 = vld [vmem:[#allocation15 + $0xc0] sm:$0xff]
    %v2793 = vld [vmem:[#allocation15 + $0xc8] sm:$0xf]
    %v2794 = vld [vmem:[#allocation15 + $0xcc] sm:$0xff]
    %v2795 = vld [vmem:[#allocation15 + $0xd4] sm:$0xf]
    %v2796 = vld [vmem:[#allocation15 + $0xd8] sm:$0xff]
    %v2797 = vld [vmem:[#allocation15 + $0xe0] sm:$0xf]
    %v2798 = vld [vmem:[#allocation15 + $0xe4] sm:$0xff]
    %v2799 = vld [vmem:[#allocation15 + $0xec] sm:$0xf]
    %v2800 = vld [vmem:[#allocation15 + $0xf0] sm:$0xff]
    %v2801 = vld [vmem:[#allocation15 + $0xf8] sm:$0xf]
    %v2802 = vld [vmem:[#allocation15 + $0xfc] sm:$0xff]
    %v2803 = vld [vmem:[#allocation15 + $0x104] sm:$0xf]
    %v2804 = vld [vmem:[#allocation15 + $0x108] sm:$0xff]
    %v2805 = vld [vmem:[#allocation15 + $0x110] sm:$0xf]
    %v2806 = vld [vmem:[#allocation15 + $0x114] sm:$0xff]
    %v2807 = vld [vmem:[#allocation15 + $0x11c] sm:$0xf]
    %v2808 = vld [vmem:[#allocation15 + $0x120] sm:$0xff]
    %v2809 = vld [vmem:[#allocation15 + $0x128] sm:$0xf]
    %v2810 = vld [vmem:[#allocation15 + $0x12c] sm:$0xff]
    %v2811 = vld [vmem:[#allocation15 + $0x134] sm:$0xf]
    %v2812 = vld [vmem:[#allocation15 + $0x138] sm:$0xff]
    %v2813 = vld [vmem:[#allocation15 + $0x140] sm:$0xf]
    %v2814 = vld [vmem:[#allocation15 + $0x144] sm:$0xff]
    %v2815 = vld [vmem:[#allocation15 + $0x14c] sm:$0xf]
    %v2816 = vld [vmem:[#allocation15 + $0x150] sm:$0xff]
    %v2817 = vld [vmem:[#allocation15 + $0x158] sm:$0xf]
    %v2818 = vld [vmem:[#allocation15 + $0x15c] sm:$0xff]
    %v2819 = vld [vmem:[#allocation15 + $0x164] sm:$0xf]
    %v2820 = vld [vmem:[#allocation15 + $0x168] sm:$0xff]
    %v2821 = vld [vmem:[#allocation15 + $0x170] sm:$0xf]
    %v2822 = vld [vmem:[#allocation15 + $0x174] sm:$0xff]
    %v2823 = vld [vmem:[#allocation15 + $0x17c] sm:$0xf]
    %v2824 = vld [vmem:[#allocation16] sm:$0x7]
    %s2825 = smul.u32 0, 2
    %s2826 = smul.addr %s2825, 8
    %s2827 = scalar_lea.vmem [#allocation3], %s2826
    %v2828 = vld [vmem:[%s2827] sm:$0xff]
    %v2829 = vld [vmem:[%s2827 + $0x8] sm:$0xff]
    %v2830 = vld [vmem:[%s2827 + $0x10] sm:$0xff]
    %v2831 = vld [vmem:[%s2827 + $0x18] sm:$0xff]
    %v2832 = vld [vmem:[%s2827 + $0x20] sm:$0xff]
    %v2833 = vld [vmem:[%s2827 + $0x28] sm:$0xff]
    %v2834 = vld [vmem:[%s2827 + $0x30] sm:$0xff]
    %v2835 = vld [vmem:[%s2827 + $0x38] sm:$0xff]
    %v2836 = vld [vmem:[%s2827 + $0x40] sm:$0xff]
    %v2837 = vld [vmem:[%s2827 + $0x48] sm:$0xff]
    %v2838 = vld [vmem:[%s2827 + $0x50] sm:$0xff]
    %v2839 = vld [vmem:[%s2827 + $0x58] sm:$0xff]
    %v2840 = vld [vmem:[%s2827 + $0x60] sm:$0xff]
    %v2841 = vld [vmem:[%s2827 + $0x68] sm:$0xff]
    %v2842 = vld [vmem:[%s2827 + $0x70] sm:$0xff]
    %v2843 = vld [vmem:[%s2827 + $0x78] sm:$0xff]
    %v2844 = vpack.c.bf16 %v2830, %v2828
    %v2845 = vpack.c.bf16 %v2831, %v2829
    %v2846 = vpack.c.bf16 %v2834, %v2832
    %v2847 = vpack.c.bf16 %v2835, %v2833
    %v2848 = vpack.c.bf16 %v2838, %v2836
    %v2849 = vpack.c.bf16 %v2839, %v2837
    %v2850 = vpack.c.bf16 %v2842, %v2840
    %v2851 = vpack.c.bf16 %v2843, %v2841
    %v2853 = vlaneseq
    %v2854 = vshrl.u32 %v2853, 7
    %v2855 = vsub.s32 0, %v2854
    %v2856 = vrot.slane %v2824, %v2855
    %v2857 = vlaneseq
    %v2858 = vshrl.u32 %v2857, 7
    %v2859 = vsub.s32 1, %v2858
    %v2860 = vrot.slane %v2824, %v2859
    %v2861 = vlaneseq
    %v2862 = vshrl.u32 %v2861, 7
    %v2863 = vsub.s32 2, %v2862
    %v2864 = vrot.slane %v2824, %v2863
    %v2932 = vunpack.c.l.b16 %v2760
    %v2933 = vunpack.c.h.b16 %v2760
    %v2934 = vunpack.c.l.b16 %v2761
    %v2935 = vunpack.c.l.b16 %v2762
    %v2936 = vunpack.c.h.b16 %v2762
    %v2937 = vunpack.c.l.b16 %v2763
    %v2938 = vunpack.c.l.b16 %v2764
    %v2939 = vunpack.c.h.b16 %v2764
    %v2940 = vunpack.c.l.b16 %v2765
    %v2941 = vunpack.c.l.b16 %v2766
    %v2942 = vunpack.c.h.b16 %v2766
    %v2943 = vunpack.c.l.b16 %v2767
    %v2944 = vunpack.c.l.b16 %v2768
    %v2945 = vunpack.c.h.b16 %v2768
    %v2946 = vunpack.c.l.b16 %v2769
    %v2947 = vunpack.c.l.b16 %v2770
    %v2948 = vunpack.c.h.b16 %v2770
    %v2949 = vunpack.c.l.b16 %v2771
    %v2950 = vunpack.c.l.b16 %v2772
    %v2951 = vunpack.c.h.b16 %v2772
    %v2952 = vunpack.c.l.b16 %v2773
    %v2953 = vunpack.c.l.b16 %v2774
    %v2954 = vunpack.c.h.b16 %v2774
    %v2955 = vunpack.c.l.b16 %v2775
    %v2956 = vunpack.c.l.b16 %v2776
    %v2957 = vunpack.c.h.b16 %v2776
    %v2958 = vunpack.c.l.b16 %v2777
    %v2959 = vunpack.c.l.b16 %v2778
    %v2960 = vunpack.c.h.b16 %v2778
    %v2961 = vunpack.c.l.b16 %v2779
    %v2962 = vunpack.c.l.b16 %v2780
    %v2963 = vunpack.c.h.b16 %v2780
    %v2964 = vunpack.c.l.b16 %v2781
    %v2965 = vunpack.c.l.b16 %v2782
    %v2966 = vunpack.c.h.b16 %v2782
    %v2967 = vunpack.c.l.b16 %v2783
    %v2968 = vunpack.c.l.b16 %v2784
    %v2969 = vunpack.c.h.b16 %v2784
    %v2970 = vunpack.c.l.b16 %v2785
    %v2971 = vunpack.c.l.b16 %v2786
    %v2972 = vunpack.c.h.b16 %v2786
    %v2973 = vunpack.c.l.b16 %v2787
    %v2974 = vunpack.c.l.b16 %v2788
    %v2975 = vunpack.c.h.b16 %v2788
    %v2976 = vunpack.c.l.b16 %v2789
    %v2977 = vunpack.c.l.b16 %v2790
    %v2978 = vunpack.c.h.b16 %v2790
    %v2979 = vunpack.c.l.b16 %v2791
    %v2980 = vunpack.c.l.b16 %v2792
    %v2981 = vunpack.c.h.b16 %v2792
    %v2982 = vunpack.c.l.b16 %v2793
    %v2983 = vunpack.c.l.b16 %v2794
    %v2984 = vunpack.c.h.b16 %v2794
    %v2985 = vunpack.c.l.b16 %v2795
    %v2986 = vunpack.c.l.b16 %v2796
    %v2987 = vunpack.c.h.b16 %v2796
    %v2988 = vunpack.c.l.b16 %v2797
    %v2989 = vunpack.c.l.b16 %v2798
    %v2990 = vunpack.c.h.b16 %v2798
    %v2991 = vunpack.c.l.b16 %v2799
    %v2992 = vunpack.c.l.b16 %v2800
    %v2993 = vunpack.c.h.b16 %v2800
    %v2994 = vunpack.c.l.b16 %v2801
    %v2995 = vunpack.c.l.b16 %v2802
    %v2996 = vunpack.c.h.b16 %v2802
    %v2997 = vunpack.c.l.b16 %v2803
    %v2998 = vunpack.c.l.b16 %v2804
    %v2999 = vunpack.c.h.b16 %v2804
    %v3000 = vunpack.c.l.b16 %v2805
    %v3001 = vunpack.c.l.b16 %v2806
    %v3002 = vunpack.c.h.b16 %v2806
    %v3003 = vunpack.c.l.b16 %v2807
    %v3004 = vunpack.c.l.b16 %v2808
    %v3005 = vunpack.c.h.b16 %v2808
    %v3006 = vunpack.c.l.b16 %v2809
    %v3007 = vunpack.c.l.b16 %v2810
    %v3008 = vunpack.c.h.b16 %v2810
    %v3009 = vunpack.c.l.b16 %v2811
    %v3010 = vunpack.c.l.b16 %v2812
    %v3011 = vunpack.c.h.b16 %v2812
    %v3012 = vunpack.c.l.b16 %v2813
    %v3013 = vunpack.c.l.b16 %v2814
    %v3014 = vunpack.c.h.b16 %v2814
    %v3015 = vunpack.c.l.b16 %v2815
    %v3016 = vunpack.c.l.b16 %v2816
    %v3017 = vunpack.c.h.b16 %v2816
    %v3018 = vunpack.c.l.b16 %v2817
    %v3019 = vunpack.c.l.b16 %v2818
    %v3020 = vunpack.c.h.b16 %v2818
    %v3021 = vunpack.c.l.b16 %v2819
    %v3022 = vunpack.c.l.b16 %v2820
    %v3023 = vunpack.c.h.b16 %v2820
    %v3024 = vunpack.c.l.b16 %v2821
    %v3025 = vunpack.c.l.b16 %v2822
    %v3026 = vunpack.c.h.b16 %v2822
    %v3027 = vunpack.c.l.b16 %v2823
    %v3028 = vpack.c.b16 %v2935, %v2932
    %v3029 = vpack.c.b16 %v2936, %v2933
    %v3030 = vpack.c.b16 %v2937, %v2934
    %v3031 = vpack.c.b16 %v2941, %v2938
    %v3032 = vpack.c.b16 %v2942, %v2939
    %v3033 = vpack.c.b16 %v2943, %v2940
    %v3034 = vpack.c.b16 %v2947, %v2944
    %v3035 = vpack.c.b16 %v2948, %v2945
    %v3036 = vpack.c.b16 %v2949, %v2946
    %v3037 = vpack.c.b16 %v2953, %v2950
    %v3038 = vpack.c.b16 %v2954, %v2951
    %v3039 = vpack.c.b16 %v2955, %v2952
    %v3040 = vpack.c.b16 %v2959, %v2956
    %v3041 = vpack.c.b16 %v2960, %v2957
    %v3042 = vpack.c.b16 %v2961, %v2958
    %v3043 = vpack.c.b16 %v2965, %v2962
    %v3044 = vpack.c.b16 %v2966, %v2963
    %v3045 = vpack.c.b16 %v2967, %v2964
    %v3046 = vpack.c.b16 %v2971, %v2968
    %v3047 = vpack.c.b16 %v2972, %v2969
    %v3048 = vpack.c.b16 %v2973, %v2970
    %v3049 = vpack.c.b16 %v2977, %v2974
    %v3050 = vpack.c.b16 %v2978, %v2975
    %v3051 = vpack.c.b16 %v2979, %v2976
    %v3052 = vpack.c.b16 %v2983, %v2980
    %v3053 = vpack.c.b16 %v2984, %v2981
    %v3054 = vpack.c.b16 %v2985, %v2982
    %v3055 = vpack.c.b16 %v2989, %v2986
    %v3056 = vpack.c.b16 %v2990, %v2987
    %v3057 = vpack.c.b16 %v2991, %v2988
    %v3058 = vpack.c.b16 %v2995, %v2992
    %v3059 = vpack.c.b16 %v2996, %v2993
    %v3060 = vpack.c.b16 %v2997, %v2994
    %v3061 = vpack.c.b16 %v3001, %v2998
    %v3062 = vpack.c.b16 %v3002, %v2999
    %v3063 = vpack.c.b16 %v3003, %v3000
    %v3064 = vpack.c.b16 %v3007, %v3004
    %v3065 = vpack.c.b16 %v3008, %v3005
    %v3066 = vpack.c.b16 %v3009, %v3006
    %v3067 = vpack.c.b16 %v3013, %v3010
    %v3068 = vpack.c.b16 %v3014, %v3011
    %v3069 = vpack.c.b16 %v3015, %v3012
    %v3070 = vpack.c.b16 %v3019, %v3016
    %v3071 = vpack.c.b16 %v3020, %v3017
    %v3072 = vpack.c.b16 %v3021, %v3018
    %v3073 = vpack.c.b16 %v3025, %v3022
    %v3074 = vpack.c.b16 %v3026, %v3023
    %v3075 = vpack.c.b16 %v3027, %v3024
    %3124 = vmatprep.subr.bf16.mxu0 %v3029
    %3125 = vmatpush1.bf16.msra.mxu0 %v3028
    %3126 = vmatprep.subr.bf16.mxu0 %v3032
    %3127 = vmatpush1.bf16.msra.mxu0 %v3031
    %3128 = vmatprep.subr.bf16.mxu0 %v3035
    %3129 = vmatpush1.bf16.msra.mxu0 %v3034
    %3130 = vmatprep.subr.bf16.mxu0 %v3038
    %3131 = vmatpush1.bf16.msra.mxu0 %v3037
    %3132 = vmatprep.subr.bf16.mxu0 %v3041
    %3133 = vmatpush1.bf16.msra.mxu0 %v3040
    %3134 = vmatprep.subr.bf16.mxu0 %v3044
    %3135 = vmatpush1.bf16.msra.mxu0 %v3043
    %3136 = vmatprep.subr.bf16.mxu0 %v3047
    %3137 = vmatpush1.bf16.msra.mxu0 %v3046
    %3138 = vmatprep.subr.bf16.mxu0 %v3050
    %3139 = vmatpush1.bf16.msra.mxu0 %v3049
    %3140 = vmatprep.subr.bf16.mxu0 %v3053
    %3141 = vmatpush1.bf16.msra.mxu0 %v3052
    %3142 = vmatprep.subr.bf16.mxu0 %v3056
    %3143 = vmatpush1.bf16.msra.mxu0 %v3055
    %3144 = vmatprep.subr.bf16.mxu0 %v3059
    %3145 = vmatpush1.bf16.msra.mxu0 %v3058
    %3146 = vmatprep.subr.bf16.mxu0 %v3062
    %3147 = vmatpush1.bf16.msra.mxu0 %v3061
    %3148 = vmatprep.subr.bf16.mxu0 %v3065
    %3149 = vmatpush1.bf16.msra.mxu0 %v3064
    %3150 = vmatprep.subr.bf16.mxu0 %v3068
    %3151 = vmatpush1.bf16.msra.mxu0 %v3067
    %3152 = vmatprep.subr.bf16.mxu0 %v3071
    %3153 = vmatpush1.bf16.msra.mxu0 %v3070
    %3154 = vmatprep.subr.bf16.mxu0 %v3074
    %3155 = vmatpush1.bf16.msra.mxu0 %v3073
    %3156 = vmatprep.mubr.bf16.mxu0 %v2845
    %3157 = vmatmul.mubr.bf16.gmra.mrb[0].mxu0 %v2844
    %v3158 = vpop.f32.mrb[0].mxu0
    %v3159 = vadd.f32 %v2856, %v3158
    %v3160 = vpop.f32.mrb[0].mxu0
    %v3161 = vadd.f32 %v2860, %v3160
    %v3162 = vpop.f32.mrb[0].mxu0
    %v3163 = vadd.f32 %v2856, %v3162
    %v3164 = vpop.f32.mrb[0].mxu0
    %v3165 = vadd.f32 %v2860, %v3164
    %3166 = vmatprep.mubr.bf16.mxu0 %v2847
    %3167 = vmatmul.mubr.bf16.gmra.mrb[0].mxu0 %v2846
    %v3168 = vpop.f32.mrb[0].mxu0
    %v3169 = vadd.f32 %v2856, %v3168
    %v3170 = vpop.f32.mrb[0].mxu0
    %v3171 = vadd.f32 %v2860, %v3170
    %v3172 = vpop.f32.mrb[0].mxu0
    %v3173 = vadd.f32 %v2856, %v3172
    %v3174 = vpop.f32.mrb[0].mxu0
    %v3175 = vadd.f32 %v2860, %v3174
    %3176 = vmatprep.mubr.bf16.mxu0 %v2849
    %3177 = vmatmul.mubr.bf16.gmra.mrb[0].mxu0 %v2848
    %v3178 = vpop.f32.mrb[0].mxu0
    %v3179 = vadd.f32 %v2856, %v3178
    %v3180 = vpop.f32.mrb[0].mxu0
    %v3181 = vadd.f32 %v2860, %v3180
    %v3182 = vpop.f32.mrb[0].mxu0
    %v3183 = vadd.f32 %v2856, %v3182
    %v3184 = vpop.f32.mrb[0].mxu0
    %v3185 = vadd.f32 %v2860, %v3184
    %3186 = vmatprep.mubr.bf16.mxu0 %v2851
    %3187 = vmatmul.mubr.bf16.gmra.mrb[0].mxu0 %v2850
    %v3188 = vpop.f32.mrb[0].mxu0
    %v3189 = vadd.f32 %v2856, %v3188
    %v3190 = vpop.f32.mrb[0].mxu0
    %v3191 = vadd.f32 %v2860, %v3190
    %v3192 = vpop.f32.mrb[0].mxu0
    %v3193 = vadd.f32 %v2856, %v3192
    %v3194 = vpop.f32.mrb[0].mxu0
    %v3195 = vadd.f32 %v2860, %v3194
    %3196 = vdwg.mxu0
    %3197 = vmatprep.subr.bf16.mxu0 0
    %3198 = vmatpush1.bf16.msra.mxu0 %v3030
    %3199 = vmatprep.subr.bf16.mxu0 0
    %3200 = vmatpush1.bf16.msra.mxu0 %v3033
    %3201 = vmatprep.subr.bf16.mxu0 0
    %3202 = vmatpush1.bf16.msra.mxu0 %v3036
    %3203 = vmatprep.subr.bf16.mxu0 0
    %3204 = vmatpush1.bf16.msra.mxu0 %v3039
    %3205 = vmatprep.subr.bf16.mxu0 0
    %3206 = vmatpush1.bf16.msra.mxu0 %v3042
    %3207 = vmatprep.subr.bf16.mxu0 0
    %3208 = vmatpush1.bf16.msra.mxu0 %v3045
    %3209 = vmatprep.subr.bf16.mxu0 0
    %3210 = vmatpush1.bf16.msra.mxu0 %v3048
    %3211 = vmatprep.subr.bf16.mxu0 0
    %3212 = vmatpush1.bf16.msra.mxu0 %v3051
    %3213 = vmatprep.subr.bf16.mxu0 0
    %3214 = vmatpush1.bf16.msra.mxu0 %v3054
    %3215 = vmatprep.subr.bf16.mxu0 0
    %3216 = vmatpush1.bf16.msra.mxu0 %v3057
    %3217 = vmatprep.subr.bf16.mxu0 0
    %3218 = vmatpush1.bf16.msra.mxu0 %v3060
    %3219 = vmatprep.subr.bf16.mxu0 0
    %3220 = vmatpush1.bf16.msra.mxu0 %v3063
    %3221 = vmatprep.subr.bf16.mxu0 0
    %3222 = vmatpush1.bf16.msra.mxu0 %v3066
    %3223 = vmatprep.subr.bf16.mxu0 0
    %3224 = vmatpush1.bf16.msra.mxu0 %v3069
    %3225 = vmatprep.subr.bf16.mxu0 0
    %3226 = vmatpush1.bf16.msra.mxu0 %v3072
    %3227 = vmatprep.subr.bf16.mxu0 0
    %3228 = vmatpush1.bf16.msra.mxu0 %v3075
    %3229 = vmatprep.mubr.bf16.mxu0 %v2845
    %3230 = vmatmul.mubr.bf16.gmra.mrb[0].mxu0 %v2844
    %v3231 = vpop.f32.mrb[0].mxu0
    %v3232 = vadd.f32 %v2864, %v3231
    %v3233 = vpop.f32.mrb[0].mxu0
    %v3234 = vpop.f32.mrb[0].mxu0
    %v3235 = vadd.f32 %v2864, %v3234
    %v3236 = vpop.f32.mrb[0].mxu0
    %3237 = vmatprep.mubr.bf16.mxu0 %v2847
    %3238 = vmatmul.mubr.bf16.gmra.mrb[0].mxu0 %v2846
    %v3239 = vpop.f32.mrb[0].mxu0
    %v3240 = vadd.f32 %v2864, %v3239
    %v3241 = vpop.f32.mrb[0].mxu0
    %v3242 = vpop.f32.mrb[0].mxu0
    %v3243 = vadd.f32 %v2864, %v3242
    %v3244 = vpop.f32.mrb[0].mxu0
    %3245 = vmatprep.mubr.bf16.mxu0 %v2849
    %3246 = vmatmul.mubr.bf16.gmra.mrb[0].mxu0 %v2848
    %v3247 = vpop.f32.mrb[0].mxu0
    %v3248 = vadd.f32 %v2864, %v3247
    %v3249 = vpop.f32.mrb[0].mxu0
    %v3250 = vpop.f32.mrb[0].mxu0
    %v3251 = vadd.f32 %v2864, %v3250
    %v3252 = vpop.f32.mrb[0].mxu0
    %3253 = vmatprep.mubr.bf16.mxu0 %v2851
    %3254 = vmatmul.mubr.bf16.gmra.mrb[0].mxu0 %v2850
    %v3255 = vpop.f32.mrb[0].mxu0
    %v3256 = vadd.f32 %v2864, %v3255
    %v3257 = vpop.f32.mrb[0].mxu0
    %v3258 = vpop.f32.mrb[0].mxu0
    %v3259 = vadd.f32 %v2864, %v3258
    %v3260 = vpop.f32.mrb[0].mxu0
    %3261 = vdwg.mxu0
    %3262 = vst [vmem:[%s599] sm:$0xff] %v3159
    %3263 = vst [vmem:[%s599 + $0x8] sm:$0xff] %v3161
    %3264 = vst [vmem:[%s599 + $0x10] sm:$0xff] %v3232
    %3265 = vst [vmem:[%s599 + $0x30] sm:$0xff] %v3163
    %3266 = vst [vmem:[%s599 + $0x38] sm:$0xff] %v3165
    %3267 = vst [vmem:[%s599 + $0x40] sm:$0xff] %v3235
    %3268 = vst [vmem:[%s599 + $0x60] sm:$0xff] %v3169
    %3269 = vst [vmem:[%s599 + $0x68] sm:$0xff] %v3171
    %3270 = vst [vmem:[%s599 + $0x70] sm:$0xff] %v3240
    %3271 = vst [vmem:[%s599 + $0x90] sm:$0xff] %v3173
    %3272 = vst [vmem:[%s599 + $0x98] sm:$0xff] %v3175
    %3273 = vst [vmem:[%s599 + $0xa0] sm:$0xff] %v3243
    %3274 = vst [vmem:[%s599 + $0xc0] sm:$0xff] %v3179
    %3275 = vst [vmem:[%s599 + $0xc8] sm:$0xff] %v3181
    %3276 = vst [vmem:[%s599 + $0xd0] sm:$0xff] %v3248
    %3277 = vst [vmem:[%s599 + $0xf0] sm:$0xff] %v3183
    %3278 = vst [vmem:[%s599 + $0xf8] sm:$0xff] %v3185
    %3279 = vst [vmem:[%s599 + $0x100] sm:$0xff] %v3251
    %3280 = vst [vmem:[%s599 + $0x120] sm:$0xff] %v3189
    %3281 = vst [vmem:[%s599 + $0x128] sm:$0xff] %v3191
    %3282 = vst [vmem:[%s599 + $0x130] sm:$0xff] %v3256
    %3283 = vst [vmem:[%s599 + $0x150] sm:$0xff] %v3193
    %3284 = vst [vmem:[%s599 + $0x158] sm:$0xff] %v3195
    %3285 = vst [vmem:[%s599 + $0x160] sm:$0xff] %v3259
    %v3286 = vld [vmem:[#allocation18] sm:$0xff]
    %v3287 = vld [vmem:[#allocation18 + $0x8] sm:$0xf]
    %v3288 = vld [vmem:[#allocation18 + $0xc] sm:$0xff]
    %v3289 = vld [vmem:[#allocation18 + $0x14] sm:$0xf]
    %v3290 = vld [vmem:[#allocation18 + $0x18] sm:$0xff]
    %v3291 = vld [vmem:[#allocation18 + $0x20] sm:$0xf]
    %v3292 = vld [vmem:[#allocation18 + $0x24] sm:$0xff]
    %v3293 = vld [vmem:[#allocation18 + $0x2c] sm:$0xf]
    %v3294 = vld [vmem:[#allocation18 + $0x30] sm:$0xff]
    %v3295 = vld [vmem:[#allocation18 + $0x38] sm:$0xf]
    %v3296 = vld [vmem:[#allocation18 + $0x3c] sm:$0xff]
    %v3297 = vld [vmem:[#allocation18 + $0x44] sm:$0xf]
    %v3298 = vld [vmem:[#allocation18 + $0x48] sm:$0xff]
    %v3299 = vld [vmem:[#allocation18 + $0x50] sm:$0xf]
    %v3300 = vld [vmem:[#allocation18 + $0x54] sm:$0xff]
    %v3301 = vld [vmem:[#allocation18 + $0x5c] sm:$0xf]
    %v3302 = vld [vmem:[#allocation18 + $0x60] sm:$0xff]
    %v3303 = vld [vmem:[#allocation18 + $0x68] sm:$0xf]
    %v3304 = vld [vmem:[#allocation18 + $0x6c] sm:$0xff]
    %v3305 = vld [vmem:[#allocation18 + $0x74] sm:$0xf]
    %v3306 = vld [vmem:[#allocation18 + $0x78] sm:$0xff]
    %v3307 = vld [vmem:[#allocation18 + $0x80] sm:$0xf]
    %v3308 = vld [vmem:[#allocation18 + $0x84] sm:$0xff]
    %v3309 = vld [vmem:[#allocation18 + $0x8c] sm:$0xf]
    %v3310 = vld [vmem:[#allocation18 + $0x90] sm:$0xff]
    %v3311 = vld [vmem:[#allocation18 + $0x98] sm:$0xf]
    %v3312 = vld [vmem:[#allocation18 + $0x9c] sm:$0xff]
    %v3313 = vld [vmem:[#allocation18 + $0xa4] sm:$0xf]
    %v3314 = vld [vmem:[#allocation18 + $0xa8] sm:$0xff]
    %v3315 = vld [vmem:[#allocation18 + $0xb0] sm:$0xf]
    %v3316 = vld [vmem:[#allocation18 + $0xb4] sm:$0xff]
    %v3317 = vld [vmem:[#allocation18 + $0xbc] sm:$0xf]
    %v3318 = vld [vmem:[#allocation19] sm:$0x7]
    %v3319 = vld [vmem:[%s716] sm:$0xff]
    %v3320 = vld [vmem:[%s716 + $0x8] sm:$0xff]
    %v3321 = vld [vmem:[%s716 + $0x10] sm:$0xff]
    %v3323 = vlaneseq
    %v3324 = vshrl.u32 %v3323, 7
    %v3325 = vsub.s32 0, %v3324
    %v3326 = vrot.slane %v3318, %v3325
    %v3327 = vlaneseq
    %v3328 = vshrl.u32 %v3327, 7
    %v3329 = vsub.s32 1, %v3328
    %v3330 = vrot.slane %v3318, %v3329
    %v3331 = vlaneseq
    %v3332 = vshrl.u32 %v3331, 7
    %v3333 = vsub.s32 2, %v3332
    %v3334 = vrot.slane %v3318, %v3333
    %v3370 = vunpack.c.l.b16 %v3286
    %v3371 = vunpack.c.h.b16 %v3286
    %v3372 = vunpack.c.l.b16 %v3287
    %v3373 = vunpack.c.l.b16 %v3288
    %v3374 = vunpack.c.h.b16 %v3288
    %v3375 = vunpack.c.l.b16 %v3289
    %v3376 = vunpack.c.l.b16 %v3290
    %v3377 = vunpack.c.h.b16 %v3290
    %v3378 = vunpack.c.l.b16 %v3291
    %v3379 = vunpack.c.l.b16 %v3292
    %v3380 = vunpack.c.h.b16 %v3292
    %v3381 = vunpack.c.l.b16 %v3293
    %v3382 = vunpack.c.l.b16 %v3294
    %v3383 = vunpack.c.h.b16 %v3294
    %v3384 = vunpack.c.l.b16 %v3295
    %v3385 = vunpack.c.l.b16 %v3296
    %v3386 = vunpack.c.h.b16 %v3296
    %v3387 = vunpack.c.l.b16 %v3297
    %v3388 = vunpack.c.l.b16 %v3298
    %v3389 = vunpack.c.h.b16 %v3298
    %v3390 = vunpack.c.l.b16 %v3299
    %v3391 = vunpack.c.l.b16 %v3300
    %v3392 = vunpack.c.h.b16 %v3300
    %v3393 = vunpack.c.l.b16 %v3301
    %v3394 = vunpack.c.l.b16 %v3302
    %v3395 = vunpack.c.h.b16 %v3302
    %v3396 = vunpack.c.l.b16 %v3303
    %v3397 = vunpack.c.l.b16 %v3304
    %v3398 = vunpack.c.h.b16 %v3304
    %v3399 = vunpack.c.l.b16 %v3305
    %v3400 = vunpack.c.l.b16 %v3306
    %v3401 = vunpack.c.h.b16 %v3306
    %v3402 = vunpack.c.l.b16 %v3307
    %v3403 = vunpack.c.l.b16 %v3308
    %v3404 = vunpack.c.h.b16 %v3308
    %v3405 = vunpack.c.l.b16 %v3309
    %v3406 = vunpack.c.l.b16 %v3310
    %v3407 = vunpack.c.h.b16 %v3310
    %v3408 = vunpack.c.l.b16 %v3311
    %v3409 = vunpack.c.l.b16 %v3312
    %v3410 = vunpack.c.h.b16 %v3312
    %v3411 = vunpack.c.l.b16 %v3313
    %v3412 = vunpack.c.l.b16 %v3314
    %v3413 = vunpack.c.h.b16 %v3314
    %v3414 = vunpack.c.l.b16 %v3315
    %v3415 = vunpack.c.l.b16 %v3316
    %v3416 = vunpack.c.h.b16 %v3316
    %v3417 = vunpack.c.l.b16 %v3317
    %v3418 = vpack.c.b16 %v3373, %v3370
    %v3419 = vpack.c.b16 %v3374, %v3371
    %v3420 = vpack.c.b16 %v3375, %v3372
    %v3421 = vpack.c.b16 %v3379, %v3376
    %v3422 = vpack.c.b16 %v3380, %v3377
    %v3423 = vpack.c.b16 %v3381, %v3378
    %v3424 = vpack.c.b16 %v3385, %v3382
    %v3425 = vpack.c.b16 %v3386, %v3383
    %v3426 = vpack.c.b16 %v3387, %v3384
    %v3427 = vpack.c.b16 %v3391, %v3388
    %v3428 = vpack.c.b16 %v3392, %v3389
    %v3429 = vpack.c.b16 %v3393, %v3390
    %v3430 = vpack.c.b16 %v3397, %v3394
    %v3431 = vpack.c.b16 %v3398, %v3395
    %v3432 = vpack.c.b16 %v3399, %v3396
    %v3433 = vpack.c.b16 %v3403, %v3400
    %v3434 = vpack.c.b16 %v3404, %v3401
    %v3435 = vpack.c.b16 %v3405, %v3402
    %v3436 = vpack.c.b16 %v3409, %v3406
    %v3437 = vpack.c.b16 %v3410, %v3407
    %v3438 = vpack.c.b16 %v3411, %v3408
    %v3439 = vpack.c.b16 %v3415, %v3412
    %v3440 = vpack.c.b16 %v3416, %v3413
    %v3441 = vpack.c.b16 %v3417, %v3414
    %3466 = vmatprep.subr.bf16.mxu0 %v3419
    %3467 = vmatpush1.bf16.msra.mxu0 %v3418
    %3468 = vmatprep.subr.bf16.mxu0 %v3422
    %3469 = vmatpush1.bf16.msra.mxu0 %v3421
    %3470 = vmatprep.subr.bf16.mxu0 %v3425
    %3471 = vmatpush1.bf16.msra.mxu0 %v3424
    %3472 = vmatprep.subr.bf16.mxu0 %v3428
    %3473 = vmatpush1.bf16.msra.mxu0 %v3427
    %3474 = vmatprep.subr.bf16.mxu0 %v3431
    %3475 = vmatpush1.bf16.msra.mxu0 %v3430
    %3476 = vmatprep.subr.bf16.mxu0 %v3434
    %3477 = vmatpush1.bf16.msra.mxu0 %v3433
    %3478 = vmatprep.subr.bf16.mxu0 %v3437
    %3479 = vmatpush1.bf16.msra.mxu0 %v3436
    %3480 = vmatprep.subr.bf16.mxu0 %v3440
    %3481 = vmatpush1.bf16.msra.mxu0 %v3439
    %3482 = vmatprep.subr.bf16.mxu0 0
    %3483 = vmatpush1.bf16.msra.mxu0 0
    %3484 = vmatprep.subr.bf16.mxu0 0
    %3485 = vmatpush1.bf16.msra.mxu0 0
    %3486 = vmatprep.subr.bf16.mxu0 0
    %3487 = vmatpush1.bf16.msra.mxu0 0
    %3488 = vmatprep.subr.bf16.mxu0 0
    %3489 = vmatpush1.bf16.msra.mxu0 0
    %3490 = vmatprep.subr.bf16.mxu0 0
    %3491 = vmatpush1.bf16.msra.mxu0 0
    %3492 = vmatprep.subr.bf16.mxu0 0
    %3493 = vmatpush1.bf16.msra.mxu0 0
    %3494 = vmatprep.subr.bf16.mxu0 0
    %3495 = vmatpush1.bf16.msra.mxu0 0
    %3496 = vmatprep.subr.bf16.mxu0 0
    %3497 = vmatpush1.bf16.msra.mxu0 0
    %3498 = vmatprep.mubr.bf16.mxu0 0
    %3499 = vmatmul.mubr.bf16.gmra.mrb[0].mxu0 0
    %v3500 = vpop.f32.mrb[0].mxu0
    %v3501 = vadd.f32 %v3326, %v3500
    %v3502 = vpop.f32.mrb[0].mxu0
    %v3503 = vadd.f32 %v3330, %v3502
    %v3504 = vpop.f32.mrb[0].mxu0
    %v3505 = vpop.f32.mrb[0].mxu0
    %3506 = vdwg.mxu0
    %3507 = vmatprep.subr.bf16.mxu0 0
    %3508 = vmatpush1.bf16.msra.mxu0 %v3420
    %3509 = vmatprep.subr.bf16.mxu0 0
    %3510 = vmatpush1.bf16.msra.mxu0 %v3423
    %3511 = vmatprep.subr.bf16.mxu0 0
    %3512 = vmatpush1.bf16.msra.mxu0 %v3426
    %3513 = vmatprep.subr.bf16.mxu0 0
    %3514 = vmatpush1.bf16.msra.mxu0 %v3429
    %3515 = vmatprep.subr.bf16.mxu0 0
    %3516 = vmatpush1.bf16.msra.mxu0 %v3432
    %3517 = vmatprep.subr.bf16.mxu0 0
    %3518 = vmatpush1.bf16.msra.mxu0 %v3435
    %3519 = vmatprep.subr.bf16.mxu0 0
    %3520 = vmatpush1.bf16.msra.mxu0 %v3438
    %3521 = vmatprep.subr.bf16.mxu0 0
    %3522 = vmatpush1.bf16.msra.mxu0 %v3441
    %3523 = vmatprep.subr.bf16.mxu0 0
    %3524 = vmatpush1.bf16.msra.mxu0 0
    %3525 = vmatprep.subr.bf16.mxu0 0
    %3526 = vmatpush1.bf16.msra.mxu0 0
    %3527 = vmatprep.subr.bf16.mxu0 0
    %3528 = vmatpush1.bf16.msra.mxu0 0
    %3529 = vmatprep.subr.bf16.mxu0 0
    %3530 = vmatpush1.bf16.msra.mxu0 0
    %3531 = vmatprep.subr.bf16.mxu0 0
    %3532 = vmatpush1.bf16.msra.mxu0 0
    %3533 = vmatprep.subr.bf16.mxu0 0
    %3534 = vmatpush1.bf16.msra.mxu0 0
    %3535 = vmatprep.subr.bf16.mxu0 0
    %3536 = vmatpush1.bf16.msra.mxu0 0
    %3537 = vmatprep.subr.bf16.mxu0 0
    %3538 = vmatpush1.bf16.msra.mxu0 0
    %3539 = vmatprep.mubr.bf16.mxu0 0
    %3540 = vmatmul.mubr.bf16.gmra.mrb[0].mxu0 0
    %v3541 = vpop.f32.mrb[0].mxu0
    %v3542 = vadd.f32 %v3334, %v3541
    %v3543 = vpop.f32.mrb[0].mxu0
    %v3544 = vpop.f32.mrb[0].mxu0
    %v3545 = vpop.f32.mrb[0].mxu0
    %3546 = vdwg.mxu0
    %v3547 = vadd.f32 %v3319, %v3501
    %v3548 = vxor.u32 %v3547, 2147483648
    %v3549 = vmul.f32 %v3548, 1.442695
    %v3550 = vpow.pop %v3549
    %v3551 = vadd.f32 %v3550, 1.0
    %v3552 = vrcp.pop %v3551
    %v3553 = vmul.f32 1.0, %v3552
    %v3554 = vadd.f32 %v3320, %v3503
    %v3555 = vxor.u32 %v3554, 2147483648
    %v3556 = vmul.f32 %v3555, 1.442695
    %v3557 = vpow.pop %v3556
    %v3558 = vadd.f32 %v3557, 1.0
    %v3559 = vrcp.pop %v3558
    %v3560 = vmul.f32 1.0, %v3559
    %v3561 = vmul.f32 %v3553, %v3542
    %v3562 = vadd.f32 %v3321, %v3561
    %v3563 = vtanh.pop %v3562
    %v3564 = vsub.f32 1.0, %v3560
    %v3565 = vmul.f32 %v3564, %v3563
    %v3566 = vmul.f32 %v3560, 0.0
    %v3567 = vadd.f32 %v3565, %v3566
    %v3568 = vld [vmem:[%s1228] sm:$0xff]
    %v3569 = vld [vmem:[%s1228 + $0x8] sm:$0xff]
    %v3570 = vld [vmem:[%s1228 + $0x10] sm:$0xff]
    %v3571 = vpack.c.bf16 %v3567, %v3567
    %3572 = vmatprep.subr.bf16.mxu0 %v3419
    %3573 = vmatpush1.bf16.msra.mxu0 %v3418
    %3574 = vmatprep.subr.bf16.mxu0 %v3422
    %3575 = vmatpush1.bf16.msra.mxu0 %v3421
    %3576 = vmatprep.subr.bf16.mxu0 %v3425
    %3577 = vmatpush1.bf16.msra.mxu0 %v3424
    %3578 = vmatprep.subr.bf16.mxu0 %v3428
    %3579 = vmatpush1.bf16.msra.mxu0 %v3427
    %3580 = vmatprep.subr.bf16.mxu0 %v3431
    %3581 = vmatpush1.bf16.msra.mxu0 %v3430
    %3582 = vmatprep.subr.bf16.mxu0 %v3434
    %3583 = vmatpush1.bf16.msra.mxu0 %v3433
    %3584 = vmatprep.subr.bf16.mxu0 %v3437
    %3585 = vmatpush1.bf16.msra.mxu0 %v3436
    %3586 = vmatprep.subr.bf16.mxu0 %v3440
    %3587 = vmatpush1.bf16.msra.mxu0 %v3439
    %3588 = vmatprep.subr.bf16.mxu0 0
    %3589 = vmatpush1.bf16.msra.mxu0 0
    %3590 = vmatprep.subr.bf16.mxu0 0
    %3591 = vmatpush1.bf16.msra.mxu0 0
    %3592 = vmatprep.subr.bf16.mxu0 0
    %3593 = vmatpush1.bf16.msra.mxu0 0
    %3594 = vmatprep.subr.bf16.mxu0 0
    %3595 = vmatpush1.bf16.msra.mxu0 0
    %3596 = vmatprep.subr.bf16.mxu0 0
    %3597 = vmatpush1.bf16.msra.mxu0 0
    %3598 = vmatprep.subr.bf16.mxu0 0
    %3599 = vmatpush1.bf16.msra.mxu0 0
    %3600 = vmatprep.subr.bf16.mxu0 0
    %3601 = vmatpush1.bf16.msra.mxu0 0
    %3602 = vmatprep.subr.bf16.mxu0 0
    %3603 = vmatpush1.bf16.msra.mxu0 0
    %3604 = vmatprep.mubr.bf16.mxu0 0
    %3605 = vmatmul.mubr.bf16.gmra.mrb[0].mxu0 %v3571
    %v3606 = vpop.f32.mrb[0].mxu0
    %v3607 = vadd.f32 %v3326, %v3606
    %v3608 = vpop.f32.mrb[0].mxu0
    %v3609 = vadd.f32 %v3330, %v3608
    %v3610 = vpop.f32.mrb[0].mxu0
    %v3611 = vpop.f32.mrb[0].mxu0
    %3612 = vdwg.mxu0
    %3613 = vmatprep.subr.bf16.mxu0 0
    %3614 = vmatpush1.bf16.msra.mxu0 %v3420
    %3615 = vmatprep.subr.bf16.mxu0 0
    %3616 = vmatpush1.bf16.msra.mxu0 %v3423
    %3617 = vmatprep.subr.bf16.mxu0 0
    %3618 = vmatpush1.bf16.msra.mxu0 %v3426
    %3619 = vmatprep.subr.bf16.mxu0 0
    %3620 = vmatpush1.bf16.msra.mxu0 %v3429
    %3621 = vmatprep.subr.bf16.mxu0 0
    %3622 = vmatpush1.bf16.msra.mxu0 %v3432
    %3623 = vmatprep.subr.bf16.mxu0 0
    %3624 = vmatpush1.bf16.msra.mxu0 %v3435
    %3625 = vmatprep.subr.bf16.mxu0 0
    %3626 = vmatpush1.bf16.msra.mxu0 %v3438
    %3627 = vmatprep.subr.bf16.mxu0 0
    %3628 = vmatpush1.bf16.msra.mxu0 %v3441
    %3629 = vmatprep.subr.bf16.mxu0 0
    %3630 = vmatpush1.bf16.msra.mxu0 0
    %3631 = vmatprep.subr.bf16.mxu0 0
    %3632 = vmatpush1.bf16.msra.mxu0 0
    %3633 = vmatprep.subr.bf16.mxu0 0
    %3634 = vmatpush1.bf16.msra.mxu0 0
    %3635 = vmatprep.subr.bf16.mxu0 0
    %3636 = vmatpush1.bf16.msra.mxu0 0
    %3637 = vmatprep.subr.bf16.mxu0 0
    %3638 = vmatpush1.bf16.msra.mxu0 0
    %3639 = vmatprep.subr.bf16.mxu0 0
    %3640 = vmatpush1.bf16.msra.mxu0 0
    %3641 = vmatprep.subr.bf16.mxu0 0
    %3642 = vmatpush1.bf16.msra.mxu0 0
    %3643 = vmatprep.subr.bf16.mxu0 0
    %3644 = vmatpush1.bf16.msra.mxu0 0
    %3645 = vmatprep.mubr.bf16.mxu0 0
    %3646 = vmatmul.mubr.bf16.gmra.mrb[0].mxu0 %v3571
    %v3647 = vpop.f32.mrb[0].mxu0
    %v3648 = vadd.f32 %v3334, %v3647
    %v3649 = vpop.f32.mrb[0].mxu0
    %v3650 = vpop.f32.mrb[0].mxu0
    %v3651 = vpop.f32.mrb[0].mxu0
    %3652 = vdwg.mxu0
    %v3653 = vadd.f32 %v3568, %v3607
    %v3654 = vxor.u32 %v3653, 2147483648
    %v3655 = vmul.f32 %v3654, 1.442695
    %v3656 = vpow.pop %v3655
    %v3657 = vadd.f32 %v3656, 1.0
    %v3658 = vrcp.pop %v3657
    %v3659 = vmul.f32 1.0, %v3658
    %v3660 = vadd.f32 %v3569, %v3609
    %v3661 = vxor.u32 %v3660, 2147483648
    %v3662 = vmul.f32 %v3661, 1.442695
    %v3663 = vpow.pop %v3662
    %v3664 = vadd.f32 %v3663, 1.0
    %v3665 = vrcp.pop %v3664
    %v3666 = vmul.f32 1.0, %v3665
    %v3667 = vmul.f32 %v3659, %v3648
    %v3668 = vadd.f32 %v3570, %v3667
    %v3669 = vtanh.pop %v3668
    %v3670 = vsub.f32 1.0, %v3666
    %v3671 = vmul.f32 %v3670, %v3669
    %v3672 = vmul.f32 %v3666, %v3567
    %v3673 = vadd.f32 %v3671, %v3672
    %v3674 = vld [vmem:[%s1454] sm:$0xff]
    %v3675 = vld [vmem:[%s1454 + $0x8] sm:$0xff]
    %v3676 = vld [vmem:[%s1454 + $0x10] sm:$0xff]
    %v3677 = vpack.c.bf16 %v3673, %v3673
    %3678 = vmatprep.subr.bf16.mxu0 %v3419
    %3679 = vmatpush1.bf16.msra.mxu0 %v3418
    %3680 = vmatprep.subr.bf16.mxu0 %v3422
    %3681 = vmatpush1.bf16.msra.mxu0 %v3421
    %3682 = vmatprep.subr.bf16.mxu0 %v3425
    %3683 = vmatpush1.bf16.msra.mxu0 %v3424
    %3684 = vmatprep.subr.bf16.mxu0 %v3428
    %3685 = vmatpush1.bf16.msra.mxu0 %v3427
    %3686 = vmatprep.subr.bf16.mxu0 %v3431
    %3687 = vmatpush1.bf16.msra.mxu0 %v3430
    %3688 = vmatprep.subr.bf16.mxu0 %v3434
    %3689 = vmatpush1.bf16.msra.mxu0 %v3433
    %3690 = vmatprep.subr.bf16.mxu0 %v3437
    %3691 = vmatpush1.bf16.msra.mxu0 %v3436
    %3692 = vmatprep.subr.bf16.mxu0 %v3440
    %3693 = vmatpush1.bf16.msra.mxu0 %v3439
    %3694 = vmatprep.subr.bf16.mxu0 0
    %3695 = vmatpush1.bf16.msra.mxu0 0
    %3696 = vmatprep.subr.bf16.mxu0 0
    %3697 = vmatpush1.bf16.msra.mxu0 0
    %3698 = vmatprep.subr.bf16.mxu0 0
    %3699 = vmatpush1.bf16.msra.mxu0 0
    %3700 = vmatprep.subr.bf16.mxu0 0
    %3701 = vmatpush1.bf16.msra.mxu0 0
    %3702 = vmatprep.subr.bf16.mxu0 0
    %3703 = vmatpush1.bf16.msra.mxu0 0
    %3704 = vmatprep.subr.bf16.mxu0 0
    %3705 = vmatpush1.bf16.msra.mxu0 0
    %3706 = vmatprep.subr.bf16.mxu0 0
    %3707 = vmatpush1.bf16.msra.mxu0 0
    %3708 = vmatprep.subr.bf16.mxu0 0
    %3709 = vmatpush1.bf16.msra.mxu0 0
    %3710 = vmatprep.mubr.bf16.mxu0 0
    %3711 = vmatmul.mubr.bf16.gmra.mrb[0].mxu0 %v3677
    %v3712 = vpop.f32.mrb[0].mxu0
    %v3713 = vadd.f32 %v3326, %v3712
    %v3714 = vpop.f32.mrb[0].mxu0
    %v3715 = vadd.f32 %v3330, %v3714
    %v3716 = vpop.f32.mrb[0].mxu0
    %v3717 = vpop.f32.mrb[0].mxu0
    %3718 = vdwg.mxu0
    %3719 = vmatprep.subr.bf16.mxu0 0
    %3720 = vmatpush1.bf16.msra.mxu0 %v3420
    %3721 = vmatprep.subr.bf16.mxu0 0
    %3722 = vmatpush1.bf16.msra.mxu0 %v3423
    %3723 = vmatprep.subr.bf16.mxu0 0
    %3724 = vmatpush1.bf16.msra.mxu0 %v3426
    %3725 = vmatprep.subr.bf16.mxu0 0
    %3726 = vmatpush1.bf16.msra.mxu0 %v3429
    %3727 = vmatprep.subr.bf16.mxu0 0
    %3728 = vmatpush1.bf16.msra.mxu0 %v3432
    %3729 = vmatprep.subr.bf16.mxu0 0
    %3730 = vmatpush1.bf16.msra.mxu0 %v3435
    %3731 = vmatprep.subr.bf16.mxu0 0
    %3732 = vmatpush1.bf16.msra.mxu0 %v3438
    %3733 = vmatprep.subr.bf16.mxu0 0
    %3734 = vmatpush1.bf16.msra.mxu0 %v3441
    %3735 = vmatprep.subr.bf16.mxu0 0
    %3736 = vmatpush1.bf16.msra.mxu0 0
    %3737 = vmatprep.subr.bf16.mxu0 0
    %3738 = vmatpush1.bf16.msra.mxu0 0
    %3739 = vmatprep.subr.bf16.mxu0 0
    %3740 = vmatpush1.bf16.msra.mxu0 0
    %3741 = vmatprep.subr.bf16.mxu0 0
    %3742 = vmatpush1.bf16.msra.mxu0 0
    %3743 = vmatprep.subr.bf16.mxu0 0
    %3744 = vmatpush1.bf16.msra.mxu0 0
    %3745 = vmatprep.subr.bf16.mxu0 0
    %3746 = vmatpush1.bf16.msra.mxu0 0
    %3747 = vmatprep.subr.bf16.mxu0 0
    %3748 = vmatpush1.bf16.msra.mxu0 0
    %3749 = vmatprep.subr.bf16.mxu0 0
    %3750 = vmatpush1.bf16.msra.mxu0 0
    %3751 = vmatprep.mubr.bf16.mxu0 0
    %3752 = vmatmul.mubr.bf16.gmra.mrb[0].mxu0 %v3677
    %v3753 = vpop.f32.mrb[0].mxu0
    %v3754 = vadd.f32 %v3334, %v3753
    %v3755 = vpop.f32.mrb[0].mxu0
    %v3756 = vpop.f32.mrb[0].mxu0
    %v3757 = vpop.f32.mrb[0].mxu0
    %3758 = vdwg.mxu0
    %v3759 = vadd.f32 %v3674, %v3713
    %v3760 = vxor.u32 %v3759, 2147483648
    %v3761 = vmul.f32 %v3760, 1.442695
    %v3762 = vpow.pop %v3761
    %v3763 = vadd.f32 %v3762, 1.0
    %v3764 = vrcp.pop %v3763
    %v3765 = vmul.f32 1.0, %v3764
    %v3766 = vadd.f32 %v3675, %v3715
    %v3767 = vxor.u32 %v3766, 2147483648
    %v3768 = vmul.f32 %v3767, 1.442695
    %v3769 = vpow.pop %v3768
    %v3770 = vadd.f32 %v3769, 1.0
    %v3771 = vrcp.pop %v3770
    %v3772 = vmul.f32 1.0, %v3771
    %v3773 = vmul.f32 %v3765, %v3754
    %v3774 = vadd.f32 %v3676, %v3773
    %v3775 = vtanh.pop %v3774
    %v3776 = vsub.f32 1.0, %v3772
    %v3777 = vmul.f32 %v3776, %v3775
    %v3778 = vmul.f32 %v3772, %v3673
    %v3779 = vadd.f32 %v3777, %v3778
    %v3780 = vld [vmem:[%s1680] sm:$0xff]
    %v3781 = vld [vmem:[%s1680 + $0x8] sm:$0xff]
    %v3782 = vld [vmem:[%s1680 + $0x10] sm:$0xff]
    %v3783 = vpack.c.bf16 %v3779, %v3779
    %3784 = vmatprep.subr.bf16.mxu0 %v3419
    %3785 = vmatpush1.bf16.msra.mxu0 %v3418
    %3786 = vmatprep.subr.bf16.mxu0 %v3422
    %3787 = vmatpush1.bf16.msra.mxu0 %v3421
    %3788 = vmatprep.subr.bf16.mxu0 %v3425
    %3789 = vmatpush1.bf16.msra.mxu0 %v3424
    %3790 = vmatprep.subr.bf16.mxu0 %v3428
    %3791 = vmatpush1.bf16.msra.mxu0 %v3427
    %3792 = vmatprep.subr.bf16.mxu0 %v3431
    %3793 = vmatpush1.bf16.msra.mxu0 %v3430
    %3794 = vmatprep.subr.bf16.mxu0 %v3434
    %3795 = vmatpush1.bf16.msra.mxu0 %v3433
    %3796 = vmatprep.subr.bf16.mxu0 %v3437
    %3797 = vmatpush1.bf16.msra.mxu0 %v3436
    %3798 = vmatprep.subr.bf16.mxu0 %v3440
    %3799 = vmatpush1.bf16.msra.mxu0 %v3439
    %3800 = vmatprep.subr.bf16.mxu0 0
    %3801 = vmatpush1.bf16.msra.mxu0 0
    %3802 = vmatprep.subr.bf16.mxu0 0
    %3803 = vmatpush1.bf16.msra.mxu0 0
    %3804 = vmatprep.subr.bf16.mxu0 0
    %3805 = vmatpush1.bf16.msra.mxu0 0
    %3806 = vmatprep.subr.bf16.mxu0 0
    %3807 = vmatpush1.bf16.msra.mxu0 0
    %3808 = vmatprep.subr.bf16.mxu0 0
    %3809 = vmatpush1.bf16.msra.mxu0 0
    %3810 = vmatprep.subr.bf16.mxu0 0
    %3811 = vmatpush1.bf16.msra.mxu0 0
    %3812 = vmatprep.subr.bf16.mxu0 0
    %3813 = vmatpush1.bf16.msra.mxu0 0
    %3814 = vmatprep.subr.bf16.mxu0 0
    %3815 = vmatpush1.bf16.msra.mxu0 0
    %3816 = vmatprep.mubr.bf16.mxu0 0
    %3817 = vmatmul.mubr.bf16.gmra.mrb[0].mxu0 %v3783
    %v3818 = vpop.f32.mrb[0].mxu0
    %v3819 = vadd.f32 %v3326, %v3818
    %v3820 = vpop.f32.mrb[0].mxu0
    %v3821 = vadd.f32 %v3330, %v3820
    %v3822 = vpop.f32.mrb[0].mxu0
    %v3823 = vpop.f32.mrb[0].mxu0
    %3824 = vdwg.mxu0
    %3825 = vmatprep.subr.bf16.mxu0 0
    %3826 = vmatpush1.bf16.msra.mxu0 %v3420
    %3827 = vmatprep.subr.bf16.mxu0 0
    %3828 = vmatpush1.bf16.msra.mxu0 %v3423
    %3829 = vmatprep.subr.bf16.mxu0 0
    %3830 = vmatpush1.bf16.msra.mxu0 %v3426
    %3831 = vmatprep.subr.bf16.mxu0 0
    %3832 = vmatpush1.bf16.msra.mxu0 %v3429
    %3833 = vmatprep.subr.bf16.mxu0 0
    %3834 = vmatpush1.bf16.msra.mxu0 %v3432
    %3835 = vmatprep.subr.bf16.mxu0 0
    %3836 = vmatpush1.bf16.msra.mxu0 %v3435
    %3837 = vmatprep.subr.bf16.mxu0 0
    %3838 = vmatpush1.bf16.msra.mxu0 %v3438
    %3839 = vmatprep.subr.bf16.mxu0 0
    %3840 = vmatpush1.bf16.msra.mxu0 %v3441
    %3841 = vmatprep.subr.bf16.mxu0 0
    %3842 = vmatpush1.bf16.msra.mxu0 0
    %3843 = vmatprep.subr.bf16.mxu0 0
    %3844 = vmatpush1.bf16.msra.mxu0 0
    %3845 = vmatprep.subr.bf16.mxu0 0
    %3846 = vmatpush1.bf16.msra.mxu0 0
    %3847 = vmatprep.subr.bf16.mxu0 0
    %3848 = vmatpush1.bf16.msra.mxu0 0
    %3849 = vmatprep.subr.bf16.mxu0 0
    %3850 = vmatpush1.bf16.msra.mxu0 0
    %3851 = vmatprep.subr.bf16.mxu0 0
    %3852 = vmatpush1.bf16.msra.mxu0 0
    %3853 = vmatprep.subr.bf16.mxu0 0
    %3854 = vmatpush1.bf16.msra.mxu0 0
    %3855 = vmatprep.subr.bf16.mxu0 0
    %3856 = vmatpush1.bf16.msra.mxu0 0
    %3857 = vmatprep.mubr.bf16.mxu0 0
    %3858 = vmatmul.mubr.bf16.gmra.mrb[0].mxu0 %v3783
    %v3859 = vpop.f32.mrb[0].mxu0
    %v3860 = vadd.f32 %v3334, %v3859
    %v3861 = vpop.f32.mrb[0].mxu0
    %v3862 = vpop.f32.mrb[0].mxu0
    %v3863 = vpop.f32.mrb[0].mxu0
    %3864 = vdwg.mxu0
    %v3865 = vadd.f32 %v3780, %v3819
    %v3866 = vxor.u32 %v3865, 2147483648
    %v3867 = vmul.f32 %v3866, 1.442695
    %v3868 = vpow.pop %v3867
    %v3869 = vadd.f32 %v3868, 1.0
    %v3870 = vrcp.pop %v3869
    %v3871 = vmul.f32 1.0, %v3870
    %v3872 = vadd.f32 %v3781, %v3821
    %v3873 = vxor.u32 %v3872, 2147483648
    %v3874 = vmul.f32 %v3873, 1.442695
    %v3875 = vpow.pop %v3874
    %v3876 = vadd.f32 %v3875, 1.0
    %v3877 = vrcp.pop %v3876
    %v3878 = vmul.f32 1.0, %v3877
    %v3879 = vmul.f32 %v3871, %v3860
    %v3880 = vadd.f32 %v3782, %v3879
    %v3881 = vtanh.pop %v3880
    %v3882 = vsub.f32 1.0, %v3878
    %v3883 = vmul.f32 %v3882, %v3881
    %v3884 = vmul.f32 %v3878, %v3779
    %v3885 = vadd.f32 %v3883, %v3884
    %v3886 = vld [vmem:[%s1686] sm:$0xff]
    %v3887 = vld [vmem:[%s1686 + $0x8] sm:$0xff]
    %v3888 = vld [vmem:[%s1686 + $0x10] sm:$0xff]
    %v3889 = vpack.c.bf16 %v3885, %v3885
    %3890 = vmatprep.subr.bf16.mxu0 %v3419
    %3891 = vmatpush1.bf16.msra.mxu0 %v3418
    %3892 = vmatprep.subr.bf16.mxu0 %v3422
    %3893 = vmatpush1.bf16.msra.mxu0 %v3421
    %3894 = vmatprep.subr.bf16.mxu0 %v3425
    %3895 = vmatpush1.bf16.msra.mxu0 %v3424
    %3896 = vmatprep.subr.bf16.mxu0 %v3428
    %3897 = vmatpush1.bf16.msra.mxu0 %v3427
    %3898 = vmatprep.subr.bf16.mxu0 %v3431
    %3899 = vmatpush1.bf16.msra.mxu0 %v3430
    %3900 = vmatprep.subr.bf16.mxu0 %v3434
    %3901 = vmatpush1.bf16.msra.mxu0 %v3433
    %3902 = vmatprep.subr.bf16.mxu0 %v3437
    %3903 = vmatpush1.bf16.msra.mxu0 %v3436
    %3904 = vmatprep.subr.bf16.mxu0 %v3440
    %3905 = vmatpush1.bf16.msra.mxu0 %v3439
    %3906 = vmatprep.subr.bf16.mxu0 0
    %3907 = vmatpush1.bf16.msra.mxu0 0
    %3908 = vmatprep.subr.bf16.mxu0 0
    %3909 = vmatpush1.bf16.msra.mxu0 0
    %3910 = vmatprep.subr.bf16.mxu0 0
    %3911 = vmatpush1.bf16.msra.mxu0 0
    %3912 = vmatprep.subr.bf16.mxu0 0
    %3913 = vmatpush1.bf16.msra.mxu0 0
    %3914 = vmatprep.subr.bf16.mxu0 0
    %3915 = vmatpush1.bf16.msra.mxu0 0
    %3916 = vmatprep.subr.bf16.mxu0 0
    %3917 = vmatpush1.bf16.msra.mxu0 0
    %3918 = vmatprep.subr.bf16.mxu0 0
    %3919 = vmatpush1.bf16.msra.mxu0 0
    %3920 = vmatprep.subr.bf16.mxu0 0
    %3921 = vmatpush1.bf16.msra.mxu0 0
    %3922 = vmatprep.mubr.bf16.mxu0 0
    %3923 = vmatmul.mubr.bf16.gmra.mrb[0].mxu0 %v3889
    %v3924 = vpop.f32.mrb[0].mxu0
    %v3925 = vadd.f32 %v3326, %v3924
    %v3926 = vpop.f32.mrb[0].mxu0
    %v3927 = vadd.f32 %v3330, %v3926
    %v3928 = vpop.f32.mrb[0].mxu0
    %v3929 = vpop.f32.mrb[0].mxu0
    %3930 = vdwg.mxu0
    %3931 = vmatprep.subr.bf16.mxu0 0
    %3932 = vmatpush1.bf16.msra.mxu0 %v3420
    %3933 = vmatprep.subr.bf16.mxu0 0
    %3934 = vmatpush1.bf16.msra.mxu0 %v3423
    %3935 = vmatprep.subr.bf16.mxu0 0
    %3936 = vmatpush1.bf16.msra.mxu0 %v3426
    %3937 = vmatprep.subr.bf16.mxu0 0
    %3938 = vmatpush1.bf16.msra.mxu0 %v3429
    %3939 = vmatprep.subr.bf16.mxu0 0
    %3940 = vmatpush1.bf16.msra.mxu0 %v3432
    %3941 = vmatprep.subr.bf16.mxu0 0
    %3942 = vmatpush1.bf16.msra.mxu0 %v3435
    %3943 = vmatprep.subr.bf16.mxu0 0
    %3944 = vmatpush1.bf16.msra.mxu0 %v3438
    %3945 = vmatprep.subr.bf16.mxu0 0
    %3946 = vmatpush1.bf16.msra.mxu0 %v3441
    %3947 = vmatprep.subr.bf16.mxu0 0
    %3948 = vmatpush1.bf16.msra.mxu0 0
    %3949 = vmatprep.subr.bf16.mxu0 0
    %3950 = vmatpush1.bf16.msra.mxu0 0
    %3951 = vmatprep.subr.bf16.mxu0 0
    %3952 = vmatpush1.bf16.msra.mxu0 0
    %3953 = vmatprep.subr.bf16.mxu0 0
    %3954 = vmatpush1.bf16.msra.mxu0 0
    %3955 = vmatprep.subr.bf16.mxu0 0
    %3956 = vmatpush1.bf16.msra.mxu0 0
    %3957 = vmatprep.subr.bf16.mxu0 0
    %3958 = vmatpush1.bf16.msra.mxu0 0
    %3959 = vmatprep.subr.bf16.mxu0 0
    %3960 = vmatpush1.bf16.msra.mxu0 0
    %3961 = vmatprep.subr.bf16.mxu0 0
    %3962 = vmatpush1.bf16.msra.mxu0 0
    %3963 = vmatprep.mubr.bf16.mxu0 0
    %3964 = vmatmul.mubr.bf16.gmra.mrb[0].mxu0 %v3889
    %v3965 = vpop.f32.mrb[0].mxu0
    %v3966 = vadd.f32 %v3334, %v3965
    %v3967 = vpop.f32.mrb[0].mxu0
    %v3968 = vpop.f32.mrb[0].mxu0
    %v3969 = vpop.f32.mrb[0].mxu0
    %3970 = vdwg.mxu0
    %v3971 = vadd.f32 %v3886, %v3925
    %v3972 = vxor.u32 %v3971, 2147483648
    %v3973 = vmul.f32 %v3972, 1.442695
    %v3974 = vpow.pop %v3973
    %v3975 = vadd.f32 %v3974, 1.0
    %v3976 = vrcp.pop %v3975
    %v3977 = vmul.f32 1.0, %v3976
    %v3978 = vadd.f32 %v3887, %v3927
    %v3979 = vxor.u32 %v3978, 2147483648
    %v3980 = vmul.f32 %v3979, 1.442695
    %v3981 = vpow.pop %v3980
    %v3982 = vadd.f32 %v3981, 1.0
    %v3983 = vrcp.pop %v3982
    %v3984 = vmul.f32 1.0, %v3983
    %v3985 = vmul.f32 %v3977, %v3966
    %v3986 = vadd.f32 %v3888, %v3985
    %v3987 = vtanh.pop %v3986
    %v3988 = vsub.f32 1.0, %v3984
    %v3989 = vmul.f32 %v3988, %v3987
    %v3990 = vmul.f32 %v3984, %v3885
    %v3991 = vadd.f32 %v3989, %v3990
    %v3992 = vld [vmem:[%s1460] sm:$0xff]
    %v3993 = vld [vmem:[%s1460 + $0x8] sm:$0xff]
    %v3994 = vld [vmem:[%s1460 + $0x10] sm:$0xff]
    %v3995 = vpack.c.bf16 %v3991, %v3991
    %3996 = vmatprep.subr.bf16.mxu0 %v3419
    %3997 = vmatpush1.bf16.msra.mxu0 %v3418
    %3998 = vmatprep.subr.bf16.mxu0 %v3422
    %3999 = vmatpush1.bf16.msra.mxu0 %v3421
    %4000 = vmatprep.subr.bf16.mxu0 %v3425
    %4001 = vmatpush1.bf16.msra.mxu0 %v3424
    %4002 = vmatprep.subr.bf16.mxu0 %v3428
    %4003 = vmatpush1.bf16.msra.mxu0 %v3427
    %4004 = vmatprep.subr.bf16.mxu0 %v3431
    %4005 = vmatpush1.bf16.msra.mxu0 %v3430
    %4006 = vmatprep.subr.bf16.mxu0 %v3434
    %4007 = vmatpush1.bf16.msra.mxu0 %v3433
    %4008 = vmatprep.subr.bf16.mxu0 %v3437
    %4009 = vmatpush1.bf16.msra.mxu0 %v3436
    %4010 = vmatprep.subr.bf16.mxu0 %v3440
    %4011 = vmatpush1.bf16.msra.mxu0 %v3439
    %4012 = vmatprep.subr.bf16.mxu0 0
    %4013 = vmatpush1.bf16.msra.mxu0 0
    %4014 = vmatprep.subr.bf16.mxu0 0
    %4015 = vmatpush1.bf16.msra.mxu0 0
    %4016 = vmatprep.subr.bf16.mxu0 0
    %4017 = vmatpush1.bf16.msra.mxu0 0
    %4018 = vmatprep.subr.bf16.mxu0 0
    %4019 = vmatpush1.bf16.msra.mxu0 0
    %4020 = vmatprep.subr.bf16.mxu0 0
    %4021 = vmatpush1.bf16.msra.mxu0 0
    %4022 = vmatprep.subr.bf16.mxu0 0
    %4023 = vmatpush1.bf16.msra.mxu0 0
    %4024 = vmatprep.subr.bf16.mxu0 0
    %4025 = vmatpush1.bf16.msra.mxu0 0
    %4026 = vmatprep.subr.bf16.mxu0 0
    %4027 = vmatpush1.bf16.msra.mxu0 0
    %4028 = vmatprep.mubr.bf16.mxu0 0
    %4029 = vmatmul.mubr.bf16.gmra.mrb[0].mxu0 %v3995
    %v4030 = vpop.f32.mrb[0].mxu0
    %v4031 = vadd.f32 %v3326, %v4030
    %v4032 = vpop.f32.mrb[0].mxu0
    %v4033 = vadd.f32 %v3330, %v4032
    %v4034 = vpop.f32.mrb[0].mxu0
    %v4035 = vpop.f32.mrb[0].mxu0
    %4036 = vdwg.mxu0
    %4037 = vmatprep.subr.bf16.mxu0 0
    %4038 = vmatpush1.bf16.msra.mxu0 %v3420
    %4039 = vmatprep.subr.bf16.mxu0 0
    %4040 = vmatpush1.bf16.msra.mxu0 %v3423
    %4041 = vmatprep.subr.bf16.mxu0 0
    %4042 = vmatpush1.bf16.msra.mxu0 %v3426
    %4043 = vmatprep.subr.bf16.mxu0 0
    %4044 = vmatpush1.bf16.msra.mxu0 %v3429
    %4045 = vmatprep.subr.bf16.mxu0 0
    %4046 = vmatpush1.bf16.msra.mxu0 %v3432
    %4047 = vmatprep.subr.bf16.mxu0 0
    %4048 = vmatpush1.bf16.msra.mxu0 %v3435
    %4049 = vmatprep.subr.bf16.mxu0 0
    %4050 = vmatpush1.bf16.msra.mxu0 %v3438
    %4051 = vmatprep.subr.bf16.mxu0 0
    %4052 = vmatpush1.bf16.msra.mxu0 %v3441
    %4053 = vmatprep.subr.bf16.mxu0 0
    %4054 = vmatpush1.bf16.msra.mxu0 0
    %4055 = vmatprep.subr.bf16.mxu0 0
    %4056 = vmatpush1.bf16.msra.mxu0 0
    %4057 = vmatprep.subr.bf16.mxu0 0
    %4058 = vmatpush1.bf16.msra.mxu0 0
    %4059 = vmatprep.subr.bf16.mxu0 0
    %4060 = vmatpush1.bf16.msra.mxu0 0
    %4061 = vmatprep.subr.bf16.mxu0 0
    %4062 = vmatpush1.bf16.msra.mxu0 0
    %4063 = vmatprep.subr.bf16.mxu0 0
    %4064 = vmatpush1.bf16.msra.mxu0 0
    %4065 = vmatprep.subr.bf16.mxu0 0
    %4066 = vmatpush1.bf16.msra.mxu0 0
    %4067 = vmatprep.subr.bf16.mxu0 0
    %4068 = vmatpush1.bf16.msra.mxu0 0
    %4069 = vmatprep.mubr.bf16.mxu0 0
    %4070 = vmatmul.mubr.bf16.gmra.mrb[0].mxu0 %v3995
    %v4071 = vpop.f32.mrb[0].mxu0
    %v4072 = vadd.f32 %v3334, %v4071
    %v4073 = vpop.f32.mrb[0].mxu0
    %v4074 = vpop.f32.mrb[0].mxu0
    %v4075 = vpop.f32.mrb[0].mxu0
    %4076 = vdwg.mxu0
    %v4077 = vadd.f32 %v3992, %v4031
    %v4078 = vxor.u32 %v4077, 2147483648
    %v4079 = vmul.f32 %v4078, 1.442695
    %v4080 = vpow.pop %v4079
    %v4081 = vadd.f32 %v4080, 1.0
    %v4082 = vrcp.pop %v4081
    %v4083 = vmul.f32 1.0, %v4082
    %v4084 = vadd.f32 %v3993, %v4033
    %v4085 = vxor.u32 %v4084, 2147483648
    %v4086 = vmul.f32 %v4085, 1.442695
    %v4087 = vpow.pop %v4086
    %v4088 = vadd.f32 %v4087, 1.0
    %v4089 = vrcp.pop %v4088
    %v4090 = vmul.f32 1.0, %v4089
    %v4091 = vmul.f32 %v4083, %v4072
    %v4092 = vadd.f32 %v3994, %v4091
    %v4093 = vtanh.pop %v4092
    %v4094 = vsub.f32 1.0, %v4090
    %v4095 = vmul.f32 %v4094, %v4093
    %v4096 = vmul.f32 %v4090, %v3991
    %v4097 = vadd.f32 %v4095, %v4096
    %v4098 = vld [vmem:[%s1234] sm:$0xff]
    %v4099 = vld [vmem:[%s1234 + $0x8] sm:$0xff]
    %v4100 = vld [vmem:[%s1234 + $0x10] sm:$0xff]
    %v4101 = vpack.c.bf16 %v4097, %v4097
    %4102 = vmatprep.subr.bf16.mxu0 %v3419
    %4103 = vmatpush1.bf16.msra.mxu0 %v3418
    %4104 = vmatprep.subr.bf16.mxu0 %v3422
    %4105 = vmatpush1.bf16.msra.mxu0 %v3421
    %4106 = vmatprep.subr.bf16.mxu0 %v3425
    %4107 = vmatpush1.bf16.msra.mxu0 %v3424
    %4108 = vmatprep.subr.bf16.mxu0 %v3428
    %4109 = vmatpush1.bf16.msra.mxu0 %v3427
    %4110 = vmatprep.subr.bf16.mxu0 %v3431
    %4111 = vmatpush1.bf16.msra.mxu0 %v3430
    %4112 = vmatprep.subr.bf16.mxu0 %v3434
    %4113 = vmatpush1.bf16.msra.mxu0 %v3433
    %4114 = vmatprep.subr.bf16.mxu0 %v3437
    %4115 = vmatpush1.bf16.msra.mxu0 %v3436
    %4116 = vmatprep.subr.bf16.mxu0 %v3440
    %4117 = vmatpush1.bf16.msra.mxu0 %v3439
    %4118 = vmatprep.subr.bf16.mxu0 0
    %4119 = vmatpush1.bf16.msra.mxu0 0
    %4120 = vmatprep.subr.bf16.mxu0 0
    %4121 = vmatpush1.bf16.msra.mxu0 0
    %4122 = vmatprep.subr.bf16.mxu0 0
    %4123 = vmatpush1.bf16.msra.mxu0 0
    %4124 = vmatprep.subr.bf16.mxu0 0
    %4125 = vmatpush1.bf16.msra.mxu0 0
    %4126 = vmatprep.subr.bf16.mxu0 0
    %4127 = vmatpush1.bf16.msra.mxu0 0
    %4128 = vmatprep.subr.bf16.mxu0 0
    %4129 = vmatpush1.bf16.msra.mxu0 0
    %4130 = vmatprep.subr.bf16.mxu0 0
    %4131 = vmatpush1.bf16.msra.mxu0 0
    %4132 = vmatprep.subr.bf16.mxu0 0
    %4133 = vmatpush1.bf16.msra.mxu0 0
    %4134 = vmatprep.mubr.bf16.mxu0 0
    %4135 = vmatmul.mubr.bf16.gmra.mrb[0].mxu0 %v4101
    %v4136 = vpop.f32.mrb[0].mxu0
    %v4137 = vadd.f32 %v3326, %v4136
    %v4138 = vpop.f32.mrb[0].mxu0
    %v4139 = vadd.f32 %v3330, %v4138
    %v4140 = vpop.f32.mrb[0].mxu0
    %v4141 = vpop.f32.mrb[0].mxu0
    %4142 = vdwg.mxu0
    %4143 = vmatprep.subr.bf16.mxu0 0
    %4144 = vmatpush1.bf16.msra.mxu0 %v3420
    %4145 = vmatprep.subr.bf16.mxu0 0
    %4146 = vmatpush1.bf16.msra.mxu0 %v3423
    %4147 = vmatprep.subr.bf16.mxu0 0
    %4148 = vmatpush1.bf16.msra.mxu0 %v3426
    %4149 = vmatprep.subr.bf16.mxu0 0
    %4150 = vmatpush1.bf16.msra.mxu0 %v3429
    %4151 = vmatprep.subr.bf16.mxu0 0
    %4152 = vmatpush1.bf16.msra.mxu0 %v3432
    %4153 = vmatprep.subr.bf16.mxu0 0
    %4154 = vmatpush1.bf16.msra.mxu0 %v3435
    %4155 = vmatprep.subr.bf16.mxu0 0
    %4156 = vmatpush1.bf16.msra.mxu0 %v3438
    %4157 = vmatprep.subr.bf16.mxu0 0
    %4158 = vmatpush1.bf16.msra.mxu0 %v3441
    %4159 = vmatprep.subr.bf16.mxu0 0
    %4160 = vmatpush1.bf16.msra.mxu0 0
    %4161 = vmatprep.subr.bf16.mxu0 0
    %4162 = vmatpush1.bf16.msra.mxu0 0
    %4163 = vmatprep.subr.bf16.mxu0 0
    %4164 = vmatpush1.bf16.msra.mxu0 0
    %4165 = vmatprep.subr.bf16.mxu0 0
    %4166 = vmatpush1.bf16.msra.mxu0 0
    %4167 = vmatprep.subr.bf16.mxu0 0
    %4168 = vmatpush1.bf16.msra.mxu0 0
    %4169 = vmatprep.subr.bf16.mxu0 0
    %4170 = vmatpush1.bf16.msra.mxu0 0
    %4171 = vmatprep.subr.bf16.mxu0 0
    %4172 = vmatpush1.bf16.msra.mxu0 0
    %4173 = vmatprep.subr.bf16.mxu0 0
    %4174 = vmatpush1.bf16.msra.mxu0 0
    %4175 = vmatprep.mubr.bf16.mxu0 0
    %4176 = vmatmul.mubr.bf16.gmra.mrb[0].mxu0 %v4101
    %v4177 = vpop.f32.mrb[0].mxu0
    %v4178 = vadd.f32 %v3334, %v4177
    %v4179 = vpop.f32.mrb[0].mxu0
    %v4180 = vpop.f32.mrb[0].mxu0
    %v4181 = vpop.f32.mrb[0].mxu0
    %4182 = vdwg.mxu0
    %v4183 = vadd.f32 %v4098, %v4137
    %v4184 = vxor.u32 %v4183, 2147483648
    %v4185 = vmul.f32 %v4184, 1.442695
    %v4186 = vpow.pop %v4185
    %v4187 = vadd.f32 %v4186, 1.0
    %v4188 = vrcp.pop %v4187
    %v4189 = vmul.f32 1.0, %v4188
    %v4190 = vadd.f32 %v4099, %v4139
    %v4191 = vxor.u32 %v4190, 2147483648
    %v4192 = vmul.f32 %v4191, 1.442695
    %v4193 = vpow.pop %v4192
    %v4194 = vadd.f32 %v4193, 1.0
    %v4195 = vrcp.pop %v4194
    %v4196 = vmul.f32 1.0, %v4195
    %v4197 = vmul.f32 %v4189, %v4178
    %v4198 = vadd.f32 %v4100, %v4197
    %v4199 = vtanh.pop %v4198
    %v4200 = vsub.f32 1.0, %v4196
    %v4201 = vmul.f32 %v4200, %v4199
    %v4202 = vmul.f32 %v4196, %v4097
    %v4203 = vadd.f32 %v4201, %v4202
    %v4204 = vld [vmem:[%s722] sm:$0xff]
    %v4205 = vld [vmem:[%s722 + $0x8] sm:$0xff]
    %v4206 = vld [vmem:[%s722 + $0x10] sm:$0xff]
    %v4207 = vpack.c.bf16 %v4203, %v4203
    %4208 = vmatprep.subr.bf16.mxu0 %v3419
    %4209 = vmatpush1.bf16.msra.mxu0 %v3418
    %4210 = vmatprep.subr.bf16.mxu0 %v3422
    %4211 = vmatpush1.bf16.msra.mxu0 %v3421
    %4212 = vmatprep.subr.bf16.mxu0 %v3425
    %4213 = vmatpush1.bf16.msra.mxu0 %v3424
    %4214 = vmatprep.subr.bf16.mxu0 %v3428
    %4215 = vmatpush1.bf16.msra.mxu0 %v3427
    %4216 = vmatprep.subr.bf16.mxu0 %v3431
    %4217 = vmatpush1.bf16.msra.mxu0 %v3430
    %4218 = vmatprep.subr.bf16.mxu0 %v3434
    %4219 = vmatpush1.bf16.msra.mxu0 %v3433
    %4220 = vmatprep.subr.bf16.mxu0 %v3437
    %4221 = vmatpush1.bf16.msra.mxu0 %v3436
    %4222 = vmatprep.subr.bf16.mxu0 %v3440
    %4223 = vmatpush1.bf16.msra.mxu0 %v3439
    %4224 = vmatprep.subr.bf16.mxu0 0
    %4225 = vmatpush1.bf16.msra.mxu0 0
    %4226 = vmatprep.subr.bf16.mxu0 0
    %4227 = vmatpush1.bf16.msra.mxu0 0
    %4228 = vmatprep.subr.bf16.mxu0 0
    %4229 = vmatpush1.bf16.msra.mxu0 0
    %4230 = vmatprep.subr.bf16.mxu0 0
    %4231 = vmatpush1.bf16.msra.mxu0 0
    %4232 = vmatprep.subr.bf16.mxu0 0
    %4233 = vmatpush1.bf16.msra.mxu0 0
    %4234 = vmatprep.subr.bf16.mxu0 0
    %4235 = vmatpush1.bf16.msra.mxu0 0
    %4236 = vmatprep.subr.bf16.mxu0 0
    %4237 = vmatpush1.bf16.msra.mxu0 0
    %4238 = vmatprep.subr.bf16.mxu0 0
    %4239 = vmatpush1.bf16.msra.mxu0 0
    %4240 = vmatprep.mubr.bf16.mxu0 0
    %4241 = vmatmul.mubr.bf16.gmra.mrb[0].mxu0 %v4207
    %v4242 = vpop.f32.mrb[0].mxu0
    %v4243 = vadd.f32 %v3326, %v4242
    %v4244 = vpop.f32.mrb[0].mxu0
    %v4245 = vadd.f32 %v3330, %v4244
    %v4246 = vpop.f32.mrb[0].mxu0
    %v4247 = vpop.f32.mrb[0].mxu0
    %4248 = vdwg.mxu0
    %4249 = vmatprep.subr.bf16.mxu0 0
    %4250 = vmatpush1.bf16.msra.mxu0 %v3420
    %4251 = vmatprep.subr.bf16.mxu0 0
    %4252 = vmatpush1.bf16.msra.mxu0 %v3423
    %4253 = vmatprep.subr.bf16.mxu0 0
    %4254 = vmatpush1.bf16.msra.mxu0 %v3426
    %4255 = vmatprep.subr.bf16.mxu0 0
    %4256 = vmatpush1.bf16.msra.mxu0 %v3429
    %4257 = vmatprep.subr.bf16.mxu0 0
    %4258 = vmatpush1.bf16.msra.mxu0 %v3432
    %4259 = vmatprep.subr.bf16.mxu0 0
    %4260 = vmatpush1.bf16.msra.mxu0 %v3435
    %4261 = vmatprep.subr.bf16.mxu0 0
    %4262 = vmatpush1.bf16.msra.mxu0 %v3438
    %4263 = vmatprep.subr.bf16.mxu0 0
    %4264 = vmatpush1.bf16.msra.mxu0 %v3441
    %4265 = vmatprep.subr.bf16.mxu0 0
    %4266 = vmatpush1.bf16.msra.mxu0 0
    %4267 = vmatprep.subr.bf16.mxu0 0
    %4268 = vmatpush1.bf16.msra.mxu0 0
    %4269 = vmatprep.subr.bf16.mxu0 0
    %4270 = vmatpush1.bf16.msra.mxu0 0
    %4271 = vmatprep.subr.bf16.mxu0 0
    %4272 = vmatpush1.bf16.msra.mxu0 0
    %4273 = vmatprep.subr.bf16.mxu0 0
    %4274 = vmatpush1.bf16.msra.mxu0 0
    %4275 = vmatprep.subr.bf16.mxu0 0
    %4276 = vmatpush1.bf16.msra.mxu0 0
    %4277 = vmatprep.subr.bf16.mxu0 0
    %4278 = vmatpush1.bf16.msra.mxu0 0
    %4279 = vmatprep.subr.bf16.mxu0 0
    %4280 = vmatpush1.bf16.msra.mxu0 0
    %4281 = vmatprep.mubr.bf16.mxu0 0
    %4282 = vmatmul.mubr.bf16.gmra.mrb[0].mxu0 %v4207
    %v4283 = vpop.f32.mrb[0].mxu0
    %v4284 = vadd.f32 %v3334, %v4283
    %v4285 = vpop.f32.mrb[0].mxu0
    %v4286 = vpop.f32.mrb[0].mxu0
    %v4287 = vpop.f32.mrb[0].mxu0
    %4288 = vdwg.mxu0
    %v4289 = vadd.f32 %v4204, %v4243
    %v4290 = vxor.u32 %v4289, 2147483648
    %v4291 = vmul.f32 %v4290, 1.442695
    %v4292 = vpow.pop %v4291
    %v4293 = vadd.f32 %v4292, 1.0
    %v4294 = vrcp.pop %v4293
    %v4295 = vmul.f32 1.0, %v4294
    %v4296 = vadd.f32 %v4205, %v4245
    %v4297 = vxor.u32 %v4296, 2147483648
    %v4298 = vmul.f32 %v4297, 1.442695
    %v4299 = vpow.pop %v4298
    %v4300 = vadd.f32 %v4299, 1.0
    %v4301 = vrcp.pop %v4300
    %v4302 = vmul.f32 1.0, %v4301
    %v4303 = vmul.f32 %v4295, %v4284
    %v4304 = vadd.f32 %v4206, %v4303
    %v4305 = vtanh.pop %v4304
    %v4306 = vsub.f32 1.0, %v4302
    %v4307 = vmul.f32 %v4306, %v4305
    %v4308 = vmul.f32 %v4302, %v4203
    %v4309 = vadd.f32 %v4307, %v4308
    %v4310 = vld [vmem:[%s1224] sm:$0xff]
    %v4311 = vld [vmem:[%s1224 + $0x8] sm:$0xff]
    %v4312 = vpack.c.bf16 %v4310, %v4310
    %v4313 = vpack.c.bf16 %v4311, %v4311
    %v4314 = vld [vmem:[%s11] sm:$0xff]
    %v4315 = vld [vmem:[%s11 + $0x8] sm:$0xf]
    %v4316 = vld [vmem:[%s11 + $0xc] sm:$0xff]
    %v4317 = vld [vmem:[%s11 + $0x14] sm:$0xf]
    %v4318 = vld [vmem:[%s11 + $0x18] sm:$0xff]
    %v4319 = vld [vmem:[%s11 + $0x20] sm:$0xf]
    %v4320 = vld [vmem:[%s11 + $0x24] sm:$0xff]
    %v4321 = vld [vmem:[%s11 + $0x2c] sm:$0xf]
    %v4322 = vld [vmem:[%s11 + $0x30] sm:$0xff]
    %v4323 = vld [vmem:[%s11 + $0x38] sm:$0xf]
    %v4324 = vld [vmem:[%s11 + $0x3c] sm:$0xff]
    %v4325 = vld [vmem:[%s11 + $0x44] sm:$0xf]
    %v4326 = vld [vmem:[%s11 + $0x48] sm:$0xff]
    %v4327 = vld [vmem:[%s11 + $0x50] sm:$0xf]
    %v4328 = vld [vmem:[%s11 + $0x54] sm:$0xff]
    %v4329 = vld [vmem:[%s11 + $0x5c] sm:$0xf]
    %v4330 = vld [vmem:[%s11 + $0x60] sm:$0xff]
    %v4331 = vld [vmem:[%s11 + $0x68] sm:$0xf]
    %v4332 = vld [vmem:[%s11 + $0x6c] sm:$0xff]
    %v4333 = vld [vmem:[%s11 + $0x74] sm:$0xf]
    %v4334 = vld [vmem:[%s11 + $0x78] sm:$0xff]
    %v4335 = vld [vmem:[%s11 + $0x80] sm:$0xf]
    %v4336 = vld [vmem:[%s11 + $0x84] sm:$0xff]
    %v4337 = vld [vmem:[%s11 + $0x8c] sm:$0xf]
    %v4338 = vld [vmem:[%s11 + $0x90] sm:$0xff]
    %v4339 = vld [vmem:[%s11 + $0x98] sm:$0xf]
    %v4340 = vld [vmem:[%s11 + $0x9c] sm:$0xff]
    %v4341 = vld [vmem:[%s11 + $0xa4] sm:$0xf]
    %v4342 = vld [vmem:[%s11 + $0xa8] sm:$0xff]
    %v4343 = vld [vmem:[%s11 + $0xb0] sm:$0xf]
    %v4344 = vld [vmem:[%s11 + $0xb4] sm:$0xff]
    %v4345 = vld [vmem:[%s11 + $0xbc] sm:$0xf]
    %v4346 = vld [vmem:[%s11 + $0xc0] sm:$0xff]
    %v4347 = vld [vmem:[%s11 + $0xc8] sm:$0xf]
    %v4348 = vld [vmem:[%s11 + $0xcc] sm:$0xff]
    %v4349 = vld [vmem:[%s11 + $0xd4] sm:$0xf]
    %v4350 = vld [vmem:[%s11 + $0xd8] sm:$0xff]
    %v4351 = vld [vmem:[%s11 + $0xe0] sm:$0xf]
    %v4352 = vld [vmem:[%s11 + $0xe4] sm:$0xff]
    %v4353 = vld [vmem:[%s11 + $0xec] sm:$0xf]
    %v4354 = vld [vmem:[%s11 + $0xf0] sm:$0xff]
    %v4355 = vld [vmem:[%s11 + $0xf8] sm:$0xf]
    %v4356 = vld [vmem:[%s11 + $0xfc] sm:$0xff]
    %v4357 = vld [vmem:[%s11 + $0x104] sm:$0xf]
    %v4358 = vld [vmem:[%s11 + $0x108] sm:$0xff]
    %v4359 = vld [vmem:[%s11 + $0x110] sm:$0xf]
    %v4360 = vld [vmem:[%s11 + $0x114] sm:$0xff]
    %v4361 = vld [vmem:[%s11 + $0x11c] sm:$0xf]
    %v4362 = vld [vmem:[%s11 + $0x120] sm:$0xff]
    %v4363 = vld [vmem:[%s11 + $0x128] sm:$0xf]
    %v4364 = vld [vmem:[%s11 + $0x12c] sm:$0xff]
    %v4365 = vld [vmem:[%s11 + $0x134] sm:$0xf]
    %v4366 = vld [vmem:[%s11 + $0x138] sm:$0xff]
    %v4367 = vld [vmem:[%s11 + $0x140] sm:$0xf]
    %v4368 = vld [vmem:[%s11 + $0x144] sm:$0xff]
    %v4369 = vld [vmem:[%s11 + $0x14c] sm:$0xf]
    %v4370 = vld [vmem:[%s11 + $0x150] sm:$0xff]
    %v4371 = vld [vmem:[%s11 + $0x158] sm:$0xf]
    %v4372 = vld [vmem:[%s11 + $0x15c] sm:$0xff]
    %v4373 = vld [vmem:[%s11 + $0x164] sm:$0xf]
    %v4374 = vld [vmem:[%s11 + $0x168] sm:$0xff]
    %v4375 = vld [vmem:[%s11 + $0x170] sm:$0xf]
    %v4376 = vld [vmem:[%s11 + $0x174] sm:$0xff]
    %v4377 = vld [vmem:[%s11 + $0x17c] sm:$0xf]
    %v4378 = vld [vmem:[%s12] sm:$0x7]
    %v4380 = vlaneseq
    %v4381 = vshrl.u32 %v4380, 7
    %v4382 = vsub.s32 0, %v4381
    %v4383 = vrot.slane %v4378, %v4382
    %v4384 = vlaneseq
    %v4385 = vshrl.u32 %v4384, 7
    %v4386 = vsub.s32 1, %v4385
    %v4387 = vrot.slane %v4378, %v4386
    %v4388 = vlaneseq
    %v4389 = vshrl.u32 %v4388, 7
    %v4390 = vsub.s32 2, %v4389
    %v4391 = vrot.slane %v4378, %v4390
    %v4459 = vunpack.c.l.b16 %v4314
    %v4460 = vunpack.c.h.b16 %v4314
    %v4461 = vunpack.c.l.b16 %v4315
    %v4462 = vunpack.c.l.b16 %v4316
    %v4463 = vunpack.c.h.b16 %v4316
    %v4464 = vunpack.c.l.b16 %v4317
    %v4465 = vunpack.c.l.b16 %v4318
    %v4466 = vunpack.c.h.b16 %v4318
    %v4467 = vunpack.c.l.b16 %v4319
    %v4468 = vunpack.c.l.b16 %v4320
    %v4469 = vunpack.c.h.b16 %v4320
    %v4470 = vunpack.c.l.b16 %v4321
    %v4471 = vunpack.c.l.b16 %v4322
    %v4472 = vunpack.c.h.b16 %v4322
    %v4473 = vunpack.c.l.b16 %v4323
    %v4474 = vunpack.c.l.b16 %v4324
    %v4475 = vunpack.c.h.b16 %v4324
    %v4476 = vunpack.c.l.b16 %v4325
    %v4477 = vunpack.c.l.b16 %v4326
    %v4478 = vunpack.c.h.b16 %v4326
    %v4479 = vunpack.c.l.b16 %v4327
    %v4480 = vunpack.c.l.b16 %v4328
    %v4481 = vunpack.c.h.b16 %v4328
    %v4482 = vunpack.c.l.b16 %v4329
    %v4483 = vunpack.c.l.b16 %v4330
    %v4484 = vunpack.c.h.b16 %v4330
    %v4485 = vunpack.c.l.b16 %v4331
    %v4486 = vunpack.c.l.b16 %v4332
    %v4487 = vunpack.c.h.b16 %v4332
    %v4488 = vunpack.c.l.b16 %v4333
    %v4489 = vunpack.c.l.b16 %v4334
    %v4490 = vunpack.c.h.b16 %v4334
    %v4491 = vunpack.c.l.b16 %v4335
    %v4492 = vunpack.c.l.b16 %v4336
    %v4493 = vunpack.c.h.b16 %v4336
    %v4494 = vunpack.c.l.b16 %v4337
    %v4495 = vunpack.c.l.b16 %v4338
    %v4496 = vunpack.c.h.b16 %v4338
    %v4497 = vunpack.c.l.b16 %v4339
    %v4498 = vunpack.c.l.b16 %v4340
    %v4499 = vunpack.c.h.b16 %v4340
    %v4500 = vunpack.c.l.b16 %v4341
    %v4501 = vunpack.c.l.b16 %v4342
    %v4502 = vunpack.c.h.b16 %v4342
    %v4503 = vunpack.c.l.b16 %v4343
    %v4504 = vunpack.c.l.b16 %v4344
    %v4505 = vunpack.c.h.b16 %v4344
    %v4506 = vunpack.c.l.b16 %v4345
    %v4507 = vunpack.c.l.b16 %v4346
    %v4508 = vunpack.c.h.b16 %v4346
    %v4509 = vunpack.c.l.b16 %v4347
    %v4510 = vunpack.c.l.b16 %v4348
    %v4511 = vunpack.c.h.b16 %v4348
    %v4512 = vunpack.c.l.b16 %v4349
    %v4513 = vunpack.c.l.b16 %v4350
    %v4514 = vunpack.c.h.b16 %v4350
    %v4515 = vunpack.c.l.b16 %v4351
    %v4516 = vunpack.c.l.b16 %v4352
    %v4517 = vunpack.c.h.b16 %v4352
    %v4518 = vunpack.c.l.b16 %v4353
    %v4519 = vunpack.c.l.b16 %v4354
    %v4520 = vunpack.c.h.b16 %v4354
    %v4521 = vunpack.c.l.b16 %v4355
    %v4522 = vunpack.c.l.b16 %v4356
    %v4523 = vunpack.c.h.b16 %v4356
    %v4524 = vunpack.c.l.b16 %v4357
    %v4525 = vunpack.c.l.b16 %v4358
    %v4526 = vunpack.c.h.b16 %v4358
    %v4527 = vunpack.c.l.b16 %v4359
    %v4528 = vunpack.c.l.b16 %v4360
    %v4529 = vunpack.c.h.b16 %v4360
    %v4530 = vunpack.c.l.b16 %v4361
    %v4531 = vunpack.c.l.b16 %v4362
    %v4532 = vunpack.c.h.b16 %v4362
    %v4533 = vunpack.c.l.b16 %v4363
    %v4534 = vunpack.c.l.b16 %v4364
    %v4535 = vunpack.c.h.b16 %v4364
    %v4536 = vunpack.c.l.b16 %v4365
    %v4537 = vunpack.c.l.b16 %v4366
    %v4538 = vunpack.c.h.b16 %v4366
    %v4539 = vunpack.c.l.b16 %v4367
    %v4540 = vunpack.c.l.b16 %v4368
    %v4541 = vunpack.c.h.b16 %v4368
    %v4542 = vunpack.c.l.b16 %v4369
    %v4543 = vunpack.c.l.b16 %v4370
    %v4544 = vunpack.c.h.b16 %v4370
    %v4545 = vunpack.c.l.b16 %v4371
    %v4546 = vunpack.c.l.b16 %v4372
    %v4547 = vunpack.c.h.b16 %v4372
    %v4548 = vunpack.c.l.b16 %v4373
    %v4549 = vunpack.c.l.b16 %v4374
    %v4550 = vunpack.c.h.b16 %v4374
    %v4551 = vunpack.c.l.b16 %v4375
    %v4552 = vunpack.c.l.b16 %v4376
    %v4553 = vunpack.c.h.b16 %v4376
    %v4554 = vunpack.c.l.b16 %v4377
    %v4555 = vpack.c.b16 %v4462, %v4459
    %v4556 = vpack.c.b16 %v4463, %v4460
    %v4557 = vpack.c.b16 %v4464, %v4461
    %v4558 = vpack.c.b16 %v4468, %v4465
    %v4559 = vpack.c.b16 %v4469, %v4466
    %v4560 = vpack.c.b16 %v4470, %v4467
    %v4561 = vpack.c.b16 %v4474, %v4471
    %v4562 = vpack.c.b16 %v4475, %v4472
    %v4563 = vpack.c.b16 %v4476, %v4473
    %v4564 = vpack.c.b16 %v4480, %v4477
    %v4565 = vpack.c.b16 %v4481, %v4478
    %v4566 = vpack.c.b16 %v4482, %v4479
    %v4567 = vpack.c.b16 %v4486, %v4483
    %v4568 = vpack.c.b16 %v4487, %v4484
    %v4569 = vpack.c.b16 %v4488, %v4485
    %v4570 = vpack.c.b16 %v4492, %v4489
    %v4571 = vpack.c.b16 %v4493, %v4490
    %v4572 = vpack.c.b16 %v4494, %v4491
    %v4573 = vpack.c.b16 %v4498, %v4495
    %v4574 = vpack.c.b16 %v4499, %v4496
    %v4575 = vpack.c.b16 %v4500, %v4497
    %v4576 = vpack.c.b16 %v4504, %v4501
    %v4577 = vpack.c.b16 %v4505, %v4502
    %v4578 = vpack.c.b16 %v4506, %v4503
    %v4579 = vpack.c.b16 %v4510, %v4507
    %v4580 = vpack.c.b16 %v4511, %v4508
    %v4581 = vpack.c.b16 %v4512, %v4509
    %v4582 = vpack.c.b16 %v4516, %v4513
    %v4583 = vpack.c.b16 %v4517, %v4514
    %v4584 = vpack.c.b16 %v4518, %v4515
    %v4585 = vpack.c.b16 %v4522, %v4519
    %v4586 = vpack.c.b16 %v4523, %v4520
    %v4587 = vpack.c.b16 %v4524, %v4521
    %v4588 = vpack.c.b16 %v4528, %v4525
    %v4589 = vpack.c.b16 %v4529, %v4526
    %v4590 = vpack.c.b16 %v4530, %v4527
    %v4591 = vpack.c.b16 %v4534, %v4531
    %v4592 = vpack.c.b16 %v4535, %v4532
    %v4593 = vpack.c.b16 %v4536, %v4533
    %v4594 = vpack.c.b16 %v4540, %v4537
    %v4595 = vpack.c.b16 %v4541, %v4538
    %v4596 = vpack.c.b16 %v4542, %v4539
    %v4597 = vpack.c.b16 %v4546, %v4543
    %v4598 = vpack.c.b16 %v4547, %v4544
    %v4599 = vpack.c.b16 %v4548, %v4545
    %v4600 = vpack.c.b16 %v4552, %v4549
    %v4601 = vpack.c.b16 %v4553, %v4550
    %v4602 = vpack.c.b16 %v4554, %v4551
    %4651 = vmatprep.subr.bf16.mxu0 %v4556
    %4652 = vmatpush1.bf16.msra.mxu0 %v4555
    %4653 = vmatprep.subr.bf16.mxu0 %v4559
    %4654 = vmatpush1.bf16.msra.mxu0 %v4558
    %4655 = vmatprep.subr.bf16.mxu0 %v4562
    %4656 = vmatpush1.bf16.msra.mxu0 %v4561
    %4657 = vmatprep.subr.bf16.mxu0 %v4565
    %4658 = vmatpush1.bf16.msra.mxu0 %v4564
    %4659 = vmatprep.subr.bf16.mxu0 %v4568
    %4660 = vmatpush1.bf16.msra.mxu0 %v4567
    %4661 = vmatprep.subr.bf16.mxu0 %v4571
    %4662 = vmatpush1.bf16.msra.mxu0 %v4570
    %4663 = vmatprep.subr.bf16.mxu0 %v4574
    %4664 = vmatpush1.bf16.msra.mxu0 %v4573
    %4665 = vmatprep.subr.bf16.mxu0 %v4577
    %4666 = vmatpush1.bf16.msra.mxu0 %v4576
    %4667 = vmatprep.subr.bf16.mxu0 %v4580
    %4668 = vmatpush1.bf16.msra.mxu0 %v4579
    %4669 = vmatprep.subr.bf16.mxu0 %v4583
    %4670 = vmatpush1.bf16.msra.mxu0 %v4582
    %4671 = vmatprep.subr.bf16.mxu0 %v4586
    %4672 = vmatpush1.bf16.msra.mxu0 %v4585
    %4673 = vmatprep.subr.bf16.mxu0 %v4589
    %4674 = vmatpush1.bf16.msra.mxu0 %v4588
    %4675 = vmatprep.subr.bf16.mxu0 %v4592
    %4676 = vmatpush1.bf16.msra.mxu0 %v4591
    %4677 = vmatprep.subr.bf16.mxu0 %v4595
    %4678 = vmatpush1.bf16.msra.mxu0 %v4594
    %4679 = vmatprep.subr.bf16.mxu0 %v4598
    %4680 = vmatpush1.bf16.msra.mxu0 %v4597
    %4681 = vmatprep.subr.bf16.mxu0 %v4601
    %4682 = vmatpush1.bf16.msra.mxu0 %v4600
    %4683 = vmatprep.mubr.bf16.mxu0 %v4313
    %4684 = vmatmul.mubr.bf16.gmra.mrb[0].mxu0 %v4312
    %v4685 = vpop.f32.mrb[0].mxu0
    %v4686 = vadd.f32 %v4383, %v4685
    %v4687 = vpop.f32.mrb[0].mxu0
    %v4688 = vadd.f32 %v4387, %v4687
    %v4689 = vpop.f32.mrb[0].mxu0
    %v4690 = vpop.f32.mrb[0].mxu0
    %4691 = vdwg.mxu0
    %4692 = vmatprep.subr.bf16.mxu0 0
    %4693 = vmatpush1.bf16.msra.mxu0 %v4557
    %4694 = vmatprep.subr.bf16.mxu0 0
    %4695 = vmatpush1.bf16.msra.mxu0 %v4560
    %4696 = vmatprep.subr.bf16.mxu0 0
    %4697 = vmatpush1.bf16.msra.mxu0 %v4563
    %4698 = vmatprep.subr.bf16.mxu0 0
    %4699 = vmatpush1.bf16.msra.mxu0 %v4566
    %4700 = vmatprep.subr.bf16.mxu0 0
    %4701 = vmatpush1.bf16.msra.mxu0 %v4569
    %4702 = vmatprep.subr.bf16.mxu0 0
    %4703 = vmatpush1.bf16.msra.mxu0 %v4572
    %4704 = vmatprep.subr.bf16.mxu0 0
    %4705 = vmatpush1.bf16.msra.mxu0 %v4575
    %4706 = vmatprep.subr.bf16.mxu0 0
    %4707 = vmatpush1.bf16.msra.mxu0 %v4578
    %4708 = vmatprep.subr.bf16.mxu0 0
    %4709 = vmatpush1.bf16.msra.mxu0 %v4581
    %4710 = vmatprep.subr.bf16.mxu0 0
    %4711 = vmatpush1.bf16.msra.mxu0 %v4584
    %4712 = vmatprep.subr.bf16.mxu0 0
    %4713 = vmatpush1.bf16.msra.mxu0 %v4587
    %4714 = vmatprep.subr.bf16.mxu0 0
    %4715 = vmatpush1.bf16.msra.mxu0 %v4590
    %4716 = vmatprep.subr.bf16.mxu0 0
    %4717 = vmatpush1.bf16.msra.mxu0 %v4593
    %4718 = vmatprep.subr.bf16.mxu0 0
    %4719 = vmatpush1.bf16.msra.mxu0 %v4596
    %4720 = vmatprep.subr.bf16.mxu0 0
    %4721 = vmatpush1.bf16.msra.mxu0 %v4599
    %4722 = vmatprep.subr.bf16.mxu0 0
    %4723 = vmatpush1.bf16.msra.mxu0 %v4602
    %4724 = vmatprep.mubr.bf16.mxu0 %v4313
    %4725 = vmatmul.mubr.bf16.gmra.mrb[0].mxu0 %v4312
    %v4726 = vpop.f32.mrb[0].mxu0
    %v4727 = vadd.f32 %v4391, %v4726
    %v4728 = vpop.f32.mrb[0].mxu0
    %v4729 = vpop.f32.mrb[0].mxu0
    %v4730 = vpop.f32.mrb[0].mxu0
    %4731 = vdwg.mxu0
    %v4732 = vld [vmem:[#allocation21] sm:$0xff]
    %v4733 = vld [vmem:[#allocation21 + $0x8] sm:$0xf]
    %v4734 = vld [vmem:[#allocation21 + $0xc] sm:$0xff]
    %v4735 = vld [vmem:[#allocation21 + $0x14] sm:$0xf]
    %v4736 = vld [vmem:[#allocation21 + $0x18] sm:$0xff]
    %v4737 = vld [vmem:[#allocation21 + $0x20] sm:$0xf]
    %v4738 = vld [vmem:[#allocation21 + $0x24] sm:$0xff]
    %v4739 = vld [vmem:[#allocation21 + $0x2c] sm:$0xf]
    %v4740 = vld [vmem:[#allocation21 + $0x30] sm:$0xff]
    %v4741 = vld [vmem:[#allocation21 + $0x38] sm:$0xf]
    %v4742 = vld [vmem:[#allocation21 + $0x3c] sm:$0xff]
    %v4743 = vld [vmem:[#allocation21 + $0x44] sm:$0xf]
    %v4744 = vld [vmem:[#allocation21 + $0x48] sm:$0xff]
    %v4745 = vld [vmem:[#allocation21 + $0x50] sm:$0xf]
    %v4746 = vld [vmem:[#allocation21 + $0x54] sm:$0xff]
    %v4747 = vld [vmem:[#allocation21 + $0x5c] sm:$0xf]
    %v4748 = vld [vmem:[#allocation21 + $0x60] sm:$0xff]
    %v4749 = vld [vmem:[#allocation21 + $0x68] sm:$0xf]
    %v4750 = vld [vmem:[#allocation21 + $0x6c] sm:$0xff]
    %v4751 = vld [vmem:[#allocation21 + $0x74] sm:$0xf]
    %v4752 = vld [vmem:[#allocation21 + $0x78] sm:$0xff]
    %v4753 = vld [vmem:[#allocation21 + $0x80] sm:$0xf]
    %v4754 = vld [vmem:[#allocation21 + $0x84] sm:$0xff]
    %v4755 = vld [vmem:[#allocation21 + $0x8c] sm:$0xf]
    %v4756 = vld [vmem:[#allocation21 + $0x90] sm:$0xff]
    %v4757 = vld [vmem:[#allocation21 + $0x98] sm:$0xf]
    %v4758 = vld [vmem:[#allocation21 + $0x9c] sm:$0xff]
    %v4759 = vld [vmem:[#allocation21 + $0xa4] sm:$0xf]
    %v4760 = vld [vmem:[#allocation21 + $0xa8] sm:$0xff]
    %v4761 = vld [vmem:[#allocation21 + $0xb0] sm:$0xf]
    %v4762 = vld [vmem:[#allocation21 + $0xb4] sm:$0xff]
    %v4763 = vld [vmem:[#allocation21 + $0xbc] sm:$0xf]
    %v4764 = vld [vmem:[%s14] sm:$0x7]
    %v4766 = vlaneseq
    %v4767 = vshrl.u32 %v4766, 7
    %v4768 = vsub.s32 0, %v4767
    %v4769 = vrot.slane %v4764, %v4768
    %v4770 = vlaneseq
    %v4771 = vshrl.u32 %v4770, 7
    %v4772 = vsub.s32 1, %v4771
    %v4773 = vrot.slane %v4764, %v4772
    %v4774 = vlaneseq
    %v4775 = vshrl.u32 %v4774, 7
    %v4776 = vsub.s32 2, %v4775
    %v4777 = vrot.slane %v4764, %v4776
    %v4813 = vunpack.c.l.b16 %v4732
    %v4814 = vunpack.c.h.b16 %v4732
    %v4815 = vunpack.c.l.b16 %v4733
    %v4816 = vunpack.c.l.b16 %v4734
    %v4817 = vunpack.c.h.b16 %v4734
    %v4818 = vunpack.c.l.b16 %v4735
    %v4819 = vunpack.c.l.b16 %v4736
    %v4820 = vunpack.c.h.b16 %v4736
    %v4821 = vunpack.c.l.b16 %v4737
    %v4822 = vunpack.c.l.b16 %v4738
    %v4823 = vunpack.c.h.b16 %v4738
    %v4824 = vunpack.c.l.b16 %v4739
    %v4825 = vunpack.c.l.b16 %v4740
    %v4826 = vunpack.c.h.b16 %v4740
    %v4827 = vunpack.c.l.b16 %v4741
    %v4828 = vunpack.c.l.b16 %v4742
    %v4829 = vunpack.c.h.b16 %v4742
    %v4830 = vunpack.c.l.b16 %v4743
    %v4831 = vunpack.c.l.b16 %v4744
    %v4832 = vunpack.c.h.b16 %v4744
    %v4833 = vunpack.c.l.b16 %v4745
    %v4834 = vunpack.c.l.b16 %v4746
    %v4835 = vunpack.c.h.b16 %v4746
    %v4836 = vunpack.c.l.b16 %v4747
    %v4837 = vunpack.c.l.b16 %v4748
    %v4838 = vunpack.c.h.b16 %v4748
    %v4839 = vunpack.c.l.b16 %v4749
    %v4840 = vunpack.c.l.b16 %v4750
    %v4841 = vunpack.c.h.b16 %v4750
    %v4842 = vunpack.c.l.b16 %v4751
    %v4843 = vunpack.c.l.b16 %v4752
    %v4844 = vunpack.c.h.b16 %v4752
    %v4845 = vunpack.c.l.b16 %v4753
    %v4846 = vunpack.c.l.b16 %v4754
    %v4847 = vunpack.c.h.b16 %v4754
    %v4848 = vunpack.c.l.b16 %v4755
    %v4849 = vunpack.c.l.b16 %v4756
    %v4850 = vunpack.c.h.b16 %v4756
    %v4851 = vunpack.c.l.b16 %v4757
    %v4852 = vunpack.c.l.b16 %v4758
    %v4853 = vunpack.c.h.b16 %v4758
    %v4854 = vunpack.c.l.b16 %v4759
    %v4855 = vunpack.c.l.b16 %v4760
    %v4856 = vunpack.c.h.b16 %v4760
    %v4857 = vunpack.c.l.b16 %v4761
    %v4858 = vunpack.c.l.b16 %v4762
    %v4859 = vunpack.c.h.b16 %v4762
    %v4860 = vunpack.c.l.b16 %v4763
    %v4861 = vpack.c.b16 %v4816, %v4813
    %v4862 = vpack.c.b16 %v4817, %v4814
    %v4863 = vpack.c.b16 %v4818, %v4815
    %v4864 = vpack.c.b16 %v4822, %v4819
    %v4865 = vpack.c.b16 %v4823, %v4820
    %v4866 = vpack.c.b16 %v4824, %v4821
    %v4867 = vpack.c.b16 %v4828, %v4825
    %v4868 = vpack.c.b16 %v4829, %v4826
    %v4869 = vpack.c.b16 %v4830, %v4827
    %v4870 = vpack.c.b16 %v4834, %v4831
    %v4871 = vpack.c.b16 %v4835, %v4832
    %v4872 = vpack.c.b16 %v4836, %v4833
    %v4873 = vpack.c.b16 %v4840, %v4837
    %v4874 = vpack.c.b16 %v4841, %v4838
    %v4875 = vpack.c.b16 %v4842, %v4839
    %v4876 = vpack.c.b16 %v4846, %v4843
    %v4877 = vpack.c.b16 %v4847, %v4844
    %v4878 = vpack.c.b16 %v4848, %v4845
    %v4879 = vpack.c.b16 %v4852, %v4849
    %v4880 = vpack.c.b16 %v4853, %v4850
    %v4881 = vpack.c.b16 %v4854, %v4851
    %v4882 = vpack.c.b16 %v4858, %v4855
    %v4883 = vpack.c.b16 %v4859, %v4856
    %v4884 = vpack.c.b16 %v4860, %v4857
    %4909 = vmatprep.subr.bf16.mxu0 %v4862
    %4910 = vmatpush1.bf16.msra.mxu0 %v4861
    %4911 = vmatprep.subr.bf16.mxu0 %v4865
    %4912 = vmatpush1.bf16.msra.mxu0 %v4864
    %4913 = vmatprep.subr.bf16.mxu0 %v4868
    %4914 = vmatpush1.bf16.msra.mxu0 %v4867
    %4915 = vmatprep.subr.bf16.mxu0 %v4871
    %4916 = vmatpush1.bf16.msra.mxu0 %v4870
    %4917 = vmatprep.subr.bf16.mxu0 %v4874
    %4918 = vmatpush1.bf16.msra.mxu0 %v4873
    %4919 = vmatprep.subr.bf16.mxu0 %v4877
    %4920 = vmatpush1.bf16.msra.mxu0 %v4876
    %4921 = vmatprep.subr.bf16.mxu0 %v4880
    %4922 = vmatpush1.bf16.msra.mxu0 %v4879
    %4923 = vmatprep.subr.bf16.mxu0 %v4883
    %4924 = vmatpush1.bf16.msra.mxu0 %v4882
    %4925 = vmatprep.subr.bf16.mxu0 0
    %4926 = vmatpush1.bf16.msra.mxu0 0
    %4927 = vmatprep.subr.bf16.mxu0 0
    %4928 = vmatpush1.bf16.msra.mxu0 0
    %4929 = vmatprep.subr.bf16.mxu0 0
    %4930 = vmatpush1.bf16.msra.mxu0 0
    %4931 = vmatprep.subr.bf16.mxu0 0
    %4932 = vmatpush1.bf16.msra.mxu0 0
    %4933 = vmatprep.subr.bf16.mxu0 0
    %4934 = vmatpush1.bf16.msra.mxu0 0
    %4935 = vmatprep.subr.bf16.mxu0 0
    %4936 = vmatpush1.bf16.msra.mxu0 0
    %4937 = vmatprep.subr.bf16.mxu0 0
    %4938 = vmatpush1.bf16.msra.mxu0 0
    %4939 = vmatprep.subr.bf16.mxu0 0
    %4940 = vmatpush1.bf16.msra.mxu0 0
    %4941 = vmatprep.mubr.bf16.mxu0 0
    %4942 = vmatmul.mubr.bf16.gmra.mrb[0].mxu0 0
    %v4943 = vpop.f32.mrb[0].mxu0
    %v4944 = vadd.f32 %v4769, %v4943
    %v4945 = vpop.f32.mrb[0].mxu0
    %v4946 = vadd.f32 %v4773, %v4945
    %v4947 = vpop.f32.mrb[0].mxu0
    %v4948 = vpop.f32.mrb[0].mxu0
    %4949 = vdwg.mxu0
    %4950 = vmatprep.subr.bf16.mxu0 0
    %4951 = vmatpush1.bf16.msra.mxu0 %v4863
    %4952 = vmatprep.subr.bf16.mxu0 0
    %4953 = vmatpush1.bf16.msra.mxu0 %v4866
    %4954 = vmatprep.subr.bf16.mxu0 0
    %4955 = vmatpush1.bf16.msra.mxu0 %v4869
    %4956 = vmatprep.subr.bf16.mxu0 0
    %4957 = vmatpush1.bf16.msra.mxu0 %v4872
    %4958 = vmatprep.subr.bf16.mxu0 0
    %4959 = vmatpush1.bf16.msra.mxu0 %v4875
    %4960 = vmatprep.subr.bf16.mxu0 0
    %4961 = vmatpush1.bf16.msra.mxu0 %v4878
    %4962 = vmatprep.subr.bf16.mxu0 0
    %4963 = vmatpush1.bf16.msra.mxu0 %v4881
    %4964 = vmatprep.subr.bf16.mxu0 0
    %4965 = vmatpush1.bf16.msra.mxu0 %v4884
    %4966 = vmatprep.subr.bf16.mxu0 0
    %4967 = vmatpush1.bf16.msra.mxu0 0
    %4968 = vmatprep.subr.bf16.mxu0 0
    %4969 = vmatpush1.bf16.msra.mxu0 0
    %4970 = vmatprep.subr.bf16.mxu0 0
    %4971 = vmatpush1.bf16.msra.mxu0 0
    %4972 = vmatprep.subr.bf16.mxu0 0
    %4973 = vmatpush1.bf16.msra.mxu0 0
    %4974 = vmatprep.subr.bf16.mxu0 0
    %4975 = vmatpush1.bf16.msra.mxu0 0
    %4976 = vmatprep.subr.bf16.mxu0 0
    %4977 = vmatpush1.bf16.msra.mxu0 0
    %4978 = vmatprep.subr.bf16.mxu0 0
    %4979 = vmatpush1.bf16.msra.mxu0 0
    %4980 = vmatprep.subr.bf16.mxu0 0
    %4981 = vmatpush1.bf16.msra.mxu0 0
    %4982 = vmatprep.mubr.bf16.mxu0 0
    %4983 = vmatmul.mubr.bf16.gmra.mrb[0].mxu0 0
    %v4984 = vpop.f32.mrb[0].mxu0
    %v4985 = vadd.f32 %v4777, %v4984
    %v4986 = vpop.f32.mrb[0].mxu0
    %v4987 = vpop.f32.mrb[0].mxu0
    %v4988 = vpop.f32.mrb[0].mxu0
    %4989 = vdwg.mxu0
    %v4990 = vadd.f32 %v4686, %v4944
    %v4991 = vxor.u32 %v4990, 2147483648
    %v4992 = vmul.f32 %v4991, 1.442695
    %v4993 = vpow.pop %v4992
    %v4994 = vadd.f32 %v4993, 1.0
    %v4995 = vrcp.pop %v4994
    %v4996 = vmul.f32 1.0, %v4995
    %v4997 = vadd.f32 %v4688, %v4946
    %v4998 = vxor.u32 %v4997, 2147483648
    %v4999 = vmul.f32 %v4998, 1.442695
    %v5000 = vpow.pop %v4999
    %v5001 = vadd.f32 %v5000, 1.0
    %v5002 = vrcp.pop %v5001
    %v5003 = vmul.f32 1.0, %v5002
    %v5004 = vmul.f32 %v4996, %v4985
    %v5005 = vadd.f32 %v4727, %v5004
    %v5006 = vtanh.pop %v5005
    %v5007 = vsub.f32 1.0, %v5003
    %v5008 = vmul.f32 %v5007, %v5006
    %v5009 = vmul.f32 %v5003, 0.0
    %v5010 = vadd.f32 %v5008, %v5009
    %v5011 = vld [vmem:[%s15] sm:$0xff]
    %v5012 = vld [vmem:[%s15 + $0x8] sm:$0xff]
    %v5013 = vld [vmem:[%s15 + $0x10] sm:$0xff]
    %v5014 = vld [vmem:[%s15 + $0x18] sm:$0xff]
    %v5015 = vld [vmem:[%s15 + $0x20] sm:$0xff]
    %v5016 = vld [vmem:[%s15 + $0x28] sm:$0xff]
    %v5017 = vld [vmem:[%s15 + $0x30] sm:$0xff]
    %v5018 = vld [vmem:[%s15 + $0x38] sm:$0xff]
    %v5019 = vld [vmem:[%s15 + $0x40] sm:$0xff]
    %v5020 = vld [vmem:[%s15 + $0x48] sm:$0xff]
    %v5021 = vld [vmem:[%s15 + $0x50] sm:$0xff]
    %v5022 = vld [vmem:[%s15 + $0x58] sm:$0xff]
    %v5023 = vld [vmem:[%s15 + $0x60] sm:$0xff]
    %v5024 = vld [vmem:[%s15 + $0x68] sm:$0xff]
    %v5025 = vld [vmem:[%s15 + $0x70] sm:$0xff]
    %v5026 = vld [vmem:[%s15 + $0x78] sm:$0xff]
    %v5027 = vld [vmem:[%s15 + $0x80] sm:$0xff]
    %v5028 = vld [vmem:[%s15 + $0x88] sm:$0xff]
    %v5029 = vld [vmem:[%s15 + $0x90] sm:$0xff]
    %v5030 = vld [vmem:[%s15 + $0x98] sm:$0xff]
    %v5031 = vld [vmem:[%s15 + $0xa0] sm:$0xff]
    %v5032 = vld [vmem:[%s15 + $0xa8] sm:$0xff]
    %v5033 = vld [vmem:[%s15 + $0xb0] sm:$0xff]
    %v5034 = vld [vmem:[%s15 + $0xb8] sm:$0xff]
    %v5035 = vld [vmem:[%s15 + $0xc0] sm:$0xff]
    %v5036 = vld [vmem:[%s15 + $0xc8] sm:$0xff]
    %v5037 = vld [vmem:[%s15 + $0xd0] sm:$0xff]
    %v5038 = vld [vmem:[%s15 + $0xd8] sm:$0xff]
    %v5039 = vld [vmem:[%s15 + $0xe0] sm:$0xff]
    %v5040 = vld [vmem:[%s15 + $0xe8] sm:$0xff]
    %v5041 = vld [vmem:[%s15 + $0xf0] sm:$0xff]
    %v5042 = vld [vmem:[%s15 + $0xf8] sm:$0xff]
    %v5043 = vld [vmem:[%s16] sm:$0x1]
    %v5045 = vlaneseq
    %v5046 = vshrl.u32 %v5045, 7
    %v5047 = vsub.s32 0, %v5046
    %v5048 = vrot.slane %v5043, %v5047
    %5050 = vmatprep.subr.mxu0 0.0
    %5051 = vmatpush1.msra.mxu0 %v5011
    %5052 = vmatprep.subr.mxu0 0.0
    %5053 = vmatpush1.msra.mxu0 %v5012
    %5054 = vmatprep.subr.mxu0 0.0
    %5055 = vmatpush1.msra.mxu0 %v5013
    %5056 = vmatprep.subr.mxu0 0.0
    %5057 = vmatpush1.msra.mxu0 %v5014
    %5058 = vmatprep.subr.mxu0 0.0
    %5059 = vmatpush1.msra.mxu0 %v5015
    %5060 = vmatprep.subr.mxu0 0.0
    %5061 = vmatpush1.msra.mxu0 %v5016
    %5062 = vmatprep.subr.mxu0 0.0
    %5063 = vmatpush1.msra.mxu0 %v5017
    %5064 = vmatprep.subr.mxu0 0.0
    %5065 = vmatpush1.msra.mxu0 %v5018
    %5066 = vmatprep.subr.mxu0 0.0
    %5067 = vmatpush1.msra.mxu0 %v5019
    %5068 = vmatprep.subr.mxu0 0.0
    %5069 = vmatpush1.msra.mxu0 %v5020
    %5070 = vmatprep.subr.mxu0 0.0
    %5071 = vmatpush1.msra.mxu0 %v5021
    %5072 = vmatprep.subr.mxu0 0.0
    %5073 = vmatpush1.msra.mxu0 %v5022
    %5074 = vmatprep.subr.mxu0 0.0
    %5075 = vmatpush1.msra.mxu0 %v5023
    %5076 = vmatprep.subr.mxu0 0.0
    %5077 = vmatpush1.msra.mxu0 %v5024
    %5078 = vmatprep.subr.mxu0 0.0
    %5079 = vmatpush1.msra.mxu0 %v5025
    %5080 = vmatprep.subr.mxu0 0.0
    %5081 = vmatpush1.msra.mxu0 %v5026
    %5082 = vmatprep.subr.mxu0 0.0
    %5083 = vmatpush1.msra.mxu0 %v5027
    %5084 = vmatprep.subr.mxu0 0.0
    %5085 = vmatpush1.msra.mxu0 %v5028
    %5086 = vmatprep.subr.mxu0 0.0
    %5087 = vmatpush1.msra.mxu0 %v5029
    %5088 = vmatprep.subr.mxu0 0.0
    %5089 = vmatpush1.msra.mxu0 %v5030
    %5090 = vmatprep.subr.mxu0 0.0
    %5091 = vmatpush1.msra.mxu0 %v5031
    %5092 = vmatprep.subr.mxu0 0.0
    %5093 = vmatpush1.msra.mxu0 %v5032
    %5094 = vmatprep.subr.mxu0 0.0
    %5095 = vmatpush1.msra.mxu0 %v5033
    %5096 = vmatprep.subr.mxu0 0.0
    %5097 = vmatpush1.msra.mxu0 %v5034
    %5098 = vmatprep.subr.mxu0 0.0
    %5099 = vmatpush1.msra.mxu0 %v5035
    %5100 = vmatprep.subr.mxu0 0.0
    %5101 = vmatpush1.msra.mxu0 %v5036
    %5102 = vmatprep.subr.mxu0 0.0
    %5103 = vmatpush1.msra.mxu0 %v5037
    %5104 = vmatprep.subr.mxu0 0.0
    %5105 = vmatpush1.msra.mxu0 %v5038
    %5106 = vmatprep.subr.mxu0 0.0
    %5107 = vmatpush1.msra.mxu0 %v5039
    %5108 = vmatprep.subr.mxu0 0.0
    %5109 = vmatpush1.msra.mxu0 %v5040
    %5110 = vmatprep.subr.mxu0 0.0
    %5111 = vmatpush1.msra.mxu0 %v5041
    %5112 = vmatprep.subr.mxu0 0.0
    %5113 = vmatpush1.msra.mxu0 %v5042
    %5114 = vmatprep.mubr.f32.mxu0 %v5010
    %5115 = vmatmul.mubr.f32.gmra.mrb[0].mxu0 %v4309
    %v5116 = vpop.f32.mrb[0].mxu0
    %v5117 = vadd.f32 %v5048, %v5116
    %v5118 = vpop.f32.mrb[0].mxu0
    %5119 = vdwg.mxu0
    %vm5120 = vcmask 97280
    %5121 = vst.msk [vmem:[#allocation22] sm:$0xff] %vm5120, %v5117
    // Predicated region
    $region114: #{tpu_custom_call.1} parent=1 // pred_check
      _
    $region115: #{tpu_custom_call.1} parent=1 // pred_check_branch
      %5123 = sbr.rel (0) target = $region117
    $region116: #{tpu_custom_call.1} parent=1 // pred_region
      %s5125 = ssub.s32 128, 128
      %5126 = vsyncadd [#allocation6], %s5125
      %s5128 = sshll.u32 [#allocation22], 4
      %s5129 = int_to_ptr.vmem [resolvable:$true] %s5128
      %5131 = dma.vmem_to_hbm [thread:$0]  %s5129, 128, %s17, [#allocation6]
    $region117: #{tpu_custom_call.1} parent=1 // pred_fallthru
      _
    // Predicated region
    $region118: #{tpu_custom_call.1} parent=1 // pred_check
      _
    $region119: #{tpu_custom_call.1} parent=1 // pred_check_branch
      %5133 = sbr.rel (0) target = $region121
    $region120: #{tpu_custom_call.1} parent=1 // pred_region
      %5134 = dma.done [#allocation6], 128
    $region121: #{tpu_custom_call.1} parent=1 // pred_fallthru
      _
    %5135 = vsyncpa [#allocation5], 1
    %5136 = vsyncpa [#allocation8], 1
    %5137 = vsyncpa [#allocation11], 1
    %5138 = vsyncpa [#allocation14], 1
    %5139 = vsyncpa [#allocation17], 1
    %5140 = vsyncpa [#allocation20], 1
    %5141 = vsyncpa [#allocation6], 1

</llo_original>
